<compile_context>
chip_gen: v7x
topology: tpu7x:2x2x1
jax: 0.10.0
libtpu: 0.0.40
codegen_flags: <defaults>
</compile_context>

<pallas_src>
import math
from functools import partial

import jax
import jax.numpy as jnp
from jax import lax
from jax.experimental import pallas as pl
from jax.experimental.pallas import tpu as pltpu

FRAC_NORM = 0.06
DS = 10.0          # self_attention.ds


# --------------------------------------------------------------------------
# Single fused kernel: whole out_win window, all layers, all projections.
# --------------------------------------------------------------------------
def _make_fused_kernel(*, b, w, c_in, hid, heads, num_layers, out_win, dt):
    f32 = jnp.float32
    g3 = 3 * hid
    n_in = 8 + 3 * num_layers
    dn_last = (((1,), (1,)), ((), ()))     # contract last dim of both operands
    c_time = c_in - 1                      # the reference increments the last channel by dt

    def kernel(*refs):
        (seq1_ref, invdom_ref, expp_ref, tmat_ref, fmask_ref,
         wproj_ref, bproj_ref, y0_ref) = refs[:8]
        layer_refs = refs[8:n_in]
        out_ref, frac_ref, yout_ref = refs[n_in:n_in + 3]
        x_scr = refs[n_in + 3]             # (b, c_pad, w) persistent layer-0 input

        # ---------- load everything once; stays VMEM/vreg resident ----------
        inv_dom = invdom_ref[...]          # (b, w)      1/domain_factor (host-side)
        expP = expp_ref[...]               # (heads, w, w)  exp(P) hoisted to wrapper
        tmat = tmat_ref[...]               # (w, hid*w)  lane-tiling matrix for the flatten
        fmask = fmask_ref[...]             # (hid, hid*w) block-diag mask for the flatten
        w_proj = wproj_ref[...]            # (hid*w, 2w+1) fused [project_y|project_a|project]
        b_proj = bproj_ref[...]            # (1, 2w+1)
        y_cur = y0_ref[...]                # (1, 1)
        wv = [layer_refs[3 * l][...] for l in range(num_layers)]        # (heads*3h, in_pad)
        b3 = [layer_refs[3 * l + 1][...] for l in range(num_layers)]    # (3h, w)
        wco = [layer_refs[3 * l + 2][...] for l in range(num_layers)]   # (h, h)

        rows = lax.broadcasted_iota(jnp.int32, (w, w), 0)
        cols = lax.broadcasted_iota(jnp.int32, (w, w), 1)
        eye = (rows == cols).astype(f32)
        ones_ww = jnp.ones((w, w), f32)

        # Initial seq_1 -> persistent scratch; only 5 rows are rewritten per step.
        x_scr[...] = seq1_ref[...]
        frac = jnp.concatenate([seq1_ref[bi, 0:1, :] for bi in range(b)], axis=0)  # (b, w)

        # out_win is a small static int: unrolled, all state stays on-chip.
        for step in range(out_win):
            # ---- masked positional attention (exp(P) hoisted; no max-sub) ----
            active = (frac > 1e-6).astype(f32)                      # (b, w)
            attn = []                                               # list of (heads, w, w)
            for bi in range(b):
                a_row = active[bi:bi + 1, :]                        # (1, w) -> active[k]
                # row-constant active[q] matrix via tiny diag@ones matmul (known-good)
                aq = jnp.dot(eye * a_row, ones_ww, preferred_element_type=f32)  # (w, w)
                # active q,k  -> exp(P);  inactive q -> one-hot on the diagonal
                numer = aq[None] * (a_row[None] * expP) + ((1.0 - aq) * eye)[None]
                denom = jnp.sum(numer, axis=-1, keepdims=True)      # (heads, w, 1)
                attn.append(numer * pl.reciprocal(denom, approx=True))

            # ---- stacked ConvLSTM layers (h_cur = c_cur = 0 every step) ----
            h_bs = [None] * b
            for l in range(num_layers):
                for bi in range(b):
                    xb = x_scr[bi] if l == 0 else h_bs[bi]          # (c_pad, w) / (hid, w)
                    vb = jnp.dot(wv[l], xb, preferred_element_type=f32)   # (heads*3h, w)
                    conv = b3[l]                                    # (3h, w), bias pre-bcast
                    for hh in range(heads):                         # 8-aligned sublane slices
                        conv = conv + lax.dot_general(
                            vb[hh * g3:(hh + 1) * g3, :], attn[bi][hh],
                            dn_last, preferred_element_type=f32)    # (3h, w)
                    # c_cur == 0: f-gate and wci/wcf peepholes contribute nothing.
                    c_next = jax.nn.sigmoid(conv[0:hid, :]) * jnp.tanh(conv[2 * hid:3 * hid, :])
                    sc_o = jnp.dot(wco[l], c_next, preferred_element_type=f32)
                    h_bs[bi] = jax.nn.sigmoid(conv[hid:2 * hid, :] + sc_o) * jnp.tanh(c_next)

            # ---- h.view(b, hid*w): MXU tile + mask + sublane-reduce (no relayout) ----
            # (h @ tmat)[j, m] = h[j, m % w];  * fmask keeps block m//w == j;  sum_j -> flat.
            h_flat = jnp.concatenate(
                [jnp.sum(jnp.dot(h_bs[bi], tmat, preferred_element_type=f32) * fmask,
                         axis=0, keepdims=True)
                 for bi in range(b)], axis=0)                       # (b, hid*w)

            # ---- fused project_y / project_a / project (one K=hid*w matmul) ----
            proj = jnp.dot(h_flat, w_proj, preferred_element_type=f32) + b_proj   # (b, 2w+1)
            dy = jnp.maximum(proj[:, 0:1], 0.0)                     # (b, 1)
            darea = proj[:, 1:1 + w]                                # (b, w)
            pproj = proj[:, 1 + w:1 + 2 * w]                        # (b, w)

            y_cur = y_cur + jnp.sum(dy, axis=0, keepdims=True) * (1.0 / b)   # (1, 1)
            contrac = 1.0 - y_cur * (math.pi / 160.0)
            dfrac0 = pproj * inv_dom / contrac
            frac0 = jnp.maximum(dfrac0 + frac, 0.0)
            norm = jnp.maximum(jnp.sum(frac0, axis=-1, keepdims=True), 1e-12)
            frac_new = frac0 / norm                                 # F.normalize(p=1)
            dfrac = (frac_new - frac) * (1.0 / FRAC_NORM)

            # direct sub-slice stores (no in-kernel output concat)
            out_ref[step, :, 0:w] = dfrac
            out_ref[step, :, w:2 * w] = jnp.maximum(darea, 0.0)
            out_ref[step, :, 2 * w:2 * w + 1] = dy
            frac_ref[step] = frac_new

            # carry state: rewrite only the dynamic rows of the input scratch
            frac = frac_new
            if step + 1 < out_win:
                for bi in range(b):
                    x_scr[bi, 0:1, :] = frac[bi:bi + 1, :]
                    x_scr[bi, 1:2, :] = dfrac[bi:bi + 1, :]
                    x_scr[bi, 2:3, :] = darea[bi:bi + 1, :]              # raw (unclamped)
                    x_scr[bi, 3:4, :] = jnp.broadcast_to(dy[bi:bi + 1, :], (1, w))
                    x_scr[bi, c_time:c_time + 1, :] = x_scr[bi, c_time:c_time + 1, :] + dt

        yout_ref[...] = y_cur

    return kernel


# --------------------------------------------------------------------------
# ConvLSTM_start.forward — wrapper packs weights/state once, calls ONE kernel.
# --------------------------------------------------------------------------
@partial(jax.jit, static_argnames=("w", "hidden", "num_layers", "out_win", "dt"))
def convlstm_start_forward(params, input_seq, input_param, domain_factor, y0,
                           *, w, hidden, num_layers, out_win, dt):
    f32 = jnp.float32
    b = input_seq.shape[0]
    hid = hidden
    heads = params["cells"][0]["aw"].shape[2]

    # seq_1 channels: [frac, dfrac, darea, yt, ini, pf, param...]   (b, C, w)
    frac0 = input_seq[:, -1, :w]
    dfr0 = input_seq[:, -1, w:2 * w]
    dar0 = input_seq[:, -1, 2 * w:3 * w]
    yt0 = jnp.broadcast_to(input_seq[:, -1, -1:], (b, w))
    ini = input_param[:, :w]
    pf = input_param[:, w:2 * w]
    n_param = input_param.shape[1] - 2 * w
    prm = jnp.broadcast_to(input_param[:, 2 * w:][:, :, None], (b, n_param, w))
    seq_1 = jnp.concatenate(
        [frac0[:, None], dfr0[:, None], dar0[:, None], yt0[:, None],
         ini[:, None], pf[:, None], prm], axis=1).astype(f32)          # (b, C, w)
    c_in = seq_1.shape[1]
    c_pad = ((c_in + 7) // 8) * 8
    if c_pad > c_in:
        seq_1 = jnp.pad(seq_1, ((0, 0), (0, c_pad - c_in), (0, 0)))

    # Per-layer packed weights: only input columns (h_cur == 0) and i/o/g rows
    # (f-gate output is multiplied by c_cur == 0); columns zero-padded to c_pad.
    layer_args = []
    for l in range(num_layers):
        cell = params["cells"][l]
        in_ch = c_in if l == 0 else hid
        in_pad = c_pad if l == 0 else hid
        aw = jnp.transpose(cell["aw"].astype(f32), (2, 0, 1))          # (heads, 4h, in_tot)
        wv = jnp.concatenate([aw[:, 0:hid, :in_ch],
                              aw[:, 2 * hid:3 * hid, :in_ch],
                              aw[:, 3 * hid:4 * hid, :in_ch]], axis=1) # (heads, 3h, in_ch)
        wv = wv.reshape(heads * 3 * hid, in_ch)
        if in_pad > in_ch:
            wv = jnp.pad(wv, ((0, 0), (0, in_pad - in_ch)))
        layer_args.append(wv)
        ab = cell["ab"].astype(f32)                                    # (4h,)
        b3 = jnp.concatenate([ab[0:hid], ab[2 * hid:3 * hid], ab[3 * hid:4 * hid]])
        layer_args.append(jnp.broadcast_to(b3[:, None], (3 * hid, w)))  # pre-broadcast bias
        layer_args.append(cell["wco"].astype(f32))

    # fused output projections: columns = [project_y | project_a | project]
    w_proj = jnp.concatenate(
        [params["Wy"], params["Wa"], params["Wp"]], axis=0).astype(f32).T   # (hid*w, 2w+1)
    b_proj = jnp.concatenate(
        [params["by"], params["ba"], params["bp"]], axis=1).astype(f32)     # (1, 2w+1)

    expP = jnp.exp(make_position(w, heads)).astype(f32)                # hoisted exp(P)
    inv_dom = (1.0 / domain_factor).astype(f32)                        # hoisted 1/dom
    tmat = jnp.tile(jnp.eye(w, dtype=f32), (1, hid))                   # (w, hid*w)
    fmask = jnp.repeat(jnp.eye(hid, dtype=f32), w, axis=1)             # (hid, hid*w)

    kernel = _make_fused_kernel(b=b, w=w, c_in=c_in, hid=hid, heads=heads,
                                num_layers=num_layers, out_win=out_win, dt=float(dt))

    vmem = pl.BlockSpec(memory_space=pltpu.MemorySpace.VMEM)
    n_inputs = 8 + 3 * num_layers
    out_t, frac_t, y_fin = pl.pallas_call(
        kernel,
        out_shape=(jax.ShapeDtypeStruct((out_win, b, 2 * w + 1), f32),
                   jax.ShapeDtypeStruct((out_win, b, w), f32),
                   jax.ShapeDtypeStruct((1, 1), f32)),
        in_specs=[vmem] * n_inputs,
        out_specs=(vmem, vmem, vmem),
        scratch_shapes=[pltpu.VMEM((b, c_pad, w), f32)],
    )(seq_1, inv_dom, expP, tmat, fmask, w_proj, b_proj,
      y0.astype(f32).reshape(1, 1), *layer_args)

    return jnp.swapaxes(out_t, 0, 1), jnp.swapaxes(frac_t, 0, 1), y_fin


# --------------------------------------------------------------------------
# Deterministic parameter construction (shapes follow the module __init__)
# --------------------------------------------------------------------------
def make_position(w, heads):
    idx = jnp.arange(w, dtype=jnp.float32)
    off = jnp.arange(heads, dtype=jnp.float32) - heads // 2
    i = idx[:, None, None]     # q
    j = idx[None, :, None]     # k
    h = off[None, None, :]
    p = DS * (-jnp.abs(i - j + h) + w * ((h * (i - j + h)) <= 0).astype(jnp.float32))
    return jnp.transpose(p, (2, 0, 1))      # (heads, w_q, w_k)


def init_params(key, *, w, heads, hidden, input_dim, num_layers):
    keys = iter(jax.random.split(key, 5 * num_layers + 6))

    def u(shape, bound):
        return jax.random.uniform(next(keys), shape, jnp.float32, -bound, bound)

    cells = []
    for layer in range(num_layers):
        in_ch = input_dim if layer == 0 else hidden
        in_tot = in_ch + hidden
        stdv = 1.0 / math.sqrt(hidden)
        cells.append(dict(
            aw=u((4 * hidden, in_tot, heads), stdv),   # self_attention.weight (torch layout)
            ab=u((4 * hidden,), stdv),                 # self_attention.bias
            wci=u((hidden, hidden), stdv),             # kept for parity; unused (c_cur==0)
            wcf=u((hidden, hidden), stdv),             # kept for parity; unused (c_cur==0)
            wco=u((hidden, hidden), stdv)))
    hw = hidden * w
    lin = 1.0 / math.sqrt(hw)
    return dict(
        cells=cells,
        Wp=u((w, hw), lin), bp=u((1, w), lin),     # project
        Wy=u((1, hw), lin), by=u((1, 1), lin),     # project_y
        Wa=u((w, hw), lin), ba=u((1, w), lin),     # project_a
    )


# --------------------------------------------------------------------------
if __name__ == "__main__":
    # small config consistent with the module (self_attention hardcodes w=8)
    w = 8
    heads = 3            # kernel_size = (3,)
    hidden = 16
    num_param = 2
    input_dim = 6 + num_param
    num_layers = 1       # num_layer = (1, 1) -> lstm uses num_layer[1] layers
    out_win = 4
    b, t = 2, 5
    dt = 0.01

    key = jax.random.PRNGKey(0)
    k_par, k_seq, k_prm = jax.random.split(key, 3)

    params = init_params(k_par, w=w, heads=heads, hidden=hidden,
                         input_dim=input_dim, num_layers=num_layers)

    input_seq = jax.random.uniform(k_seq, (b, t, 3 * w + 1), jnp.float32, 0.0, 1.0)
    input_param = jax.random.uniform(k_prm, (b, 2 * w + num_param), jnp.float32, 0.0, 1.0)
    domain_factor = jnp.full((b, w), 2.0, jnp.float32)
    y_ = jnp.zeros((1, 1), jnp.float32)

    output_seq, frac_seq, y_new = convlstm_start_forward(
        params, input_seq, input_param, domain_factor, y_,
        w=w, hidden=hidden, num_layers=num_layers, out_win=out_win, dt=dt)
    jax.block_until_ready((output_seq, frac_seq, y_new))

    assert output_seq.shape == (b, out_win, 2 * w + 1)
    assert frac_seq.shape == (b, out_win, w)
    assert y_new.shape == (1, 1)
    assert bool(jnp.isfinite(output_seq).all()) and bool(jnp.isfinite(frac_seq).all())
    assert bool(jnp.isfinite(y_new).all())
    print("KERNEL_OK")
</pallas_src>

<mosaic_0001>
module attributes {stable_mosaic.version = 11 : i64} {
  func.func @kernel(%arg0: memref<2x8x8xf32, #tpu.memory_space<vmem>>, %arg1: memref<2x8xf32, #tpu.memory_space<vmem>>, %arg2: memref<3x8x8xf32, #tpu.memory_space<vmem>>, %arg3: memref<8x128xf32, #tpu.memory_space<vmem>>, %arg4: memref<16x128xf32, #tpu.memory_space<vmem>>, %arg5: memref<128x17xf32, #tpu.memory_space<vmem>>, %arg6: memref<1x17xf32, #tpu.memory_space<vmem>>, %arg7: memref<1x1xf32, #tpu.memory_space<vmem>>, %arg8: memref<144x8xf32, #tpu.memory_space<vmem>>, %arg9: memref<48x8xf32, #tpu.memory_space<vmem>>, %arg10: memref<16x16xf32, #tpu.memory_space<vmem>>, %arg11: memref<4x2x17xf32, #tpu.memory_space<vmem>>, %arg12: memref<4x2x8xf32, #tpu.memory_space<vmem>>, %arg13: memref<1x1xf32, #tpu.memory_space<vmem>>, %arg14: memref<2x8x8xf32, #tpu.memory_space<vmem>>) attributes {dimension_semantics = [], scalar_prefetch = 0 : i64, scratch_operands = 1 : i64, tpu.core_type = #tpu.core_type<tc>} {
    %c0 = arith.constant 0 : index
    %c0_0 = arith.constant 0 : index
    %0 = vector.load %arg1[%c0, %c0_0] : memref<2x8xf32, #tpu.memory_space<vmem>>, vector<2x8xf32>
    %c0_1 = arith.constant 0 : index
    %c0_2 = arith.constant 0 : index
    %c0_3 = arith.constant 0 : index
    %1 = vector.load %arg2[%c0_1, %c0_2, %c0_3] : memref<3x8x8xf32, #tpu.memory_space<vmem>>, vector<3x8x8xf32>
    %c0_4 = arith.constant 0 : index
    %c0_5 = arith.constant 0 : index
    %2 = vector.load %arg3[%c0_4, %c0_5] : memref<8x128xf32, #tpu.memory_space<vmem>>, vector<8x128xf32>
    %c0_6 = arith.constant 0 : index
    %c0_7 = arith.constant 0 : index
    %3 = vector.load %arg4[%c0_6, %c0_7] : memref<16x128xf32, #tpu.memory_space<vmem>>, vector<16x128xf32>
    %c0_8 = arith.constant 0 : index
    %c0_9 = arith.constant 0 : index
    %4 = vector.load %arg5[%c0_8, %c0_9] : memref<128x17xf32, #tpu.memory_space<vmem>>, vector<128x17xf32>
    %c0_10 = arith.constant 0 : index
    %c0_11 = arith.constant 0 : index
    %5 = vector.load %arg6[%c0_10, %c0_11] : memref<1x17xf32, #tpu.memory_space<vmem>>, vector<1x17xf32>
    %c0_12 = arith.constant 0 : index
    %c0_13 = arith.constant 0 : index
    %6 = vector.load %arg7[%c0_12, %c0_13] : memref<1x1xf32, #tpu.memory_space<vmem>>, vector<1x1xf32>
    %c0_14 = arith.constant 0 : index
    %c0_15 = arith.constant 0 : index
    %7 = vector.load %arg8[%c0_14, %c0_15] : memref<144x8xf32, #tpu.memory_space<vmem>>, vector<144x8xf32>
    %c0_16 = arith.constant 0 : index
    %c0_17 = arith.constant 0 : index
    %8 = vector.load %arg9[%c0_16, %c0_17] : memref<48x8xf32, #tpu.memory_space<vmem>>, vector<48x8xf32>
    %c0_18 = arith.constant 0 : index
    %c0_19 = arith.constant 0 : index
    %9 = vector.load %arg10[%c0_18, %c0_19] : memref<16x16xf32, #tpu.memory_space<vmem>>, vector<16x16xf32>
    %10 = tpu.iota {dimensions = array<i32: 0>} : vector<8x8xi32>
    %11 = tpu.iota {dimensions = array<i32: 1>} : vector<8x8xi32>
    %12 = arith.cmpi eq, %10, %11 : vector<8x8xi32>
    %13 = arith.extui %12 : vector<8x8xi1> to vector<8x8xi32>
    %14 = arith.sitofp %13 : vector<8x8xi32> to vector<8x8xf32>
    %cst = arith.constant 1.000000e+00 : f32
    %15 = vector.broadcast %cst : f32 to vector<8x8xf32>
    %c0_20 = arith.constant 0 : index
    %c0_21 = arith.constant 0 : index
    %c0_22 = arith.constant 0 : index
    %16 = vector.load %arg0[%c0_20, %c0_21, %c0_22] : memref<2x8x8xf32, #tpu.memory_space<vmem>>, vector<2x8x8xf32>
    %c0_23 = arith.constant 0 : index
    %c0_24 = arith.constant 0 : index
    %c0_25 = arith.constant 0 : index
    %17 = vector.load %arg14[%c0_23, %c0_24, %c0_25] : memref<2x8x8xf32, #tpu.memory_space<vmem>>, vector<2x8x8xf32>
    tpu.vector_store %arg14[%c0_23, %c0_24, %c0_25], %16 {strides = array<i32>} : memref<2x8x8xf32, #tpu.memory_space<vmem>>, vector<2x8x8xf32>,
    %c0_26 = arith.constant 0 : index
    %c0_27 = arith.constant 0 : index
    %c0_28 = arith.constant 0 : index
    %18 = vector.load %arg0[%c0_26, %c0_27, %c0_28] : memref<2x8x8xf32, #tpu.memory_space<vmem>>, vector<1x1x8xf32>
    %19 = vector.shape_cast %18 : vector<1x1x8xf32> to vector<1x8xf32>
    %c1 = arith.constant 1 : index
    %c0_29 = arith.constant 0 : index
    %c0_30 = arith.constant 0 : index
    %20 = vector.load %arg0[%c1, %c0_29, %c0_30] : memref<2x8x8xf32, #tpu.memory_space<vmem>>, vector<1x1x8xf32>
    %21 = vector.shape_cast %20 : vector<1x1x8xf32> to vector<1x8xf32>
    %22 = tpu.concatenate %19, %21 in 0 : vector<1x8xf32>, vector<1x8xf32> -> vector<2x8xf32>
    %cst_31 = arith.constant 9.99999997E-7 : f32
    %23 = vector.broadcast %cst_31 : f32 to vector<2x8xf32>
    %24 = arith.cmpf ogt, %22, %23 : vector<2x8xf32>
    %25 = arith.extui %24 : vector<2x8xi1> to vector<2x8xi32>
    %26 = arith.sitofp %25 : vector<2x8xi32> to vector<2x8xf32>
    %27 = vector.extract_strided_slice %26 {offsets = [0, 0], sizes = [1, 8], strides = [1, 1]} : vector<2x8xf32> to vector<1x8xf32>
    %28 = vector.broadcast %27 : vector<1x8xf32> to vector<8x8xf32>
    %29 = arith.mulf %14, %28 : vector<8x8xf32>
    %cst_32 = arith.constant dense<0.000000e+00> : vector<8x8xf32>
    %30 = tpu.matmul %29, %15, %cst_32 {dimension_numbers = #tpu.dot_dimension_numbers<[1], [0], [0], [1], [0, 0, 1, 1], [], []>} : vector<8x8xf32>, vector<8x8xf32>, vector<8x8xf32> -> vector<8x8xf32>
    %31 = vector.shape_cast %30 : vector<8x8xf32> to vector<1x8x8xf32>
    %32 = vector.shape_cast %27 : vector<1x8xf32> to vector<1x1x8xf32>
    %33 = vector.broadcast %32 : vector<1x1x8xf32> to vector<3x8x8xf32>
    %34 = arith.mulf %33, %1 : vector<3x8x8xf32>
    %35 = vector.broadcast %31 : vector<1x8x8xf32> to vector<3x8x8xf32>
    %36 = arith.mulf %35, %34 : vector<3x8x8xf32>
    %cst_33 = arith.constant 1.000000e+00 : f32
    %37 = vector.broadcast %cst_33 : f32 to vector<8x8xf32>
    %38 = arith.subf %37, %30 : vector<8x8xf32>
    %39 = arith.mulf %38, %14 : vector<8x8xf32>
    %40 = vector.shape_cast %39 : vector<8x8xf32> to vector<1x8x8xf32>
    %41 = vector.broadcast %40 : vector<1x8x8xf32> to vector<3x8x8xf32>
    %42 = arith.addf %36, %41 : vector<3x8x8xf32>
    %cst_34 = arith.constant dense<0.000000e+00> : vector<3x8xf32>
    %43 = vector.multi_reduction <add>, %42, %cst_34 [2] : vector<3x8x8xf32> to vector<3x8xf32>
    %44 = vector.shape_cast %43 : vector<3x8xf32> to vector<3x8x1xf32>
    %45 = tpu.reciprocal %44 {approx = true} : vector<3x8x1xf32> -> vector<3x8x1xf32>
    %46 = vector.broadcast %45 : vector<3x8x1xf32> to vector<3x8x8xf32>
    %47 = arith.mulf %42, %46 : vector<3x8x8xf32>
    %48 = vector.extract_strided_slice %26 {offsets = [1, 0], sizes = [1, 8], strides = [1, 1]} : vector<2x8xf32> to vector<1x8xf32>
    %49 = vector.broadcast %48 : vector<1x8xf32> to vector<8x8xf32>
    %50 = arith.mulf %14, %49 : vector<8x8xf32>
    %cst_35 = arith.constant dense<0.000000e+00> : vector<8x8xf32>
    %51 = tpu.matmul %50, %15, %cst_35 {dimension_numbers = #tpu.dot_dimension_numbers<[1], [0], [0], [1], [0, 0, 1, 1], [], []>} : vector<8x8xf32>, vector<8x8xf32>, vector<8x8xf32> -> vector<8x8xf32>
    %52 = vector.shape_cast %51 : vector<8x8xf32> to vector<1x8x8xf32>
    %53 = vector.shape_cast %48 : vector<1x8xf32> to vector<1x1x8xf32>
    %54 = vector.broadcast %53 : vector<1x1x8xf32> to vector<3x8x8xf32>
    %55 = arith.mulf %54, %1 : vector<3x8x8xf32>
    %56 = vector.broadcast %52 : vector<1x8x8xf32> to vector<3x8x8xf32>
    %57 = arith.mulf %56, %55 : vector<3x8x8xf32>
    %cst_36 = arith.constant 1.000000e+00 : f32
    %58 = vector.broadcast %cst_36 : f32 to vector<8x8xf32>
    %59 = arith.subf %58, %51 : vector<8x8xf32>
    %60 = arith.mulf %59, %14 : vector<8x8xf32>
    %61 = vector.shape_cast %60 : vector<8x8xf32> to vector<1x8x8xf32>
    %62 = vector.broadcast %61 : vector<1x8x8xf32> to vector<3x8x8xf32>
    %63 = arith.addf %57, %62 : vector<3x8x8xf32>
    %cst_37 = arith.constant dense<0.000000e+00> : vector<3x8xf32>
    %64 = vector.multi_reduction <add>, %63, %cst_37 [2] : vector<3x8x8xf32> to vector<3x8xf32>
    %65 = vector.shape_cast %64 : vector<3x8xf32> to vector<3x8x1xf32>
    %66 = tpu.reciprocal %65 {approx = true} : vector<3x8x1xf32> -> vector<3x8x1xf32>
    %67 = vector.broadcast %66 : vector<3x8x1xf32> to vector<3x8x8xf32>
    %68 = arith.mulf %63, %67 : vector<3x8x8xf32>
    %c0_38 = arith.constant 0 : index
    %c0_39 = arith.constant 0 : index
    %c0_40 = arith.constant 0 : index
    %69 = vector.load %arg14[%c0_38, %c0_39, %c0_40] : memref<2x8x8xf32, #tpu.memory_space<vmem>>, vector<1x8x8xf32>
    %70 = vector.shape_cast %69 : vector<1x8x8xf32> to vector<8x8xf32>
    %cst_41 = arith.constant dense<0.000000e+00> : vector<144x8xf32>
    %71 = tpu.matmul %7, %70, %cst_41 {dimension_numbers = #tpu.dot_dimension_numbers<[1], [0], [0], [1], [0, 0, 1, 1], [], []>} : vector<144x8xf32>, vector<8x8xf32>, vector<144x8xf32> -> vector<144x8xf32>
    %72 = vector.extract_strided_slice %71 {offsets = [0, 0], sizes = [48, 8], strides = [1, 1]} : vector<144x8xf32> to vector<48x8xf32>
    %73 = vector.extract_strided_slice %47 {offsets = [0, 0, 0], sizes = [1, 8, 8], strides = [1, 1, 1]} : vector<3x8x8xf32> to vector<1x8x8xf32>
    %74 = vector.shape_cast %73 : vector<1x8x8xf32> to vector<8x8xf32>
    %cst_42 = arith.constant dense<0.000000e+00> : vector<48x8xf32>
    %75 = tpu.matmul %72, %74, %cst_42 {dimension_numbers = #tpu.dot_dimension_numbers<[1], [1], [0], [0], [0, 0, 1, 0], [], []>} : vector<48x8xf32>, vector<8x8xf32>, vector<48x8xf32> -> vector<48x8xf32>
    %76 = arith.addf %8, %75 : vector<48x8xf32>
    %77 = vector.extract_strided_slice %71 {offsets = [48, 0], sizes = [48, 8], strides = [1, 1]} : vector<144x8xf32> to vector<48x8xf32>
    %78 = vector.extract_strided_slice %47 {offsets = [1, 0, 0], sizes = [1, 8, 8], strides = [1, 1, 1]} : vector<3x8x8xf32> to vector<1x8x8xf32>
    %79 = vector.shape_cast %78 : vector<1x8x8xf32> to vector<8x8xf32>
    %cst_43 = arith.constant dense<0.000000e+00> : vector<48x8xf32>
    %80 = tpu.matmul %77, %79, %cst_43 {dimension_numbers = #tpu.dot_dimension_numbers<[1], [1], [0], [0], [0, 0, 1, 0], [], []>} : vector<48x8xf32>, vector<8x8xf32>, vector<48x8xf32> -> vector<48x8xf32>
    %81 = arith.addf %76, %80 : vector<48x8xf32>
    %82 = vector.extract_strided_slice %71 {offsets = [96, 0], sizes = [48, 8], strides = [1, 1]} : vector<144x8xf32> to vector<48x8xf32>
    %83 = vector.extract_strided_slice %47 {offsets = [2, 0, 0], sizes = [1, 8, 8], strides = [1, 1, 1]} : vector<3x8x8xf32> to vector<1x8x8xf32>
    %84 = vector.shape_cast %83 : vector<1x8x8xf32> to vector<8x8xf32>
    %cst_44 = arith.constant dense<0.000000e+00> : vector<48x8xf32>
    %85 = tpu.matmul %82, %84, %cst_44 {dimension_numbers = #tpu.dot_dimension_numbers<[1], [1], [0], [0], [0, 0, 1, 0], [], []>} : vector<48x8xf32>, vector<8x8xf32>, vector<48x8xf32> -> vector<48x8xf32>
    %86 = arith.addf %81, %85 : vector<48x8xf32>
    %87 = vector.extract_strided_slice %86 {offsets = [0, 0], sizes = [16, 8], strides = [1, 1]} : vector<48x8xf32> to vector<16x8xf32>
    %88 = arith.negf %87 : vector<16x8xf32>
    %89 = math.exp %88 : vector<16x8xf32>
    %cst_45 = arith.constant 1.000000e+00 : f32
    %90 = vector.broadcast %cst_45 : f32 to vector<16x8xf32>
    %91 = arith.addf %90, %89 : vector<16x8xf32>
    %92 = arith.divf %90, %91 : vector<16x8xf32>
    %93 = vector.extract_strided_slice %86 {offsets = [32, 0], sizes = [16, 8], strides = [1, 1]} : vector<48x8xf32> to vector<16x8xf32>
    %94 = math.tanh %93 : vector<16x8xf32>
    %95 = arith.mulf %92, %94 : vector<16x8xf32>
    %cst_46 = arith.constant dense<0.000000e+00> : vector<16x8xf32>
    %96 = tpu.matmul %9, %95, %cst_46 {dimension_numbers = #tpu.dot_dimension_numbers<[1], [0], [0], [1], [0, 0, 1, 1], [], []>} : vector<16x16xf32>, vector<16x8xf32>, vector<16x8xf32> -> vector<16x8xf32>
    %97 = vector.extract_strided_slice %86 {offsets = [16, 0], sizes = [16, 8], strides = [1, 1]} : vector<48x8xf32> to vector<16x8xf32>
    %98 = arith.addf %97, %96 : vector<16x8xf32>
    %99 = arith.negf %98 : vector<16x8xf32>
    %100 = math.exp %99 : vector<16x8xf32>
    %cst_47 = arith.constant 1.000000e+00 : f32
    %101 = vector.broadcast %cst_47 : f32 to vector<16x8xf32>
    %102 = arith.addf %101, %100 : vector<16x8xf32>
    %103 = arith.divf %101, %102 : vector<16x8xf32>
    %104 = math.tanh %95 : vector<16x8xf32>
    %105 = arith.mulf %103, %104 : vector<16x8xf32>
    %c1_48 = arith.constant 1 : index
    %c0_49 = arith.constant 0 : index
    %c0_50 = arith.constant 0 : index
    %106 = vector.load %arg14[%c1_48, %c0_49, %c0_50] : memref<2x8x8xf32, #tpu.memory_space<vmem>>, vector<1x8x8xf32>
    %107 = vector.shape_cast %106 : vector<1x8x8xf32> to vector<8x8xf32>
    %cst_51 = arith.constant dense<0.000000e+00> : vector<144x8xf32>
    %108 = tpu.matmul %7, %107, %cst_51 {dimension_numbers = #tpu.dot_dimension_numbers<[1], [0], [0], [1], [0, 0, 1, 1], [], []>} : vector<144x8xf32>, vector<8x8xf32>, vector<144x8xf32> -> vector<144x8xf32>
    %109 = vector.extract_strided_slice %108 {offsets = [0, 0], sizes = [48, 8], strides = [1, 1]} : vector<144x8xf32> to vector<48x8xf32>
    %110 = vector.extract_strided_slice %68 {offsets = [0, 0, 0], sizes = [1, 8, 8], strides = [1, 1, 1]} : vector<3x8x8xf32> to vector<1x8x8xf32>
    %111 = vector.shape_cast %110 : vector<1x8x8xf32> to vector<8x8xf32>
    %cst_52 = arith.constant dense<0.000000e+00> : vector<48x8xf32>
    %112 = tpu.matmul %109, %111, %cst_52 {dimension_numbers = #tpu.dot_dimension_numbers<[1], [1], [0], [0], [0, 0, 1, 0], [], []>} : vector<48x8xf32>, vector<8x8xf32>, vector<48x8xf32> -> vector<48x8xf32>
    %113 = arith.addf %8, %112 : vector<48x8xf32>
    %114 = vector.extract_strided_slice %108 {offsets = [48, 0], sizes = [48, 8], strides = [1, 1]} : vector<144x8xf32> to vector<48x8xf32>
    %115 = vector.extract_strided_slice %68 {offsets = [1, 0, 0], sizes = [1, 8, 8], strides = [1, 1, 1]} : vector<3x8x8xf32> to vector<1x8x8xf32>
    %116 = vector.shape_cast %115 : vector<1x8x8xf32> to vector<8x8xf32>
    %cst_53 = arith.constant dense<0.000000e+00> : vector<48x8xf32>
    %117 = tpu.matmul %114, %116, %cst_53 {dimension_numbers = #tpu.dot_dimension_numbers<[1], [1], [0], [0], [0, 0, 1, 0], [], []>} : vector<48x8xf32>, vector<8x8xf32>, vector<48x8xf32> -> vector<48x8xf32>
    %118 = arith.addf %113, %117 : vector<48x8xf32>
    %119 = vector.extract_strided_slice %108 {offsets = [96, 0], sizes = [48, 8], strides = [1, 1]} : vector<144x8xf32> to vector<48x8xf32>
    %120 = vector.extract_strided_slice %68 {offsets = [2, 0, 0], sizes = [1, 8, 8], strides = [1, 1, 1]} : vector<3x8x8xf32> to vector<1x8x8xf32>
    %121 = vector.shape_cast %120 : vector<1x8x8xf32> to vector<8x8xf32>
    %cst_54 = arith.constant dense<0.000000e+00> : vector<48x8xf32>
    %122 = tpu.matmul %119, %121, %cst_54 {dimension_numbers = #tpu.dot_dimension_numbers<[1], [1], [0], [0], [0, 0, 1, 0], [], []>} : vector<48x8xf32>, vector<8x8xf32>, vector<48x8xf32> -> vector<48x8xf32>
    %123 = arith.addf %118, %122 : vector<48x8xf32>
    %124 = vector.extract_strided_slice %123 {offsets = [0, 0], sizes = [16, 8], strides = [1, 1]} : vector<48x8xf32> to vector<16x8xf32>
    %125 = arith.negf %124 : vector<16x8xf32>
    %126 = math.exp %125 : vector<16x8xf32>
    %cst_55 = arith.constant 1.000000e+00 : f32
    %127 = vector.broadcast %cst_55 : f32 to vector<16x8xf32>
    %128 = arith.addf %127, %126 : vector<16x8xf32>
    %129 = arith.divf %127, %128 : vector<16x8xf32>
    %130 = vector.extract_strided_slice %123 {offsets = [32, 0], sizes = [16, 8], strides = [1, 1]} : vector<48x8xf32> to vector<16x8xf32>
    %131 = math.tanh %130 : vector<16x8xf32>
    %132 = arith.mulf %129, %131 : vector<16x8xf32>
    %cst_56 = arith.constant dense<0.000000e+00> : vector<16x8xf32>
    %133 = tpu.matmul %9, %132, %cst_56 {dimension_numbers = #tpu.dot_dimension_numbers<[1], [0], [0], [1], [0, 0, 1, 1], [], []>} : vector<16x16xf32>, vector<16x8xf32>, vector<16x8xf32> -> vector<16x8xf32>
    %134 = vector.extract_strided_slice %123 {offsets = [16, 0], sizes = [16, 8], strides = [1, 1]} : vector<48x8xf32> to vector<16x8xf32>
    %135 = arith.addf %134, %133 : vector<16x8xf32>
    %136 = arith.negf %135 : vector<16x8xf32>
    %137 = math.exp %136 : vector<16x8xf32>
    %cst_57 = arith.constant 1.000000e+00 : f32
    %138 = vector.broadcast %cst_57 : f32 to vector<16x8xf32>
    %139 = arith.addf %138, %137 : vector<16x8xf32>
    %140 = arith.divf %138, %139 : vector<16x8xf32>
    %141 = math.tanh %132 : vector<16x8xf32>
    %142 = arith.mulf %140, %141 : vector<16x8xf32>
    %cst_58 = arith.constant dense<0.000000e+00> : vector<16x128xf32>
    %143 = tpu.matmul %105, %2, %cst_58 {dimension_numbers = #tpu.dot_dimension_numbers<[1], [0], [0], [1], [0, 0, 1, 1], [], []>} : vector<16x8xf32>, vector<8x128xf32>, vector<16x128xf32> -> vector<16x128xf32>
    %144 = arith.mulf %143, %3 : vector<16x128xf32>
    %cst_59 = arith.constant dense<0.000000e+00> : vector<128xf32>
    %145 = vector.multi_reduction <add>, %144, %cst_59 [0] : vector<16x128xf32> to vector<128xf32>
    %146 = vector.shape_cast %145 : vector<128xf32> to vector<1x128xf32>
    %cst_60 = arith.constant dense<0.000000e+00> : vector<16x128xf32>
    %147 = tpu.matmul %142, %2, %cst_60 {dimension_numbers = #tpu.dot_dimension_numbers<[1], [0], [0], [1], [0, 0, 1, 1], [], []>} : vector<16x8xf32>, vector<8x128xf32>, vector<16x128xf32> -> vector<16x128xf32>
    %148 = arith.mulf %147, %3 : vector<16x128xf32>
    %cst_61 = arith.constant dense<0.000000e+00> : vector<128xf32>
    %149 = vector.multi_reduction <add>, %148, %cst_61 [0] : vector<16x128xf32> to vector<128xf32>
    %150 = vector.shape_cast %149 : vector<128xf32> to vector<1x128xf32>
    %151 = tpu.concatenate %146, %150 in 0 : vector<1x128xf32>, vector<1x128xf32> -> vector<2x128xf32>
    %cst_62 = arith.constant dense<0.000000e+00> : vector<2x17xf32>
    %152 = tpu.matmul %151, %4, %cst_62 {dimension_numbers = #tpu.dot_dimension_numbers<[1], [0], [0], [1], [0, 0, 1, 1], [], []>} : vector<2x128xf32>, vector<128x17xf32>, vector<2x17xf32> -> vector<2x17xf32>
    %153 = vector.broadcast %5 : vector<1x17xf32> to vector<2x17xf32>
    %154 = arith.addf %152, %153 : vector<2x17xf32>
    %155 = vector.extract_strided_slice %154 {offsets = [0, 0], sizes = [2, 1], strides = [1, 1]} : vector<2x17xf32> to vector<2x1xf32>
    %cst_63 = arith.constant 0.000000e+00 : f32
    %156 = vector.broadcast %cst_63 : f32 to vector<2x1xf32>
    %157 = arith.maximumf %155, %156 : vector<2x1xf32>
    %158 = vector.extract_strided_slice %154 {offsets = [0, 1], sizes = [2, 8], strides = [1, 1]} : vector<2x17xf32> to vector<2x8xf32>
    %159 = vector.extract_strided_slice %154 {offsets = [0, 9], sizes = [2, 8], strides = [1, 1]} : vector<2x17xf32> to vector<2x8xf32>
    %cst_64 = arith.constant dense<0.000000e+00> : vector<1xf32>
    %160 = vector.multi_reduction <add>, %157, %cst_64 [0] : vector<2x1xf32> to vector<1xf32>
    %161 = vector.shape_cast %160 : vector<1xf32> to vector<1x1xf32>
    %cst_65 = arith.constant 5.000000e-01 : f32
    %162 = vector.broadcast %cst_65 : f32 to vector<1x1xf32>
    %163 = arith.mulf %161, %162 : vector<1x1xf32>
    %164 = arith.addf %6, %163 : vector<1x1xf32>
    %cst_66 = arith.constant 0.0196349546 : f32
    %165 = vector.broadcast %cst_66 : f32 to vector<1x1xf32>
    %166 = arith.mulf %164, %165 : vector<1x1xf32>
    %cst_67 = arith.constant 1.000000e+00 : f32
    %167 = vector.broadcast %cst_67 : f32 to vector<1x1xf32>
    %168 = arith.subf %167, %166 : vector<1x1xf32>
    %169 = arith.mulf %159, %0 : vector<2x8xf32>
    %170 = vector.broadcast %168 : vector<1x1xf32> to vector<2x8xf32>
    %171 = arith.divf %169, %170 : vector<2x8xf32>
    %172 = arith.addf %171, %22 : vector<2x8xf32>
    %cst_68 = arith.constant 0.000000e+00 : f32
    %173 = vector.broadcast %cst_68 : f32 to vector<2x8xf32>
    %174 = arith.maximumf %172, %173 : vector<2x8xf32>
    %cst_69 = arith.constant dense<0.000000e+00> : vector<2xf32>
    %175 = vector.multi_reduction <add>, %174, %cst_69 [1] : vector<2x8xf32> to vector<2xf32>
    %176 = vector.shape_cast %175 : vector<2xf32> to vector<2x1xf32>
    %cst_70 = arith.constant 9.99999996E-13 : f32
    %177 = vector.broadcast %cst_70 : f32 to vector<2x1xf32>
    %178 = arith.maximumf %176, %177 : vector<2x1xf32>
    %179 = vector.broadcast %178 : vector<2x1xf32> to vector<2x8xf32>
    %180 = arith.divf %174, %179 : vector<2x8xf32>
    %181 = arith.subf %180, %22 : vector<2x8xf32>
    %cst_71 = arith.constant 16.666666 : f32
    %182 = vector.broadcast %cst_71 : f32 to vector<2x8xf32>
    %183 = arith.mulf %181, %182 : vector<2x8xf32>
    %c0_72 = arith.constant 0 : index
    %c0_73 = arith.constant 0 : index
    %c0_74 = arith.constant 0 : index
    %184 = vector.load %arg11[%c0_72, %c0_73, %c0_74] : memref<4x2x17xf32, #tpu.memory_space<vmem>>, vector<1x2x8xf32>
    %185 = vector.shape_cast %184 : vector<1x2x8xf32> to vector<2x8xf32>
    %186 = vector.shape_cast %183 : vector<2x8xf32> to vector<1x2x8xf32>
    tpu.vector_store %arg11[%c0_72, %c0_73, %c0_74], %186 {strides = array<i32>} : memref<4x2x17xf32, #tpu.memory_space<vmem>>, vector<1x2x8xf32>,
    %cst_75 = arith.constant 0.000000e+00 : f32
    %187 = vector.broadcast %cst_75 : f32 to vector<2x8xf32>
    %188 = arith.maximumf %158, %187 : vector<2x8xf32>
    %c0_76 = arith.constant 0 : index
    %c0_77 = arith.constant 0 : index
    %c8 = arith.constant 8 : index
    %189 = vector.load %arg11[%c0_76, %c0_77, %c8] : memref<4x2x17xf32, #tpu.memory_space<vmem>>, vector<1x2x8xf32>
    %190 = vector.shape_cast %189 : vector<1x2x8xf32> to vector<2x8xf32>
    %191 = vector.shape_cast %188 : vector<2x8xf32> to vector<1x2x8xf32>
    tpu.vector_store %arg11[%c0_76, %c0_77, %c8], %191 {strides = array<i32>} : memref<4x2x17xf32, #tpu.memory_space<vmem>>, vector<1x2x8xf32>,
    %c0_78 = arith.constant 0 : index
    %c0_79 = arith.constant 0 : index
    %c16 = arith.constant 16 : index
    %192 = vector.load %arg11[%c0_78, %c0_79, %c16] : memref<4x2x17xf32, #tpu.memory_space<vmem>>, vector<1x2x1xf32>
    %193 = vector.shape_cast %192 : vector<1x2x1xf32> to vector<2x1xf32>
    %194 = vector.shape_cast %157 : vector<2x1xf32> to vector<1x2x1xf32>
    tpu.vector_store %arg11[%c0_78, %c0_79, %c16], %194 {strides = array<i32>} : memref<4x2x17xf32, #tpu.memory_space<vmem>>, vector<1x2x1xf32>,
    %c0_80 = arith.constant 0 : index
    %c0_81 = arith.constant 0 : index
    %c0_82 = arith.constant 0 : index
    %195 = vector.load %arg12[%c0_80, %c0_81, %c0_82] : memref<4x2x8xf32, #tpu.memory_space<vmem>>, vector<1x2x8xf32>
    %196 = vector.shape_cast %195 : vector<1x2x8xf32> to vector<2x8xf32>
    %197 = vector.shape_cast %180 : vector<2x8xf32> to vector<1x2x8xf32>
    tpu.vector_store %arg12[%c0_80, %c0_81, %c0_82], %197 {strides = array<i32>} : memref<4x2x8xf32, #tpu.memory_space<vmem>>, vector<1x2x8xf32>,
    %198 = vector.extract_strided_slice %180 {offsets = [0, 0], sizes = [1, 8], strides = [1, 1]} : vector<2x8xf32> to vector<1x8xf32>
    %c0_83 = arith.constant 0 : index
    %c0_84 = arith.constant 0 : index
    %c0_85 = arith.constant 0 : index
    %199 = vector.load %arg14[%c0_83, %c0_84, %c0_85] : memref<2x8x8xf32, #tpu.memory_space<vmem>>, vector<1x1x8xf32>
    %200 = vector.shape_cast %199 : vector<1x1x8xf32> to vector<1x8xf32>
    %201 = vector.shape_cast %198 : vector<1x8xf32> to vector<1x1x8xf32>
    tpu.vector_store %arg14[%c0_83, %c0_84, %c0_85], %201 {strides = array<i32>} : memref<2x8x8xf32, #tpu.memory_space<vmem>>, vector<1x1x8xf32>,
    %202 = vector.extract_strided_slice %183 {offsets = [0, 0], sizes = [1, 8], strides = [1, 1]} : vector<2x8xf32> to vector<1x8xf32>
    %c0_86 = arith.constant 0 : index
    %c1_87 = arith.constant 1 : index
    %c0_88 = arith.constant 0 : index
    %203 = vector.load %arg14[%c0_86, %c1_87, %c0_88] : memref<2x8x8xf32, #tpu.memory_space<vmem>>, vector<1x1x8xf32>
    %204 = vector.shape_cast %203 : vector<1x1x8xf32> to vector<1x8xf32>
    %205 = vector.shape_cast %202 : vector<1x8xf32> to vector<1x1x8xf32>
    tpu.vector_store %arg14[%c0_86, %c1_87, %c0_88], %205 {strides = array<i32>} : memref<2x8x8xf32, #tpu.memory_space<vmem>>, vector<1x1x8xf32>,
    %206 = vector.extract_strided_slice %158 {offsets = [0, 0], sizes = [1, 8], strides = [1, 1]} : vector<2x8xf32> to vector<1x8xf32>
    %c0_89 = arith.constant 0 : index
    %c2 = arith.constant 2 : index
    %c0_90 = arith.constant 0 : index
    %207 = vector.load %arg14[%c0_89, %c2, %c0_90] : memref<2x8x8xf32, #tpu.memory_space<vmem>>, vector<1x1x8xf32>
    %208 = vector.shape_cast %207 : vector<1x1x8xf32> to vector<1x8xf32>
    %209 = vector.shape_cast %206 : vector<1x8xf32> to vector<1x1x8xf32>
    tpu.vector_store %arg14[%c0_89, %c2, %c0_90], %209 {strides = array<i32>} : memref<2x8x8xf32, #tpu.memory_space<vmem>>, vector<1x1x8xf32>,
    %210 = vector.extract_strided_slice %157 {offsets = [0, 0], sizes = [1, 1], strides = [1, 1]} : vector<2x1xf32> to vector<1x1xf32>
    %211 = vector.shape_cast %210 : vector<1x1xf32> to vector<1x1xf32>
    %212 = vector.broadcast %211 : vector<1x1xf32> to vector<1x8xf32>
    %c0_91 = arith.constant 0 : index
    %c3 = arith.constant 3 : index
    %c0_92 = arith.constant 0 : index
    %213 = vector.load %arg14[%c0_91, %c3, %c0_92] : memref<2x8x8xf32, #tpu.memory_space<vmem>>, vector<1x1x8xf32>
    %214 = vector.shape_cast %213 : vector<1x1x8xf32> to vector<1x8xf32>
    %215 = vector.shape_cast %212 : vector<1x8xf32> to vector<1x1x8xf32>
    tpu.vector_store %arg14[%c0_91, %c3, %c0_92], %215 {strides = array<i32>} : memref<2x8x8xf32, #tpu.memory_space<vmem>>, vector<1x1x8xf32>,
    %c0_93 = arith.constant 0 : index
    %c7 = arith.constant 7 : index
    %c0_94 = arith.constant 0 : index
    %216 = vector.load %arg14[%c0_93, %c7, %c0_94] : memref<2x8x8xf32, #tpu.memory_space<vmem>>, vector<1x1x8xf32>
    %217 = vector.shape_cast %216 : vector<1x1x8xf32> to vector<1x8xf32>
    %cst_95 = arith.constant 0.00999999977 : f32
    %218 = vector.broadcast %cst_95 : f32 to vector<1x8xf32>
    %219 = arith.addf %217, %218 : vector<1x8xf32>
    %c0_96 = arith.constant 0 : index
    %c7_97 = arith.constant 7 : index
    %c0_98 = arith.constant 0 : index
    %220 = vector.load %arg14[%c0_96, %c7_97, %c0_98] : memref<2x8x8xf32, #tpu.memory_space<vmem>>, vector<1x1x8xf32>
    %221 = vector.shape_cast %220 : vector<1x1x8xf32> to vector<1x8xf32>
    %222 = vector.shape_cast %219 : vector<1x8xf32> to vector<1x1x8xf32>
    tpu.vector_store %arg14[%c0_96, %c7_97, %c0_98], %222 {strides = array<i32>} : memref<2x8x8xf32, #tpu.memory_space<vmem>>, vector<1x1x8xf32>,
    %223 = vector.extract_strided_slice %180 {offsets = [1, 0], sizes = [1, 8], strides = [1, 1]} : vector<2x8xf32> to vector<1x8xf32>
    %c1_99 = arith.constant 1 : index
    %c0_100 = arith.constant 0 : index
    %c0_101 = arith.constant 0 : index
    %224 = vector.load %arg14[%c1_99, %c0_100, %c0_101] : memref<2x8x8xf32, #tpu.memory_space<vmem>>, vector<1x1x8xf32>
    %225 = vector.shape_cast %224 : vector<1x1x8xf32> to vector<1x8xf32>
    %226 = vector.shape_cast %223 : vector<1x8xf32> to vector<1x1x8xf32>
    tpu.vector_store %arg14[%c1_99, %c0_100, %c0_101], %226 {strides = array<i32>} : memref<2x8x8xf32, #tpu.memory_space<vmem>>, vector<1x1x8xf32>,
    %227 = vector.extract_strided_slice %183 {offsets = [1, 0], sizes = [1, 8], strides = [1, 1]} : vector<2x8xf32> to vector<1x8xf32>
    %c1_102 = arith.constant 1 : index
    %c1_103 = arith.constant 1 : index
    %c0_104 = arith.constant 0 : index
    %228 = vector.load %arg14[%c1_102, %c1_103, %c0_104] : memref<2x8x8xf32, #tpu.memory_space<vmem>>, vector<1x1x8xf32>
    %229 = vector.shape_cast %228 : vector<1x1x8xf32> to vector<1x8xf32>
    %230 = vector.shape_cast %227 : vector<1x8xf32> to vector<1x1x8xf32>
    tpu.vector_store %arg14[%c1_102, %c1_103, %c0_104], %230 {strides = array<i32>} : memref<2x8x8xf32, #tpu.memory_space<vmem>>, vector<1x1x8xf32>,
    %231 = vector.extract_strided_slice %158 {offsets = [1, 0], sizes = [1, 8], strides = [1, 1]} : vector<2x8xf32> to vector<1x8xf32>
    %c1_105 = arith.constant 1 : index
    %c2_106 = arith.constant 2 : index
    %c0_107 = arith.constant 0 : index
    %232 = vector.load %arg14[%c1_105, %c2_106, %c0_107] : memref<2x8x8xf32, #tpu.memory_space<vmem>>, vector<1x1x8xf32>
    %233 = vector.shape_cast %232 : vector<1x1x8xf32> to vector<1x8xf32>
    %234 = vector.shape_cast %231 : vector<1x8xf32> to vector<1x1x8xf32>
    tpu.vector_store %arg14[%c1_105, %c2_106, %c0_107], %234 {strides = array<i32>} : memref<2x8x8xf32, #tpu.memory_space<vmem>>, vector<1x1x8xf32>,
    %235 = vector.extract_strided_slice %157 {offsets = [1, 0], sizes = [1, 1], strides = [1, 1]} : vector<2x1xf32> to vector<1x1xf32>
    %236 = vector.shape_cast %235 : vector<1x1xf32> to vector<1x1xf32>
    %237 = vector.broadcast %236 : vector<1x1xf32> to vector<1x8xf32>
    %c1_108 = arith.constant 1 : index
    %c3_109 = arith.constant 3 : index
    %c0_110 = arith.constant 0 : index
    %238 = vector.load %arg14[%c1_108, %c3_109, %c0_110] : memref<2x8x8xf32, #tpu.memory_space<vmem>>, vector<1x1x8xf32>
    %239 = vector.shape_cast %238 : vector<1x1x8xf32> to vector<1x8xf32>
    %240 = vector.shape_cast %237 : vector<1x8xf32> to vector<1x1x8xf32>
    tpu.vector_store %arg14[%c1_108, %c3_109, %c0_110], %240 {strides = array<i32>} : memref<2x8x8xf32, #tpu.memory_space<vmem>>, vector<1x1x8xf32>,
    %c1_111 = arith.constant 1 : index
    %c7_112 = arith.constant 7 : index
    %c0_113 = arith.constant 0 : index
    %241 = vector.load %arg14[%c1_111, %c7_112, %c0_113] : memref<2x8x8xf32, #tpu.memory_space<vmem>>, vector<1x1x8xf32>
    %242 = vector.shape_cast %241 : vector<1x1x8xf32> to vector<1x8xf32>
    %cst_114 = arith.constant 0.00999999977 : f32
    %243 = vector.broadcast %cst_114 : f32 to vector<1x8xf32>
    %244 = arith.addf %242, %243 : vector<1x8xf32>
    %c1_115 = arith.constant 1 : index
    %c7_116 = arith.constant 7 : index
    %c0_117 = arith.constant 0 : index
    %245 = vector.load %arg14[%c1_115, %c7_116, %c0_117] : memref<2x8x8xf32, #tpu.memory_space<vmem>>, vector<1x1x8xf32>
    %246 = vector.shape_cast %245 : vector<1x1x8xf32> to vector<1x8xf32>
    %247 = vector.shape_cast %244 : vector<1x8xf32> to vector<1x1x8xf32>
    tpu.vector_store %arg14[%c1_115, %c7_116, %c0_117], %247 {strides = array<i32>} : memref<2x8x8xf32, #tpu.memory_space<vmem>>, vector<1x1x8xf32>,
    %cst_118 = arith.constant 9.99999997E-7 : f32
    %248 = vector.broadcast %cst_118 : f32 to vector<2x8xf32>
    %249 = arith.cmpf ogt, %180, %248 : vector<2x8xf32>
    %250 = arith.extui %249 : vector<2x8xi1> to vector<2x8xi32>
    %251 = arith.sitofp %250 : vector<2x8xi32> to vector<2x8xf32>
    %252 = vector.extract_strided_slice %251 {offsets = [0, 0], sizes = [1, 8], strides = [1, 1]} : vector<2x8xf32> to vector<1x8xf32>
    %253 = vector.broadcast %252 : vector<1x8xf32> to vector<8x8xf32>
    %254 = arith.mulf %14, %253 : vector<8x8xf32>
    %cst_119 = arith.constant dense<0.000000e+00> : vector<8x8xf32>
    %255 = tpu.matmul %254, %15, %cst_119 {dimension_numbers = #tpu.dot_dimension_numbers<[1], [0], [0], [1], [0, 0, 1, 1], [], []>} : vector<8x8xf32>, vector<8x8xf32>, vector<8x8xf32> -> vector<8x8xf32>
    %256 = vector.shape_cast %255 : vector<8x8xf32> to vector<1x8x8xf32>
    %257 = vector.shape_cast %252 : vector<1x8xf32> to vector<1x1x8xf32>
    %258 = vector.broadcast %257 : vector<1x1x8xf32> to vector<3x8x8xf32>
    %259 = arith.mulf %258, %1 : vector<3x8x8xf32>
    %260 = vector.broadcast %256 : vector<1x8x8xf32> to vector<3x8x8xf32>
    %261 = arith.mulf %260, %259 : vector<3x8x8xf32>
    %cst_120 = arith.constant 1.000000e+00 : f32
    %262 = vector.broadcast %cst_120 : f32 to vector<8x8xf32>
    %263 = arith.subf %262, %255 : vector<8x8xf32>
    %264 = arith.mulf %263, %14 : vector<8x8xf32>
    %265 = vector.shape_cast %264 : vector<8x8xf32> to vector<1x8x8xf32>
    %266 = vector.broadcast %265 : vector<1x8x8xf32> to vector<3x8x8xf32>
    %267 = arith.addf %261, %266 : vector<3x8x8xf32>
    %cst_121 = arith.constant dense<0.000000e+00> : vector<3x8xf32>
    %268 = vector.multi_reduction <add>, %267, %cst_121 [2] : vector<3x8x8xf32> to vector<3x8xf32>
    %269 = vector.shape_cast %268 : vector<3x8xf32> to vector<3x8x1xf32>
    %270 = tpu.reciprocal %269 {approx = true} : vector<3x8x1xf32> -> vector<3x8x1xf32>
    %271 = vector.broadcast %270 : vector<3x8x1xf32> to vector<3x8x8xf32>
    %272 = arith.mulf %267, %271 : vector<3x8x8xf32>
    %273 = vector.extract_strided_slice %251 {offsets = [1, 0], sizes = [1, 8], strides = [1, 1]} : vector<2x8xf32> to vector<1x8xf32>
    %274 = vector.broadcast %273 : vector<1x8xf32> to vector<8x8xf32>
    %275 = arith.mulf %14, %274 : vector<8x8xf32>
    %cst_122 = arith.constant dense<0.000000e+00> : vector<8x8xf32>
    %276 = tpu.matmul %275, %15, %cst_122 {dimension_numbers = #tpu.dot_dimension_numbers<[1], [0], [0], [1], [0, 0, 1, 1], [], []>} : vector<8x8xf32>, vector<8x8xf32>, vector<8x8xf32> -> vector<8x8xf32>
    %277 = vector.shape_cast %276 : vector<8x8xf32> to vector<1x8x8xf32>
    %278 = vector.shape_cast %273 : vector<1x8xf32> to vector<1x1x8xf32>
    %279 = vector.broadcast %278 : vector<1x1x8xf32> to vector<3x8x8xf32>
    %280 = arith.mulf %279, %1 : vector<3x8x8xf32>
    %281 = vector.broadcast %277 : vector<1x8x8xf32> to vector<3x8x8xf32>
    %282 = arith.mulf %281, %280 : vector<3x8x8xf32>
    %cst_123 = arith.constant 1.000000e+00 : f32
    %283 = vector.broadcast %cst_123 : f32 to vector<8x8xf32>
    %284 = arith.subf %283, %276 : vector<8x8xf32>
    %285 = arith.mulf %284, %14 : vector<8x8xf32>
    %286 = vector.shape_cast %285 : vector<8x8xf32> to vector<1x8x8xf32>
    %287 = vector.broadcast %286 : vector<1x8x8xf32> to vector<3x8x8xf32>
    %288 = arith.addf %282, %287 : vector<3x8x8xf32>
    %cst_124 = arith.constant dense<0.000000e+00> : vector<3x8xf32>
    %289 = vector.multi_reduction <add>, %288, %cst_124 [2] : vector<3x8x8xf32> to vector<3x8xf32>
    %290 = vector.shape_cast %289 : vector<3x8xf32> to vector<3x8x1xf32>
    %291 = tpu.reciprocal %290 {approx = true} : vector<3x8x1xf32> -> vector<3x8x1xf32>
    %292 = vector.broadcast %291 : vector<3x8x1xf32> to vector<3x8x8xf32>
    %293 = arith.mulf %288, %292 : vector<3x8x8xf32>
    %c0_125 = arith.constant 0 : index
    %c0_126 = arith.constant 0 : index
    %c0_127 = arith.constant 0 : index
    %294 = vector.load %arg14[%c0_125, %c0_126, %c0_127] : memref<2x8x8xf32, #tpu.memory_space<vmem>>, vector<1x8x8xf32>
    %295 = vector.shape_cast %294 : vector<1x8x8xf32> to vector<8x8xf32>
    %cst_128 = arith.constant dense<0.000000e+00> : vector<144x8xf32>
    %296 = tpu.matmul %7, %295, %cst_128 {dimension_numbers = #tpu.dot_dimension_numbers<[1], [0], [0], [1], [0, 0, 1, 1], [], []>} : vector<144x8xf32>, vector<8x8xf32>, vector<144x8xf32> -> vector<144x8xf32>
    %297 = vector.extract_strided_slice %296 {offsets = [0, 0], sizes = [48, 8], strides = [1, 1]} : vector<144x8xf32> to vector<48x8xf32>
    %298 = vector.extract_strided_slice %272 {offsets = [0, 0, 0], sizes = [1, 8, 8], strides = [1, 1, 1]} : vector<3x8x8xf32> to vector<1x8x8xf32>
    %299 = vector.shape_cast %298 : vector<1x8x8xf32> to vector<8x8xf32>
    %cst_129 = arith.constant dense<0.000000e+00> : vector<48x8xf32>
    %300 = tpu.matmul %297, %299, %cst_129 {dimension_numbers = #tpu.dot_dimension_numbers<[1], [1], [0], [0], [0, 0, 1, 0], [], []>} : vector<48x8xf32>, vector<8x8xf32>, vector<48x8xf32> -> vector<48x8xf32>
    %301 = arith.addf %8, %300 : vector<48x8xf32>
    %302 = vector.extract_strided_slice %296 {offsets = [48, 0], sizes = [48, 8], strides = [1, 1]} : vector<144x8xf32> to vector<48x8xf32>
    %303 = vector.extract_strided_slice %272 {offsets = [1, 0, 0], sizes = [1, 8, 8], strides = [1, 1, 1]} : vector<3x8x8xf32> to vector<1x8x8xf32>
    %304 = vector.shape_cast %303 : vector<1x8x8xf32> to vector<8x8xf32>
    %cst_130 = arith.constant dense<0.000000e+00> : vector<48x8xf32>
    %305 = tpu.matmul %302, %304, %cst_130 {dimension_numbers = #tpu.dot_dimension_numbers<[1], [1], [0], [0], [0, 0, 1, 0], [], []>} : vector<48x8xf32>, vector<8x8xf32>, vector<48x8xf32> -> vector<48x8xf32>
    %306 = arith.addf %301, %305 : vector<48x8xf32>
    %307 = vector.extract_strided_slice %296 {offsets = [96, 0], sizes = [48, 8], strides = [1, 1]} : vector<144x8xf32> to vector<48x8xf32>
    %308 = vector.extract_strided_slice %272 {offsets = [2, 0, 0], sizes = [1, 8, 8], strides = [1, 1, 1]} : vector<3x8x8xf32> to vector<1x8x8xf32>
    %309 = vector.shape_cast %308 : vector<1x8x8xf32> to vector<8x8xf32>
    %cst_131 = arith.constant dense<0.000000e+00> : vector<48x8xf32>
    %310 = tpu.matmul %307, %309, %cst_131 {dimension_numbers = #tpu.dot_dimension_numbers<[1], [1], [0], [0], [0, 0, 1, 0], [], []>} : vector<48x8xf32>, vector<8x8xf32>, vector<48x8xf32> -> vector<48x8xf32>
    %311 = arith.addf %306, %310 : vector<48x8xf32>
    %312 = vector.extract_strided_slice %311 {offsets = [0, 0], sizes = [16, 8], strides = [1, 1]} : vector<48x8xf32> to vector<16x8xf32>
    %313 = arith.negf %312 : vector<16x8xf32>
    %314 = math.exp %313 : vector<16x8xf32>
    %cst_132 = arith.constant 1.000000e+00 : f32
    %315 = vector.broadcast %cst_132 : f32 to vector<16x8xf32>
    %316 = arith.addf %315, %314 : vector<16x8xf32>
    %317 = arith.divf %315, %316 : vector<16x8xf32>
    %318 = vector.extract_strided_slice %311 {offsets = [32, 0], sizes = [16, 8], strides = [1, 1]} : vector<48x8xf32> to vector<16x8xf32>
    %319 = math.tanh %318 : vector<16x8xf32>
    %320 = arith.mulf %317, %319 : vector<16x8xf32>
    %cst_133 = arith.constant dense<0.000000e+00> : vector<16x8xf32>
    %321 = tpu.matmul %9, %320, %cst_133 {dimension_numbers = #tpu.dot_dimension_numbers<[1], [0], [0], [1], [0, 0, 1, 1], [], []>} : vector<16x16xf32>, vector<16x8xf32>, vector<16x8xf32> -> vector<16x8xf32>
    %322 = vector.extract_strided_slice %311 {offsets = [16, 0], sizes = [16, 8], strides = [1, 1]} : vector<48x8xf32> to vector<16x8xf32>
    %323 = arith.addf %322, %321 : vector<16x8xf32>
    %324 = arith.negf %323 : vector<16x8xf32>
    %325 = math.exp %324 : vector<16x8xf32>
    %cst_134 = arith.constant 1.000000e+00 : f32
    %326 = vector.broadcast %cst_134 : f32 to vector<16x8xf32>
    %327 = arith.addf %326, %325 : vector<16x8xf32>
    %328 = arith.divf %326, %327 : vector<16x8xf32>
    %329 = math.tanh %320 : vector<16x8xf32>
    %330 = arith.mulf %328, %329 : vector<16x8xf32>
    %c1_135 = arith.constant 1 : index
    %c0_136 = arith.constant 0 : index
    %c0_137 = arith.constant 0 : index
    %331 = vector.load %arg14[%c1_135, %c0_136, %c0_137] : memref<2x8x8xf32, #tpu.memory_space<vmem>>, vector<1x8x8xf32>
    %332 = vector.shape_cast %331 : vector<1x8x8xf32> to vector<8x8xf32>
    %cst_138 = arith.constant dense<0.000000e+00> : vector<144x8xf32>
    %333 = tpu.matmul %7, %332, %cst_138 {dimension_numbers = #tpu.dot_dimension_numbers<[1], [0], [0], [1], [0, 0, 1, 1], [], []>} : vector<144x8xf32>, vector<8x8xf32>, vector<144x8xf32> -> vector<144x8xf32>
    %334 = vector.extract_strided_slice %333 {offsets = [0, 0], sizes = [48, 8], strides = [1, 1]} : vector<144x8xf32> to vector<48x8xf32>
    %335 = vector.extract_strided_slice %293 {offsets = [0, 0, 0], sizes = [1, 8, 8], strides = [1, 1, 1]} : vector<3x8x8xf32> to vector<1x8x8xf32>
    %336 = vector.shape_cast %335 : vector<1x8x8xf32> to vector<8x8xf32>
    %cst_139 = arith.constant dense<0.000000e+00> : vector<48x8xf32>
    %337 = tpu.matmul %334, %336, %cst_139 {dimension_numbers = #tpu.dot_dimension_numbers<[1], [1], [0], [0], [0, 0, 1, 0], [], []>} : vector<48x8xf32>, vector<8x8xf32>, vector<48x8xf32> -> vector<48x8xf32>
    %338 = arith.addf %8, %337 : vector<48x8xf32>
    %339 = vector.extract_strided_slice %333 {offsets = [48, 0], sizes = [48, 8], strides = [1, 1]} : vector<144x8xf32> to vector<48x8xf32>
    %340 = vector.extract_strided_slice %293 {offsets = [1, 0, 0], sizes = [1, 8, 8], strides = [1, 1, 1]} : vector<3x8x8xf32> to vector<1x8x8xf32>
    %341 = vector.shape_cast %340 : vector<1x8x8xf32> to vector<8x8xf32>
    %cst_140 = arith.constant dense<0.000000e+00> : vector<48x8xf32>
    %342 = tpu.matmul %339, %341, %cst_140 {dimension_numbers = #tpu.dot_dimension_numbers<[1], [1], [0], [0], [0, 0, 1, 0], [], []>} : vector<48x8xf32>, vector<8x8xf32>, vector<48x8xf32> -> vector<48x8xf32>
    %343 = arith.addf %338, %342 : vector<48x8xf32>
    %344 = vector.extract_strided_slice %333 {offsets = [96, 0], sizes = [48, 8], strides = [1, 1]} : vector<144x8xf32> to vector<48x8xf32>
    %345 = vector.extract_strided_slice %293 {offsets = [2, 0, 0], sizes = [1, 8, 8], strides = [1, 1, 1]} : vector<3x8x8xf32> to vector<1x8x8xf32>
    %346 = vector.shape_cast %345 : vector<1x8x8xf32> to vector<8x8xf32>
    %cst_141 = arith.constant dense<0.000000e+00> : vector<48x8xf32>
    %347 = tpu.matmul %344, %346, %cst_141 {dimension_numbers = #tpu.dot_dimension_numbers<[1], [1], [0], [0], [0, 0, 1, 0], [], []>} : vector<48x8xf32>, vector<8x8xf32>, vector<48x8xf32> -> vector<48x8xf32>
    %348 = arith.addf %343, %347 : vector<48x8xf32>
    %349 = vector.extract_strided_slice %348 {offsets = [0, 0], sizes = [16, 8], strides = [1, 1]} : vector<48x8xf32> to vector<16x8xf32>
    %350 = arith.negf %349 : vector<16x8xf32>
    %351 = math.exp %350 : vector<16x8xf32>
    %cst_142 = arith.constant 1.000000e+00 : f32
    %352 = vector.broadcast %cst_142 : f32 to vector<16x8xf32>
    %353 = arith.addf %352, %351 : vector<16x8xf32>
    %354 = arith.divf %352, %353 : vector<16x8xf32>
    %355 = vector.extract_strided_slice %348 {offsets = [32, 0], sizes = [16, 8], strides = [1, 1]} : vector<48x8xf32> to vector<16x8xf32>
    %356 = math.tanh %355 : vector<16x8xf32>
    %357 = arith.mulf %354, %356 : vector<16x8xf32>
    %cst_143 = arith.constant dense<0.000000e+00> : vector<16x8xf32>
    %358 = tpu.matmul %9, %357, %cst_143 {dimension_numbers = #tpu.dot_dimension_numbers<[1], [0], [0], [1], [0, 0, 1, 1], [], []>} : vector<16x16xf32>, vector<16x8xf32>, vector<16x8xf32> -> vector<16x8xf32>
    %359 = vector.extract_strided_slice %348 {offsets = [16, 0], sizes = [16, 8], strides = [1, 1]} : vector<48x8xf32> to vector<16x8xf32>
    %360 = arith.addf %359, %358 : vector<16x8xf32>
    %361 = arith.negf %360 : vector<16x8xf32>
    %362 = math.exp %361 : vector<16x8xf32>
    %cst_144 = arith.constant 1.000000e+00 : f32
    %363 = vector.broadcast %cst_144 : f32 to vector<16x8xf32>
    %364 = arith.addf %363, %362 : vector<16x8xf32>
    %365 = arith.divf %363, %364 : vector<16x8xf32>
    %366 = math.tanh %357 : vector<16x8xf32>
    %367 = arith.mulf %365, %366 : vector<16x8xf32>
    %cst_145 = arith.constant dense<0.000000e+00> : vector<16x128xf32>
    %368 = tpu.matmul %330, %2, %cst_145 {dimension_numbers = #tpu.dot_dimension_numbers<[1], [0], [0], [1], [0, 0, 1, 1], [], []>} : vector<16x8xf32>, vector<8x128xf32>, vector<16x128xf32> -> vector<16x128xf32>
    %369 = arith.mulf %368, %3 : vector<16x128xf32>
    %cst_146 = arith.constant dense<0.000000e+00> : vector<128xf32>
    %370 = vector.multi_reduction <add>, %369, %cst_146 [0] : vector<16x128xf32> to vector<128xf32>
    %371 = vector.shape_cast %370 : vector<128xf32> to vector<1x128xf32>
    %cst_147 = arith.constant dense<0.000000e+00> : vector<16x128xf32>
    %372 = tpu.matmul %367, %2, %cst_147 {dimension_numbers = #tpu.dot_dimension_numbers<[1], [0], [0], [1], [0, 0, 1, 1], [], []>} : vector<16x8xf32>, vector<8x128xf32>, vector<16x128xf32> -> vector<16x128xf32>
    %373 = arith.mulf %372, %3 : vector<16x128xf32>
    %cst_148 = arith.constant dense<0.000000e+00> : vector<128xf32>
    %374 = vector.multi_reduction <add>, %373, %cst_148 [0] : vector<16x128xf32> to vector<128xf32>
    %375 = vector.shape_cast %374 : vector<128xf32> to vector<1x128xf32>
    %376 = tpu.concatenate %371, %375 in 0 : vector<1x128xf32>, vector<1x128xf32> -> vector<2x128xf32>
    %cst_149 = arith.constant dense<0.000000e+00> : vector<2x17xf32>
    %377 = tpu.matmul %376, %4, %cst_149 {dimension_numbers = #tpu.dot_dimension_numbers<[1], [0], [0], [1], [0, 0, 1, 1], [], []>} : vector<2x128xf32>, vector<128x17xf32>, vector<2x17xf32> -> vector<2x17xf32>
    %378 = vector.broadcast %5 : vector<1x17xf32> to vector<2x17xf32>
    %379 = arith.addf %377, %378 : vector<2x17xf32>
    %380 = vector.extract_strided_slice %379 {offsets = [0, 0], sizes = [2, 1], strides = [1, 1]} : vector<2x17xf32> to vector<2x1xf32>
    %cst_150 = arith.constant 0.000000e+00 : f32
    %381 = vector.broadcast %cst_150 : f32 to vector<2x1xf32>
    %382 = arith.maximumf %380, %381 : vector<2x1xf32>
    %383 = vector.extract_strided_slice %379 {offsets = [0, 1], sizes = [2, 8], strides = [1, 1]} : vector<2x17xf32> to vector<2x8xf32>
    %384 = vector.extract_strided_slice %379 {offsets = [0, 9], sizes = [2, 8], strides = [1, 1]} : vector<2x17xf32> to vector<2x8xf32>
    %cst_151 = arith.constant dense<0.000000e+00> : vector<1xf32>
    %385 = vector.multi_reduction <add>, %382, %cst_151 [0] : vector<2x1xf32> to vector<1xf32>
    %386 = vector.shape_cast %385 : vector<1xf32> to vector<1x1xf32>
    %cst_152 = arith.constant 5.000000e-01 : f32
    %387 = vector.broadcast %cst_152 : f32 to vector<1x1xf32>
    %388 = arith.mulf %386, %387 : vector<1x1xf32>
    %389 = arith.addf %164, %388 : vector<1x1xf32>
    %cst_153 = arith.constant 0.0196349546 : f32
    %390 = vector.broadcast %cst_153 : f32 to vector<1x1xf32>
    %391 = arith.mulf %389, %390 : vector<1x1xf32>
    %cst_154 = arith.constant 1.000000e+00 : f32
    %392 = vector.broadcast %cst_154 : f32 to vector<1x1xf32>
    %393 = arith.subf %392, %391 : vector<1x1xf32>
    %394 = arith.mulf %384, %0 : vector<2x8xf32>
    %395 = vector.broadcast %393 : vector<1x1xf32> to vector<2x8xf32>
    %396 = arith.divf %394, %395 : vector<2x8xf32>
    %397 = arith.addf %396, %180 : vector<2x8xf32>
    %cst_155 = arith.constant 0.000000e+00 : f32
    %398 = vector.broadcast %cst_155 : f32 to vector<2x8xf32>
    %399 = arith.maximumf %397, %398 : vector<2x8xf32>
    %cst_156 = arith.constant dense<0.000000e+00> : vector<2xf32>
    %400 = vector.multi_reduction <add>, %399, %cst_156 [1] : vector<2x8xf32> to vector<2xf32>
    %401 = vector.shape_cast %400 : vector<2xf32> to vector<2x1xf32>
    %cst_157 = arith.constant 9.99999996E-13 : f32
    %402 = vector.broadcast %cst_157 : f32 to vector<2x1xf32>
    %403 = arith.maximumf %401, %402 : vector<2x1xf32>
    %404 = vector.broadcast %403 : vector<2x1xf32> to vector<2x8xf32>
    %405 = arith.divf %399, %404 : vector<2x8xf32>
    %406 = arith.subf %405, %180 : vector<2x8xf32>
    %cst_158 = arith.constant 16.666666 : f32
    %407 = vector.broadcast %cst_158 : f32 to vector<2x8xf32>
    %408 = arith.mulf %406, %407 : vector<2x8xf32>
    %c1_159 = arith.constant 1 : index
    %c0_160 = arith.constant 0 : index
    %c0_161 = arith.constant 0 : index
    %409 = vector.load %arg11[%c1_159, %c0_160, %c0_161] : memref<4x2x17xf32, #tpu.memory_space<vmem>>, vector<1x2x8xf32>
    %410 = vector.shape_cast %409 : vector<1x2x8xf32> to vector<2x8xf32>
    %411 = vector.shape_cast %408 : vector<2x8xf32> to vector<1x2x8xf32>
    tpu.vector_store %arg11[%c1_159, %c0_160, %c0_161], %411 {strides = array<i32>} : memref<4x2x17xf32, #tpu.memory_space<vmem>>, vector<1x2x8xf32>,
    %cst_162 = arith.constant 0.000000e+00 : f32
    %412 = vector.broadcast %cst_162 : f32 to vector<2x8xf32>
    %413 = arith.maximumf %383, %412 : vector<2x8xf32>
    %c1_163 = arith.constant 1 : index
    %c0_164 = arith.constant 0 : index
    %c8_165 = arith.constant 8 : index
    %414 = vector.load %arg11[%c1_163, %c0_164, %c8_165] : memref<4x2x17xf32, #tpu.memory_space<vmem>>, vector<1x2x8xf32>
    %415 = vector.shape_cast %414 : vector<1x2x8xf32> to vector<2x8xf32>
    %416 = vector.shape_cast %413 : vector<2x8xf32> to vector<1x2x8xf32>
    tpu.vector_store %arg11[%c1_163, %c0_164, %c8_165], %416 {strides = array<i32>} : memref<4x2x17xf32, #tpu.memory_space<vmem>>, vector<1x2x8xf32>,
    %c1_166 = arith.constant 1 : index
    %c0_167 = arith.constant 0 : index
    %c16_168 = arith.constant 16 : index
    %417 = vector.load %arg11[%c1_166, %c0_167, %c16_168] : memref<4x2x17xf32, #tpu.memory_space<vmem>>, vector<1x2x1xf32>
    %418 = vector.shape_cast %417 : vector<1x2x1xf32> to vector<2x1xf32>
    %419 = vector.shape_cast %382 : vector<2x1xf32> to vector<1x2x1xf32>
    tpu.vector_store %arg11[%c1_166, %c0_167, %c16_168], %419 {strides = array<i32>} : memref<4x2x17xf32, #tpu.memory_space<vmem>>, vector<1x2x1xf32>,
    %c1_169 = arith.constant 1 : index
    %c0_170 = arith.constant 0 : index
    %c0_171 = arith.constant 0 : index
    %420 = vector.load %arg12[%c1_169, %c0_170, %c0_171] : memref<4x2x8xf32, #tpu.memory_space<vmem>>, vector<1x2x8xf32>
    %421 = vector.shape_cast %420 : vector<1x2x8xf32> to vector<2x8xf32>
    %422 = vector.shape_cast %405 : vector<2x8xf32> to vector<1x2x8xf32>
    tpu.vector_store %arg12[%c1_169, %c0_170, %c0_171], %422 {strides = array<i32>} : memref<4x2x8xf32, #tpu.memory_space<vmem>>, vector<1x2x8xf32>,
    %423 = vector.extract_strided_slice %405 {offsets = [0, 0], sizes = [1, 8], strides = [1, 1]} : vector<2x8xf32> to vector<1x8xf32>
    %c0_172 = arith.constant 0 : index
    %c0_173 = arith.constant 0 : index
    %c0_174 = arith.constant 0 : index
    %424 = vector.load %arg14[%c0_172, %c0_173, %c0_174] : memref<2x8x8xf32, #tpu.memory_space<vmem>>, vector<1x1x8xf32>
    %425 = vector.shape_cast %424 : vector<1x1x8xf32> to vector<1x8xf32>
    %426 = vector.shape_cast %423 : vector<1x8xf32> to vector<1x1x8xf32>
    tpu.vector_store %arg14[%c0_172, %c0_173, %c0_174], %426 {strides = array<i32>} : memref<2x8x8xf32, #tpu.memory_space<vmem>>, vector<1x1x8xf32>,
    %427 = vector.extract_strided_slice %408 {offsets = [0, 0], sizes = [1, 8], strides = [1, 1]} : vector<2x8xf32> to vector<1x8xf32>
    %c0_175 = arith.constant 0 : index
    %c1_176 = arith.constant 1 : index
    %c0_177 = arith.constant 0 : index
    %428 = vector.load %arg14[%c0_175, %c1_176, %c0_177] : memref<2x8x8xf32, #tpu.memory_space<vmem>>, vector<1x1x8xf32>
    %429 = vector.shape_cast %428 : vector<1x1x8xf32> to vector<1x8xf32>
    %430 = vector.shape_cast %427 : vector<1x8xf32> to vector<1x1x8xf32>
    tpu.vector_store %arg14[%c0_175, %c1_176, %c0_177], %430 {strides = array<i32>} : memref<2x8x8xf32, #tpu.memory_space<vmem>>, vector<1x1x8xf32>,
    %431 = vector.extract_strided_slice %383 {offsets = [0, 0], sizes = [1, 8], strides = [1, 1]} : vector<2x8xf32> to vector<1x8xf32>
    %c0_178 = arith.constant 0 : index
    %c2_179 = arith.constant 2 : index
    %c0_180 = arith.constant 0 : index
    %432 = vector.load %arg14[%c0_178, %c2_179, %c0_180] : memref<2x8x8xf32, #tpu.memory_space<vmem>>, vector<1x1x8xf32>
    %433 = vector.shape_cast %432 : vector<1x1x8xf32> to vector<1x8xf32>
    %434 = vector.shape_cast %431 : vector<1x8xf32> to vector<1x1x8xf32>
    tpu.vector_store %arg14[%c0_178, %c2_179, %c0_180], %434 {strides = array<i32>} : memref<2x8x8xf32, #tpu.memory_space<vmem>>, vector<1x1x8xf32>,
    %435 = vector.extract_strided_slice %382 {offsets = [0, 0], sizes = [1, 1], strides = [1, 1]} : vector<2x1xf32> to vector<1x1xf32>
    %436 = vector.shape_cast %435 : vector<1x1xf32> to vector<1x1xf32>
    %437 = vector.broadcast %436 : vector<1x1xf32> to vector<1x8xf32>
    %c0_181 = arith.constant 0 : index
    %c3_182 = arith.constant 3 : index
    %c0_183 = arith.constant 0 : index
    %438 = vector.load %arg14[%c0_181, %c3_182, %c0_183] : memref<2x8x8xf32, #tpu.memory_space<vmem>>, vector<1x1x8xf32>
    %439 = vector.shape_cast %438 : vector<1x1x8xf32> to vector<1x8xf32>
    %440 = vector.shape_cast %437 : vector<1x8xf32> to vector<1x1x8xf32>
    tpu.vector_store %arg14[%c0_181, %c3_182, %c0_183], %440 {strides = array<i32>} : memref<2x8x8xf32, #tpu.memory_space<vmem>>, vector<1x1x8xf32>,
    %c0_184 = arith.constant 0 : index
    %c7_185 = arith.constant 7 : index
    %c0_186 = arith.constant 0 : index
    %441 = vector.load %arg14[%c0_184, %c7_185, %c0_186] : memref<2x8x8xf32, #tpu.memory_space<vmem>>, vector<1x1x8xf32>
    %442 = vector.shape_cast %441 : vector<1x1x8xf32> to vector<1x8xf32>
    %cst_187 = arith.constant 0.00999999977 : f32
    %443 = vector.broadcast %cst_187 : f32 to vector<1x8xf32>
    %444 = arith.addf %442, %443 : vector<1x8xf32>
    %c0_188 = arith.constant 0 : index
    %c7_189 = arith.constant 7 : index
    %c0_190 = arith.constant 0 : index
    %445 = vector.load %arg14[%c0_188, %c7_189, %c0_190] : memref<2x8x8xf32, #tpu.memory_space<vmem>>, vector<1x1x8xf32>
    %446 = vector.shape_cast %445 : vector<1x1x8xf32> to vector<1x8xf32>
    %447 = vector.shape_cast %444 : vector<1x8xf32> to vector<1x1x8xf32>
    tpu.vector_store %arg14[%c0_188, %c7_189, %c0_190], %447 {strides = array<i32>} : memref<2x8x8xf32, #tpu.memory_space<vmem>>, vector<1x1x8xf32>,
    %448 = vector.extract_strided_slice %405 {offsets = [1, 0], sizes = [1, 8], strides = [1, 1]} : vector<2x8xf32> to vector<1x8xf32>
    %c1_191 = arith.constant 1 : index
    %c0_192 = arith.constant 0 : index
    %c0_193 = arith.constant 0 : index
    %449 = vector.load %arg14[%c1_191, %c0_192, %c0_193] : memref<2x8x8xf32, #tpu.memory_space<vmem>>, vector<1x1x8xf32>
    %450 = vector.shape_cast %449 : vector<1x1x8xf32> to vector<1x8xf32>
    %451 = vector.shape_cast %448 : vector<1x8xf32> to vector<1x1x8xf32>
    tpu.vector_store %arg14[%c1_191, %c0_192, %c0_193], %451 {strides = array<i32>} : memref<2x8x8xf32, #tpu.memory_space<vmem>>, vector<1x1x8xf32>,
    %452 = vector.extract_strided_slice %408 {offsets = [1, 0], sizes = [1, 8], strides = [1, 1]} : vector<2x8xf32> to vector<1x8xf32>
    %c1_194 = arith.constant 1 : index
    %c1_195 = arith.constant 1 : index
    %c0_196 = arith.constant 0 : index
    %453 = vector.load %arg14[%c1_194, %c1_195, %c0_196] : memref<2x8x8xf32, #tpu.memory_space<vmem>>, vector<1x1x8xf32>
    %454 = vector.shape_cast %453 : vector<1x1x8xf32> to vector<1x8xf32>
    %455 = vector.shape_cast %452 : vector<1x8xf32> to vector<1x1x8xf32>
    tpu.vector_store %arg14[%c1_194, %c1_195, %c0_196], %455 {strides = array<i32>} : memref<2x8x8xf32, #tpu.memory_space<vmem>>, vector<1x1x8xf32>,
    %456 = vector.extract_strided_slice %383 {offsets = [1, 0], sizes = [1, 8], strides = [1, 1]} : vector<2x8xf32> to vector<1x8xf32>
    %c1_197 = arith.constant 1 : index
    %c2_198 = arith.constant 2 : index
    %c0_199 = arith.constant 0 : index
    %457 = vector.load %arg14[%c1_197, %c2_198, %c0_199] : memref<2x8x8xf32, #tpu.memory_space<vmem>>, vector<1x1x8xf32>
    %458 = vector.shape_cast %457 : vector<1x1x8xf32> to vector<1x8xf32>
    %459 = vector.shape_cast %456 : vector<1x8xf32> to vector<1x1x8xf32>
    tpu.vector_store %arg14[%c1_197, %c2_198, %c0_199], %459 {strides = array<i32>} : memref<2x8x8xf32, #tpu.memory_space<vmem>>, vector<1x1x8xf32>,
    %460 = vector.extract_strided_slice %382 {offsets = [1, 0], sizes = [1, 1], strides = [1, 1]} : vector<2x1xf32> to vector<1x1xf32>
    %461 = vector.shape_cast %460 : vector<1x1xf32> to vector<1x1xf32>
    %462 = vector.broadcast %461 : vector<1x1xf32> to vector<1x8xf32>
    %c1_200 = arith.constant 1 : index
    %c3_201 = arith.constant 3 : index
    %c0_202 = arith.constant 0 : index
    %463 = vector.load %arg14[%c1_200, %c3_201, %c0_202] : memref<2x8x8xf32, #tpu.memory_space<vmem>>, vector<1x1x8xf32>
    %464 = vector.shape_cast %463 : vector<1x1x8xf32> to vector<1x8xf32>
    %465 = vector.shape_cast %462 : vector<1x8xf32> to vector<1x1x8xf32>
    tpu.vector_store %arg14[%c1_200, %c3_201, %c0_202], %465 {strides = array<i32>} : memref<2x8x8xf32, #tpu.memory_space<vmem>>, vector<1x1x8xf32>,
    %c1_203 = arith.constant 1 : index
    %c7_204 = arith.constant 7 : index
    %c0_205 = arith.constant 0 : index
    %466 = vector.load %arg14[%c1_203, %c7_204, %c0_205] : memref<2x8x8xf32, #tpu.memory_space<vmem>>, vector<1x1x8xf32>
    %467 = vector.shape_cast %466 : vector<1x1x8xf32> to vector<1x8xf32>
    %cst_206 = arith.constant 0.00999999977 : f32
    %468 = vector.broadcast %cst_206 : f32 to vector<1x8xf32>
    %469 = arith.addf %467, %468 : vector<1x8xf32>
    %c1_207 = arith.constant 1 : index
    %c7_208 = arith.constant 7 : index
    %c0_209 = arith.constant 0 : index
    %470 = vector.load %arg14[%c1_207, %c7_208, %c0_209] : memref<2x8x8xf32, #tpu.memory_space<vmem>>, vector<1x1x8xf32>
    %471 = vector.shape_cast %470 : vector<1x1x8xf32> to vector<1x8xf32>
    %472 = vector.shape_cast %469 : vector<1x8xf32> to vector<1x1x8xf32>
    tpu.vector_store %arg14[%c1_207, %c7_208, %c0_209], %472 {strides = array<i32>} : memref<2x8x8xf32, #tpu.memory_space<vmem>>, vector<1x1x8xf32>,
    %cst_210 = arith.constant 9.99999997E-7 : f32
    %473 = vector.broadcast %cst_210 : f32 to vector<2x8xf32>
    %474 = arith.cmpf ogt, %405, %473 : vector<2x8xf32>
    %475 = arith.extui %474 : vector<2x8xi1> to vector<2x8xi32>
    %476 = arith.sitofp %475 : vector<2x8xi32> to vector<2x8xf32>
    %477 = vector.extract_strided_slice %476 {offsets = [0, 0], sizes = [1, 8], strides = [1, 1]} : vector<2x8xf32> to vector<1x8xf32>
    %478 = vector.broadcast %477 : vector<1x8xf32> to vector<8x8xf32>
    %479 = arith.mulf %14, %478 : vector<8x8xf32>
    %cst_211 = arith.constant dense<0.000000e+00> : vector<8x8xf32>
    %480 = tpu.matmul %479, %15, %cst_211 {dimension_numbers = #tpu.dot_dimension_numbers<[1], [0], [0], [1], [0, 0, 1, 1], [], []>} : vector<8x8xf32>, vector<8x8xf32>, vector<8x8xf32> -> vector<8x8xf32>
    %481 = vector.shape_cast %480 : vector<8x8xf32> to vector<1x8x8xf32>
    %482 = vector.shape_cast %477 : vector<1x8xf32> to vector<1x1x8xf32>
    %483 = vector.broadcast %482 : vector<1x1x8xf32> to vector<3x8x8xf32>
    %484 = arith.mulf %483, %1 : vector<3x8x8xf32>
    %485 = vector.broadcast %481 : vector<1x8x8xf32> to vector<3x8x8xf32>
    %486 = arith.mulf %485, %484 : vector<3x8x8xf32>
    %cst_212 = arith.constant 1.000000e+00 : f32
    %487 = vector.broadcast %cst_212 : f32 to vector<8x8xf32>
    %488 = arith.subf %487, %480 : vector<8x8xf32>
    %489 = arith.mulf %488, %14 : vector<8x8xf32>
    %490 = vector.shape_cast %489 : vector<8x8xf32> to vector<1x8x8xf32>
    %491 = vector.broadcast %490 : vector<1x8x8xf32> to vector<3x8x8xf32>
    %492 = arith.addf %486, %491 : vector<3x8x8xf32>
    %cst_213 = arith.constant dense<0.000000e+00> : vector<3x8xf32>
    %493 = vector.multi_reduction <add>, %492, %cst_213 [2] : vector<3x8x8xf32> to vector<3x8xf32>
    %494 = vector.shape_cast %493 : vector<3x8xf32> to vector<3x8x1xf32>
    %495 = tpu.reciprocal %494 {approx = true} : vector<3x8x1xf32> -> vector<3x8x1xf32>
    %496 = vector.broadcast %495 : vector<3x8x1xf32> to vector<3x8x8xf32>
    %497 = arith.mulf %492, %496 : vector<3x8x8xf32>
    %498 = vector.extract_strided_slice %476 {offsets = [1, 0], sizes = [1, 8], strides = [1, 1]} : vector<2x8xf32> to vector<1x8xf32>
    %499 = vector.broadcast %498 : vector<1x8xf32> to vector<8x8xf32>
    %500 = arith.mulf %14, %499 : vector<8x8xf32>
    %cst_214 = arith.constant dense<0.000000e+00> : vector<8x8xf32>
    %501 = tpu.matmul %500, %15, %cst_214 {dimension_numbers = #tpu.dot_dimension_numbers<[1], [0], [0], [1], [0, 0, 1, 1], [], []>} : vector<8x8xf32>, vector<8x8xf32>, vector<8x8xf32> -> vector<8x8xf32>
    %502 = vector.shape_cast %501 : vector<8x8xf32> to vector<1x8x8xf32>
    %503 = vector.shape_cast %498 : vector<1x8xf32> to vector<1x1x8xf32>
    %504 = vector.broadcast %503 : vector<1x1x8xf32> to vector<3x8x8xf32>
    %505 = arith.mulf %504, %1 : vector<3x8x8xf32>
    %506 = vector.broadcast %502 : vector<1x8x8xf32> to vector<3x8x8xf32>
    %507 = arith.mulf %506, %505 : vector<3x8x8xf32>
    %cst_215 = arith.constant 1.000000e+00 : f32
    %508 = vector.broadcast %cst_215 : f32 to vector<8x8xf32>
    %509 = arith.subf %508, %501 : vector<8x8xf32>
    %510 = arith.mulf %509, %14 : vector<8x8xf32>
    %511 = vector.shape_cast %510 : vector<8x8xf32> to vector<1x8x8xf32>
    %512 = vector.broadcast %511 : vector<1x8x8xf32> to vector<3x8x8xf32>
    %513 = arith.addf %507, %512 : vector<3x8x8xf32>
    %cst_216 = arith.constant dense<0.000000e+00> : vector<3x8xf32>
    %514 = vector.multi_reduction <add>, %513, %cst_216 [2] : vector<3x8x8xf32> to vector<3x8xf32>
    %515 = vector.shape_cast %514 : vector<3x8xf32> to vector<3x8x1xf32>
    %516 = tpu.reciprocal %515 {approx = true} : vector<3x8x1xf32> -> vector<3x8x1xf32>
    %517 = vector.broadcast %516 : vector<3x8x1xf32> to vector<3x8x8xf32>
    %518 = arith.mulf %513, %517 : vector<3x8x8xf32>
    %c0_217 = arith.constant 0 : index
    %c0_218 = arith.constant 0 : index
    %c0_219 = arith.constant 0 : index
    %519 = vector.load %arg14[%c0_217, %c0_218, %c0_219] : memref<2x8x8xf32, #tpu.memory_space<vmem>>, vector<1x8x8xf32>
    %520 = vector.shape_cast %519 : vector<1x8x8xf32> to vector<8x8xf32>
    %cst_220 = arith.constant dense<0.000000e+00> : vector<144x8xf32>
    %521 = tpu.matmul %7, %520, %cst_220 {dimension_numbers = #tpu.dot_dimension_numbers<[1], [0], [0], [1], [0, 0, 1, 1], [], []>} : vector<144x8xf32>, vector<8x8xf32>, vector<144x8xf32> -> vector<144x8xf32>
    %522 = vector.extract_strided_slice %521 {offsets = [0, 0], sizes = [48, 8], strides = [1, 1]} : vector<144x8xf32> to vector<48x8xf32>
    %523 = vector.extract_strided_slice %497 {offsets = [0, 0, 0], sizes = [1, 8, 8], strides = [1, 1, 1]} : vector<3x8x8xf32> to vector<1x8x8xf32>
    %524 = vector.shape_cast %523 : vector<1x8x8xf32> to vector<8x8xf32>
    %cst_221 = arith.constant dense<0.000000e+00> : vector<48x8xf32>
    %525 = tpu.matmul %522, %524, %cst_221 {dimension_numbers = #tpu.dot_dimension_numbers<[1], [1], [0], [0], [0, 0, 1, 0], [], []>} : vector<48x8xf32>, vector<8x8xf32>, vector<48x8xf32> -> vector<48x8xf32>
    %526 = arith.addf %8, %525 : vector<48x8xf32>
    %527 = vector.extract_strided_slice %521 {offsets = [48, 0], sizes = [48, 8], strides = [1, 1]} : vector<144x8xf32> to vector<48x8xf32>
    %528 = vector.extract_strided_slice %497 {offsets = [1, 0, 0], sizes = [1, 8, 8], strides = [1, 1, 1]} : vector<3x8x8xf32> to vector<1x8x8xf32>
    %529 = vector.shape_cast %528 : vector<1x8x8xf32> to vector<8x8xf32>
    %cst_222 = arith.constant dense<0.000000e+00> : vector<48x8xf32>
    %530 = tpu.matmul %527, %529, %cst_222 {dimension_numbers = #tpu.dot_dimension_numbers<[1], [1], [0], [0], [0, 0, 1, 0], [], []>} : vector<48x8xf32>, vector<8x8xf32>, vector<48x8xf32> -> vector<48x8xf32>
    %531 = arith.addf %526, %530 : vector<48x8xf32>
    %532 = vector.extract_strided_slice %521 {offsets = [96, 0], sizes = [48, 8], strides = [1, 1]} : vector<144x8xf32> to vector<48x8xf32>
    %533 = vector.extract_strided_slice %497 {offsets = [2, 0, 0], sizes = [1, 8, 8], strides = [1, 1, 1]} : vector<3x8x8xf32> to vector<1x8x8xf32>
    %534 = vector.shape_cast %533 : vector<1x8x8xf32> to vector<8x8xf32>
    %cst_223 = arith.constant dense<0.000000e+00> : vector<48x8xf32>
    %535 = tpu.matmul %532, %534, %cst_223 {dimension_numbers = #tpu.dot_dimension_numbers<[1], [1], [0], [0], [0, 0, 1, 0], [], []>} : vector<48x8xf32>, vector<8x8xf32>, vector<48x8xf32> -> vector<48x8xf32>
    %536 = arith.addf %531, %535 : vector<48x8xf32>
    %537 = vector.extract_strided_slice %536 {offsets = [0, 0], sizes = [16, 8], strides = [1, 1]} : vector<48x8xf32> to vector<16x8xf32>
    %538 = arith.negf %537 : vector<16x8xf32>
    %539 = math.exp %538 : vector<16x8xf32>
    %cst_224 = arith.constant 1.000000e+00 : f32
    %540 = vector.broadcast %cst_224 : f32 to vector<16x8xf32>
    %541 = arith.addf %540, %539 : vector<16x8xf32>
    %542 = arith.divf %540, %541 : vector<16x8xf32>
    %543 = vector.extract_strided_slice %536 {offsets = [32, 0], sizes = [16, 8], strides = [1, 1]} : vector<48x8xf32> to vector<16x8xf32>
    %544 = math.tanh %543 : vector<16x8xf32>
    %545 = arith.mulf %542, %544 : vector<16x8xf32>
    %cst_225 = arith.constant dense<0.000000e+00> : vector<16x8xf32>
    %546 = tpu.matmul %9, %545, %cst_225 {dimension_numbers = #tpu.dot_dimension_numbers<[1], [0], [0], [1], [0, 0, 1, 1], [], []>} : vector<16x16xf32>, vector<16x8xf32>, vector<16x8xf32> -> vector<16x8xf32>
    %547 = vector.extract_strided_slice %536 {offsets = [16, 0], sizes = [16, 8], strides = [1, 1]} : vector<48x8xf32> to vector<16x8xf32>
    %548 = arith.addf %547, %546 : vector<16x8xf32>
    %549 = arith.negf %548 : vector<16x8xf32>
    %550 = math.exp %549 : vector<16x8xf32>
    %cst_226 = arith.constant 1.000000e+00 : f32
    %551 = vector.broadcast %cst_226 : f32 to vector<16x8xf32>
    %552 = arith.addf %551, %550 : vector<16x8xf32>
    %553 = arith.divf %551, %552 : vector<16x8xf32>
    %554 = math.tanh %545 : vector<16x8xf32>
    %555 = arith.mulf %553, %554 : vector<16x8xf32>
    %c1_227 = arith.constant 1 : index
    %c0_228 = arith.constant 0 : index
    %c0_229 = arith.constant 0 : index
    %556 = vector.load %arg14[%c1_227, %c0_228, %c0_229] : memref<2x8x8xf32, #tpu.memory_space<vmem>>, vector<1x8x8xf32>
    %557 = vector.shape_cast %556 : vector<1x8x8xf32> to vector<8x8xf32>
    %cst_230 = arith.constant dense<0.000000e+00> : vector<144x8xf32>
    %558 = tpu.matmul %7, %557, %cst_230 {dimension_numbers = #tpu.dot_dimension_numbers<[1], [0], [0], [1], [0, 0, 1, 1], [], []>} : vector<144x8xf32>, vector<8x8xf32>, vector<144x8xf32> -> vector<144x8xf32>
    %559 = vector.extract_strided_slice %558 {offsets = [0, 0], sizes = [48, 8], strides = [1, 1]} : vector<144x8xf32> to vector<48x8xf32>
    %560 = vector.extract_strided_slice %518 {offsets = [0, 0, 0], sizes = [1, 8, 8], strides = [1, 1, 1]} : vector<3x8x8xf32> to vector<1x8x8xf32>
    %561 = vector.shape_cast %560 : vector<1x8x8xf32> to vector<8x8xf32>
    %cst_231 = arith.constant dense<0.000000e+00> : vector<48x8xf32>
    %562 = tpu.matmul %559, %561, %cst_231 {dimension_numbers = #tpu.dot_dimension_numbers<[1], [1], [0], [0], [0, 0, 1, 0], [], []>} : vector<48x8xf32>, vector<8x8xf32>, vector<48x8xf32> -> vector<48x8xf32>
    %563 = arith.addf %8, %562 : vector<48x8xf32>
    %564 = vector.extract_strided_slice %558 {offsets = [48, 0], sizes = [48, 8], strides = [1, 1]} : vector<144x8xf32> to vector<48x8xf32>
    %565 = vector.extract_strided_slice %518 {offsets = [1, 0, 0], sizes = [1, 8, 8], strides = [1, 1, 1]} : vector<3x8x8xf32> to vector<1x8x8xf32>
    %566 = vector.shape_cast %565 : vector<1x8x8xf32> to vector<8x8xf32>
    %cst_232 = arith.constant dense<0.000000e+00> : vector<48x8xf32>
    %567 = tpu.matmul %564, %566, %cst_232 {dimension_numbers = #tpu.dot_dimension_numbers<[1], [1], [0], [0], [0, 0, 1, 0], [], []>} : vector<48x8xf32>, vector<8x8xf32>, vector<48x8xf32> -> vector<48x8xf32>
    %568 = arith.addf %563, %567 : vector<48x8xf32>
    %569 = vector.extract_strided_slice %558 {offsets = [96, 0], sizes = [48, 8], strides = [1, 1]} : vector<144x8xf32> to vector<48x8xf32>
    %570 = vector.extract_strided_slice %518 {offsets = [2, 0, 0], sizes = [1, 8, 8], strides = [1, 1, 1]} : vector<3x8x8xf32> to vector<1x8x8xf32>
    %571 = vector.shape_cast %570 : vector<1x8x8xf32> to vector<8x8xf32>
    %cst_233 = arith.constant dense<0.000000e+00> : vector<48x8xf32>
    %572 = tpu.matmul %569, %571, %cst_233 {dimension_numbers = #tpu.dot_dimension_numbers<[1], [1], [0], [0], [0, 0, 1, 0], [], []>} : vector<48x8xf32>, vector<8x8xf32>, vector<48x8xf32> -> vector<48x8xf32>
    %573 = arith.addf %568, %572 : vector<48x8xf32>
    %574 = vector.extract_strided_slice %573 {offsets = [0, 0], sizes = [16, 8], strides = [1, 1]} : vector<48x8xf32> to vector<16x8xf32>
    %575 = arith.negf %574 : vector<16x8xf32>
    %576 = math.exp %575 : vector<16x8xf32>
    %cst_234 = arith.constant 1.000000e+00 : f32
    %577 = vector.broadcast %cst_234 : f32 to vector<16x8xf32>
    %578 = arith.addf %577, %576 : vector<16x8xf32>
    %579 = arith.divf %577, %578 : vector<16x8xf32>
    %580 = vector.extract_strided_slice %573 {offsets = [32, 0], sizes = [16, 8], strides = [1, 1]} : vector<48x8xf32> to vector<16x8xf32>
    %581 = math.tanh %580 : vector<16x8xf32>
    %582 = arith.mulf %579, %581 : vector<16x8xf32>
    %cst_235 = arith.constant dense<0.000000e+00> : vector<16x8xf32>
    %583 = tpu.matmul %9, %582, %cst_235 {dimension_numbers = #tpu.dot_dimension_numbers<[1], [0], [0], [1], [0, 0, 1, 1], [], []>} : vector<16x16xf32>, vector<16x8xf32>, vector<16x8xf32> -> vector<16x8xf32>
    %584 = vector.extract_strided_slice %573 {offsets = [16, 0], sizes = [16, 8], strides = [1, 1]} : vector<48x8xf32> to vector<16x8xf32>
    %585 = arith.addf %584, %583 : vector<16x8xf32>
    %586 = arith.negf %585 : vector<16x8xf32>
    %587 = math.exp %586 : vector<16x8xf32>
    %cst_236 = arith.constant 1.000000e+00 : f32
    %588 = vector.broadcast %cst_236 : f32 to vector<16x8xf32>
    %589 = arith.addf %588, %587 : vector<16x8xf32>
    %590 = arith.divf %588, %589 : vector<16x8xf32>
    %591 = math.tanh %582 : vector<16x8xf32>
    %592 = arith.mulf %590, %591 : vector<16x8xf32>
    %cst_237 = arith.constant dense<0.000000e+00> : vector<16x128xf32>
    %593 = tpu.matmul %555, %2, %cst_237 {dimension_numbers = #tpu.dot_dimension_numbers<[1], [0], [0], [1], [0, 0, 1, 1], [], []>} : vector<16x8xf32>, vector<8x128xf32>, vector<16x128xf32> -> vector<16x128xf32>
    %594 = arith.mulf %593, %3 : vector<16x128xf32>
    %cst_238 = arith.constant dense<0.000000e+00> : vector<128xf32>
    %595 = vector.multi_reduction <add>, %594, %cst_238 [0] : vector<16x128xf32> to vector<128xf32>
    %596 = vector.shape_cast %595 : vector<128xf32> to vector<1x128xf32>
    %cst_239 = arith.constant dense<0.000000e+00> : vector<16x128xf32>
    %597 = tpu.matmul %592, %2, %cst_239 {dimension_numbers = #tpu.dot_dimension_numbers<[1], [0], [0], [1], [0, 0, 1, 1], [], []>} : vector<16x8xf32>, vector<8x128xf32>, vector<16x128xf32> -> vector<16x128xf32>
    %598 = arith.mulf %597, %3 : vector<16x128xf32>
    %cst_240 = arith.constant dense<0.000000e+00> : vector<128xf32>
    %599 = vector.multi_reduction <add>, %598, %cst_240 [0] : vector<16x128xf32> to vector<128xf32>
    %600 = vector.shape_cast %599 : vector<128xf32> to vector<1x128xf32>
    %601 = tpu.concatenate %596, %600 in 0 : vector<1x128xf32>, vector<1x128xf32> -> vector<2x128xf32>
    %cst_241 = arith.constant dense<0.000000e+00> : vector<2x17xf32>
    %602 = tpu.matmul %601, %4, %cst_241 {dimension_numbers = #tpu.dot_dimension_numbers<[1], [0], [0], [1], [0, 0, 1, 1], [], []>} : vector<2x128xf32>, vector<128x17xf32>, vector<2x17xf32> -> vector<2x17xf32>
    %603 = vector.broadcast %5 : vector<1x17xf32> to vector<2x17xf32>
    %604 = arith.addf %602, %603 : vector<2x17xf32>
    %605 = vector.extract_strided_slice %604 {offsets = [0, 0], sizes = [2, 1], strides = [1, 1]} : vector<2x17xf32> to vector<2x1xf32>
    %cst_242 = arith.constant 0.000000e+00 : f32
    %606 = vector.broadcast %cst_242 : f32 to vector<2x1xf32>
    %607 = arith.maximumf %605, %606 : vector<2x1xf32>
    %608 = vector.extract_strided_slice %604 {offsets = [0, 1], sizes = [2, 8], strides = [1, 1]} : vector<2x17xf32> to vector<2x8xf32>
    %609 = vector.extract_strided_slice %604 {offsets = [0, 9], sizes = [2, 8], strides = [1, 1]} : vector<2x17xf32> to vector<2x8xf32>
    %cst_243 = arith.constant dense<0.000000e+00> : vector<1xf32>
    %610 = vector.multi_reduction <add>, %607, %cst_243 [0] : vector<2x1xf32> to vector<1xf32>
    %611 = vector.shape_cast %610 : vector<1xf32> to vector<1x1xf32>
    %cst_244 = arith.constant 5.000000e-01 : f32
    %612 = vector.broadcast %cst_244 : f32 to vector<1x1xf32>
    %613 = arith.mulf %611, %612 : vector<1x1xf32>
    %614 = arith.addf %389, %613 : vector<1x1xf32>
    %cst_245 = arith.constant 0.0196349546 : f32
    %615 = vector.broadcast %cst_245 : f32 to vector<1x1xf32>
    %616 = arith.mulf %614, %615 : vector<1x1xf32>
    %cst_246 = arith.constant 1.000000e+00 : f32
    %617 = vector.broadcast %cst_246 : f32 to vector<1x1xf32>
    %618 = arith.subf %617, %616 : vector<1x1xf32>
    %619 = arith.mulf %609, %0 : vector<2x8xf32>
    %620 = vector.broadcast %618 : vector<1x1xf32> to vector<2x8xf32>
    %621 = arith.divf %619, %620 : vector<2x8xf32>
    %622 = arith.addf %621, %405 : vector<2x8xf32>
    %cst_247 = arith.constant 0.000000e+00 : f32
    %623 = vector.broadcast %cst_247 : f32 to vector<2x8xf32>
    %624 = arith.maximumf %622, %623 : vector<2x8xf32>
    %cst_248 = arith.constant dense<0.000000e+00> : vector<2xf32>
    %625 = vector.multi_reduction <add>, %624, %cst_248 [1] : vector<2x8xf32> to vector<2xf32>
    %626 = vector.shape_cast %625 : vector<2xf32> to vector<2x1xf32>
    %cst_249 = arith.constant 9.99999996E-13 : f32
    %627 = vector.broadcast %cst_249 : f32 to vector<2x1xf32>
    %628 = arith.maximumf %626, %627 : vector<2x1xf32>
    %629 = vector.broadcast %628 : vector<2x1xf32> to vector<2x8xf32>
    %630 = arith.divf %624, %629 : vector<2x8xf32>
    %631 = arith.subf %630, %405 : vector<2x8xf32>
    %cst_250 = arith.constant 16.666666 : f32
    %632 = vector.broadcast %cst_250 : f32 to vector<2x8xf32>
    %633 = arith.mulf %631, %632 : vector<2x8xf32>
    %c2_251 = arith.constant 2 : index
    %c0_252 = arith.constant 0 : index
    %c0_253 = arith.constant 0 : index
    %634 = vector.load %arg11[%c2_251, %c0_252, %c0_253] : memref<4x2x17xf32, #tpu.memory_space<vmem>>, vector<1x2x8xf32>
    %635 = vector.shape_cast %634 : vector<1x2x8xf32> to vector<2x8xf32>
    %636 = vector.shape_cast %633 : vector<2x8xf32> to vector<1x2x8xf32>
    tpu.vector_store %arg11[%c2_251, %c0_252, %c0_253], %636 {strides = array<i32>} : memref<4x2x17xf32, #tpu.memory_space<vmem>>, vector<1x2x8xf32>,
    %cst_254 = arith.constant 0.000000e+00 : f32
    %637 = vector.broadcast %cst_254 : f32 to vector<2x8xf32>
    %638 = arith.maximumf %608, %637 : vector<2x8xf32>
    %c2_255 = arith.constant 2 : index
    %c0_256 = arith.constant 0 : index
    %c8_257 = arith.constant 8 : index
    %639 = vector.load %arg11[%c2_255, %c0_256, %c8_257] : memref<4x2x17xf32, #tpu.memory_space<vmem>>, vector<1x2x8xf32>
    %640 = vector.shape_cast %639 : vector<1x2x8xf32> to vector<2x8xf32>
    %641 = vector.shape_cast %638 : vector<2x8xf32> to vector<1x2x8xf32>
    tpu.vector_store %arg11[%c2_255, %c0_256, %c8_257], %641 {strides = array<i32>} : memref<4x2x17xf32, #tpu.memory_space<vmem>>, vector<1x2x8xf32>,
    %c2_258 = arith.constant 2 : index
    %c0_259 = arith.constant 0 : index
    %c16_260 = arith.constant 16 : index
    %642 = vector.load %arg11[%c2_258, %c0_259, %c16_260] : memref<4x2x17xf32, #tpu.memory_space<vmem>>, vector<1x2x1xf32>
    %643 = vector.shape_cast %642 : vector<1x2x1xf32> to vector<2x1xf32>
    %644 = vector.shape_cast %607 : vector<2x1xf32> to vector<1x2x1xf32>
    tpu.vector_store %arg11[%c2_258, %c0_259, %c16_260], %644 {strides = array<i32>} : memref<4x2x17xf32, #tpu.memory_space<vmem>>, vector<1x2x1xf32>,
    %c2_261 = arith.constant 2 : index
    %c0_262 = arith.constant 0 : index
    %c0_263 = arith.constant 0 : index
    %645 = vector.load %arg12[%c2_261, %c0_262, %c0_263] : memref<4x2x8xf32, #tpu.memory_space<vmem>>, vector<1x2x8xf32>
    %646 = vector.shape_cast %645 : vector<1x2x8xf32> to vector<2x8xf32>
    %647 = vector.shape_cast %630 : vector<2x8xf32> to vector<1x2x8xf32>
    tpu.vector_store %arg12[%c2_261, %c0_262, %c0_263], %647 {strides = array<i32>} : memref<4x2x8xf32, #tpu.memory_space<vmem>>, vector<1x2x8xf32>,
    %648 = vector.extract_strided_slice %630 {offsets = [0, 0], sizes = [1, 8], strides = [1, 1]} : vector<2x8xf32> to vector<1x8xf32>
    %c0_264 = arith.constant 0 : index
    %c0_265 = arith.constant 0 : index
    %c0_266 = arith.constant 0 : index
    %649 = vector.load %arg14[%c0_264, %c0_265, %c0_266] : memref<2x8x8xf32, #tpu.memory_space<vmem>>, vector<1x1x8xf32>
    %650 = vector.shape_cast %649 : vector<1x1x8xf32> to vector<1x8xf32>
    %651 = vector.shape_cast %648 : vector<1x8xf32> to vector<1x1x8xf32>
    tpu.vector_store %arg14[%c0_264, %c0_265, %c0_266], %651 {strides = array<i32>} : memref<2x8x8xf32, #tpu.memory_space<vmem>>, vector<1x1x8xf32>,
    %652 = vector.extract_strided_slice %633 {offsets = [0, 0], sizes = [1, 8], strides = [1, 1]} : vector<2x8xf32> to vector<1x8xf32>
    %c0_267 = arith.constant 0 : index
    %c1_268 = arith.constant 1 : index
    %c0_269 = arith.constant 0 : index
    %653 = vector.load %arg14[%c0_267, %c1_268, %c0_269] : memref<2x8x8xf32, #tpu.memory_space<vmem>>, vector<1x1x8xf32>
    %654 = vector.shape_cast %653 : vector<1x1x8xf32> to vector<1x8xf32>
    %655 = vector.shape_cast %652 : vector<1x8xf32> to vector<1x1x8xf32>
    tpu.vector_store %arg14[%c0_267, %c1_268, %c0_269], %655 {strides = array<i32>} : memref<2x8x8xf32, #tpu.memory_space<vmem>>, vector<1x1x8xf32>,
    %656 = vector.extract_strided_slice %608 {offsets = [0, 0], sizes = [1, 8], strides = [1, 1]} : vector<2x8xf32> to vector<1x8xf32>
    %c0_270 = arith.constant 0 : index
    %c2_271 = arith.constant 2 : index
    %c0_272 = arith.constant 0 : index
    %657 = vector.load %arg14[%c0_270, %c2_271, %c0_272] : memref<2x8x8xf32, #tpu.memory_space<vmem>>, vector<1x1x8xf32>
    %658 = vector.shape_cast %657 : vector<1x1x8xf32> to vector<1x8xf32>
    %659 = vector.shape_cast %656 : vector<1x8xf32> to vector<1x1x8xf32>
    tpu.vector_store %arg14[%c0_270, %c2_271, %c0_272], %659 {strides = array<i32>} : memref<2x8x8xf32, #tpu.memory_space<vmem>>, vector<1x1x8xf32>,
    %660 = vector.extract_strided_slice %607 {offsets = [0, 0], sizes = [1, 1], strides = [1, 1]} : vector<2x1xf32> to vector<1x1xf32>
    %661 = vector.shape_cast %660 : vector<1x1xf32> to vector<1x1xf32>
    %662 = vector.broadcast %661 : vector<1x1xf32> to vector<1x8xf32>
    %c0_273 = arith.constant 0 : index
    %c3_274 = arith.constant 3 : index
    %c0_275 = arith.constant 0 : index
    %663 = vector.load %arg14[%c0_273, %c3_274, %c0_275] : memref<2x8x8xf32, #tpu.memory_space<vmem>>, vector<1x1x8xf32>
    %664 = vector.shape_cast %663 : vector<1x1x8xf32> to vector<1x8xf32>
    %665 = vector.shape_cast %662 : vector<1x8xf32> to vector<1x1x8xf32>
    tpu.vector_store %arg14[%c0_273, %c3_274, %c0_275], %665 {strides = array<i32>} : memref<2x8x8xf32, #tpu.memory_space<vmem>>, vector<1x1x8xf32>,
    %c0_276 = arith.constant 0 : index
    %c7_277 = arith.constant 7 : index
    %c0_278 = arith.constant 0 : index
    %666 = vector.load %arg14[%c0_276, %c7_277, %c0_278] : memref<2x8x8xf32, #tpu.memory_space<vmem>>, vector<1x1x8xf32>
    %667 = vector.shape_cast %666 : vector<1x1x8xf32> to vector<1x8xf32>
    %cst_279 = arith.constant 0.00999999977 : f32
    %668 = vector.broadcast %cst_279 : f32 to vector<1x8xf32>
    %669 = arith.addf %667, %668 : vector<1x8xf32>
    %c0_280 = arith.constant 0 : index
    %c7_281 = arith.constant 7 : index
    %c0_282 = arith.constant 0 : index
    %670 = vector.load %arg14[%c0_280, %c7_281, %c0_282] : memref<2x8x8xf32, #tpu.memory_space<vmem>>, vector<1x1x8xf32>
    %671 = vector.shape_cast %670 : vector<1x1x8xf32> to vector<1x8xf32>
    %672 = vector.shape_cast %669 : vector<1x8xf32> to vector<1x1x8xf32>
    tpu.vector_store %arg14[%c0_280, %c7_281, %c0_282], %672 {strides = array<i32>} : memref<2x8x8xf32, #tpu.memory_space<vmem>>, vector<1x1x8xf32>,
    %673 = vector.extract_strided_slice %630 {offsets = [1, 0], sizes = [1, 8], strides = [1, 1]} : vector<2x8xf32> to vector<1x8xf32>
    %c1_283 = arith.constant 1 : index
    %c0_284 = arith.constant 0 : index
    %c0_285 = arith.constant 0 : index
    %674 = vector.load %arg14[%c1_283, %c0_284, %c0_285] : memref<2x8x8xf32, #tpu.memory_space<vmem>>, vector<1x1x8xf32>
    %675 = vector.shape_cast %674 : vector<1x1x8xf32> to vector<1x8xf32>
    %676 = vector.shape_cast %673 : vector<1x8xf32> to vector<1x1x8xf32>
    tpu.vector_store %arg14[%c1_283, %c0_284, %c0_285], %676 {strides = array<i32>} : memref<2x8x8xf32, #tpu.memory_space<vmem>>, vector<1x1x8xf32>,
    %677 = vector.extract_strided_slice %633 {offsets = [1, 0], sizes = [1, 8], strides = [1, 1]} : vector<2x8xf32> to vector<1x8xf32>
    %c1_286 = arith.constant 1 : index
    %c1_287 = arith.constant 1 : index
    %c0_288 = arith.constant 0 : index
    %678 = vector.load %arg14[%c1_286, %c1_287, %c0_288] : memref<2x8x8xf32, #tpu.memory_space<vmem>>, vector<1x1x8xf32>
    %679 = vector.shape_cast %678 : vector<1x1x8xf32> to vector<1x8xf32>
    %680 = vector.shape_cast %677 : vector<1x8xf32> to vector<1x1x8xf32>
    tpu.vector_store %arg14[%c1_286, %c1_287, %c0_288], %680 {strides = array<i32>} : memref<2x8x8xf32, #tpu.memory_space<vmem>>, vector<1x1x8xf32>,
    %681 = vector.extract_strided_slice %608 {offsets = [1, 0], sizes = [1, 8], strides = [1, 1]} : vector<2x8xf32> to vector<1x8xf32>
    %c1_289 = arith.constant 1 : index
    %c2_290 = arith.constant 2 : index
    %c0_291 = arith.constant 0 : index
    %682 = vector.load %arg14[%c1_289, %c2_290, %c0_291] : memref<2x8x8xf32, #tpu.memory_space<vmem>>, vector<1x1x8xf32>
    %683 = vector.shape_cast %682 : vector<1x1x8xf32> to vector<1x8xf32>
    %684 = vector.shape_cast %681 : vector<1x8xf32> to vector<1x1x8xf32>
    tpu.vector_store %arg14[%c1_289, %c2_290, %c0_291], %684 {strides = array<i32>} : memref<2x8x8xf32, #tpu.memory_space<vmem>>, vector<1x1x8xf32>,
    %685 = vector.extract_strided_slice %607 {offsets = [1, 0], sizes = [1, 1], strides = [1, 1]} : vector<2x1xf32> to vector<1x1xf32>
    %686 = vector.shape_cast %685 : vector<1x1xf32> to vector<1x1xf32>
    %687 = vector.broadcast %686 : vector<1x1xf32> to vector<1x8xf32>
    %c1_292 = arith.constant 1 : index
    %c3_293 = arith.constant 3 : index
    %c0_294 = arith.constant 0 : index
    %688 = vector.load %arg14[%c1_292, %c3_293, %c0_294] : memref<2x8x8xf32, #tpu.memory_space<vmem>>, vector<1x1x8xf32>
    %689 = vector.shape_cast %688 : vector<1x1x8xf32> to vector<1x8xf32>
    %690 = vector.shape_cast %687 : vector<1x8xf32> to vector<1x1x8xf32>
    tpu.vector_store %arg14[%c1_292, %c3_293, %c0_294], %690 {strides = array<i32>} : memref<2x8x8xf32, #tpu.memory_space<vmem>>, vector<1x1x8xf32>,
    %c1_295 = arith.constant 1 : index
    %c7_296 = arith.constant 7 : index
    %c0_297 = arith.constant 0 : index
    %691 = vector.load %arg14[%c1_295, %c7_296, %c0_297] : memref<2x8x8xf32, #tpu.memory_space<vmem>>, vector<1x1x8xf32>
    %692 = vector.shape_cast %691 : vector<1x1x8xf32> to vector<1x8xf32>
    %cst_298 = arith.constant 0.00999999977 : f32
    %693 = vector.broadcast %cst_298 : f32 to vector<1x8xf32>
    %694 = arith.addf %692, %693 : vector<1x8xf32>
    %c1_299 = arith.constant 1 : index
    %c7_300 = arith.constant 7 : index
    %c0_301 = arith.constant 0 : index
    %695 = vector.load %arg14[%c1_299, %c7_300, %c0_301] : memref<2x8x8xf32, #tpu.memory_space<vmem>>, vector<1x1x8xf32>
    %696 = vector.shape_cast %695 : vector<1x1x8xf32> to vector<1x8xf32>
    %697 = vector.shape_cast %694 : vector<1x8xf32> to vector<1x1x8xf32>
    tpu.vector_store %arg14[%c1_299, %c7_300, %c0_301], %697 {strides = array<i32>} : memref<2x8x8xf32, #tpu.memory_space<vmem>>, vector<1x1x8xf32>,
    %cst_302 = arith.constant 9.99999997E-7 : f32
    %698 = vector.broadcast %cst_302 : f32 to vector<2x8xf32>
    %699 = arith.cmpf ogt, %630, %698 : vector<2x8xf32>
    %700 = arith.extui %699 : vector<2x8xi1> to vector<2x8xi32>
    %701 = arith.sitofp %700 : vector<2x8xi32> to vector<2x8xf32>
    %702 = vector.extract_strided_slice %701 {offsets = [0, 0], sizes = [1, 8], strides = [1, 1]} : vector<2x8xf32> to vector<1x8xf32>
    %703 = vector.broadcast %702 : vector<1x8xf32> to vector<8x8xf32>
    %704 = arith.mulf %14, %703 : vector<8x8xf32>
    %cst_303 = arith.constant dense<0.000000e+00> : vector<8x8xf32>
    %705 = tpu.matmul %704, %15, %cst_303 {dimension_numbers = #tpu.dot_dimension_numbers<[1], [0], [0], [1], [0, 0, 1, 1], [], []>} : vector<8x8xf32>, vector<8x8xf32>, vector<8x8xf32> -> vector<8x8xf32>
    %706 = vector.shape_cast %705 : vector<8x8xf32> to vector<1x8x8xf32>
    %707 = vector.shape_cast %702 : vector<1x8xf32> to vector<1x1x8xf32>
    %708 = vector.broadcast %707 : vector<1x1x8xf32> to vector<3x8x8xf32>
    %709 = arith.mulf %708, %1 : vector<3x8x8xf32>
    %710 = vector.broadcast %706 : vector<1x8x8xf32> to vector<3x8x8xf32>
    %711 = arith.mulf %710, %709 : vector<3x8x8xf32>
    %cst_304 = arith.constant 1.000000e+00 : f32
    %712 = vector.broadcast %cst_304 : f32 to vector<8x8xf32>
    %713 = arith.subf %712, %705 : vector<8x8xf32>
    %714 = arith.mulf %713, %14 : vector<8x8xf32>
    %715 = vector.shape_cast %714 : vector<8x8xf32> to vector<1x8x8xf32>
    %716 = vector.broadcast %715 : vector<1x8x8xf32> to vector<3x8x8xf32>
    %717 = arith.addf %711, %716 : vector<3x8x8xf32>
    %cst_305 = arith.constant dense<0.000000e+00> : vector<3x8xf32>
    %718 = vector.multi_reduction <add>, %717, %cst_305 [2] : vector<3x8x8xf32> to vector<3x8xf32>
    %719 = vector.shape_cast %718 : vector<3x8xf32> to vector<3x8x1xf32>
    %720 = tpu.reciprocal %719 {approx = true} : vector<3x8x1xf32> -> vector<3x8x1xf32>
    %721 = vector.broadcast %720 : vector<3x8x1xf32> to vector<3x8x8xf32>
    %722 = arith.mulf %717, %721 : vector<3x8x8xf32>
    %723 = vector.extract_strided_slice %701 {offsets = [1, 0], sizes = [1, 8], strides = [1, 1]} : vector<2x8xf32> to vector<1x8xf32>
    %724 = vector.broadcast %723 : vector<1x8xf32> to vector<8x8xf32>
    %725 = arith.mulf %14, %724 : vector<8x8xf32>
    %cst_306 = arith.constant dense<0.000000e+00> : vector<8x8xf32>
    %726 = tpu.matmul %725, %15, %cst_306 {dimension_numbers = #tpu.dot_dimension_numbers<[1], [0], [0], [1], [0, 0, 1, 1], [], []>} : vector<8x8xf32>, vector<8x8xf32>, vector<8x8xf32> -> vector<8x8xf32>
    %727 = vector.shape_cast %726 : vector<8x8xf32> to vector<1x8x8xf32>
    %728 = vector.shape_cast %723 : vector<1x8xf32> to vector<1x1x8xf32>
    %729 = vector.broadcast %728 : vector<1x1x8xf32> to vector<3x8x8xf32>
    %730 = arith.mulf %729, %1 : vector<3x8x8xf32>
    %731 = vector.broadcast %727 : vector<1x8x8xf32> to vector<3x8x8xf32>
    %732 = arith.mulf %731, %730 : vector<3x8x8xf32>
    %cst_307 = arith.constant 1.000000e+00 : f32
    %733 = vector.broadcast %cst_307 : f32 to vector<8x8xf32>
    %734 = arith.subf %733, %726 : vector<8x8xf32>
    %735 = arith.mulf %734, %14 : vector<8x8xf32>
    %736 = vector.shape_cast %735 : vector<8x8xf32> to vector<1x8x8xf32>
    %737 = vector.broadcast %736 : vector<1x8x8xf32> to vector<3x8x8xf32>
    %738 = arith.addf %732, %737 : vector<3x8x8xf32>
    %cst_308 = arith.constant dense<0.000000e+00> : vector<3x8xf32>
    %739 = vector.multi_reduction <add>, %738, %cst_308 [2] : vector<3x8x8xf32> to vector<3x8xf32>
    %740 = vector.shape_cast %739 : vector<3x8xf32> to vector<3x8x1xf32>
    %741 = tpu.reciprocal %740 {approx = true} : vector<3x8x1xf32> -> vector<3x8x1xf32>
    %742 = vector.broadcast %741 : vector<3x8x1xf32> to vector<3x8x8xf32>
    %743 = arith.mulf %738, %742 : vector<3x8x8xf32>
    %c0_309 = arith.constant 0 : index
    %c0_310 = arith.constant 0 : index
    %c0_311 = arith.constant 0 : index
    %744 = vector.load %arg14[%c0_309, %c0_310, %c0_311] : memref<2x8x8xf32, #tpu.memory_space<vmem>>, vector<1x8x8xf32>
    %745 = vector.shape_cast %744 : vector<1x8x8xf32> to vector<8x8xf32>
    %cst_312 = arith.constant dense<0.000000e+00> : vector<144x8xf32>
    %746 = tpu.matmul %7, %745, %cst_312 {dimension_numbers = #tpu.dot_dimension_numbers<[1], [0], [0], [1], [0, 0, 1, 1], [], []>} : vector<144x8xf32>, vector<8x8xf32>, vector<144x8xf32> -> vector<144x8xf32>
    %747 = vector.extract_strided_slice %746 {offsets = [0, 0], sizes = [48, 8], strides = [1, 1]} : vector<144x8xf32> to vector<48x8xf32>
    %748 = vector.extract_strided_slice %722 {offsets = [0, 0, 0], sizes = [1, 8, 8], strides = [1, 1, 1]} : vector<3x8x8xf32> to vector<1x8x8xf32>
    %749 = vector.shape_cast %748 : vector<1x8x8xf32> to vector<8x8xf32>
    %cst_313 = arith.constant dense<0.000000e+00> : vector<48x8xf32>
    %750 = tpu.matmul %747, %749, %cst_313 {dimension_numbers = #tpu.dot_dimension_numbers<[1], [1], [0], [0], [0, 0, 1, 0], [], []>} : vector<48x8xf32>, vector<8x8xf32>, vector<48x8xf32> -> vector<48x8xf32>
    %751 = arith.addf %8, %750 : vector<48x8xf32>
    %752 = vector.extract_strided_slice %746 {offsets = [48, 0], sizes = [48, 8], strides = [1, 1]} : vector<144x8xf32> to vector<48x8xf32>
    %753 = vector.extract_strided_slice %722 {offsets = [1, 0, 0], sizes = [1, 8, 8], strides = [1, 1, 1]} : vector<3x8x8xf32> to vector<1x8x8xf32>
    %754 = vector.shape_cast %753 : vector<1x8x8xf32> to vector<8x8xf32>
    %cst_314 = arith.constant dense<0.000000e+00> : vector<48x8xf32>
    %755 = tpu.matmul %752, %754, %cst_314 {dimension_numbers = #tpu.dot_dimension_numbers<[1], [1], [0], [0], [0, 0, 1, 0], [], []>} : vector<48x8xf32>, vector<8x8xf32>, vector<48x8xf32> -> vector<48x8xf32>
    %756 = arith.addf %751, %755 : vector<48x8xf32>
    %757 = vector.extract_strided_slice %746 {offsets = [96, 0], sizes = [48, 8], strides = [1, 1]} : vector<144x8xf32> to vector<48x8xf32>
    %758 = vector.extract_strided_slice %722 {offsets = [2, 0, 0], sizes = [1, 8, 8], strides = [1, 1, 1]} : vector<3x8x8xf32> to vector<1x8x8xf32>
    %759 = vector.shape_cast %758 : vector<1x8x8xf32> to vector<8x8xf32>
    %cst_315 = arith.constant dense<0.000000e+00> : vector<48x8xf32>
    %760 = tpu.matmul %757, %759, %cst_315 {dimension_numbers = #tpu.dot_dimension_numbers<[1], [1], [0], [0], [0, 0, 1, 0], [], []>} : vector<48x8xf32>, vector<8x8xf32>, vector<48x8xf32> -> vector<48x8xf32>
    %761 = arith.addf %756, %760 : vector<48x8xf32>
    %762 = vector.extract_strided_slice %761 {offsets = [0, 0], sizes = [16, 8], strides = [1, 1]} : vector<48x8xf32> to vector<16x8xf32>
    %763 = arith.negf %762 : vector<16x8xf32>
    %764 = math.exp %763 : vector<16x8xf32>
    %cst_316 = arith.constant 1.000000e+00 : f32
    %765 = vector.broadcast %cst_316 : f32 to vector<16x8xf32>
    %766 = arith.addf %765, %764 : vector<16x8xf32>
    %767 = arith.divf %765, %766 : vector<16x8xf32>
    %768 = vector.extract_strided_slice %761 {offsets = [32, 0], sizes = [16, 8], strides = [1, 1]} : vector<48x8xf32> to vector<16x8xf32>
    %769 = math.tanh %768 : vector<16x8xf32>
    %770 = arith.mulf %767, %769 : vector<16x8xf32>
    %cst_317 = arith.constant dense<0.000000e+00> : vector<16x8xf32>
    %771 = tpu.matmul %9, %770, %cst_317 {dimension_numbers = #tpu.dot_dimension_numbers<[1], [0], [0], [1], [0, 0, 1, 1], [], []>} : vector<16x16xf32>, vector<16x8xf32>, vector<16x8xf32> -> vector<16x8xf32>
    %772 = vector.extract_strided_slice %761 {offsets = [16, 0], sizes = [16, 8], strides = [1, 1]} : vector<48x8xf32> to vector<16x8xf32>
    %773 = arith.addf %772, %771 : vector<16x8xf32>
    %774 = arith.negf %773 : vector<16x8xf32>
    %775 = math.exp %774 : vector<16x8xf32>
    %cst_318 = arith.constant 1.000000e+00 : f32
    %776 = vector.broadcast %cst_318 : f32 to vector<16x8xf32>
    %777 = arith.addf %776, %775 : vector<16x8xf32>
    %778 = arith.divf %776, %777 : vector<16x8xf32>
    %779 = math.tanh %770 : vector<16x8xf32>
    %780 = arith.mulf %778, %779 : vector<16x8xf32>
    %c1_319 = arith.constant 1 : index
    %c0_320 = arith.constant 0 : index
    %c0_321 = arith.constant 0 : index
    %781 = vector.load %arg14[%c1_319, %c0_320, %c0_321] : memref<2x8x8xf32, #tpu.memory_space<vmem>>, vector<1x8x8xf32>
    %782 = vector.shape_cast %781 : vector<1x8x8xf32> to vector<8x8xf32>
    %cst_322 = arith.constant dense<0.000000e+00> : vector<144x8xf32>
    %783 = tpu.matmul %7, %782, %cst_322 {dimension_numbers = #tpu.dot_dimension_numbers<[1], [0], [0], [1], [0, 0, 1, 1], [], []>} : vector<144x8xf32>, vector<8x8xf32>, vector<144x8xf32> -> vector<144x8xf32>
    %784 = vector.extract_strided_slice %783 {offsets = [0, 0], sizes = [48, 8], strides = [1, 1]} : vector<144x8xf32> to vector<48x8xf32>
    %785 = vector.extract_strided_slice %743 {offsets = [0, 0, 0], sizes = [1, 8, 8], strides = [1, 1, 1]} : vector<3x8x8xf32> to vector<1x8x8xf32>
    %786 = vector.shape_cast %785 : vector<1x8x8xf32> to vector<8x8xf32>
    %cst_323 = arith.constant dense<0.000000e+00> : vector<48x8xf32>
    %787 = tpu.matmul %784, %786, %cst_323 {dimension_numbers = #tpu.dot_dimension_numbers<[1], [1], [0], [0], [0, 0, 1, 0], [], []>} : vector<48x8xf32>, vector<8x8xf32>, vector<48x8xf32> -> vector<48x8xf32>
    %788 = arith.addf %8, %787 : vector<48x8xf32>
    %789 = vector.extract_strided_slice %783 {offsets = [48, 0], sizes = [48, 8], strides = [1, 1]} : vector<144x8xf32> to vector<48x8xf32>
    %790 = vector.extract_strided_slice %743 {offsets = [1, 0, 0], sizes = [1, 8, 8], strides = [1, 1, 1]} : vector<3x8x8xf32> to vector<1x8x8xf32>
    %791 = vector.shape_cast %790 : vector<1x8x8xf32> to vector<8x8xf32>
    %cst_324 = arith.constant dense<0.000000e+00> : vector<48x8xf32>
    %792 = tpu.matmul %789, %791, %cst_324 {dimension_numbers = #tpu.dot_dimension_numbers<[1], [1], [0], [0], [0, 0, 1, 0], [], []>} : vector<48x8xf32>, vector<8x8xf32>, vector<48x8xf32> -> vector<48x8xf32>
    %793 = arith.addf %788, %792 : vector<48x8xf32>
    %794 = vector.extract_strided_slice %783 {offsets = [96, 0], sizes = [48, 8], strides = [1, 1]} : vector<144x8xf32> to vector<48x8xf32>
    %795 = vector.extract_strided_slice %743 {offsets = [2, 0, 0], sizes = [1, 8, 8], strides = [1, 1, 1]} : vector<3x8x8xf32> to vector<1x8x8xf32>
    %796 = vector.shape_cast %795 : vector<1x8x8xf32> to vector<8x8xf32>
    %cst_325 = arith.constant dense<0.000000e+00> : vector<48x8xf32>
    %797 = tpu.matmul %794, %796, %cst_325 {dimension_numbers = #tpu.dot_dimension_numbers<[1], [1], [0], [0], [0, 0, 1, 0], [], []>} : vector<48x8xf32>, vector<8x8xf32>, vector<48x8xf32> -> vector<48x8xf32>
    %798 = arith.addf %793, %797 : vector<48x8xf32>
    %799 = vector.extract_strided_slice %798 {offsets = [0, 0], sizes = [16, 8], strides = [1, 1]} : vector<48x8xf32> to vector<16x8xf32>
    %800 = arith.negf %799 : vector<16x8xf32>
    %801 = math.exp %800 : vector<16x8xf32>
    %cst_326 = arith.constant 1.000000e+00 : f32
    %802 = vector.broadcast %cst_326 : f32 to vector<16x8xf32>
    %803 = arith.addf %802, %801 : vector<16x8xf32>
    %804 = arith.divf %802, %803 : vector<16x8xf32>
    %805 = vector.extract_strided_slice %798 {offsets = [32, 0], sizes = [16, 8], strides = [1, 1]} : vector<48x8xf32> to vector<16x8xf32>
    %806 = math.tanh %805 : vector<16x8xf32>
    %807 = arith.mulf %804, %806 : vector<16x8xf32>
    %cst_327 = arith.constant dense<0.000000e+00> : vector<16x8xf32>
    %808 = tpu.matmul %9, %807, %cst_327 {dimension_numbers = #tpu.dot_dimension_numbers<[1], [0], [0], [1], [0, 0, 1, 1], [], []>} : vector<16x16xf32>, vector<16x8xf32>, vector<16x8xf32> -> vector<16x8xf32>
    %809 = vector.extract_strided_slice %798 {offsets = [16, 0], sizes = [16, 8], strides = [1, 1]} : vector<48x8xf32> to vector<16x8xf32>
    %810 = arith.addf %809, %808 : vector<16x8xf32>
    %811 = arith.negf %810 : vector<16x8xf32>
    %812 = math.exp %811 : vector<16x8xf32>
    %cst_328 = arith.constant 1.000000e+00 : f32
    %813 = vector.broadcast %cst_328 : f32 to vector<16x8xf32>
    %814 = arith.addf %813, %812 : vector<16x8xf32>
    %815 = arith.divf %813, %814 : vector<16x8xf32>
    %816 = math.tanh %807 : vector<16x8xf32>
    %817 = arith.mulf %815, %816 : vector<16x8xf32>
    %cst_329 = arith.constant dense<0.000000e+00> : vector<16x128xf32>
    %818 = tpu.matmul %780, %2, %cst_329 {dimension_numbers = #tpu.dot_dimension_numbers<[1], [0], [0], [1], [0, 0, 1, 1], [], []>} : vector<16x8xf32>, vector<8x128xf32>, vector<16x128xf32> -> vector<16x128xf32>
    %819 = arith.mulf %818, %3 : vector<16x128xf32>
    %cst_330 = arith.constant dense<0.000000e+00> : vector<128xf32>
    %820 = vector.multi_reduction <add>, %819, %cst_330 [0] : vector<16x128xf32> to vector<128xf32>
    %821 = vector.shape_cast %820 : vector<128xf32> to vector<1x128xf32>
    %cst_331 = arith.constant dense<0.000000e+00> : vector<16x128xf32>
    %822 = tpu.matmul %817, %2, %cst_331 {dimension_numbers = #tpu.dot_dimension_numbers<[1], [0], [0], [1], [0, 0, 1, 1], [], []>} : vector<16x8xf32>, vector<8x128xf32>, vector<16x128xf32> -> vector<16x128xf32>
    %823 = arith.mulf %822, %3 : vector<16x128xf32>
    %cst_332 = arith.constant dense<0.000000e+00> : vector<128xf32>
    %824 = vector.multi_reduction <add>, %823, %cst_332 [0] : vector<16x128xf32> to vector<128xf32>
    %825 = vector.shape_cast %824 : vector<128xf32> to vector<1x128xf32>
    %826 = tpu.concatenate %821, %825 in 0 : vector<1x128xf32>, vector<1x128xf32> -> vector<2x128xf32>
    %cst_333 = arith.constant dense<0.000000e+00> : vector<2x17xf32>
    %827 = tpu.matmul %826, %4, %cst_333 {dimension_numbers = #tpu.dot_dimension_numbers<[1], [0], [0], [1], [0, 0, 1, 1], [], []>} : vector<2x128xf32>, vector<128x17xf32>, vector<2x17xf32> -> vector<2x17xf32>
    %828 = vector.broadcast %5 : vector<1x17xf32> to vector<2x17xf32>
    %829 = arith.addf %827, %828 : vector<2x17xf32>
    %830 = vector.extract_strided_slice %829 {offsets = [0, 0], sizes = [2, 1], strides = [1, 1]} : vector<2x17xf32> to vector<2x1xf32>
    %cst_334 = arith.constant 0.000000e+00 : f32
    %831 = vector.broadcast %cst_334 : f32 to vector<2x1xf32>
    %832 = arith.maximumf %830, %831 : vector<2x1xf32>
    %833 = vector.extract_strided_slice %829 {offsets = [0, 1], sizes = [2, 8], strides = [1, 1]} : vector<2x17xf32> to vector<2x8xf32>
    %834 = vector.extract_strided_slice %829 {offsets = [0, 9], sizes = [2, 8], strides = [1, 1]} : vector<2x17xf32> to vector<2x8xf32>
    %cst_335 = arith.constant dense<0.000000e+00> : vector<1xf32>
    %835 = vector.multi_reduction <add>, %832, %cst_335 [0] : vector<2x1xf32> to vector<1xf32>
    %836 = vector.shape_cast %835 : vector<1xf32> to vector<1x1xf32>
    %cst_336 = arith.constant 5.000000e-01 : f32
    %837 = vector.broadcast %cst_336 : f32 to vector<1x1xf32>
    %838 = arith.mulf %836, %837 : vector<1x1xf32>
    %839 = arith.addf %614, %838 : vector<1x1xf32>
    %cst_337 = arith.constant 0.0196349546 : f32
    %840 = vector.broadcast %cst_337 : f32 to vector<1x1xf32>
    %841 = arith.mulf %839, %840 : vector<1x1xf32>
    %cst_338 = arith.constant 1.000000e+00 : f32
    %842 = vector.broadcast %cst_338 : f32 to vector<1x1xf32>
    %843 = arith.subf %842, %841 : vector<1x1xf32>
    %844 = arith.mulf %834, %0 : vector<2x8xf32>
    %845 = vector.broadcast %843 : vector<1x1xf32> to vector<2x8xf32>
    %846 = arith.divf %844, %845 : vector<2x8xf32>
    %847 = arith.addf %846, %630 : vector<2x8xf32>
    %cst_339 = arith.constant 0.000000e+00 : f32
    %848 = vector.broadcast %cst_339 : f32 to vector<2x8xf32>
    %849 = arith.maximumf %847, %848 : vector<2x8xf32>
    %cst_340 = arith.constant dense<0.000000e+00> : vector<2xf32>
    %850 = vector.multi_reduction <add>, %849, %cst_340 [1] : vector<2x8xf32> to vector<2xf32>
    %851 = vector.shape_cast %850 : vector<2xf32> to vector<2x1xf32>
    %cst_341 = arith.constant 9.99999996E-13 : f32
    %852 = vector.broadcast %cst_341 : f32 to vector<2x1xf32>
    %853 = arith.maximumf %851, %852 : vector<2x1xf32>
    %854 = vector.broadcast %853 : vector<2x1xf32> to vector<2x8xf32>
    %855 = arith.divf %849, %854 : vector<2x8xf32>
    %856 = arith.subf %855, %630 : vector<2x8xf32>
    %cst_342 = arith.constant 16.666666 : f32
    %857 = vector.broadcast %cst_342 : f32 to vector<2x8xf32>
    %858 = arith.mulf %856, %857 : vector<2x8xf32>
    %c3_343 = arith.constant 3 : index
    %c0_344 = arith.constant 0 : index
    %c0_345 = arith.constant 0 : index
    %859 = vector.load %arg11[%c3_343, %c0_344, %c0_345] : memref<4x2x17xf32, #tpu.memory_space<vmem>>, vector<1x2x8xf32>
    %860 = vector.shape_cast %859 : vector<1x2x8xf32> to vector<2x8xf32>
    %861 = vector.shape_cast %858 : vector<2x8xf32> to vector<1x2x8xf32>
    tpu.vector_store %arg11[%c3_343, %c0_344, %c0_345], %861 {strides = array<i32>} : memref<4x2x17xf32, #tpu.memory_space<vmem>>, vector<1x2x8xf32>,
    %cst_346 = arith.constant 0.000000e+00 : f32
    %862 = vector.broadcast %cst_346 : f32 to vector<2x8xf32>
    %863 = arith.maximumf %833, %862 : vector<2x8xf32>
    %c3_347 = arith.constant 3 : index
    %c0_348 = arith.constant 0 : index
    %c8_349 = arith.constant 8 : index
    %864 = vector.load %arg11[%c3_347, %c0_348, %c8_349] : memref<4x2x17xf32, #tpu.memory_space<vmem>>, vector<1x2x8xf32>
    %865 = vector.shape_cast %864 : vector<1x2x8xf32> to vector<2x8xf32>
    %866 = vector.shape_cast %863 : vector<2x8xf32> to vector<1x2x8xf32>
    tpu.vector_store %arg11[%c3_347, %c0_348, %c8_349], %866 {strides = array<i32>} : memref<4x2x17xf32, #tpu.memory_space<vmem>>, vector<1x2x8xf32>,
    %c3_350 = arith.constant 3 : index
    %c0_351 = arith.constant 0 : index
    %c16_352 = arith.constant 16 : index
    %867 = vector.load %arg11[%c3_350, %c0_351, %c16_352] : memref<4x2x17xf32, #tpu.memory_space<vmem>>, vector<1x2x1xf32>
    %868 = vector.shape_cast %867 : vector<1x2x1xf32> to vector<2x1xf32>
    %869 = vector.shape_cast %832 : vector<2x1xf32> to vector<1x2x1xf32>
    tpu.vector_store %arg11[%c3_350, %c0_351, %c16_352], %869 {strides = array<i32>} : memref<4x2x17xf32, #tpu.memory_space<vmem>>, vector<1x2x1xf32>,
    %c3_353 = arith.constant 3 : index
    %c0_354 = arith.constant 0 : index
    %c0_355 = arith.constant 0 : index
    %870 = vector.load %arg12[%c3_353, %c0_354, %c0_355] : memref<4x2x8xf32, #tpu.memory_space<vmem>>, vector<1x2x8xf32>
    %871 = vector.shape_cast %870 : vector<1x2x8xf32> to vector<2x8xf32>
    %872 = vector.shape_cast %855 : vector<2x8xf32> to vector<1x2x8xf32>
    tpu.vector_store %arg12[%c3_353, %c0_354, %c0_355], %872 {strides = array<i32>} : memref<4x2x8xf32, #tpu.memory_space<vmem>>, vector<1x2x8xf32>,
    %c0_356 = arith.constant 0 : index
    %c0_357 = arith.constant 0 : index
    %873 = vector.load %arg13[%c0_356, %c0_357] : memref<1x1xf32, #tpu.memory_space<vmem>>, vector<1x1xf32>
    tpu.vector_store %arg13[%c0_356, %c0_357], %839 {strides = array<i32>} : memref<1x1xf32, #tpu.memory_space<vmem>>, vector<1x1xf32>,
    return
  }
}

</mosaic_0001>

<llo_original>
// kernel: tile.9
$region0: #{tile.9}
  %s0 = inlined_call_operand.vmem [shape: f32[8,16,8], index: 0, kind: input, shape index: {}]
  %s1 = inlined_call_operand.vmem [shape: f32[8,128], index: 1, kind: output, shape index: {}]
  %s2 = smov 3
  %v3 = vld [vmem:[%s0] ss:$16 sm:%s2]
  %s4 = smov 12
  %v5 = vld [vmem:[%s0] ss:$16 sm:%s4]
  %vm6 = vcmask 1043458
  %v7 = vsel %vm6, %v5, %v3
  %s8 = smov 48
  %v9 = vld [vmem:[%s0] ss:$16 sm:%s8]
  %vm10 = vcmask 1045508
  %v11 = vsel %vm10, %v9, %v7
  %s12 = smov 192
  %v13 = vld [vmem:[%s0] ss:$16 sm:%s12]
  %vm14 = vcmask 1047558
  %v15 = vsel %vm14, %v13, %v11
  %vm16 = vcmask 64512
  %17 = vst.msk [vmem:[%s1] sm:$0xff] %vm16, %v15
  %s18 = scalar_lea.vmem %s0, 15
  %s19 = smov 3
  %v20 = vld [vmem:[%s18] ss:$16 sm:%s19]
  %s21 = scalar_lea.vmem %s0, 15
  %s22 = smov 12
  %v23 = vld [vmem:[%s21] ss:$16 sm:%s22]
  %vm24 = vcmask 1043458
  %v25 = vsel %vm24, %v23, %v20
  %s26 = scalar_lea.vmem %s0, 15
  %s27 = smov 48
  %v28 = vld [vmem:[%s26] ss:$16 sm:%s27]
  %vm29 = vcmask 1045508
  %v30 = vsel %vm29, %v28, %v25
  %s31 = scalar_lea.vmem %s0, 15
  %s32 = smov 192
  %v33 = vld [vmem:[%s31] ss:$16 sm:%s32]
  %vm34 = vcmask 1047558
  %v35 = vsel %vm34, %v33, %v30
  %36 = vrot.lane.b32.xlu0 %v35, 120
  %v37 = vpop.permute.xlu0 %36
  %vm38 = vcmask 1048512
  %39 = vst.msk [vmem:[%s1] sm:$0xff] %vm38, %v37
  %s40 = scalar_lea.vmem %s0, 14
  %s41 = smov 3
  %v42 = vld [vmem:[%s40] ss:$16 sm:%s41]
  %s43 = scalar_lea.vmem %s0, 14
  %s44 = smov 12
  %v45 = vld [vmem:[%s43] ss:$16 sm:%s44]
  %vm46 = vcmask 1043458
  %v47 = vsel %vm46, %v45, %v42
  %s48 = scalar_lea.vmem %s0, 14
  %s49 = smov 48
  %v50 = vld [vmem:[%s48] ss:$16 sm:%s49]
  %vm51 = vcmask 1045508
  %v52 = vsel %vm51, %v50, %v47
  %s53 = scalar_lea.vmem %s0, 14
  %s54 = smov 192
  %v55 = vld [vmem:[%s53] ss:$16 sm:%s54]
  %vm56 = vcmask 1047558
  %v57 = vsel %vm56, %v55, %v52
  %58 = vrot.lane.b32.xlu0 %v57, 112
  %v59 = vpop.permute.xlu0 %58
  %vm60 = vcmask 982912
  %61 = vst.msk [vmem:[%s1] sm:$0xff] %vm60, %v59
  %s62 = scalar_lea.vmem %s0, 13
  %s63 = smov 3
  %v64 = vld [vmem:[%s62] ss:$16 sm:%s63]
  %s65 = scalar_lea.vmem %s0, 13
  %s66 = smov 12
  %v67 = vld [vmem:[%s65] ss:$16 sm:%s66]
  %vm68 = vcmask 1043458
  %v69 = vsel %vm68, %v67, %v64
  %s70 = scalar_lea.vmem %s0, 13
  %s71 = smov 48
  %v72 = vld [vmem:[%s70] ss:$16 sm:%s71]
  %vm73 = vcmask 1045508
  %v74 = vsel %vm73, %v72, %v69
  %s75 = scalar_lea.vmem %s0, 13
  %s76 = smov 192
  %v77 = vld [vmem:[%s75] ss:$16 sm:%s76]
  %vm78 = vcmask 1047558
  %v79 = vsel %vm78, %v77, %v74
  %80 = vrot.lane.b32.xlu0 %v79, 104
  %v81 = vpop.permute.xlu0 %80
  %vm82 = vcmask 917312
  %83 = vst.msk [vmem:[%s1] sm:$0xff] %vm82, %v81
  %s84 = scalar_lea.vmem %s0, 12
  %s85 = smov 3
  %v86 = vld [vmem:[%s84] ss:$16 sm:%s85]
  %s87 = scalar_lea.vmem %s0, 12
  %s88 = smov 12
  %v89 = vld [vmem:[%s87] ss:$16 sm:%s88]
  %vm90 = vcmask 1043458
  %v91 = vsel %vm90, %v89, %v86
  %s92 = scalar_lea.vmem %s0, 12
  %s93 = smov 48
  %v94 = vld [vmem:[%s92] ss:$16 sm:%s93]
  %vm95 = vcmask 1045508
  %v96 = vsel %vm95, %v94, %v91
  %s97 = scalar_lea.vmem %s0, 12
  %s98 = smov 192
  %v99 = vld [vmem:[%s97] ss:$16 sm:%s98]
  %vm100 = vcmask 1047558
  %v101 = vsel %vm100, %v99, %v96
  %102 = vrot.lane.b32.xlu0 %v101, 96
  %v103 = vpop.permute.xlu0 %102
  %vm104 = vcmask 851712
  %105 = vst.msk [vmem:[%s1] sm:$0xff] %vm104, %v103
  %s106 = scalar_lea.vmem %s0, 11
  %s107 = smov 3
  %v108 = vld [vmem:[%s106] ss:$16 sm:%s107]
  %s109 = scalar_lea.vmem %s0, 11
  %s110 = smov 12
  %v111 = vld [vmem:[%s109] ss:$16 sm:%s110]
  %vm112 = vcmask 1043458
  %v113 = vsel %vm112, %v111, %v108
  %s114 = scalar_lea.vmem %s0, 11
  %s115 = smov 48
  %v116 = vld [vmem:[%s114] ss:$16 sm:%s115]
  %vm117 = vcmask 1045508
  %v118 = vsel %vm117, %v116, %v113
  %s119 = scalar_lea.vmem %s0, 11
  %s120 = smov 192
  %v121 = vld [vmem:[%s119] ss:$16 sm:%s120]
  %vm122 = vcmask 1047558
  %v123 = vsel %vm122, %v121, %v118
  %124 = vrot.lane.b32.xlu0 %v123, 88
  %v125 = vpop.permute.xlu0 %124
  %vm126 = vcmask 786112
  %127 = vst.msk [vmem:[%s1] sm:$0xff] %vm126, %v125
  %s128 = scalar_lea.vmem %s0, 10
  %s129 = smov 3
  %v130 = vld [vmem:[%s128] ss:$16 sm:%s129]
  %s131 = scalar_lea.vmem %s0, 10
  %s132 = smov 12
  %v133 = vld [vmem:[%s131] ss:$16 sm:%s132]
  %vm134 = vcmask 1043458
  %v135 = vsel %vm134, %v133, %v130
  %s136 = scalar_lea.vmem %s0, 10
  %s137 = smov 48
  %v138 = vld [vmem:[%s136] ss:$16 sm:%s137]
  %vm139 = vcmask 1045508
  %v140 = vsel %vm139, %v138, %v135
  %s141 = scalar_lea.vmem %s0, 10
  %s142 = smov 192
  %v143 = vld [vmem:[%s141] ss:$16 sm:%s142]
  %vm144 = vcmask 1047558
  %v145 = vsel %vm144, %v143, %v140
  %146 = vrot.lane.b32.xlu0 %v145, 80
  %v147 = vpop.permute.xlu0 %146
  %vm148 = vcmask 720512
  %149 = vst.msk [vmem:[%s1] sm:$0xff] %vm148, %v147
  %s150 = scalar_lea.vmem %s0, 9
  %s151 = smov 3
  %v152 = vld [vmem:[%s150] ss:$16 sm:%s151]
  %s153 = scalar_lea.vmem %s0, 9
  %s154 = smov 12
  %v155 = vld [vmem:[%s153] ss:$16 sm:%s154]
  %vm156 = vcmask 1043458
  %v157 = vsel %vm156, %v155, %v152
  %s158 = scalar_lea.vmem %s0, 9
  %s159 = smov 48
  %v160 = vld [vmem:[%s158] ss:$16 sm:%s159]
  %vm161 = vcmask 1045508
  %v162 = vsel %vm161, %v160, %v157
  %s163 = scalar_lea.vmem %s0, 9
  %s164 = smov 192
  %v165 = vld [vmem:[%s163] ss:$16 sm:%s164]
  %vm166 = vcmask 1047558
  %v167 = vsel %vm166, %v165, %v162
  %168 = vrot.lane.b32.xlu0 %v167, 72
  %v169 = vpop.permute.xlu0 %168
  %vm170 = vcmask 654912
  %171 = vst.msk [vmem:[%s1] sm:$0xff] %vm170, %v169
  %s172 = scalar_lea.vmem %s0, 8
  %s173 = smov 3
  %v174 = vld [vmem:[%s172] ss:$16 sm:%s173]
  %s175 = scalar_lea.vmem %s0, 8
  %s176 = smov 12
  %v177 = vld [vmem:[%s175] ss:$16 sm:%s176]
  %vm178 = vcmask 1043458
  %v179 = vsel %vm178, %v177, %v174
  %s180 = scalar_lea.vmem %s0, 8
  %s181 = smov 48
  %v182 = vld [vmem:[%s180] ss:$16 sm:%s181]
  %vm183 = vcmask 1045508
  %v184 = vsel %vm183, %v182, %v179
  %s185 = scalar_lea.vmem %s0, 8
  %s186 = smov 192
  %v187 = vld [vmem:[%s185] ss:$16 sm:%s186]
  %vm188 = vcmask 1047558
  %v189 = vsel %vm188, %v187, %v184
  %190 = vrot.lane.b32.xlu0 %v189, 64
  %v191 = vpop.permute.xlu0 %190
  %vm192 = vcmask 589312
  %193 = vst.msk [vmem:[%s1] sm:$0xff] %vm192, %v191
  %s194 = scalar_lea.vmem %s0, 7
  %s195 = smov 3
  %v196 = vld [vmem:[%s194] ss:$16 sm:%s195]
  %s197 = scalar_lea.vmem %s0, 7
  %s198 = smov 12
  %v199 = vld [vmem:[%s197] ss:$16 sm:%s198]
  %vm200 = vcmask 1043458
  %v201 = vsel %vm200, %v199, %v196
  %s202 = scalar_lea.vmem %s0, 7
  %s203 = smov 48
  %v204 = vld [vmem:[%s202] ss:$16 sm:%s203]
  %vm205 = vcmask 1045508
  %v206 = vsel %vm205, %v204, %v201
  %s207 = scalar_lea.vmem %s0, 7
  %s208 = smov 192
  %v209 = vld [vmem:[%s207] ss:$16 sm:%s208]
  %vm210 = vcmask 1047558
  %v211 = vsel %vm210, %v209, %v206
  %212 = vrot.lane.b32.xlu0 %v211, 56
  %v213 = vpop.permute.xlu0 %212
  %vm214 = vcmask 523712
  %215 = vst.msk [vmem:[%s1] sm:$0xff] %vm214, %v213
  %s216 = scalar_lea.vmem %s0, 6
  %s217 = smov 3
  %v218 = vld [vmem:[%s216] ss:$16 sm:%s217]
  %s219 = scalar_lea.vmem %s0, 6
  %s220 = smov 12
  %v221 = vld [vmem:[%s219] ss:$16 sm:%s220]
  %vm222 = vcmask 1043458
  %v223 = vsel %vm222, %v221, %v218
  %s224 = scalar_lea.vmem %s0, 6
  %s225 = smov 48
  %v226 = vld [vmem:[%s224] ss:$16 sm:%s225]
  %vm227 = vcmask 1045508
  %v228 = vsel %vm227, %v226, %v223
  %s229 = scalar_lea.vmem %s0, 6
  %s230 = smov 192
  %v231 = vld [vmem:[%s229] ss:$16 sm:%s230]
  %vm232 = vcmask 1047558
  %v233 = vsel %vm232, %v231, %v228
  %234 = vrot.lane.b32.xlu0 %v233, 48
  %v235 = vpop.permute.xlu0 %234
  %vm236 = vcmask 458112
  %237 = vst.msk [vmem:[%s1] sm:$0xff] %vm236, %v235
  %s238 = scalar_lea.vmem %s0, 5
  %s239 = smov 3
  %v240 = vld [vmem:[%s238] ss:$16 sm:%s239]
  %s241 = scalar_lea.vmem %s0, 5
  %s242 = smov 12
  %v243 = vld [vmem:[%s241] ss:$16 sm:%s242]
  %vm244 = vcmask 1043458
  %v245 = vsel %vm244, %v243, %v240
  %s246 = scalar_lea.vmem %s0, 5
  %s247 = smov 48
  %v248 = vld [vmem:[%s246] ss:$16 sm:%s247]
  %vm249 = vcmask 1045508
  %v250 = vsel %vm249, %v248, %v245
  %s251 = scalar_lea.vmem %s0, 5
  %s252 = smov 192
  %v253 = vld [vmem:[%s251] ss:$16 sm:%s252]
  %vm254 = vcmask 1047558
  %v255 = vsel %vm254, %v253, %v250
  %256 = vrot.lane.b32.xlu0 %v255, 40
  %v257 = vpop.permute.xlu0 %256
  %vm258 = vcmask 392512
  %259 = vst.msk [vmem:[%s1] sm:$0xff] %vm258, %v257
  %s260 = scalar_lea.vmem %s0, 4
  %s261 = smov 3
  %v262 = vld [vmem:[%s260] ss:$16 sm:%s261]
  %s263 = scalar_lea.vmem %s0, 4
  %s264 = smov 12
  %v265 = vld [vmem:[%s263] ss:$16 sm:%s264]
  %vm266 = vcmask 1043458
  %v267 = vsel %vm266, %v265, %v262
  %s268 = scalar_lea.vmem %s0, 4
  %s269 = smov 48
  %v270 = vld [vmem:[%s268] ss:$16 sm:%s269]
  %vm271 = vcmask 1045508
  %v272 = vsel %vm271, %v270, %v267
  %s273 = scalar_lea.vmem %s0, 4
  %s274 = smov 192
  %v275 = vld [vmem:[%s273] ss:$16 sm:%s274]
  %vm276 = vcmask 1047558
  %v277 = vsel %vm276, %v275, %v272
  %278 = vrot.lane.b32.xlu0 %v277, 32
  %v279 = vpop.permute.xlu0 %278
  %vm280 = vcmask 326912
  %281 = vst.msk [vmem:[%s1] sm:$0xff] %vm280, %v279
  %s282 = scalar_lea.vmem %s0, 3
  %s283 = smov 3
  %v284 = vld [vmem:[%s282] ss:$16 sm:%s283]
  %s285 = scalar_lea.vmem %s0, 3
  %s286 = smov 12
  %v287 = vld [vmem:[%s285] ss:$16 sm:%s286]
  %vm288 = vcmask 1043458
  %v289 = vsel %vm288, %v287, %v284
  %s290 = scalar_lea.vmem %s0, 3
  %s291 = smov 48
  %v292 = vld [vmem:[%s290] ss:$16 sm:%s291]
  %vm293 = vcmask 1045508
  %v294 = vsel %vm293, %v292, %v289
  %s295 = scalar_lea.vmem %s0, 3
  %s296 = smov 192
  %v297 = vld [vmem:[%s295] ss:$16 sm:%s296]
  %vm298 = vcmask 1047558
  %v299 = vsel %vm298, %v297, %v294
  %300 = vrot.lane.b32.xlu0 %v299, 24
  %v301 = vpop.permute.xlu0 %300
  %vm302 = vcmask 261312
  %303 = vst.msk [vmem:[%s1] sm:$0xff] %vm302, %v301
  %s304 = scalar_lea.vmem %s0, 2
  %s305 = smov 3
  %v306 = vld [vmem:[%s304] ss:$16 sm:%s305]
  %s307 = scalar_lea.vmem %s0, 2
  %s308 = smov 12
  %v309 = vld [vmem:[%s307] ss:$16 sm:%s308]
  %vm310 = vcmask 1043458
  %v311 = vsel %vm310, %v309, %v306
  %s312 = scalar_lea.vmem %s0, 2
  %s313 = smov 48
  %v314 = vld [vmem:[%s312] ss:$16 sm:%s313]
  %vm315 = vcmask 1045508
  %v316 = vsel %vm315, %v314, %v311
  %s317 = scalar_lea.vmem %s0, 2
  %s318 = smov 192
  %v319 = vld [vmem:[%s317] ss:$16 sm:%s318]
  %vm320 = vcmask 1047558
  %v321 = vsel %vm320, %v319, %v316
  %322 = vrot.lane.b32.xlu0 %v321, 16
  %v323 = vpop.permute.xlu0 %322
  %vm324 = vcmask 195712
  %325 = vst.msk [vmem:[%s1] sm:$0xff] %vm324, %v323
  %s326 = scalar_lea.vmem %s0, 1
  %s327 = smov 3
  %v328 = vld [vmem:[%s326] ss:$16 sm:%s327]
  %s329 = scalar_lea.vmem %s0, 1
  %s330 = smov 12
  %v331 = vld [vmem:[%s329] ss:$16 sm:%s330]
  %vm332 = vcmask 1043458
  %v333 = vsel %vm332, %v331, %v328
  %s334 = scalar_lea.vmem %s0, 1
  %s335 = smov 48
  %v336 = vld [vmem:[%s334] ss:$16 sm:%s335]
  %vm337 = vcmask 1045508
  %v338 = vsel %vm337, %v336, %v333
  %s339 = scalar_lea.vmem %s0, 1
  %s340 = smov 192
  %v341 = vld [vmem:[%s339] ss:$16 sm:%s340]
  %vm342 = vcmask 1047558
  %v343 = vsel %vm342, %v341, %v338
  %344 = vrot.lane.b32.xlu0 %v343, 8
  %v345 = vpop.permute.xlu0 %344
  %vm346 = vcmask 130112
  %347 = vst.msk [vmem:[%s1] sm:$0xff] %vm346, %v345

// kernel: convlstm_start_forward.1
$region0: #{convlstm_start_forward.1}
  #allocation0 [shape = 'u32[]', space=smem, size = 0x4, offset = 0x4, fixed_abs, tag = 'smem constant byte address 0x4 - core index']
  #allocation1 [shape = 'u32[144,128]{1,0:T(1,128)}', space=vmem, size = 0x12000, scoped, tag = 'internal scratch']
  #allocation2 [shape = 'f32[2,8,8]{2,1,0:T(8,128)}', space=vmem, size = 0x2000, scoped, tag = 'scratch operand']
  #allocation3 [shape = 'f32[1,1]{1,0:T(1,128)S(1)}', space=vmem, size = 0x200, scoped, tag = 'scoped memory for convlstm_start_forward.1']
  %s0 = inlined_call_operand.vmem [shape: f32[2,8,8], index: 0, kind: input, shape index: {}]
  %s1 = inlined_call_operand.vmem [shape: f32[2,8], index: 1, kind: input, shape index: {}]
  %s2 = inlined_call_operand.vmem [shape: f32[3,8,8], index: 2, kind: input, shape index: {}]
  %s3 = inlined_call_operand.vmem [shape: f32[8,128], index: 3, kind: input, shape index: {}]
  %s4 = inlined_call_operand.vmem [shape: f32[16,128], index: 4, kind: input, shape index: {}]
  %s5 = inlined_call_operand.vmem [shape: f32[128,17], index: 5, kind: input, shape index: {}]
  %s6 = inlined_call_operand.vmem [shape: f32[1,17], index: 6, kind: input, shape index: {}]
  %s7 = inlined_call_operand.<no memory space> [shape: f32[1,1], index: 7, kind: input, shape index: {}]
  %s8 = inlined_call_operand.vmem [shape: f32[144,8], index: 8, kind: input, shape index: {}]
  %s9 = inlined_call_operand.vmem [shape: f32[48,8], index: 9, kind: input, shape index: {}]
  %s10 = inlined_call_operand.vmem [shape: f32[16,16], index: 10, kind: input, shape index: {}]
  %s11 = inlined_call_operand.vmem [shape: f32[4,2,17], index: 11, kind: output, shape index: {0}]
  %s12 = inlined_call_operand.vmem [shape: f32[4,2,8], index: 12, kind: output, shape index: {1}]
  %s13 = inlined_call_operand.hbm [shape: f32[1,1], index: 13, kind: output, shape index: {2}]
  %14 = xla_tuple %s11, %s12, %s13
  %s15 = sld [smem:[#allocation0]]
  $region70: #{convlstm_start_forward.1} parent=0
    _
  %s17 = ssub.s32 1, %s15
  %s18 = scalar_select 0, %s17, %s15
  %v19 = vstv %s7
  %20 = vst [vmem:[#allocation3] sm:$0x1] %v19
  $region1: #{convlstm_start_forward.1} parent=0
    #allocation4 [shape = 'u8[512]{0}', space=vmem, size = 0x400, scoped, tag = 'output window, operand 2, single buffered']
    #allocation5 [shape = 's32[1]{0}', space=sflag, size = 0x4, scoped, tag = 'scoped memory for convlstm_start_forward.1']
    %21 = vsyncpa [#allocation5], 0
    // Predicated region
    $region2: #{convlstm_start_forward.1} parent=1 // pred_check
      _
    $region3: #{convlstm_start_forward.1} parent=1 // pred_check_branch
      %23 = sbr.rel (0) target = $region5
    $region4: #{convlstm_start_forward.1} parent=1 // pred_region
      _
    $region5: #{convlstm_start_forward.1} parent=1 // pred_fallthru
      _
    // Predicated region
    $region6: #{convlstm_start_forward.1} parent=1 // pred_check
      _
    $region7: #{convlstm_start_forward.1} parent=1 // pred_check_branch
      %25 = sbr.rel (0) target = $region9
    $region8: #{convlstm_start_forward.1} parent=1 // pred_region
      _
    $region9: #{convlstm_start_forward.1} parent=1 // pred_fallthru
      _
    // Predicated region
    $region10: #{convlstm_start_forward.1} parent=1 // pred_check
      _
    $region11: #{convlstm_start_forward.1} parent=1 // pred_check_branch
      %27 = sbr.rel (0) target = $region13
    $region12: #{convlstm_start_forward.1} parent=1 // pred_region
      _
    $region13: #{convlstm_start_forward.1} parent=1 // pred_fallthru
      _
    // Predicated region
    $region14: #{convlstm_start_forward.1} parent=1 // pred_check
      _
    $region15: #{convlstm_start_forward.1} parent=1 // pred_check_branch
      %29 = sbr.rel (0) target = $region17
    $region16: #{convlstm_start_forward.1} parent=1 // pred_region
      _
    $region17: #{convlstm_start_forward.1} parent=1 // pred_fallthru
      _
    // Predicated region
    $region18: #{convlstm_start_forward.1} parent=1 // pred_check
      _
    $region19: #{convlstm_start_forward.1} parent=1 // pred_check_branch
      %31 = sbr.rel (0) target = $region21
    $region20: #{convlstm_start_forward.1} parent=1 // pred_region
      _
    $region21: #{convlstm_start_forward.1} parent=1 // pred_fallthru
      _
    // Predicated region
    $region22: #{convlstm_start_forward.1} parent=1 // pred_check
      _
    $region23: #{convlstm_start_forward.1} parent=1 // pred_check_branch
      %33 = sbr.rel (0) target = $region25
    $region24: #{convlstm_start_forward.1} parent=1 // pred_region
      _
    $region25: #{convlstm_start_forward.1} parent=1 // pred_fallthru
      _
    // Predicated region
    $region26: #{convlstm_start_forward.1} parent=1 // pred_check
      _
    $region27: #{convlstm_start_forward.1} parent=1 // pred_check_branch
      %35 = sbr.rel (0) target = $region29
    $region28: #{convlstm_start_forward.1} parent=1 // pred_region
      _
    $region29: #{convlstm_start_forward.1} parent=1 // pred_fallthru
      _
    // Predicated region
    $region30: #{convlstm_start_forward.1} parent=1 // pred_check
      _
    $region31: #{convlstm_start_forward.1} parent=1 // pred_check_branch
      %37 = sbr.rel (0) target = $region33
    $region32: #{convlstm_start_forward.1} parent=1 // pred_region
      _
    $region33: #{convlstm_start_forward.1} parent=1 // pred_fallthru
      _
    // Predicated region
    $region34: #{convlstm_start_forward.1} parent=1 // pred_check
      _
    $region35: #{convlstm_start_forward.1} parent=1 // pred_check_branch
      %39 = sbr.rel (0) target = $region37
    $region36: #{convlstm_start_forward.1} parent=1 // pred_region
      _
    $region37: #{convlstm_start_forward.1} parent=1 // pred_fallthru
      _
    // Predicated region
    $region38: #{convlstm_start_forward.1} parent=1 // pred_check
      _
    $region39: #{convlstm_start_forward.1} parent=1 // pred_check_branch
      %41 = sbr.rel (0) target = $region41
    $region40: #{convlstm_start_forward.1} parent=1 // pred_region
      _
    $region41: #{convlstm_start_forward.1} parent=1 // pred_fallthru
      _
    // Predicated region
    $region42: #{convlstm_start_forward.1} parent=1 // pred_check
      _
    $region43: #{convlstm_start_forward.1} parent=1 // pred_check_branch
      %43 = sbr.rel (0) target = $region45
    $region44: #{convlstm_start_forward.1} parent=1 // pred_region
      _
    $region45: #{convlstm_start_forward.1} parent=1 // pred_fallthru
      _
    %v44 = vld [vmem:[%s1] sm:$0x3]
    %v45 = vld [vmem:[%s2] sm:$0xff]
    %v46 = vld [vmem:[%s2 + $0x8] sm:$0xff]
    %v47 = vld [vmem:[%s2 + $0x10] sm:$0xff]
    %v48 = vld [vmem:[%s3] sm:$0xff]
    %v49 = vld [vmem:[%s4] sm:$0xff]
    %v50 = vld [vmem:[%s4 + $0x8] sm:$0xff]
    %v51 = vld [vmem:[%s5] sm:$0xff]
    %v52 = vld [vmem:[%s5 + $0x8] sm:$0xff]
    %v53 = vld [vmem:[%s5 + $0x10] sm:$0xff]
    %v54 = vld [vmem:[%s5 + $0x18] sm:$0xff]
    %v55 = vld [vmem:[%s5 + $0x20] sm:$0xff]
    %v56 = vld [vmem:[%s5 + $0x28] sm:$0xff]
    %v57 = vld [vmem:[%s5 + $0x30] sm:$0xff]
    %v58 = vld [vmem:[%s5 + $0x38] sm:$0xff]
    %v59 = vld [vmem:[%s5 + $0x40] sm:$0xff]
    %v60 = vld [vmem:[%s5 + $0x48] sm:$0xff]
    %v61 = vld [vmem:[%s5 + $0x50] sm:$0xff]
    %v62 = vld [vmem:[%s5 + $0x58] sm:$0xff]
    %v63 = vld [vmem:[%s5 + $0x60] sm:$0xff]
    %v64 = vld [vmem:[%s5 + $0x68] sm:$0xff]
    %v65 = vld [vmem:[%s5 + $0x70] sm:$0xff]
    %v66 = vld [vmem:[%s5 + $0x78] sm:$0xff]
    %v67 = vld [vmem:[%s6] sm:$0x1]
    %v68 = vld [vmem:[#allocation3] sm:$0x1]
    %v69 = vld [vmem:[%s8] sm:$0xff]
    %v70 = vld [vmem:[%s8 + $0x8] sm:$0xff]
    %v71 = vld [vmem:[%s8 + $0x10] sm:$0xff]
    %v72 = vld [vmem:[%s8 + $0x18] sm:$0xff]
    %v73 = vld [vmem:[%s8 + $0x20] sm:$0xff]
    %v74 = vld [vmem:[%s8 + $0x28] sm:$0xff]
    %v75 = vld [vmem:[%s8 + $0x30] sm:$0xff]
    %v76 = vld [vmem:[%s8 + $0x38] sm:$0xff]
    %v77 = vld [vmem:[%s8 + $0x40] sm:$0xff]
    %v78 = vld [vmem:[%s8 + $0x48] sm:$0xff]
    %v79 = vld [vmem:[%s8 + $0x50] sm:$0xff]
    %v80 = vld [vmem:[%s8 + $0x58] sm:$0xff]
    %v81 = vld [vmem:[%s8 + $0x60] sm:$0xff]
    %v82 = vld [vmem:[%s8 + $0x68] sm:$0xff]
    %v83 = vld [vmem:[%s8 + $0x70] sm:$0xff]
    %v84 = vld [vmem:[%s8 + $0x78] sm:$0xff]
    %v85 = vld [vmem:[%s8 + $0x80] sm:$0xff]
    %v86 = vld [vmem:[%s8 + $0x88] sm:$0xff]
    %v87 = vld [vmem:[%s9] sm:$0xff]
    %v88 = vld [vmem:[%s9 + $0x8] sm:$0xff]
    %v89 = vld [vmem:[%s9 + $0x10] sm:$0xff]
    %v90 = vld [vmem:[%s9 + $0x18] sm:$0xff]
    %v91 = vld [vmem:[%s9 + $0x20] sm:$0xff]
    %v92 = vld [vmem:[%s9 + $0x28] sm:$0xff]
    %v93 = vld [vmem:[%s10] sm:$0xff]
    %v94 = vld [vmem:[%s10 + $0x8] sm:$0xff]
    %v95 = vlaneseq
    %v96 = vshrl.u32 %v95, 7
    %v97 = vlaneseq
    %v98 = vand.u32 %v97, 127
    %vm99 = vcmp.eq.s32.totalorder %v96, %v98
    %v100 = vsel %vm99, 1, 0
    %v101 = vcvt.s32.f32 %v100
    %v102 = vld [vmem:[%s0] sm:$0xff]
    %v103 = vld [vmem:[%s0 + $0x8] sm:$0xff]
    %vm104 = vcmask 64512
    %105 = vst.msk [vmem:[#allocation2] sm:$0xff] %vm104, %v102
    %106 = vst.msk [vmem:[#allocation2 + $0x8] sm:$0xff] %vm104, %v103
    %v107 = vld [vmem:[%s0] sm:$0x1]
    %s108 = scalar_lea.vmem %s0, 8
    %v109 = vld [vmem:[%s108] sm:$0x1]
    %v111 = vrot.slane %v109, 7
    %vm113 = vcmask 1040384
    %v114 = vsel %vm113, %v107, %v111
    %vm115 = vcmp.gt.f32.partialorder %v114, 1e-06
    %v116 = vsel %vm115, 1, 0
    %v117 = vcvt.s32.f32 %v116
    %v118 = vlaneseq
    %v119 = vshrl.u32 %v118, 7
    %v120 = vsub.s32 0, %v119
    %v121 = vrot.slane %v117, %v120
    %v122 = vmul.f32 %v101, %v121
    %v124 = vsel %vm104, %v122, 0
    %126 = vmatprep.subr.mxu0 0.0
    %127 = vmatpush1.msra.mxu0 1.0
    %128 = vmatprep.subr.mxu0 0.0
    %129 = vmatpush1.msra.mxu0 0.0
    %130 = vmatprep.subr.mxu0 0.0
    %131 = vmatpush1.msra.mxu0 0.0
    %132 = vmatprep.subr.mxu0 0.0
    %133 = vmatpush1.msra.mxu0 0.0
    %134 = vmatprep.subr.mxu0 0.0
    %135 = vmatpush1.msra.mxu0 0.0
    %136 = vmatprep.subr.mxu0 0.0
    %137 = vmatpush1.msra.mxu0 0.0
    %138 = vmatprep.subr.mxu0 0.0
    %139 = vmatpush1.msra.mxu0 0.0
    %140 = vmatprep.subr.mxu0 0.0
    %141 = vmatpush1.msra.mxu0 0.0
    %142 = vmatprep.subr.mxu0 0.0
    %143 = vmatpush1.msra.mxu0 0.0
    %144 = vmatprep.subr.mxu0 0.0
    %145 = vmatpush1.msra.mxu0 0.0
    %146 = vmatprep.subr.mxu0 0.0
    %147 = vmatpush1.msra.mxu0 0.0
    %148 = vmatprep.subr.mxu0 0.0
    %149 = vmatpush1.msra.mxu0 0.0
    %150 = vmatprep.subr.mxu0 0.0
    %151 = vmatpush1.msra.mxu0 0.0
    %152 = vmatprep.subr.mxu0 0.0
    %153 = vmatpush1.msra.mxu0 0.0
    %154 = vmatprep.subr.mxu0 0.0
    %155 = vmatpush1.msra.mxu0 0.0
    %156 = vmatprep.subr.mxu0 0.0
    %157 = vmatpush1.msra.mxu0 0.0
    %158 = vmatprep.subr.mxu0 0.0
    %159 = vmatpush1.msra.mxu0 0.0
    %160 = vmatprep.subr.mxu0 0.0
    %161 = vmatpush1.msra.mxu0 0.0
    %162 = vmatprep.subr.mxu0 0.0
    %163 = vmatpush1.msra.mxu0 0.0
    %164 = vmatprep.subr.mxu0 0.0
    %165 = vmatpush1.msra.mxu0 0.0
    %166 = vmatprep.subr.mxu0 0.0
    %167 = vmatpush1.msra.mxu0 0.0
    %168 = vmatprep.subr.mxu0 0.0
    %169 = vmatpush1.msra.mxu0 0.0
    %170 = vmatprep.subr.mxu0 0.0
    %171 = vmatpush1.msra.mxu0 0.0
    %172 = vmatprep.subr.mxu0 0.0
    %173 = vmatpush1.msra.mxu0 0.0
    %174 = vmatprep.subr.mxu0 0.0
    %175 = vmatpush1.msra.mxu0 0.0
    %176 = vmatprep.subr.mxu0 0.0
    %177 = vmatpush1.msra.mxu0 0.0
    %178 = vmatprep.subr.mxu0 0.0
    %179 = vmatpush1.msra.mxu0 0.0
    %180 = vmatprep.subr.mxu0 0.0
    %181 = vmatpush1.msra.mxu0 0.0
    %182 = vmatprep.subr.mxu0 0.0
    %183 = vmatpush1.msra.mxu0 0.0
    %184 = vmatprep.subr.mxu0 0.0
    %185 = vmatpush1.msra.mxu0 0.0
    %186 = vmatprep.subr.mxu0 0.0
    %187 = vmatpush1.msra.mxu0 0.0
    %188 = vmatprep.subr.mxu0 0.0
    %189 = vmatpush1.msra.mxu0 0.0
    %190 = vmatprep.mubr.f32.mxu0 0.0
    %191 = vmatmul.mubr.f32.gmra.mrb[0].mxu0 %v124
    %v192 = vpop.f32.mrb[0].mxu0
    %v193 = vadd.f32 0.0, %v192
    %v194 = vpop.f32.mrb[0].mxu0
    %195 = vdwg.mxu0
    %v196 = vmul.f32 %v121, %v45
    %v197 = vmul.f32 %v121, %v46
    %v198 = vmul.f32 %v121, %v47
    %v199 = vmul.f32 %v193, %v196
    %v200 = vmul.f32 %v193, %v197
    %v201 = vmul.f32 %v193, %v198
    %v202 = vsub.f32 1.0, %v193
    %v203 = vmul.f32 %v202, %v101
    %v204 = vadd.f32 %v199, %v203
    %v205 = vadd.f32 %v200, %v203
    %v206 = vadd.f32 %v201, %v203
    %v207 = vsel %vm104, %v204, 0.0
    %208 = vadd.xlane.f32.xlu0 %v207
    %v209 = vpop.xlane.xlu0 %208
    %v210 = vsel %vm104, %v205, 0.0
    %211 = vadd.xlane.f32.xlu0 %v210
    %v212 = vpop.xlane.xlu0 %211
    %v213 = vsel %vm104, %v206, 0.0
    %214 = vadd.xlane.f32.xlu0 %v213
    %v215 = vpop.xlane.xlu0 %214
    %v216 = vrcp.pop %v209
    %v217 = vrcp.pop %v212
    %v218 = vrcp.pop %v215
    %v219 = vmul.f32 %v204, %v216
    %v220 = vmul.f32 %v205, %v217
    %v221 = vmul.f32 %v206, %v218
    %v222 = vlaneseq
    %v223 = vshrl.u32 %v222, 7
    %v224 = vsub.s32 1, %v223
    %v225 = vrot.slane %v117, %v224
    %v226 = vmul.f32 %v101, %v225
    %v228 = vsel %vm104, %v226, 0
    %230 = vmatprep.subr.mxu0 0.0
    %231 = vmatpush1.msra.mxu0 1.0
    %232 = vmatprep.subr.mxu0 0.0
    %233 = vmatpush1.msra.mxu0 0.0
    %234 = vmatprep.subr.mxu0 0.0
    %235 = vmatpush1.msra.mxu0 0.0
    %236 = vmatprep.subr.mxu0 0.0
    %237 = vmatpush1.msra.mxu0 0.0
    %238 = vmatprep.subr.mxu0 0.0
    %239 = vmatpush1.msra.mxu0 0.0
    %240 = vmatprep.subr.mxu0 0.0
    %241 = vmatpush1.msra.mxu0 0.0
    %242 = vmatprep.subr.mxu0 0.0
    %243 = vmatpush1.msra.mxu0 0.0
    %244 = vmatprep.subr.mxu0 0.0
    %245 = vmatpush1.msra.mxu0 0.0
    %246 = vmatprep.subr.mxu0 0.0
    %247 = vmatpush1.msra.mxu0 0.0
    %248 = vmatprep.subr.mxu0 0.0
    %249 = vmatpush1.msra.mxu0 0.0
    %250 = vmatprep.subr.mxu0 0.0
    %251 = vmatpush1.msra.mxu0 0.0
    %252 = vmatprep.subr.mxu0 0.0
    %253 = vmatpush1.msra.mxu0 0.0
    %254 = vmatprep.subr.mxu0 0.0
    %255 = vmatpush1.msra.mxu0 0.0
    %256 = vmatprep.subr.mxu0 0.0
    %257 = vmatpush1.msra.mxu0 0.0
    %258 = vmatprep.subr.mxu0 0.0
    %259 = vmatpush1.msra.mxu0 0.0
    %260 = vmatprep.subr.mxu0 0.0
    %261 = vmatpush1.msra.mxu0 0.0
    %262 = vmatprep.subr.mxu0 0.0
    %263 = vmatpush1.msra.mxu0 0.0
    %264 = vmatprep.subr.mxu0 0.0
    %265 = vmatpush1.msra.mxu0 0.0
    %266 = vmatprep.subr.mxu0 0.0
    %267 = vmatpush1.msra.mxu0 0.0
    %268 = vmatprep.subr.mxu0 0.0
    %269 = vmatpush1.msra.mxu0 0.0
    %270 = vmatprep.subr.mxu0 0.0
    %271 = vmatpush1.msra.mxu0 0.0
    %272 = vmatprep.subr.mxu0 0.0
    %273 = vmatpush1.msra.mxu0 0.0
    %274 = vmatprep.subr.mxu0 0.0
    %275 = vmatpush1.msra.mxu0 0.0
    %276 = vmatprep.subr.mxu0 0.0
    %277 = vmatpush1.msra.mxu0 0.0
    %278 = vmatprep.subr.mxu0 0.0
    %279 = vmatpush1.msra.mxu0 0.0
    %280 = vmatprep.subr.mxu0 0.0
    %281 = vmatpush1.msra.mxu0 0.0
    %282 = vmatprep.subr.mxu0 0.0
    %283 = vmatpush1.msra.mxu0 0.0
    %284 = vmatprep.subr.mxu0 0.0
    %285 = vmatpush1.msra.mxu0 0.0
    %286 = vmatprep.subr.mxu0 0.0
    %287 = vmatpush1.msra.mxu0 0.0
    %288 = vmatprep.subr.mxu0 0.0
    %289 = vmatpush1.msra.mxu0 0.0
    %290 = vmatprep.subr.mxu0 0.0
    %291 = vmatpush1.msra.mxu0 0.0
    %292 = vmatprep.subr.mxu0 0.0
    %293 = vmatpush1.msra.mxu0 0.0
    %294 = vmatprep.mubr.f32.mxu0 0.0
    %295 = vmatmul.mubr.f32.gmra.mrb[0].mxu0 %v228
    %v296 = vpop.f32.mrb[0].mxu0
    %v297 = vadd.f32 0.0, %v296
    %v298 = vpop.f32.mrb[0].mxu0
    %299 = vdwg.mxu0
    %v300 = vmul.f32 %v225, %v45
    %v301 = vmul.f32 %v225, %v46
    %v302 = vmul.f32 %v225, %v47
    %v303 = vmul.f32 %v297, %v300
    %v304 = vmul.f32 %v297, %v301
    %v305 = vmul.f32 %v297, %v302
    %v306 = vsub.f32 1.0, %v297
    %v307 = vmul.f32 %v306, %v101
    %v308 = vadd.f32 %v303, %v307
    %v309 = vadd.f32 %v304, %v307
    %v310 = vadd.f32 %v305, %v307
    %v311 = vsel %vm104, %v308, 0.0
    %312 = vadd.xlane.f32.xlu0 %v311
    %v313 = vpop.xlane.xlu0 %312
    %v314 = vsel %vm104, %v309, 0.0
    %315 = vadd.xlane.f32.xlu0 %v314
    %v316 = vpop.xlane.xlu0 %315
    %v317 = vsel %vm104, %v310, 0.0
    %318 = vadd.xlane.f32.xlu0 %v317
    %v319 = vpop.xlane.xlu0 %318
    %v320 = vrcp.pop %v313
    %v321 = vrcp.pop %v316
    %v322 = vrcp.pop %v319
    %v323 = vmul.f32 %v308, %v320
    %v324 = vmul.f32 %v309, %v321
    %v325 = vmul.f32 %v310, %v322
    %v326 = vld [vmem:[#allocation2] sm:$0xff]
    %v328 = vsel %vm104, %v69, 0
    %v331 = vsel %vm104, %v70, 0
    %v334 = vsel %vm104, %v71, 0
    %v337 = vsel %vm104, %v72, 0
    %v340 = vsel %vm104, %v73, 0
    %v343 = vsel %vm104, %v74, 0
    %v346 = vsel %vm104, %v75, 0
    %v349 = vsel %vm104, %v76, 0
    %v352 = vsel %vm104, %v77, 0
    %v355 = vsel %vm104, %v78, 0
    %v358 = vsel %vm104, %v79, 0
    %v361 = vsel %vm104, %v80, 0
    %v364 = vsel %vm104, %v81, 0
    %v367 = vsel %vm104, %v82, 0
    %v370 = vsel %vm104, %v83, 0
    %v373 = vsel %vm104, %v84, 0
    %v376 = vsel %vm104, %v85, 0
    %v379 = vsel %vm104, %v86, 0
    %381 = vmatprep.subr.mxu0 0.0
    %382 = vmatpush1.msra.mxu0 %v326
    %383 = vmatprep.subr.mxu0 0.0
    %384 = vmatpush1.msra.mxu0 0.0
    %385 = vmatprep.subr.mxu0 0.0
    %386 = vmatpush1.msra.mxu0 0.0
    %387 = vmatprep.subr.mxu0 0.0
    %388 = vmatpush1.msra.mxu0 0.0
    %389 = vmatprep.subr.mxu0 0.0
    %390 = vmatpush1.msra.mxu0 0.0
    %391 = vmatprep.subr.mxu0 0.0
    %392 = vmatpush1.msra.mxu0 0.0
    %393 = vmatprep.subr.mxu0 0.0
    %394 = vmatpush1.msra.mxu0 0.0
    %395 = vmatprep.subr.mxu0 0.0
    %396 = vmatpush1.msra.mxu0 0.0
    %397 = vmatprep.subr.mxu0 0.0
    %398 = vmatpush1.msra.mxu0 0.0
    %399 = vmatprep.subr.mxu0 0.0
    %400 = vmatpush1.msra.mxu0 0.0
    %401 = vmatprep.subr.mxu0 0.0
    %402 = vmatpush1.msra.mxu0 0.0
    %403 = vmatprep.subr.mxu0 0.0
    %404 = vmatpush1.msra.mxu0 0.0
    %405 = vmatprep.subr.mxu0 0.0
    %406 = vmatpush1.msra.mxu0 0.0
    %407 = vmatprep.subr.mxu0 0.0
    %408 = vmatpush1.msra.mxu0 0.0
    %409 = vmatprep.subr.mxu0 0.0
    %410 = vmatpush1.msra.mxu0 0.0
    %411 = vmatprep.subr.mxu0 0.0
    %412 = vmatpush1.msra.mxu0 0.0
    %413 = vmatprep.subr.mxu0 0.0
    %414 = vmatpush1.msra.mxu0 0.0
    %415 = vmatprep.subr.mxu0 0.0
    %416 = vmatpush1.msra.mxu0 0.0
    %417 = vmatprep.subr.mxu0 0.0
    %418 = vmatpush1.msra.mxu0 0.0
    %419 = vmatprep.subr.mxu0 0.0
    %420 = vmatpush1.msra.mxu0 0.0
    %421 = vmatprep.subr.mxu0 0.0
    %422 = vmatpush1.msra.mxu0 0.0
    %423 = vmatprep.subr.mxu0 0.0
    %424 = vmatpush1.msra.mxu0 0.0
    %425 = vmatprep.subr.mxu0 0.0
    %426 = vmatpush1.msra.mxu0 0.0
    %427 = vmatprep.subr.mxu0 0.0
    %428 = vmatpush1.msra.mxu0 0.0
    %429 = vmatprep.subr.mxu0 0.0
    %430 = vmatpush1.msra.mxu0 0.0
    %431 = vmatprep.subr.mxu0 0.0
    %432 = vmatpush1.msra.mxu0 0.0
    %433 = vmatprep.subr.mxu0 0.0
    %434 = vmatpush1.msra.mxu0 0.0
    %435 = vmatprep.subr.mxu0 0.0
    %436 = vmatpush1.msra.mxu0 0.0
    %437 = vmatprep.subr.mxu0 0.0
    %438 = vmatpush1.msra.mxu0 0.0
    %439 = vmatprep.subr.mxu0 0.0
    %440 = vmatpush1.msra.mxu0 0.0
    %441 = vmatprep.subr.mxu0 0.0
    %442 = vmatpush1.msra.mxu0 0.0
    %443 = vmatprep.subr.mxu0 0.0
    %444 = vmatpush1.msra.mxu0 0.0
    %445 = vmatprep.mubr.f32.mxu0 0.0
    %446 = vmatmul.mubr.f32.gmra.mrb[0].mxu0 %v328
    %v447 = vpop.f32.mrb[0].mxu0
    %v448 = vadd.f32 0.0, %v447
    %v449 = vpop.f32.mrb[0].mxu0
    %450 = vmatprep.mubr.f32.mxu0 0.0
    %451 = vmatmul.mubr.f32.gmra.mrb[0].mxu0 %v331
    %v452 = vpop.f32.mrb[0].mxu0
    %v453 = vadd.f32 0.0, %v452
    %v454 = vpop.f32.mrb[0].mxu0
    %455 = vmatprep.mubr.f32.mxu0 0.0
    %456 = vmatmul.mubr.f32.gmra.mrb[0].mxu0 %v334
    %v457 = vpop.f32.mrb[0].mxu0
    %v458 = vadd.f32 0.0, %v457
    %v459 = vpop.f32.mrb[0].mxu0
    %460 = vmatprep.mubr.f32.mxu0 0.0
    %461 = vmatmul.mubr.f32.gmra.mrb[0].mxu0 %v337
    %v462 = vpop.f32.mrb[0].mxu0
    %v463 = vadd.f32 0.0, %v462
    %v464 = vpop.f32.mrb[0].mxu0
    %465 = vmatprep.mubr.f32.mxu0 0.0
    %466 = vmatmul.mubr.f32.gmra.mrb[0].mxu0 %v340
    %v467 = vpop.f32.mrb[0].mxu0
    %v468 = vadd.f32 0.0, %v467
    %v469 = vpop.f32.mrb[0].mxu0
    %470 = vmatprep.mubr.f32.mxu0 0.0
    %471 = vmatmul.mubr.f32.gmra.mrb[0].mxu0 %v343
    %v472 = vpop.f32.mrb[0].mxu0
    %v473 = vadd.f32 0.0, %v472
    %v474 = vpop.f32.mrb[0].mxu0
    %475 = vmatprep.mubr.f32.mxu0 0.0
    %476 = vmatmul.mubr.f32.gmra.mrb[0].mxu0 %v346
    %v477 = vpop.f32.mrb[0].mxu0
    %v478 = vadd.f32 0.0, %v477
    %v479 = vpop.f32.mrb[0].mxu0
    %480 = vmatprep.mubr.f32.mxu0 0.0
    %481 = vmatmul.mubr.f32.gmra.mrb[0].mxu0 %v349
    %v482 = vpop.f32.mrb[0].mxu0
    %v483 = vadd.f32 0.0, %v482
    %v484 = vpop.f32.mrb[0].mxu0
    %485 = vmatprep.mubr.f32.mxu0 0.0
    %486 = vmatmul.mubr.f32.gmra.mrb[0].mxu0 %v352
    %v487 = vpop.f32.mrb[0].mxu0
    %v488 = vadd.f32 0.0, %v487
    %v489 = vpop.f32.mrb[0].mxu0
    %490 = vmatprep.mubr.f32.mxu0 0.0
    %491 = vmatmul.mubr.f32.gmra.mrb[0].mxu0 %v355
    %v492 = vpop.f32.mrb[0].mxu0
    %v493 = vadd.f32 0.0, %v492
    %v494 = vpop.f32.mrb[0].mxu0
    %495 = vmatprep.mubr.f32.mxu0 0.0
    %496 = vmatmul.mubr.f32.gmra.mrb[0].mxu0 %v358
    %v497 = vpop.f32.mrb[0].mxu0
    %v498 = vadd.f32 0.0, %v497
    %v499 = vpop.f32.mrb[0].mxu0
    %500 = vmatprep.mubr.f32.mxu0 0.0
    %501 = vmatmul.mubr.f32.gmra.mrb[0].mxu0 %v361
    %v502 = vpop.f32.mrb[0].mxu0
    %v503 = vadd.f32 0.0, %v502
    %v504 = vpop.f32.mrb[0].mxu0
    %505 = vmatprep.mubr.f32.mxu0 0.0
    %506 = vmatmul.mubr.f32.gmra.mrb[0].mxu0 %v364
    %v507 = vpop.f32.mrb[0].mxu0
    %v508 = vadd.f32 0.0, %v507
    %v509 = vpop.f32.mrb[0].mxu0
    %510 = vmatprep.mubr.f32.mxu0 0.0
    %511 = vmatmul.mubr.f32.gmra.mrb[0].mxu0 %v367
    %v512 = vpop.f32.mrb[0].mxu0
    %v513 = vadd.f32 0.0, %v512
    %v514 = vpop.f32.mrb[0].mxu0
    %515 = vmatprep.mubr.f32.mxu0 0.0
    %516 = vmatmul.mubr.f32.gmra.mrb[0].mxu0 %v370
    %v517 = vpop.f32.mrb[0].mxu0
    %v518 = vadd.f32 0.0, %v517
    %v519 = vpop.f32.mrb[0].mxu0
    %520 = vmatprep.mubr.f32.mxu0 0.0
    %521 = vmatmul.mubr.f32.gmra.mrb[0].mxu0 %v373
    %v522 = vpop.f32.mrb[0].mxu0
    %v523 = vadd.f32 0.0, %v522
    %v524 = vpop.f32.mrb[0].mxu0
    %525 = vmatprep.mubr.f32.mxu0 0.0
    %526 = vmatmul.mubr.f32.gmra.mrb[0].mxu0 %v376
    %v527 = vpop.f32.mrb[0].mxu0
    %v528 = vadd.f32 0.0, %v527
    %v529 = vpop.f32.mrb[0].mxu0
    %530 = vmatprep.mubr.f32.mxu0 0.0
    %531 = vmatmul.mubr.f32.gmra.mrb[0].mxu0 %v379
    %v532 = vpop.f32.mrb[0].mxu0
    %v533 = vadd.f32 0.0, %v532
    %v534 = vpop.f32.mrb[0].mxu0
    %535 = vdwg.mxu0
    %v537 = vsel %vm104, %v448, 0
    %v540 = vsel %vm104, %v453, 0
    %v543 = vsel %vm104, %v458, 0
    %v546 = vsel %vm104, %v463, 0
    %v549 = vsel %vm104, %v468, 0
    %v552 = vsel %vm104, %v473, 0
    %v555 = vsel %vm104, %v219, 0
    %557 = vmatprep.subr.mxu0 0.0
    %558 = vmatpush1.xpose.msra.mxu0 %v555
    %559 = vmatprep.subr.mxu0 0.0
    %560 = vmatpush1.xpose.msra.mxu0 0.0
    %561 = vmatprep.subr.mxu0 0.0
    %562 = vmatpush1.xpose.msra.mxu0 0.0
    %563 = vmatprep.subr.mxu0 0.0
    %564 = vmatpush1.xpose.msra.mxu0 0.0
    %565 = vmatprep.subr.mxu0 0.0
    %566 = vmatpush1.xpose.msra.mxu0 0.0
    %567 = vmatprep.subr.mxu0 0.0
    %568 = vmatpush1.xpose.msra.mxu0 0.0
    %569 = vmatprep.subr.mxu0 0.0
    %570 = vmatpush1.xpose.msra.mxu0 0.0
    %571 = vmatprep.subr.mxu0 0.0
    %572 = vmatpush1.xpose.msra.mxu0 0.0
    %573 = vmatprep.subr.mxu0 0.0
    %574 = vmatpush1.xpose.msra.mxu0 0.0
    %575 = vmatprep.subr.mxu0 0.0
    %576 = vmatpush1.xpose.msra.mxu0 0.0
    %577 = vmatprep.subr.mxu0 0.0
    %578 = vmatpush1.xpose.msra.mxu0 0.0
    %579 = vmatprep.subr.mxu0 0.0
    %580 = vmatpush1.xpose.msra.mxu0 0.0
    %581 = vmatprep.subr.mxu0 0.0
    %582 = vmatpush1.xpose.msra.mxu0 0.0
    %583 = vmatprep.subr.mxu0 0.0
    %584 = vmatpush1.xpose.msra.mxu0 0.0
    %585 = vmatprep.subr.mxu0 0.0
    %586 = vmatpush1.xpose.msra.mxu0 0.0
    %587 = vmatprep.subr.mxu0 0.0
    %588 = vmatpush1.xpose.msra.mxu0 0.0
    %589 = vmatprep.subr.mxu0 0.0
    %590 = vmatpush1.xpose.msra.mxu0 0.0
    %591 = vmatprep.subr.mxu0 0.0
    %592 = vmatpush1.xpose.msra.mxu0 0.0
    %593 = vmatprep.subr.mxu0 0.0
    %594 = vmatpush1.xpose.msra.mxu0 0.0
    %595 = vmatprep.subr.mxu0 0.0
    %596 = vmatpush1.xpose.msra.mxu0 0.0
    %597 = vmatprep.subr.mxu0 0.0
    %598 = vmatpush1.xpose.msra.mxu0 0.0
    %599 = vmatprep.subr.mxu0 0.0
    %600 = vmatpush1.xpose.msra.mxu0 0.0
    %601 = vmatprep.subr.mxu0 0.0
    %602 = vmatpush1.xpose.msra.mxu0 0.0
    %603 = vmatprep.subr.mxu0 0.0
    %604 = vmatpush1.xpose.msra.mxu0 0.0
    %605 = vmatprep.subr.mxu0 0.0
    %606 = vmatpush1.xpose.msra.mxu0 0.0
    %607 = vmatprep.subr.mxu0 0.0
    %608 = vmatpush1.xpose.msra.mxu0 0.0
    %609 = vmatprep.subr.mxu0 0.0
    %610 = vmatpush1.xpose.msra.mxu0 0.0
    %611 = vmatprep.subr.mxu0 0.0
    %612 = vmatpush1.xpose.msra.mxu0 0.0
    %613 = vmatprep.subr.mxu0 0.0
    %614 = vmatpush1.xpose.msra.mxu0 0.0
    %615 = vmatprep.subr.mxu0 0.0
    %616 = vmatpush1.xpose.msra.mxu0 0.0
    %617 = vmatprep.subr.mxu0 0.0
    %618 = vmatpush1.xpose.msra.mxu0 0.0
    %619 = vmatprep.subr.mxu0 0.0
    %620 = vmatpush1.xpose.msra.mxu0 0.0
    %621 = vmatprep.mubr.f32.mxu0 0.0
    %622 = vmatmul.mubr.f32.gmra.mrb[0].mxu0 %v537
    %v623 = vpop.f32.mrb[0].mxu0
    %v624 = vadd.f32 0.0, %v623
    %v625 = vpop.f32.mrb[0].mxu0
    %626 = vmatprep.mubr.f32.mxu0 0.0
    %627 = vmatmul.mubr.f32.gmra.mrb[0].mxu0 %v540
    %v628 = vpop.f32.mrb[0].mxu0
    %v629 = vadd.f32 0.0, %v628
    %v630 = vpop.f32.mrb[0].mxu0
    %631 = vmatprep.mubr.f32.mxu0 0.0
    %632 = vmatmul.mubr.f32.gmra.mrb[0].mxu0 %v543
    %v633 = vpop.f32.mrb[0].mxu0
    %v634 = vadd.f32 0.0, %v633
    %v635 = vpop.f32.mrb[0].mxu0
    %636 = vmatprep.mubr.f32.mxu0 0.0
    %637 = vmatmul.mubr.f32.gmra.mrb[0].mxu0 %v546
    %v638 = vpop.f32.mrb[0].mxu0
    %v639 = vadd.f32 0.0, %v638
    %v640 = vpop.f32.mrb[0].mxu0
    %641 = vmatprep.mubr.f32.mxu0 0.0
    %642 = vmatmul.mubr.f32.gmra.mrb[0].mxu0 %v549
    %v643 = vpop.f32.mrb[0].mxu0
    %v644 = vadd.f32 0.0, %v643
    %v645 = vpop.f32.mrb[0].mxu0
    %646 = vmatprep.mubr.f32.mxu0 0.0
    %647 = vmatmul.mubr.f32.gmra.mrb[0].mxu0 %v552
    %v648 = vpop.f32.mrb[0].mxu0
    %v649 = vadd.f32 0.0, %v648
    %v650 = vpop.f32.mrb[0].mxu0
    %651 = vdwg.mxu0
    %v652 = vadd.f32 %v87, %v624
    %v653 = vadd.f32 %v88, %v629
    %v654 = vadd.f32 %v89, %v634
    %v655 = vadd.f32 %v90, %v639
    %v656 = vadd.f32 %v91, %v644
    %v657 = vadd.f32 %v92, %v649
    %v659 = vsel %vm104, %v478, 0
    %v662 = vsel %vm104, %v483, 0
    %v665 = vsel %vm104, %v488, 0
    %v668 = vsel %vm104, %v493, 0
    %v671 = vsel %vm104, %v498, 0
    %v674 = vsel %vm104, %v503, 0
    %v677 = vsel %vm104, %v220, 0
    %679 = vmatprep.subr.mxu0 0.0
    %680 = vmatpush1.xpose.msra.mxu0 %v677
    %681 = vmatprep.subr.mxu0 0.0
    %682 = vmatpush1.xpose.msra.mxu0 0.0
    %683 = vmatprep.subr.mxu0 0.0
    %684 = vmatpush1.xpose.msra.mxu0 0.0
    %685 = vmatprep.subr.mxu0 0.0
    %686 = vmatpush1.xpose.msra.mxu0 0.0
    %687 = vmatprep.subr.mxu0 0.0
    %688 = vmatpush1.xpose.msra.mxu0 0.0
    %689 = vmatprep.subr.mxu0 0.0
    %690 = vmatpush1.xpose.msra.mxu0 0.0
    %691 = vmatprep.subr.mxu0 0.0
    %692 = vmatpush1.xpose.msra.mxu0 0.0
    %693 = vmatprep.subr.mxu0 0.0
    %694 = vmatpush1.xpose.msra.mxu0 0.0
    %695 = vmatprep.subr.mxu0 0.0
    %696 = vmatpush1.xpose.msra.mxu0 0.0
    %697 = vmatprep.subr.mxu0 0.0
    %698 = vmatpush1.xpose.msra.mxu0 0.0
    %699 = vmatprep.subr.mxu0 0.0
    %700 = vmatpush1.xpose.msra.mxu0 0.0
    %701 = vmatprep.subr.mxu0 0.0
    %702 = vmatpush1.xpose.msra.mxu0 0.0
    %703 = vmatprep.subr.mxu0 0.0
    %704 = vmatpush1.xpose.msra.mxu0 0.0
    %705 = vmatprep.subr.mxu0 0.0
    %706 = vmatpush1.xpose.msra.mxu0 0.0
    %707 = vmatprep.subr.mxu0 0.0
    %708 = vmatpush1.xpose.msra.mxu0 0.0
    %709 = vmatprep.subr.mxu0 0.0
    %710 = vmatpush1.xpose.msra.mxu0 0.0
    %711 = vmatprep.subr.mxu0 0.0
    %712 = vmatpush1.xpose.msra.mxu0 0.0
    %713 = vmatprep.subr.mxu0 0.0
    %714 = vmatpush1.xpose.msra.mxu0 0.0
    %715 = vmatprep.subr.mxu0 0.0
    %716 = vmatpush1.xpose.msra.mxu0 0.0
    %717 = vmatprep.subr.mxu0 0.0
    %718 = vmatpush1.xpose.msra.mxu0 0.0
    %719 = vmatprep.subr.mxu0 0.0
    %720 = vmatpush1.xpose.msra.mxu0 0.0
    %721 = vmatprep.subr.mxu0 0.0
    %722 = vmatpush1.xpose.msra.mxu0 0.0
    %723 = vmatprep.subr.mxu0 0.0
    %724 = vmatpush1.xpose.msra.mxu0 0.0
    %725 = vmatprep.subr.mxu0 0.0
    %726 = vmatpush1.xpose.msra.mxu0 0.0
    %727 = vmatprep.subr.mxu0 0.0
    %728 = vmatpush1.xpose.msra.mxu0 0.0
    %729 = vmatprep.subr.mxu0 0.0
    %730 = vmatpush1.xpose.msra.mxu0 0.0
    %731 = vmatprep.subr.mxu0 0.0
    %732 = vmatpush1.xpose.msra.mxu0 0.0
    %733 = vmatprep.subr.mxu0 0.0
    %734 = vmatpush1.xpose.msra.mxu0 0.0
    %735 = vmatprep.subr.mxu0 0.0
    %736 = vmatpush1.xpose.msra.mxu0 0.0
    %737 = vmatprep.subr.mxu0 0.0
    %738 = vmatpush1.xpose.msra.mxu0 0.0
    %739 = vmatprep.subr.mxu0 0.0
    %740 = vmatpush1.xpose.msra.mxu0 0.0
    %741 = vmatprep.subr.mxu0 0.0
    %742 = vmatpush1.xpose.msra.mxu0 0.0
    %743 = vmatprep.mubr.f32.mxu0 0.0
    %744 = vmatmul.mubr.f32.gmra.mrb[0].mxu0 %v659
    %v745 = vpop.f32.mrb[0].mxu0
    %v746 = vadd.f32 0.0, %v745
    %v747 = vpop.f32.mrb[0].mxu0
    %748 = vmatprep.mubr.f32.mxu0 0.0
    %749 = vmatmul.mubr.f32.gmra.mrb[0].mxu0 %v662
    %v750 = vpop.f32.mrb[0].mxu0
    %v751 = vadd.f32 0.0, %v750
    %v752 = vpop.f32.mrb[0].mxu0
    %753 = vmatprep.mubr.f32.mxu0 0.0
    %754 = vmatmul.mubr.f32.gmra.mrb[0].mxu0 %v665
    %v755 = vpop.f32.mrb[0].mxu0
    %v756 = vadd.f32 0.0, %v755
    %v757 = vpop.f32.mrb[0].mxu0
    %758 = vmatprep.mubr.f32.mxu0 0.0
    %759 = vmatmul.mubr.f32.gmra.mrb[0].mxu0 %v668
    %v760 = vpop.f32.mrb[0].mxu0
    %v761 = vadd.f32 0.0, %v760
    %v762 = vpop.f32.mrb[0].mxu0
    %763 = vmatprep.mubr.f32.mxu0 0.0
    %764 = vmatmul.mubr.f32.gmra.mrb[0].mxu0 %v671
    %v765 = vpop.f32.mrb[0].mxu0
    %v766 = vadd.f32 0.0, %v765
    %v767 = vpop.f32.mrb[0].mxu0
    %768 = vmatprep.mubr.f32.mxu0 0.0
    %769 = vmatmul.mubr.f32.gmra.mrb[0].mxu0 %v674
    %v770 = vpop.f32.mrb[0].mxu0
    %v771 = vadd.f32 0.0, %v770
    %v772 = vpop.f32.mrb[0].mxu0
    %773 = vdwg.mxu0
    %v774 = vadd.f32 %v652, %v746
    %v775 = vadd.f32 %v653, %v751
    %v776 = vadd.f32 %v654, %v756
    %v777 = vadd.f32 %v655, %v761
    %v778 = vadd.f32 %v656, %v766
    %v779 = vadd.f32 %v657, %v771
    %v781 = vsel %vm104, %v508, 0
    %v784 = vsel %vm104, %v513, 0
    %v787 = vsel %vm104, %v518, 0
    %v790 = vsel %vm104, %v523, 0
    %v793 = vsel %vm104, %v528, 0
    %v796 = vsel %vm104, %v533, 0
    %v799 = vsel %vm104, %v221, 0
    %801 = vmatprep.subr.mxu0 0.0
    %802 = vmatpush1.xpose.msra.mxu0 %v799
    %803 = vmatprep.subr.mxu0 0.0
    %804 = vmatpush1.xpose.msra.mxu0 0.0
    %805 = vmatprep.subr.mxu0 0.0
    %806 = vmatpush1.xpose.msra.mxu0 0.0
    %807 = vmatprep.subr.mxu0 0.0
    %808 = vmatpush1.xpose.msra.mxu0 0.0
    %809 = vmatprep.subr.mxu0 0.0
    %810 = vmatpush1.xpose.msra.mxu0 0.0
    %811 = vmatprep.subr.mxu0 0.0
    %812 = vmatpush1.xpose.msra.mxu0 0.0
    %813 = vmatprep.subr.mxu0 0.0
    %814 = vmatpush1.xpose.msra.mxu0 0.0
    %815 = vmatprep.subr.mxu0 0.0
    %816 = vmatpush1.xpose.msra.mxu0 0.0
    %817 = vmatprep.subr.mxu0 0.0
    %818 = vmatpush1.xpose.msra.mxu0 0.0
    %819 = vmatprep.subr.mxu0 0.0
    %820 = vmatpush1.xpose.msra.mxu0 0.0
    %821 = vmatprep.subr.mxu0 0.0
    %822 = vmatpush1.xpose.msra.mxu0 0.0
    %823 = vmatprep.subr.mxu0 0.0
    %824 = vmatpush1.xpose.msra.mxu0 0.0
    %825 = vmatprep.subr.mxu0 0.0
    %826 = vmatpush1.xpose.msra.mxu0 0.0
    %827 = vmatprep.subr.mxu0 0.0
    %828 = vmatpush1.xpose.msra.mxu0 0.0
    %829 = vmatprep.subr.mxu0 0.0
    %830 = vmatpush1.xpose.msra.mxu0 0.0
    %831 = vmatprep.subr.mxu0 0.0
    %832 = vmatpush1.xpose.msra.mxu0 0.0
    %833 = vmatprep.subr.mxu0 0.0
    %834 = vmatpush1.xpose.msra.mxu0 0.0
    %835 = vmatprep.subr.mxu0 0.0
    %836 = vmatpush1.xpose.msra.mxu0 0.0
    %837 = vmatprep.subr.mxu0 0.0
    %838 = vmatpush1.xpose.msra.mxu0 0.0
    %839 = vmatprep.subr.mxu0 0.0
    %840 = vmatpush1.xpose.msra.mxu0 0.0
    %841 = vmatprep.subr.mxu0 0.0
    %842 = vmatpush1.xpose.msra.mxu0 0.0
    %843 = vmatprep.subr.mxu0 0.0
    %844 = vmatpush1.xpose.msra.mxu0 0.0
    %845 = vmatprep.subr.mxu0 0.0
    %846 = vmatpush1.xpose.msra.mxu0 0.0
    %847 = vmatprep.subr.mxu0 0.0
    %848 = vmatpush1.xpose.msra.mxu0 0.0
    %849 = vmatprep.subr.mxu0 0.0
    %850 = vmatpush1.xpose.msra.mxu0 0.0
    %851 = vmatprep.subr.mxu0 0.0
    %852 = vmatpush1.xpose.msra.mxu0 0.0
    %853 = vmatprep.subr.mxu0 0.0
    %854 = vmatpush1.xpose.msra.mxu0 0.0
    %855 = vmatprep.subr.mxu0 0.0
    %856 = vmatpush1.xpose.msra.mxu0 0.0
    %857 = vmatprep.subr.mxu0 0.0
    %858 = vmatpush1.xpose.msra.mxu0 0.0
    %859 = vmatprep.subr.mxu0 0.0
    %860 = vmatpush1.xpose.msra.mxu0 0.0
    %861 = vmatprep.subr.mxu0 0.0
    %862 = vmatpush1.xpose.msra.mxu0 0.0
    %863 = vmatprep.subr.mxu0 0.0
    %864 = vmatpush1.xpose.msra.mxu0 0.0
    %865 = vmatprep.mubr.f32.mxu0 0.0
    %866 = vmatmul.mubr.f32.gmra.mrb[0].mxu0 %v781
    %v867 = vpop.f32.mrb[0].mxu0
    %v868 = vadd.f32 0.0, %v867
    %v869 = vpop.f32.mrb[0].mxu0
    %870 = vmatprep.mubr.f32.mxu0 0.0
    %871 = vmatmul.mubr.f32.gmra.mrb[0].mxu0 %v784
    %v872 = vpop.f32.mrb[0].mxu0
    %v873 = vadd.f32 0.0, %v872
    %v874 = vpop.f32.mrb[0].mxu0
    %875 = vmatprep.mubr.f32.mxu0 0.0
    %876 = vmatmul.mubr.f32.gmra.mrb[0].mxu0 %v787
    %v877 = vpop.f32.mrb[0].mxu0
    %v878 = vadd.f32 0.0, %v877
    %v879 = vpop.f32.mrb[0].mxu0
    %880 = vmatprep.mubr.f32.mxu0 0.0
    %881 = vmatmul.mubr.f32.gmra.mrb[0].mxu0 %v790
    %v882 = vpop.f32.mrb[0].mxu0
    %v883 = vadd.f32 0.0, %v882
    %v884 = vpop.f32.mrb[0].mxu0
    %885 = vmatprep.mubr.f32.mxu0 0.0
    %886 = vmatmul.mubr.f32.gmra.mrb[0].mxu0 %v793
    %v887 = vpop.f32.mrb[0].mxu0
    %v888 = vadd.f32 0.0, %v887
    %v889 = vpop.f32.mrb[0].mxu0
    %890 = vmatprep.mubr.f32.mxu0 0.0
    %891 = vmatmul.mubr.f32.gmra.mrb[0].mxu0 %v796
    %v892 = vpop.f32.mrb[0].mxu0
    %v893 = vadd.f32 0.0, %v892
    %v894 = vpop.f32.mrb[0].mxu0
    %895 = vdwg.mxu0
    %v896 = vadd.f32 %v774, %v868
    %v897 = vadd.f32 %v775, %v873
    %v898 = vadd.f32 %v776, %v878
    %v899 = vadd.f32 %v777, %v883
    %v900 = vadd.f32 %v778, %v888
    %v901 = vadd.f32 %v779, %v893
    %v902 = vxor.u32 %v896, 2147483648
    %v903 = vxor.u32 %v897, 2147483648
    %v904 = vmul.f32 %v902, 1.442695
    %v905 = vpow.pop %v904
    %v906 = vmul.f32 %v903, 1.442695
    %v907 = vpow.pop %v906
    %v908 = vadd.f32 %v905, 1.0
    %v909 = vadd.f32 %v907, 1.0
    %v910 = vrcp.pop %v908
    %v911 = vmul.f32 1.0, %v910
    %v912 = vrcp.pop %v909
    %v913 = vmul.f32 1.0, %v912
    %v914 = vtanh.pop %v900
    %v915 = vtanh.pop %v901
    %v916 = vmul.f32 %v911, %v914
    %v917 = vmul.f32 %v913, %v915
    %vm918 = vcmask 130048
    %v920 = vsel %vm918, %v93, 0
    %v923 = vsel %vm918, %v94, 0
    %925 = vmatprep.subr.mxu0 0.0
    %926 = vmatpush1.msra.mxu0 %v916
    %927 = vmatprep.subr.mxu0 0.0
    %928 = vmatpush1.msra.mxu0 %v917
    %929 = vmatprep.subr.mxu0 0.0
    %930 = vmatpush1.msra.mxu0 0.0
    %931 = vmatprep.subr.mxu0 0.0
    %932 = vmatpush1.msra.mxu0 0.0
    %933 = vmatprep.subr.mxu0 0.0
    %934 = vmatpush1.msra.mxu0 0.0
    %935 = vmatprep.subr.mxu0 0.0
    %936 = vmatpush1.msra.mxu0 0.0
    %937 = vmatprep.subr.mxu0 0.0
    %938 = vmatpush1.msra.mxu0 0.0
    %939 = vmatprep.subr.mxu0 0.0
    %940 = vmatpush1.msra.mxu0 0.0
    %941 = vmatprep.subr.mxu0 0.0
    %942 = vmatpush1.msra.mxu0 0.0
    %943 = vmatprep.subr.mxu0 0.0
    %944 = vmatpush1.msra.mxu0 0.0
    %945 = vmatprep.subr.mxu0 0.0
    %946 = vmatpush1.msra.mxu0 0.0
    %947 = vmatprep.subr.mxu0 0.0
    %948 = vmatpush1.msra.mxu0 0.0
    %949 = vmatprep.subr.mxu0 0.0
    %950 = vmatpush1.msra.mxu0 0.0
    %951 = vmatprep.subr.mxu0 0.0
    %952 = vmatpush1.msra.mxu0 0.0
    %953 = vmatprep.subr.mxu0 0.0
    %954 = vmatpush1.msra.mxu0 0.0
    %955 = vmatprep.subr.mxu0 0.0
    %956 = vmatpush1.msra.mxu0 0.0
    %957 = vmatprep.subr.mxu0 0.0
    %958 = vmatpush1.msra.mxu0 0.0
    %959 = vmatprep.subr.mxu0 0.0
    %960 = vmatpush1.msra.mxu0 0.0
    %961 = vmatprep.subr.mxu0 0.0
    %962 = vmatpush1.msra.mxu0 0.0
    %963 = vmatprep.subr.mxu0 0.0
    %964 = vmatpush1.msra.mxu0 0.0
    %965 = vmatprep.subr.mxu0 0.0
    %966 = vmatpush1.msra.mxu0 0.0
    %967 = vmatprep.subr.mxu0 0.0
    %968 = vmatpush1.msra.mxu0 0.0
    %969 = vmatprep.subr.mxu0 0.0
    %970 = vmatpush1.msra.mxu0 0.0
    %971 = vmatprep.subr.mxu0 0.0
    %972 = vmatpush1.msra.mxu0 0.0
    %973 = vmatprep.subr.mxu0 0.0
    %974 = vmatpush1.msra.mxu0 0.0
    %975 = vmatprep.subr.mxu0 0.0
    %976 = vmatpush1.msra.mxu0 0.0
    %977 = vmatprep.subr.mxu0 0.0
    %978 = vmatpush1.msra.mxu0 0.0
    %979 = vmatprep.subr.mxu0 0.0
    %980 = vmatpush1.msra.mxu0 0.0
    %981 = vmatprep.subr.mxu0 0.0
    %982 = vmatpush1.msra.mxu0 0.0
    %983 = vmatprep.subr.mxu0 0.0
    %984 = vmatpush1.msra.mxu0 0.0
    %985 = vmatprep.subr.mxu0 0.0
    %986 = vmatpush1.msra.mxu0 0.0
    %987 = vmatprep.subr.mxu0 0.0
    %988 = vmatpush1.msra.mxu0 0.0
    %989 = vmatprep.mubr.f32.mxu0 0.0
    %990 = vmatmul.mubr.f32.gmra.mrb[0].mxu0 %v920
    %v991 = vpop.f32.mrb[0].mxu0
    %v992 = vadd.f32 0.0, %v991
    %v993 = vpop.f32.mrb[0].mxu0
    %994 = vmatprep.mubr.f32.mxu0 0.0
    %995 = vmatmul.mubr.f32.gmra.mrb[0].mxu0 %v923
    %v996 = vpop.f32.mrb[0].mxu0
    %v997 = vadd.f32 0.0, %v996
    %v998 = vpop.f32.mrb[0].mxu0
    %999 = vdwg.mxu0
    %v1000 = vadd.f32 %v898, %v992
    %v1001 = vadd.f32 %v899, %v997
    %v1002 = vxor.u32 %v1000, 2147483648
    %v1003 = vxor.u32 %v1001, 2147483648
    %v1004 = vmul.f32 %v1002, 1.442695
    %v1005 = vpow.pop %v1004
    %v1006 = vmul.f32 %v1003, 1.442695
    %v1007 = vpow.pop %v1006
    %v1008 = vadd.f32 %v1005, 1.0
    %v1009 = vadd.f32 %v1007, 1.0
    %v1010 = vrcp.pop %v1008
    %v1011 = vmul.f32 1.0, %v1010
    %v1012 = vrcp.pop %v1009
    %v1013 = vmul.f32 1.0, %v1012
    %v1014 = vtanh.pop %v916
    %v1015 = vtanh.pop %v917
    %v1016 = vmul.f32 %v1011, %v1014
    %v1017 = vmul.f32 %v1013, %v1015
    %s1018 = scalar_lea.vmem [#allocation2], 8
    %v1019 = vld [vmem:[%s1018] sm:$0xff]
    %1020 = vmatprep.subr.mxu0 0.0
    %1021 = vmatpush1.msra.mxu0 %v1019
    %1022 = vmatprep.subr.mxu0 0.0
    %1023 = vmatpush1.msra.mxu0 0.0
    %1024 = vmatprep.subr.mxu0 0.0
    %1025 = vmatpush1.msra.mxu0 0.0
    %1026 = vmatprep.subr.mxu0 0.0
    %1027 = vmatpush1.msra.mxu0 0.0
    %1028 = vmatprep.subr.mxu0 0.0
    %1029 = vmatpush1.msra.mxu0 0.0
    %1030 = vmatprep.subr.mxu0 0.0
    %1031 = vmatpush1.msra.mxu0 0.0
    %1032 = vmatprep.subr.mxu0 0.0
    %1033 = vmatpush1.msra.mxu0 0.0
    %1034 = vmatprep.subr.mxu0 0.0
    %1035 = vmatpush1.msra.mxu0 0.0
    %1036 = vmatprep.subr.mxu0 0.0
    %1037 = vmatpush1.msra.mxu0 0.0
    %1038 = vmatprep.subr.mxu0 0.0
    %1039 = vmatpush1.msra.mxu0 0.0
    %1040 = vmatprep.subr.mxu0 0.0
    %1041 = vmatpush1.msra.mxu0 0.0
    %1042 = vmatprep.subr.mxu0 0.0
    %1043 = vmatpush1.msra.mxu0 0.0
    %1044 = vmatprep.subr.mxu0 0.0
    %1045 = vmatpush1.msra.mxu0 0.0
    %1046 = vmatprep.subr.mxu0 0.0
    %1047 = vmatpush1.msra.mxu0 0.0
    %1048 = vmatprep.subr.mxu0 0.0
    %1049 = vmatpush1.msra.mxu0 0.0
    %1050 = vmatprep.subr.mxu0 0.0
    %1051 = vmatpush1.msra.mxu0 0.0
    %1052 = vmatprep.subr.mxu0 0.0
    %1053 = vmatpush1.msra.mxu0 0.0
    %1054 = vmatprep.subr.mxu0 0.0
    %1055 = vmatpush1.msra.mxu0 0.0
    %1056 = vmatprep.subr.mxu0 0.0
    %1057 = vmatpush1.msra.mxu0 0.0
    %1058 = vmatprep.subr.mxu0 0.0
    %1059 = vmatpush1.msra.mxu0 0.0
    %1060 = vmatprep.subr.mxu0 0.0
    %1061 = vmatpush1.msra.mxu0 0.0
    %1062 = vmatprep.subr.mxu0 0.0
    %1063 = vmatpush1.msra.mxu0 0.0
    %1064 = vmatprep.subr.mxu0 0.0
    %1065 = vmatpush1.msra.mxu0 0.0
    %1066 = vmatprep.subr.mxu0 0.0
    %1067 = vmatpush1.msra.mxu0 0.0
    %1068 = vmatprep.subr.mxu0 0.0
    %1069 = vmatpush1.msra.mxu0 0.0
    %1070 = vmatprep.subr.mxu0 0.0
    %1071 = vmatpush1.msra.mxu0 0.0
    %1072 = vmatprep.subr.mxu0 0.0
    %1073 = vmatpush1.msra.mxu0 0.0
    %1074 = vmatprep.subr.mxu0 0.0
    %1075 = vmatpush1.msra.mxu0 0.0
    %1076 = vmatprep.subr.mxu0 0.0
    %1077 = vmatpush1.msra.mxu0 0.0
    %1078 = vmatprep.subr.mxu0 0.0
    %1079 = vmatpush1.msra.mxu0 0.0
    %1080 = vmatprep.subr.mxu0 0.0
    %1081 = vmatpush1.msra.mxu0 0.0
    %1082 = vmatprep.subr.mxu0 0.0
    %1083 = vmatpush1.msra.mxu0 0.0
    %1084 = vmatprep.mubr.f32.mxu0 0.0
    %1085 = vmatmul.mubr.f32.gmra.mrb[0].mxu0 %v328
    %v1086 = vpop.f32.mrb[0].mxu0
    %v1087 = vadd.f32 0.0, %v1086
    %v1088 = vpop.f32.mrb[0].mxu0
    %1089 = vmatprep.mubr.f32.mxu0 0.0
    %1090 = vmatmul.mubr.f32.gmra.mrb[0].mxu0 %v331
    %v1091 = vpop.f32.mrb[0].mxu0
    %v1092 = vadd.f32 0.0, %v1091
    %v1093 = vpop.f32.mrb[0].mxu0
    %1094 = vmatprep.mubr.f32.mxu0 0.0
    %1095 = vmatmul.mubr.f32.gmra.mrb[0].mxu0 %v334
    %v1096 = vpop.f32.mrb[0].mxu0
    %v1097 = vadd.f32 0.0, %v1096
    %v1098 = vpop.f32.mrb[0].mxu0
    %1099 = vmatprep.mubr.f32.mxu0 0.0
    %1100 = vmatmul.mubr.f32.gmra.mrb[0].mxu0 %v337
    %v1101 = vpop.f32.mrb[0].mxu0
    %v1102 = vadd.f32 0.0, %v1101
    %v1103 = vpop.f32.mrb[0].mxu0
    %1104 = vmatprep.mubr.f32.mxu0 0.0
    %1105 = vmatmul.mubr.f32.gmra.mrb[0].mxu0 %v340
    %v1106 = vpop.f32.mrb[0].mxu0
    %v1107 = vadd.f32 0.0, %v1106
    %v1108 = vpop.f32.mrb[0].mxu0
    %1109 = vmatprep.mubr.f32.mxu0 0.0
    %1110 = vmatmul.mubr.f32.gmra.mrb[0].mxu0 %v343
    %v1111 = vpop.f32.mrb[0].mxu0
    %v1112 = vadd.f32 0.0, %v1111
    %v1113 = vpop.f32.mrb[0].mxu0
    %1114 = vmatprep.mubr.f32.mxu0 0.0
    %1115 = vmatmul.mubr.f32.gmra.mrb[0].mxu0 %v346
    %v1116 = vpop.f32.mrb[0].mxu0
    %v1117 = vadd.f32 0.0, %v1116
    %v1118 = vpop.f32.mrb[0].mxu0
    %1119 = vmatprep.mubr.f32.mxu0 0.0
    %1120 = vmatmul.mubr.f32.gmra.mrb[0].mxu0 %v349
    %v1121 = vpop.f32.mrb[0].mxu0
    %v1122 = vadd.f32 0.0, %v1121
    %v1123 = vpop.f32.mrb[0].mxu0
    %1124 = vmatprep.mubr.f32.mxu0 0.0
    %1125 = vmatmul.mubr.f32.gmra.mrb[0].mxu0 %v352
    %v1126 = vpop.f32.mrb[0].mxu0
    %v1127 = vadd.f32 0.0, %v1126
    %v1128 = vpop.f32.mrb[0].mxu0
    %1129 = vmatprep.mubr.f32.mxu0 0.0
    %1130 = vmatmul.mubr.f32.gmra.mrb[0].mxu0 %v355
    %v1131 = vpop.f32.mrb[0].mxu0
    %v1132 = vadd.f32 0.0, %v1131
    %v1133 = vpop.f32.mrb[0].mxu0
    %1134 = vmatprep.mubr.f32.mxu0 0.0
    %1135 = vmatmul.mubr.f32.gmra.mrb[0].mxu0 %v358
    %v1136 = vpop.f32.mrb[0].mxu0
    %v1137 = vadd.f32 0.0, %v1136
    %v1138 = vpop.f32.mrb[0].mxu0
    %1139 = vmatprep.mubr.f32.mxu0 0.0
    %1140 = vmatmul.mubr.f32.gmra.mrb[0].mxu0 %v361
    %v1141 = vpop.f32.mrb[0].mxu0
    %v1142 = vadd.f32 0.0, %v1141
    %v1143 = vpop.f32.mrb[0].mxu0
    %1144 = vmatprep.mubr.f32.mxu0 0.0
    %1145 = vmatmul.mubr.f32.gmra.mrb[0].mxu0 %v364
    %v1146 = vpop.f32.mrb[0].mxu0
    %v1147 = vadd.f32 0.0, %v1146
    %v1148 = vpop.f32.mrb[0].mxu0
    %1149 = vmatprep.mubr.f32.mxu0 0.0
    %1150 = vmatmul.mubr.f32.gmra.mrb[0].mxu0 %v367
    %v1151 = vpop.f32.mrb[0].mxu0
    %v1152 = vadd.f32 0.0, %v1151
    %v1153 = vpop.f32.mrb[0].mxu0
    %1154 = vmatprep.mubr.f32.mxu0 0.0
    %1155 = vmatmul.mubr.f32.gmra.mrb[0].mxu0 %v370
    %v1156 = vpop.f32.mrb[0].mxu0
    %v1157 = vadd.f32 0.0, %v1156
    %v1158 = vpop.f32.mrb[0].mxu0
    %1159 = vmatprep.mubr.f32.mxu0 0.0
    %1160 = vmatmul.mubr.f32.gmra.mrb[0].mxu0 %v373
    %v1161 = vpop.f32.mrb[0].mxu0
    %v1162 = vadd.f32 0.0, %v1161
    %v1163 = vpop.f32.mrb[0].mxu0
    %1164 = vmatprep.mubr.f32.mxu0 0.0
    %1165 = vmatmul.mubr.f32.gmra.mrb[0].mxu0 %v376
    %v1166 = vpop.f32.mrb[0].mxu0
    %v1167 = vadd.f32 0.0, %v1166
    %v1168 = vpop.f32.mrb[0].mxu0
    %1169 = vmatprep.mubr.f32.mxu0 0.0
    %1170 = vmatmul.mubr.f32.gmra.mrb[0].mxu0 %v379
    %v1171 = vpop.f32.mrb[0].mxu0
    %v1172 = vadd.f32 0.0, %v1171
    %v1173 = vpop.f32.mrb[0].mxu0
    %1174 = vdwg.mxu0
    %v1176 = vsel %vm104, %v1087, 0
    %v1179 = vsel %vm104, %v1092, 0
    %v1182 = vsel %vm104, %v1097, 0
    %v1185 = vsel %vm104, %v1102, 0
    %v1188 = vsel %vm104, %v1107, 0
    %v1191 = vsel %vm104, %v1112, 0
    %v1194 = vsel %vm104, %v323, 0
    %1196 = vmatprep.subr.mxu0 0.0
    %1197 = vmatpush1.xpose.msra.mxu0 %v1194
    %1198 = vmatprep.subr.mxu0 0.0
    %1199 = vmatpush1.xpose.msra.mxu0 0.0
    %1200 = vmatprep.subr.mxu0 0.0
    %1201 = vmatpush1.xpose.msra.mxu0 0.0
    %1202 = vmatprep.subr.mxu0 0.0
    %1203 = vmatpush1.xpose.msra.mxu0 0.0
    %1204 = vmatprep.subr.mxu0 0.0
    %1205 = vmatpush1.xpose.msra.mxu0 0.0
    %1206 = vmatprep.subr.mxu0 0.0
    %1207 = vmatpush1.xpose.msra.mxu0 0.0
    %1208 = vmatprep.subr.mxu0 0.0
    %1209 = vmatpush1.xpose.msra.mxu0 0.0
    %1210 = vmatprep.subr.mxu0 0.0
    %1211 = vmatpush1.xpose.msra.mxu0 0.0
    %1212 = vmatprep.subr.mxu0 0.0
    %1213 = vmatpush1.xpose.msra.mxu0 0.0
    %1214 = vmatprep.subr.mxu0 0.0
    %1215 = vmatpush1.xpose.msra.mxu0 0.0
    %1216 = vmatprep.subr.mxu0 0.0
    %1217 = vmatpush1.xpose.msra.mxu0 0.0
    %1218 = vmatprep.subr.mxu0 0.0
    %1219 = vmatpush1.xpose.msra.mxu0 0.0
    %1220 = vmatprep.subr.mxu0 0.0
    %1221 = vmatpush1.xpose.msra.mxu0 0.0
    %1222 = vmatprep.subr.mxu0 0.0
    %1223 = vmatpush1.xpose.msra.mxu0 0.0
    %1224 = vmatprep.subr.mxu0 0.0
    %1225 = vmatpush1.xpose.msra.mxu0 0.0
    %1226 = vmatprep.subr.mxu0 0.0
    %1227 = vmatpush1.xpose.msra.mxu0 0.0
    %1228 = vmatprep.subr.mxu0 0.0
    %1229 = vmatpush1.xpose.msra.mxu0 0.0
    %1230 = vmatprep.subr.mxu0 0.0
    %1231 = vmatpush1.xpose.msra.mxu0 0.0
    %1232 = vmatprep.subr.mxu0 0.0
    %1233 = vmatpush1.xpose.msra.mxu0 0.0
    %1234 = vmatprep.subr.mxu0 0.0
    %1235 = vmatpush1.xpose.msra.mxu0 0.0
    %1236 = vmatprep.subr.mxu0 0.0
    %1237 = vmatpush1.xpose.msra.mxu0 0.0
    %1238 = vmatprep.subr.mxu0 0.0
    %1239 = vmatpush1.xpose.msra.mxu0 0.0
    %1240 = vmatprep.subr.mxu0 0.0
    %1241 = vmatpush1.xpose.msra.mxu0 0.0
    %1242 = vmatprep.subr.mxu0 0.0
    %1243 = vmatpush1.xpose.msra.mxu0 0.0
    %1244 = vmatprep.subr.mxu0 0.0
    %1245 = vmatpush1.xpose.msra.mxu0 0.0
    %1246 = vmatprep.subr.mxu0 0.0
    %1247 = vmatpush1.xpose.msra.mxu0 0.0
    %1248 = vmatprep.subr.mxu0 0.0
    %1249 = vmatpush1.xpose.msra.mxu0 0.0
    %1250 = vmatprep.subr.mxu0 0.0
    %1251 = vmatpush1.xpose.msra.mxu0 0.0
    %1252 = vmatprep.subr.mxu0 0.0
    %1253 = vmatpush1.xpose.msra.mxu0 0.0
    %1254 = vmatprep.subr.mxu0 0.0
    %1255 = vmatpush1.xpose.msra.mxu0 0.0
    %1256 = vmatprep.subr.mxu0 0.0
    %1257 = vmatpush1.xpose.msra.mxu0 0.0
    %1258 = vmatprep.subr.mxu0 0.0
    %1259 = vmatpush1.xpose.msra.mxu0 0.0
    %1260 = vmatprep.mubr.f32.mxu0 0.0
    %1261 = vmatmul.mubr.f32.gmra.mrb[0].mxu0 %v1176
    %v1262 = vpop.f32.mrb[0].mxu0
    %v1263 = vadd.f32 0.0, %v1262
    %v1264 = vpop.f32.mrb[0].mxu0
    %1265 = vmatprep.mubr.f32.mxu0 0.0
    %1266 = vmatmul.mubr.f32.gmra.mrb[0].mxu0 %v1179
    %v1267 = vpop.f32.mrb[0].mxu0
    %v1268 = vadd.f32 0.0, %v1267
    %v1269 = vpop.f32.mrb[0].mxu0
    %1270 = vmatprep.mubr.f32.mxu0 0.0
    %1271 = vmatmul.mubr.f32.gmra.mrb[0].mxu0 %v1182
    %v1272 = vpop.f32.mrb[0].mxu0
    %v1273 = vadd.f32 0.0, %v1272
    %v1274 = vpop.f32.mrb[0].mxu0
    %1275 = vmatprep.mubr.f32.mxu0 0.0
    %1276 = vmatmul.mubr.f32.gmra.mrb[0].mxu0 %v1185
    %v1277 = vpop.f32.mrb[0].mxu0
    %v1278 = vadd.f32 0.0, %v1277
    %v1279 = vpop.f32.mrb[0].mxu0
    %1280 = vmatprep.mubr.f32.mxu0 0.0
    %1281 = vmatmul.mubr.f32.gmra.mrb[0].mxu0 %v1188
    %v1282 = vpop.f32.mrb[0].mxu0
    %v1283 = vadd.f32 0.0, %v1282
    %v1284 = vpop.f32.mrb[0].mxu0
    %1285 = vmatprep.mubr.f32.mxu0 0.0
    %1286 = vmatmul.mubr.f32.gmra.mrb[0].mxu0 %v1191
    %v1287 = vpop.f32.mrb[0].mxu0
    %v1288 = vadd.f32 0.0, %v1287
    %v1289 = vpop.f32.mrb[0].mxu0
    %1290 = vdwg.mxu0
    %v1291 = vadd.f32 %v87, %v1263
    %v1292 = vadd.f32 %v88, %v1268
    %v1293 = vadd.f32 %v89, %v1273
    %v1294 = vadd.f32 %v90, %v1278
    %v1295 = vadd.f32 %v91, %v1283
    %v1296 = vadd.f32 %v92, %v1288
    %v1298 = vsel %vm104, %v1117, 0
    %v1301 = vsel %vm104, %v1122, 0
    %v1304 = vsel %vm104, %v1127, 0
    %v1307 = vsel %vm104, %v1132, 0
    %v1310 = vsel %vm104, %v1137, 0
    %v1313 = vsel %vm104, %v1142, 0
    %v1316 = vsel %vm104, %v324, 0
    %1318 = vmatprep.subr.mxu0 0.0
    %1319 = vmatpush1.xpose.msra.mxu0 %v1316
    %1320 = vmatprep.subr.mxu0 0.0
    %1321 = vmatpush1.xpose.msra.mxu0 0.0
    %1322 = vmatprep.subr.mxu0 0.0
    %1323 = vmatpush1.xpose.msra.mxu0 0.0
    %1324 = vmatprep.subr.mxu0 0.0
    %1325 = vmatpush1.xpose.msra.mxu0 0.0
    %1326 = vmatprep.subr.mxu0 0.0
    %1327 = vmatpush1.xpose.msra.mxu0 0.0
    %1328 = vmatprep.subr.mxu0 0.0
    %1329 = vmatpush1.xpose.msra.mxu0 0.0
    %1330 = vmatprep.subr.mxu0 0.0
    %1331 = vmatpush1.xpose.msra.mxu0 0.0
    %1332 = vmatprep.subr.mxu0 0.0
    %1333 = vmatpush1.xpose.msra.mxu0 0.0
    %1334 = vmatprep.subr.mxu0 0.0
    %1335 = vmatpush1.xpose.msra.mxu0 0.0
    %1336 = vmatprep.subr.mxu0 0.0
    %1337 = vmatpush1.xpose.msra.mxu0 0.0
    %1338 = vmatprep.subr.mxu0 0.0
    %1339 = vmatpush1.xpose.msra.mxu0 0.0
    %1340 = vmatprep.subr.mxu0 0.0
    %1341 = vmatpush1.xpose.msra.mxu0 0.0
    %1342 = vmatprep.subr.mxu0 0.0
    %1343 = vmatpush1.xpose.msra.mxu0 0.0
    %1344 = vmatprep.subr.mxu0 0.0
    %1345 = vmatpush1.xpose.msra.mxu0 0.0
    %1346 = vmatprep.subr.mxu0 0.0
    %1347 = vmatpush1.xpose.msra.mxu0 0.0
    %1348 = vmatprep.subr.mxu0 0.0
    %1349 = vmatpush1.xpose.msra.mxu0 0.0
    %1350 = vmatprep.subr.mxu0 0.0
    %1351 = vmatpush1.xpose.msra.mxu0 0.0
    %1352 = vmatprep.subr.mxu0 0.0
    %1353 = vmatpush1.xpose.msra.mxu0 0.0
    %1354 = vmatprep.subr.mxu0 0.0
    %1355 = vmatpush1.xpose.msra.mxu0 0.0
    %1356 = vmatprep.subr.mxu0 0.0
    %1357 = vmatpush1.xpose.msra.mxu0 0.0
    %1358 = vmatprep.subr.mxu0 0.0
    %1359 = vmatpush1.xpose.msra.mxu0 0.0
    %1360 = vmatprep.subr.mxu0 0.0
    %1361 = vmatpush1.xpose.msra.mxu0 0.0
    %1362 = vmatprep.subr.mxu0 0.0
    %1363 = vmatpush1.xpose.msra.mxu0 0.0
    %1364 = vmatprep.subr.mxu0 0.0
    %1365 = vmatpush1.xpose.msra.mxu0 0.0
    %1366 = vmatprep.subr.mxu0 0.0
    %1367 = vmatpush1.xpose.msra.mxu0 0.0
    %1368 = vmatprep.subr.mxu0 0.0
    %1369 = vmatpush1.xpose.msra.mxu0 0.0
    %1370 = vmatprep.subr.mxu0 0.0
    %1371 = vmatpush1.xpose.msra.mxu0 0.0
    %1372 = vmatprep.subr.mxu0 0.0
    %1373 = vmatpush1.xpose.msra.mxu0 0.0
    %1374 = vmatprep.subr.mxu0 0.0
    %1375 = vmatpush1.xpose.msra.mxu0 0.0
    %1376 = vmatprep.subr.mxu0 0.0
    %1377 = vmatpush1.xpose.msra.mxu0 0.0
    %1378 = vmatprep.subr.mxu0 0.0
    %1379 = vmatpush1.xpose.msra.mxu0 0.0
    %1380 = vmatprep.subr.mxu0 0.0
    %1381 = vmatpush1.xpose.msra.mxu0 0.0
    %1382 = vmatprep.mubr.f32.mxu0 0.0
    %1383 = vmatmul.mubr.f32.gmra.mrb[0].mxu0 %v1298
    %v1384 = vpop.f32.mrb[0].mxu0
    %v1385 = vadd.f32 0.0, %v1384
    %v1386 = vpop.f32.mrb[0].mxu0
    %1387 = vmatprep.mubr.f32.mxu0 0.0
    %1388 = vmatmul.mubr.f32.gmra.mrb[0].mxu0 %v1301
    %v1389 = vpop.f32.mrb[0].mxu0
    %v1390 = vadd.f32 0.0, %v1389
    %v1391 = vpop.f32.mrb[0].mxu0
    %1392 = vmatprep.mubr.f32.mxu0 0.0
    %1393 = vmatmul.mubr.f32.gmra.mrb[0].mxu0 %v1304
    %v1394 = vpop.f32.mrb[0].mxu0
    %v1395 = vadd.f32 0.0, %v1394
    %v1396 = vpop.f32.mrb[0].mxu0
    %1397 = vmatprep.mubr.f32.mxu0 0.0
    %1398 = vmatmul.mubr.f32.gmra.mrb[0].mxu0 %v1307
    %v1399 = vpop.f32.mrb[0].mxu0
    %v1400 = vadd.f32 0.0, %v1399
    %v1401 = vpop.f32.mrb[0].mxu0
    %1402 = vmatprep.mubr.f32.mxu0 0.0
    %1403 = vmatmul.mubr.f32.gmra.mrb[0].mxu0 %v1310
    %v1404 = vpop.f32.mrb[0].mxu0
    %v1405 = vadd.f32 0.0, %v1404
    %v1406 = vpop.f32.mrb[0].mxu0
    %1407 = vmatprep.mubr.f32.mxu0 0.0
    %1408 = vmatmul.mubr.f32.gmra.mrb[0].mxu0 %v1313
    %v1409 = vpop.f32.mrb[0].mxu0
    %v1410 = vadd.f32 0.0, %v1409
    %v1411 = vpop.f32.mrb[0].mxu0
    %1412 = vdwg.mxu0
    %v1413 = vadd.f32 %v1291, %v1385
    %v1414 = vadd.f32 %v1292, %v1390
    %v1415 = vadd.f32 %v1293, %v1395
    %v1416 = vadd.f32 %v1294, %v1400
    %v1417 = vadd.f32 %v1295, %v1405
    %v1418 = vadd.f32 %v1296, %v1410
    %v1420 = vsel %vm104, %v1147, 0
    %v1423 = vsel %vm104, %v1152, 0
    %v1426 = vsel %vm104, %v1157, 0
    %v1429 = vsel %vm104, %v1162, 0
    %v1432 = vsel %vm104, %v1167, 0
    %v1435 = vsel %vm104, %v1172, 0
    %v1438 = vsel %vm104, %v325, 0
    %1440 = vmatprep.subr.mxu0 0.0
    %1441 = vmatpush1.xpose.msra.mxu0 %v1438
    %1442 = vmatprep.subr.mxu0 0.0
    %1443 = vmatpush1.xpose.msra.mxu0 0.0
    %1444 = vmatprep.subr.mxu0 0.0
    %1445 = vmatpush1.xpose.msra.mxu0 0.0
    %1446 = vmatprep.subr.mxu0 0.0
    %1447 = vmatpush1.xpose.msra.mxu0 0.0
    %1448 = vmatprep.subr.mxu0 0.0
    %1449 = vmatpush1.xpose.msra.mxu0 0.0
    %1450 = vmatprep.subr.mxu0 0.0
    %1451 = vmatpush1.xpose.msra.mxu0 0.0
    %1452 = vmatprep.subr.mxu0 0.0
    %1453 = vmatpush1.xpose.msra.mxu0 0.0
    %1454 = vmatprep.subr.mxu0 0.0
    %1455 = vmatpush1.xpose.msra.mxu0 0.0
    %1456 = vmatprep.subr.mxu0 0.0
    %1457 = vmatpush1.xpose.msra.mxu0 0.0
    %1458 = vmatprep.subr.mxu0 0.0
    %1459 = vmatpush1.xpose.msra.mxu0 0.0
    %1460 = vmatprep.subr.mxu0 0.0
    %1461 = vmatpush1.xpose.msra.mxu0 0.0
    %1462 = vmatprep.subr.mxu0 0.0
    %1463 = vmatpush1.xpose.msra.mxu0 0.0
    %1464 = vmatprep.subr.mxu0 0.0
    %1465 = vmatpush1.xpose.msra.mxu0 0.0
    %1466 = vmatprep.subr.mxu0 0.0
    %1467 = vmatpush1.xpose.msra.mxu0 0.0
    %1468 = vmatprep.subr.mxu0 0.0
    %1469 = vmatpush1.xpose.msra.mxu0 0.0
    %1470 = vmatprep.subr.mxu0 0.0
    %1471 = vmatpush1.xpose.msra.mxu0 0.0
    %1472 = vmatprep.subr.mxu0 0.0
    %1473 = vmatpush1.xpose.msra.mxu0 0.0
    %1474 = vmatprep.subr.mxu0 0.0
    %1475 = vmatpush1.xpose.msra.mxu0 0.0
    %1476 = vmatprep.subr.mxu0 0.0
    %1477 = vmatpush1.xpose.msra.mxu0 0.0
    %1478 = vmatprep.subr.mxu0 0.0
    %1479 = vmatpush1.xpose.msra.mxu0 0.0
    %1480 = vmatprep.subr.mxu0 0.0
    %1481 = vmatpush1.xpose.msra.mxu0 0.0
    %1482 = vmatprep.subr.mxu0 0.0
    %1483 = vmatpush1.xpose.msra.mxu0 0.0
    %1484 = vmatprep.subr.mxu0 0.0
    %1485 = vmatpush1.xpose.msra.mxu0 0.0
    %1486 = vmatprep.subr.mxu0 0.0
    %1487 = vmatpush1.xpose.msra.mxu0 0.0
    %1488 = vmatprep.subr.mxu0 0.0
    %1489 = vmatpush1.xpose.msra.mxu0 0.0
    %1490 = vmatprep.subr.mxu0 0.0
    %1491 = vmatpush1.xpose.msra.mxu0 0.0
    %1492 = vmatprep.subr.mxu0 0.0
    %1493 = vmatpush1.xpose.msra.mxu0 0.0
    %1494 = vmatprep.subr.mxu0 0.0
    %1495 = vmatpush1.xpose.msra.mxu0 0.0
    %1496 = vmatprep.subr.mxu0 0.0
    %1497 = vmatpush1.xpose.msra.mxu0 0.0
    %1498 = vmatprep.subr.mxu0 0.0
    %1499 = vmatpush1.xpose.msra.mxu0 0.0
    %1500 = vmatprep.subr.mxu0 0.0
    %1501 = vmatpush1.xpose.msra.mxu0 0.0
    %1502 = vmatprep.subr.mxu0 0.0
    %1503 = vmatpush1.xpose.msra.mxu0 0.0
    %1504 = vmatprep.mubr.f32.mxu0 0.0
    %1505 = vmatmul.mubr.f32.gmra.mrb[0].mxu0 %v1420
    %v1506 = vpop.f32.mrb[0].mxu0
    %v1507 = vadd.f32 0.0, %v1506
    %v1508 = vpop.f32.mrb[0].mxu0
    %1509 = vmatprep.mubr.f32.mxu0 0.0
    %1510 = vmatmul.mubr.f32.gmra.mrb[0].mxu0 %v1423
    %v1511 = vpop.f32.mrb[0].mxu0
    %v1512 = vadd.f32 0.0, %v1511
    %v1513 = vpop.f32.mrb[0].mxu0
    %1514 = vmatprep.mubr.f32.mxu0 0.0
    %1515 = vmatmul.mubr.f32.gmra.mrb[0].mxu0 %v1426
    %v1516 = vpop.f32.mrb[0].mxu0
    %v1517 = vadd.f32 0.0, %v1516
    %v1518 = vpop.f32.mrb[0].mxu0
    %1519 = vmatprep.mubr.f32.mxu0 0.0
    %1520 = vmatmul.mubr.f32.gmra.mrb[0].mxu0 %v1429
    %v1521 = vpop.f32.mrb[0].mxu0
    %v1522 = vadd.f32 0.0, %v1521
    %v1523 = vpop.f32.mrb[0].mxu0
    %1524 = vmatprep.mubr.f32.mxu0 0.0
    %1525 = vmatmul.mubr.f32.gmra.mrb[0].mxu0 %v1432
    %v1526 = vpop.f32.mrb[0].mxu0
    %v1527 = vadd.f32 0.0, %v1526
    %v1528 = vpop.f32.mrb[0].mxu0
    %1529 = vmatprep.mubr.f32.mxu0 0.0
    %1530 = vmatmul.mubr.f32.gmra.mrb[0].mxu0 %v1435
    %v1531 = vpop.f32.mrb[0].mxu0
    %v1532 = vadd.f32 0.0, %v1531
    %v1533 = vpop.f32.mrb[0].mxu0
    %1534 = vdwg.mxu0
    %v1535 = vadd.f32 %v1413, %v1507
    %v1536 = vadd.f32 %v1414, %v1512
    %v1537 = vadd.f32 %v1415, %v1517
    %v1538 = vadd.f32 %v1416, %v1522
    %v1539 = vadd.f32 %v1417, %v1527
    %v1540 = vadd.f32 %v1418, %v1532
    %v1541 = vxor.u32 %v1535, 2147483648
    %v1542 = vxor.u32 %v1536, 2147483648
    %v1543 = vmul.f32 %v1541, 1.442695
    %v1544 = vpow.pop %v1543
    %v1545 = vmul.f32 %v1542, 1.442695
    %v1546 = vpow.pop %v1545
    %v1547 = vadd.f32 %v1544, 1.0
    %v1548 = vadd.f32 %v1546, 1.0
    %v1549 = vrcp.pop %v1547
    %v1550 = vmul.f32 1.0, %v1549
    %v1551 = vrcp.pop %v1548
    %v1552 = vmul.f32 1.0, %v1551
    %v1553 = vtanh.pop %v1539
    %v1554 = vtanh.pop %v1540
    %v1555 = vmul.f32 %v1550, %v1553
    %v1556 = vmul.f32 %v1552, %v1554
    %1557 = vmatprep.subr.mxu0 0.0
    %1558 = vmatpush1.msra.mxu0 %v1555
    %1559 = vmatprep.subr.mxu0 0.0
    %1560 = vmatpush1.msra.mxu0 %v1556
    %1561 = vmatprep.subr.mxu0 0.0
    %1562 = vmatpush1.msra.mxu0 0.0
    %1563 = vmatprep.subr.mxu0 0.0
    %1564 = vmatpush1.msra.mxu0 0.0
    %1565 = vmatprep.subr.mxu0 0.0
    %1566 = vmatpush1.msra.mxu0 0.0
    %1567 = vmatprep.subr.mxu0 0.0
    %1568 = vmatpush1.msra.mxu0 0.0
    %1569 = vmatprep.subr.mxu0 0.0
    %1570 = vmatpush1.msra.mxu0 0.0
    %1571 = vmatprep.subr.mxu0 0.0
    %1572 = vmatpush1.msra.mxu0 0.0
    %1573 = vmatprep.subr.mxu0 0.0
    %1574 = vmatpush1.msra.mxu0 0.0
    %1575 = vmatprep.subr.mxu0 0.0
    %1576 = vmatpush1.msra.mxu0 0.0
    %1577 = vmatprep.subr.mxu0 0.0
    %1578 = vmatpush1.msra.mxu0 0.0
    %1579 = vmatprep.subr.mxu0 0.0
    %1580 = vmatpush1.msra.mxu0 0.0
    %1581 = vmatprep.subr.mxu0 0.0
    %1582 = vmatpush1.msra.mxu0 0.0
    %1583 = vmatprep.subr.mxu0 0.0
    %1584 = vmatpush1.msra.mxu0 0.0
    %1585 = vmatprep.subr.mxu0 0.0
    %1586 = vmatpush1.msra.mxu0 0.0
    %1587 = vmatprep.subr.mxu0 0.0
    %1588 = vmatpush1.msra.mxu0 0.0
    %1589 = vmatprep.subr.mxu0 0.0
    %1590 = vmatpush1.msra.mxu0 0.0
    %1591 = vmatprep.subr.mxu0 0.0
    %1592 = vmatpush1.msra.mxu0 0.0
    %1593 = vmatprep.subr.mxu0 0.0
    %1594 = vmatpush1.msra.mxu0 0.0
    %1595 = vmatprep.subr.mxu0 0.0
    %1596 = vmatpush1.msra.mxu0 0.0
    %1597 = vmatprep.subr.mxu0 0.0
    %1598 = vmatpush1.msra.mxu0 0.0
    %1599 = vmatprep.subr.mxu0 0.0
    %1600 = vmatpush1.msra.mxu0 0.0
    %1601 = vmatprep.subr.mxu0 0.0
    %1602 = vmatpush1.msra.mxu0 0.0
    %1603 = vmatprep.subr.mxu0 0.0
    %1604 = vmatpush1.msra.mxu0 0.0
    %1605 = vmatprep.subr.mxu0 0.0
    %1606 = vmatpush1.msra.mxu0 0.0
    %1607 = vmatprep.subr.mxu0 0.0
    %1608 = vmatpush1.msra.mxu0 0.0
    %1609 = vmatprep.subr.mxu0 0.0
    %1610 = vmatpush1.msra.mxu0 0.0
    %1611 = vmatprep.subr.mxu0 0.0
    %1612 = vmatpush1.msra.mxu0 0.0
    %1613 = vmatprep.subr.mxu0 0.0
    %1614 = vmatpush1.msra.mxu0 0.0
    %1615 = vmatprep.subr.mxu0 0.0
    %1616 = vmatpush1.msra.mxu0 0.0
    %1617 = vmatprep.subr.mxu0 0.0
    %1618 = vmatpush1.msra.mxu0 0.0
    %1619 = vmatprep.subr.mxu0 0.0
    %1620 = vmatpush1.msra.mxu0 0.0
    %1621 = vmatprep.mubr.f32.mxu0 0.0
    %1622 = vmatmul.mubr.f32.gmra.mrb[0].mxu0 %v920
    %v1623 = vpop.f32.mrb[0].mxu0
    %v1624 = vadd.f32 0.0, %v1623
    %v1625 = vpop.f32.mrb[0].mxu0
    %1626 = vmatprep.mubr.f32.mxu0 0.0
    %1627 = vmatmul.mubr.f32.gmra.mrb[0].mxu0 %v923
    %v1628 = vpop.f32.mrb[0].mxu0
    %v1629 = vadd.f32 0.0, %v1628
    %v1630 = vpop.f32.mrb[0].mxu0
    %1631 = vdwg.mxu0
    %v1632 = vadd.f32 %v1537, %v1624
    %v1633 = vadd.f32 %v1538, %v1629
    %v1634 = vxor.u32 %v1632, 2147483648
    %v1635 = vxor.u32 %v1633, 2147483648
    %v1636 = vmul.f32 %v1634, 1.442695
    %v1637 = vpow.pop %v1636
    %v1638 = vmul.f32 %v1635, 1.442695
    %v1639 = vpow.pop %v1638
    %v1640 = vadd.f32 %v1637, 1.0
    %v1641 = vadd.f32 %v1639, 1.0
    %v1642 = vrcp.pop %v1640
    %v1643 = vmul.f32 1.0, %v1642
    %v1644 = vrcp.pop %v1641
    %v1645 = vmul.f32 1.0, %v1644
    %v1646 = vtanh.pop %v1555
    %v1647 = vtanh.pop %v1556
    %v1648 = vmul.f32 %v1643, %v1646
    %v1649 = vmul.f32 %v1645, %v1647
    %v1651 = vsel %vm104, %v1016, 0
    %v1654 = vsel %vm104, %v1017, 0
    %1656 = vmatprep.subr.mxu0 0.0
    %1657 = vmatpush1.msra.mxu0 %v48
    %1658 = vmatprep.subr.mxu0 0.0
    %1659 = vmatpush1.msra.mxu0 0.0
    %1660 = vmatprep.subr.mxu0 0.0
    %1661 = vmatpush1.msra.mxu0 0.0
    %1662 = vmatprep.subr.mxu0 0.0
    %1663 = vmatpush1.msra.mxu0 0.0
    %1664 = vmatprep.subr.mxu0 0.0
    %1665 = vmatpush1.msra.mxu0 0.0
    %1666 = vmatprep.subr.mxu0 0.0
    %1667 = vmatpush1.msra.mxu0 0.0
    %1668 = vmatprep.subr.mxu0 0.0
    %1669 = vmatpush1.msra.mxu0 0.0
    %1670 = vmatprep.subr.mxu0 0.0
    %1671 = vmatpush1.msra.mxu0 0.0
    %1672 = vmatprep.subr.mxu0 0.0
    %1673 = vmatpush1.msra.mxu0 0.0
    %1674 = vmatprep.subr.mxu0 0.0
    %1675 = vmatpush1.msra.mxu0 0.0
    %1676 = vmatprep.subr.mxu0 0.0
    %1677 = vmatpush1.msra.mxu0 0.0
    %1678 = vmatprep.subr.mxu0 0.0
    %1679 = vmatpush1.msra.mxu0 0.0
    %1680 = vmatprep.subr.mxu0 0.0
    %1681 = vmatpush1.msra.mxu0 0.0
    %1682 = vmatprep.subr.mxu0 0.0
    %1683 = vmatpush1.msra.mxu0 0.0
    %1684 = vmatprep.subr.mxu0 0.0
    %1685 = vmatpush1.msra.mxu0 0.0
    %1686 = vmatprep.subr.mxu0 0.0
    %1687 = vmatpush1.msra.mxu0 0.0
    %1688 = vmatprep.subr.mxu0 0.0
    %1689 = vmatpush1.msra.mxu0 0.0
    %1690 = vmatprep.subr.mxu0 0.0
    %1691 = vmatpush1.msra.mxu0 0.0
    %1692 = vmatprep.subr.mxu0 0.0
    %1693 = vmatpush1.msra.mxu0 0.0
    %1694 = vmatprep.subr.mxu0 0.0
    %1695 = vmatpush1.msra.mxu0 0.0
    %1696 = vmatprep.subr.mxu0 0.0
    %1697 = vmatpush1.msra.mxu0 0.0
    %1698 = vmatprep.subr.mxu0 0.0
    %1699 = vmatpush1.msra.mxu0 0.0
    %1700 = vmatprep.subr.mxu0 0.0
    %1701 = vmatpush1.msra.mxu0 0.0
    %1702 = vmatprep.subr.mxu0 0.0
    %1703 = vmatpush1.msra.mxu0 0.0
    %1704 = vmatprep.subr.mxu0 0.0
    %1705 = vmatpush1.msra.mxu0 0.0
    %1706 = vmatprep.subr.mxu0 0.0
    %1707 = vmatpush1.msra.mxu0 0.0
    %1708 = vmatprep.subr.mxu0 0.0
    %1709 = vmatpush1.msra.mxu0 0.0
    %1710 = vmatprep.subr.mxu0 0.0
    %1711 = vmatpush1.msra.mxu0 0.0
    %1712 = vmatprep.subr.mxu0 0.0
    %1713 = vmatpush1.msra.mxu0 0.0
    %1714 = vmatprep.subr.mxu0 0.0
    %1715 = vmatpush1.msra.mxu0 0.0
    %1716 = vmatprep.subr.mxu0 0.0
    %1717 = vmatpush1.msra.mxu0 0.0
    %1718 = vmatprep.subr.mxu0 0.0
    %1719 = vmatpush1.msra.mxu0 0.0
    %1720 = vmatprep.mubr.f32.mxu0 0.0
    %1721 = vmatmul.mubr.f32.gmra.mrb[0].mxu0 %v1651
    %v1722 = vpop.f32.mrb[0].mxu0
    %v1723 = vadd.f32 0.0, %v1722
    %v1724 = vpop.f32.mrb[0].mxu0
    %1725 = vmatprep.mubr.f32.mxu0 0.0
    %1726 = vmatmul.mubr.f32.gmra.mrb[0].mxu0 %v1654
    %v1727 = vpop.f32.mrb[0].mxu0
    %v1728 = vadd.f32 0.0, %v1727
    %v1729 = vpop.f32.mrb[0].mxu0
    %1730 = vdwg.mxu0
    %v1731 = vmul.f32 %v1723, %v49
    %v1732 = vmul.f32 %v1728, %v50
    %v1733 = vadd.f32 %v1731, %v1732
    %v1734 = vrot.slane %v1733, 4
    %v1735 = vadd.f32 %v1733, %v1734
    %v1736 = vrot.slane %v1735, 2
    %v1737 = vadd.f32 %v1735, %v1736
    %v1738 = vrot.slane %v1737, 1
    %v1739 = vadd.f32 %v1737, %v1738
    %v1741 = vsel %vm104, %v1648, 0
    %v1744 = vsel %vm104, %v1649, 0
    %1746 = vmatprep.subr.mxu0 0.0
    %1747 = vmatpush1.msra.mxu0 %v48
    %1748 = vmatprep.subr.mxu0 0.0
    %1749 = vmatpush1.msra.mxu0 0.0
    %1750 = vmatprep.subr.mxu0 0.0
    %1751 = vmatpush1.msra.mxu0 0.0
    %1752 = vmatprep.subr.mxu0 0.0
    %1753 = vmatpush1.msra.mxu0 0.0
    %1754 = vmatprep.subr.mxu0 0.0
    %1755 = vmatpush1.msra.mxu0 0.0
    %1756 = vmatprep.subr.mxu0 0.0
    %1757 = vmatpush1.msra.mxu0 0.0
    %1758 = vmatprep.subr.mxu0 0.0
    %1759 = vmatpush1.msra.mxu0 0.0
    %1760 = vmatprep.subr.mxu0 0.0
    %1761 = vmatpush1.msra.mxu0 0.0
    %1762 = vmatprep.subr.mxu0 0.0
    %1763 = vmatpush1.msra.mxu0 0.0
    %1764 = vmatprep.subr.mxu0 0.0
    %1765 = vmatpush1.msra.mxu0 0.0
    %1766 = vmatprep.subr.mxu0 0.0
    %1767 = vmatpush1.msra.mxu0 0.0
    %1768 = vmatprep.subr.mxu0 0.0
    %1769 = vmatpush1.msra.mxu0 0.0
    %1770 = vmatprep.subr.mxu0 0.0
    %1771 = vmatpush1.msra.mxu0 0.0
    %1772 = vmatprep.subr.mxu0 0.0
    %1773 = vmatpush1.msra.mxu0 0.0
    %1774 = vmatprep.subr.mxu0 0.0
    %1775 = vmatpush1.msra.mxu0 0.0
    %1776 = vmatprep.subr.mxu0 0.0
    %1777 = vmatpush1.msra.mxu0 0.0
    %1778 = vmatprep.subr.mxu0 0.0
    %1779 = vmatpush1.msra.mxu0 0.0
    %1780 = vmatprep.subr.mxu0 0.0
    %1781 = vmatpush1.msra.mxu0 0.0
    %1782 = vmatprep.subr.mxu0 0.0
    %1783 = vmatpush1.msra.mxu0 0.0
    %1784 = vmatprep.subr.mxu0 0.0
    %1785 = vmatpush1.msra.mxu0 0.0
    %1786 = vmatprep.subr.mxu0 0.0
    %1787 = vmatpush1.msra.mxu0 0.0
    %1788 = vmatprep.subr.mxu0 0.0
    %1789 = vmatpush1.msra.mxu0 0.0
    %1790 = vmatprep.subr.mxu0 0.0
    %1791 = vmatpush1.msra.mxu0 0.0
    %1792 = vmatprep.subr.mxu0 0.0
    %1793 = vmatpush1.msra.mxu0 0.0
    %1794 = vmatprep.subr.mxu0 0.0
    %1795 = vmatpush1.msra.mxu0 0.0
    %1796 = vmatprep.subr.mxu0 0.0
    %1797 = vmatpush1.msra.mxu0 0.0
    %1798 = vmatprep.subr.mxu0 0.0
    %1799 = vmatpush1.msra.mxu0 0.0
    %1800 = vmatprep.subr.mxu0 0.0
    %1801 = vmatpush1.msra.mxu0 0.0
    %1802 = vmatprep.subr.mxu0 0.0
    %1803 = vmatpush1.msra.mxu0 0.0
    %1804 = vmatprep.subr.mxu0 0.0
    %1805 = vmatpush1.msra.mxu0 0.0
    %1806 = vmatprep.subr.mxu0 0.0
    %1807 = vmatpush1.msra.mxu0 0.0
    %1808 = vmatprep.subr.mxu0 0.0
    %1809 = vmatpush1.msra.mxu0 0.0
    %1810 = vmatprep.mubr.f32.mxu0 0.0
    %1811 = vmatmul.mubr.f32.gmra.mrb[0].mxu0 %v1741
    %v1812 = vpop.f32.mrb[0].mxu0
    %v1813 = vadd.f32 0.0, %v1812
    %v1814 = vpop.f32.mrb[0].mxu0
    %1815 = vmatprep.mubr.f32.mxu0 0.0
    %1816 = vmatmul.mubr.f32.gmra.mrb[0].mxu0 %v1744
    %v1817 = vpop.f32.mrb[0].mxu0
    %v1818 = vadd.f32 0.0, %v1817
    %v1819 = vpop.f32.mrb[0].mxu0
    %1820 = vdwg.mxu0
    %v1821 = vmul.f32 %v1813, %v49
    %v1822 = vmul.f32 %v1818, %v50
    %v1823 = vadd.f32 %v1821, %v1822
    %v1824 = vrot.slane %v1823, 4
    %v1825 = vadd.f32 %v1823, %v1824
    %v1826 = vrot.slane %v1825, 2
    %v1827 = vadd.f32 %v1825, %v1826
    %v1828 = vrot.slane %v1827, 1
    %v1829 = vadd.f32 %v1827, %v1828
    %v1830 = vsel %vm113, %v1739, %v1829
    %v1832 = vlaneseq
    %v1833 = vshrl.u32 %v1832, 7
    %v1834 = vsub.s32 0, %v1833
    %v1835 = vrot.slane %v67, %v1834
    %1837 = vmatprep.subr.mxu0 0.0
    %1838 = vmatpush1.msra.mxu0 %v51
    %1839 = vmatprep.subr.mxu0 0.0
    %1840 = vmatpush1.msra.mxu0 %v52
    %1841 = vmatprep.subr.mxu0 0.0
    %1842 = vmatpush1.msra.mxu0 %v53
    %1843 = vmatprep.subr.mxu0 0.0
    %1844 = vmatpush1.msra.mxu0 %v54
    %1845 = vmatprep.subr.mxu0 0.0
    %1846 = vmatpush1.msra.mxu0 %v55
    %1847 = vmatprep.subr.mxu0 0.0
    %1848 = vmatpush1.msra.mxu0 %v56
    %1849 = vmatprep.subr.mxu0 0.0
    %1850 = vmatpush1.msra.mxu0 %v57
    %1851 = vmatprep.subr.mxu0 0.0
    %1852 = vmatpush1.msra.mxu0 %v58
    %1853 = vmatprep.subr.mxu0 0.0
    %1854 = vmatpush1.msra.mxu0 %v59
    %1855 = vmatprep.subr.mxu0 0.0
    %1856 = vmatpush1.msra.mxu0 %v60
    %1857 = vmatprep.subr.mxu0 0.0
    %1858 = vmatpush1.msra.mxu0 %v61
    %1859 = vmatprep.subr.mxu0 0.0
    %1860 = vmatpush1.msra.mxu0 %v62
    %1861 = vmatprep.subr.mxu0 0.0
    %1862 = vmatpush1.msra.mxu0 %v63
    %1863 = vmatprep.subr.mxu0 0.0
    %1864 = vmatpush1.msra.mxu0 %v64
    %1865 = vmatprep.subr.mxu0 0.0
    %1866 = vmatpush1.msra.mxu0 %v65
    %1867 = vmatprep.subr.mxu0 0.0
    %1868 = vmatpush1.msra.mxu0 %v66
    %1869 = vmatprep.subr.mxu0 0.0
    %1870 = vmatpush1.msra.mxu0 0.0
    %1871 = vmatprep.subr.mxu0 0.0
    %1872 = vmatpush1.msra.mxu0 0.0
    %1873 = vmatprep.subr.mxu0 0.0
    %1874 = vmatpush1.msra.mxu0 0.0
    %1875 = vmatprep.subr.mxu0 0.0
    %1876 = vmatpush1.msra.mxu0 0.0
    %1877 = vmatprep.subr.mxu0 0.0
    %1878 = vmatpush1.msra.mxu0 0.0
    %1879 = vmatprep.subr.mxu0 0.0
    %1880 = vmatpush1.msra.mxu0 0.0
    %1881 = vmatprep.subr.mxu0 0.0
    %1882 = vmatpush1.msra.mxu0 0.0
    %1883 = vmatprep.subr.mxu0 0.0
    %1884 = vmatpush1.msra.mxu0 0.0
    %1885 = vmatprep.subr.mxu0 0.0
    %1886 = vmatpush1.msra.mxu0 0.0
    %1887 = vmatprep.subr.mxu0 0.0
    %1888 = vmatpush1.msra.mxu0 0.0
    %1889 = vmatprep.subr.mxu0 0.0
    %1890 = vmatpush1.msra.mxu0 0.0
    %1891 = vmatprep.subr.mxu0 0.0
    %1892 = vmatpush1.msra.mxu0 0.0
    %1893 = vmatprep.subr.mxu0 0.0
    %1894 = vmatpush1.msra.mxu0 0.0
    %1895 = vmatprep.subr.mxu0 0.0
    %1896 = vmatpush1.msra.mxu0 0.0
    %1897 = vmatprep.subr.mxu0 0.0
    %1898 = vmatpush1.msra.mxu0 0.0
    %1899 = vmatprep.subr.mxu0 0.0
    %1900 = vmatpush1.msra.mxu0 0.0
    %1901 = vmatprep.mubr.f32.mxu0 0.0
    %1902 = vmatmul.mubr.f32.gmra.mrb[0].mxu0 %v1830
    %v1903 = vpop.f32.mrb[0].mxu0
    %v1904 = vadd.f32 %v1835, %v1903
    %v1905 = vpop.f32.mrb[0].mxu0
    %1906 = vdwg.mxu0
    %v1907 = vmax.f32 %v1904, 0.0
    %vm1908 = vcmask 1024
    %v1909 = vsel %vm1908, %v1907, 0.0
    %v1910 = vrot.slane %v1909, 4
    %v1911 = vadd.f32 %v1909, %v1910
    %v1912 = vrot.slane %v1911, 2
    %v1913 = vadd.f32 %v1911, %v1912
    %v1914 = vrot.slane %v1913, 1
    %v1915 = vadd.f32 %v1913, %v1914
    %v1916 = vmul.f32 %v1915, 0.5
    %v1917 = vadd.f32 %v68, %v1916
    %v1918 = vmul.f32 %v1917, 0.019634955
    %v1919 = vsub.f32 1.0, %v1918
    %1921 = vrot.lane.b32.xlu0 %v44, 9
    %v1922 = vpop.permute.xlu0 %1921
    %v1924 = vmul.f32 %v1904, %v1922
    %v1926 = vlaneseq
    %v1927 = vshrl.u32 %v1926, 7
    %v1928 = vsub.s32 0, %v1927
    %v1929 = vrot.slane %v1919, %v1928
    %1930 = vset.pattern.permute.xlu0 0
    %1931 = vperm.xlu0 %1930, %v1929
    %v1932 = vpop.permute.xlu0 %1931
    %v1934 = vrcp.pop %v1932
    %v1935 = vmul.f32 %v1924, %v1934
    %1937 = vrot.lane.b32.xlu0 %v114, 9
    %v1938 = vpop.permute.xlu0 %1937
    %v1940 = vadd.f32 %v1935, %v1938
    %v1941 = vmax.f32 %v1940, 0.0
    %1943 = vrot.lane.b32.xlu0 %v1941, 119
    %v1944 = vpop.permute.xlu0 %1943
    %vm1946 = vcmask 58368
    %v1947 = vsel %vm1946, %v1944, 0.0
    %1948 = vadd.xlane.f32.xlu0 %v1947
    %v1949 = vpop.xlane.xlu0 %1948
    %v1950 = vmax.f32 %v1949, 1e-12
    %v1951 = vrcp.pop %v1950
    %v1952 = vmul.f32 %v1941, %v1951
    %v1953 = vsub.f32 %v1952, %v1938
    %v1954 = vmul.f32 %v1953, 16.666666
    %1956 = vrot.lane.b32.xlu0 %v1954, 119
    %v1957 = vpop.permute.xlu0 %1956
    %1959 = vst.msk [vmem:[%s11] sm:$0x3] %vm1946, %v1957
    %1961 = vrot.lane.b32.xlu0 %v1907, 7
    %v1962 = vpop.permute.xlu0 %1961
    %vm1964 = vcmask 123968
    %1965 = vst.msk [vmem:[%s11] sm:$0x3] %vm1964, %v1962
    %1966 = vrot.lane.b32.xlu0 %v1907, 16
    %v1967 = vpop.permute.xlu0 %1966
    %vm1969 = vcmask 132224
    %1970 = vst.msk [vmem:[%s11] sm:$0x3] %vm1969, %v1967
    %1972 = vrot.lane.b32.xlu0 %v1952, 119
    %v1973 = vpop.permute.xlu0 %1972
    %1975 = vst.msk [vmem:[%s12] sm:$0x3] %vm1946, %v1973
    %vm1976 = vcmask 57344
    %1977 = vst.msk [vmem:[#allocation2] sm:$0x1] %vm1976, %v1973
    %1978 = vst.msk [vmem:[#allocation2 + $0x1] sm:$0x1] %vm1976, %v1957
    %1980 = vrot.lane.b32.xlu0 %v1904, 127
    %v1981 = vpop.permute.xlu0 %1980
    %1983 = vst.msk [vmem:[#allocation2 + $0x2] sm:$0x1] %vm1976, %v1981
    %1984 = vset.pattern.permute.xlu0 0
    %1985 = vperm.xlu0 %1984, %v1907
    %v1986 = vpop.permute.xlu0 %1985
    %1988 = vst.msk [vmem:[#allocation2 + $0x3] sm:$0x1] %vm1976, %v1986
    %v1989 = vld [vmem:[#allocation2 + $0x7] sm:$0x1]
    %v1990 = vadd.f32 %v1989, 0.01
    %1991 = vst.msk [vmem:[#allocation2 + $0x7] sm:$0x1] %vm1976, %v1990
    %vm1992 = vcmask 58369
    %1993 = vst.msk [vmem:[%s1018 - $0x1] sm:$0x2] %vm1992, %v1973
    %1994 = vst.msk [vmem:[%s1018] sm:$0x2] %vm1992, %v1957
    %1995 = vst.msk [vmem:[%s1018 + $0x1] sm:$0x2] %vm1992, %v1981
    %1996 = vst.msk [vmem:[%s1018 + $0x2] sm:$0x2] %vm1992, %v1986
    %v1997 = vld [vmem:[%s1018 + $0x7] sm:$0x1]
    %v1998 = vadd.f32 %v1997, 0.01
    %1999 = vst.msk [vmem:[%s1018 + $0x7] sm:$0x1] %vm1976, %v1998
    %vm2000 = vcmp.gt.f32.partialorder %v1952, 1e-06
    %v2001 = vsel %vm2000, 1, 0
    %v2002 = vcvt.s32.f32 %v2001
    %v2003 = vlaneseq
    %v2004 = vshrl.u32 %v2003, 7
    %v2005 = vsub.s32 0, %v2004
    %v2006 = vrot.slane %v2002, %v2005
    %2008 = vrot.lane.b32.xlu0 %v2006, 119
    %v2009 = vpop.permute.xlu0 %2008
    %v2011 = vmul.f32 %v101, %v2009
    %v2013 = vsel %vm104, %v2011, 0
    %2015 = vmatprep.subr.mxu0 0.0
    %2016 = vmatpush1.msra.mxu0 1.0
    %2017 = vmatprep.subr.mxu0 0.0
    %2018 = vmatpush1.msra.mxu0 0.0
    %2019 = vmatprep.subr.mxu0 0.0
    %2020 = vmatpush1.msra.mxu0 0.0
    %2021 = vmatprep.subr.mxu0 0.0
    %2022 = vmatpush1.msra.mxu0 0.0
    %2023 = vmatprep.subr.mxu0 0.0
    %2024 = vmatpush1.msra.mxu0 0.0
    %2025 = vmatprep.subr.mxu0 0.0
    %2026 = vmatpush1.msra.mxu0 0.0
    %2027 = vmatprep.subr.mxu0 0.0
    %2028 = vmatpush1.msra.mxu0 0.0
    %2029 = vmatprep.subr.mxu0 0.0
    %2030 = vmatpush1.msra.mxu0 0.0
    %2031 = vmatprep.subr.mxu0 0.0
    %2032 = vmatpush1.msra.mxu0 0.0
    %2033 = vmatprep.subr.mxu0 0.0
    %2034 = vmatpush1.msra.mxu0 0.0
    %2035 = vmatprep.subr.mxu0 0.0
    %2036 = vmatpush1.msra.mxu0 0.0
    %2037 = vmatprep.subr.mxu0 0.0
    %2038 = vmatpush1.msra.mxu0 0.0
    %2039 = vmatprep.subr.mxu0 0.0
    %2040 = vmatpush1.msra.mxu0 0.0
    %2041 = vmatprep.subr.mxu0 0.0
    %2042 = vmatpush1.msra.mxu0 0.0
    %2043 = vmatprep.subr.mxu0 0.0
    %2044 = vmatpush1.msra.mxu0 0.0
    %2045 = vmatprep.subr.mxu0 0.0
    %2046 = vmatpush1.msra.mxu0 0.0
    %2047 = vmatprep.subr.mxu0 0.0
    %2048 = vmatpush1.msra.mxu0 0.0
    %2049 = vmatprep.subr.mxu0 0.0
    %2050 = vmatpush1.msra.mxu0 0.0
    %2051 = vmatprep.subr.mxu0 0.0
    %2052 = vmatpush1.msra.mxu0 0.0
    %2053 = vmatprep.subr.mxu0 0.0
    %2054 = vmatpush1.msra.mxu0 0.0
    %2055 = vmatprep.subr.mxu0 0.0
    %2056 = vmatpush1.msra.mxu0 0.0
    %2057 = vmatprep.subr.mxu0 0.0
    %2058 = vmatpush1.msra.mxu0 0.0
    %2059 = vmatprep.subr.mxu0 0.0
    %2060 = vmatpush1.msra.mxu0 0.0
    %2061 = vmatprep.subr.mxu0 0.0
    %2062 = vmatpush1.msra.mxu0 0.0
    %2063 = vmatprep.subr.mxu0 0.0
    %2064 = vmatpush1.msra.mxu0 0.0
    %2065 = vmatprep.subr.mxu0 0.0
    %2066 = vmatpush1.msra.mxu0 0.0
    %2067 = vmatprep.subr.mxu0 0.0
    %2068 = vmatpush1.msra.mxu0 0.0
    %2069 = vmatprep.subr.mxu0 0.0
    %2070 = vmatpush1.msra.mxu0 0.0
    %2071 = vmatprep.subr.mxu0 0.0
    %2072 = vmatpush1.msra.mxu0 0.0
    %2073 = vmatprep.subr.mxu0 0.0
    %2074 = vmatpush1.msra.mxu0 0.0
    %2075 = vmatprep.subr.mxu0 0.0
    %2076 = vmatpush1.msra.mxu0 0.0
    %2077 = vmatprep.subr.mxu0 0.0
    %2078 = vmatpush1.msra.mxu0 0.0
    %2079 = vmatprep.mubr.f32.mxu0 0.0
    %2080 = vmatmul.mubr.f32.gmra.mrb[0].mxu0 %v2013
    %v2081 = vpop.f32.mrb[0].mxu0
    %v2082 = vadd.f32 0.0, %v2081
    %v2083 = vpop.f32.mrb[0].mxu0
    %2084 = vdwg.mxu0
    %2088 = vrot.lane.b32.xlu0 %v45, 9
    %v2089 = vpop.permute.xlu0 %2088
    %2090 = vrot.lane.b32.xlu0 %v46, 9
    %v2091 = vpop.permute.xlu0 %2090
    %2092 = vrot.lane.b32.xlu0 %v47, 9
    %v2093 = vpop.permute.xlu0 %2092
    %v2097 = vmul.f32 %v2006, %v2089
    %v2098 = vmul.f32 %v2006, %v2091
    %v2099 = vmul.f32 %v2006, %v2093
    %2103 = vrot.lane.b32.xlu0 %v2097, 119
    %v2104 = vpop.permute.xlu0 %2103
    %2105 = vrot.lane.b32.xlu0 %v2098, 119
    %v2106 = vpop.permute.xlu0 %2105
    %2107 = vrot.lane.b32.xlu0 %v2099, 119
    %v2108 = vpop.permute.xlu0 %2107
    %v2112 = vmul.f32 %v2082, %v2104
    %v2113 = vmul.f32 %v2082, %v2106
    %v2114 = vmul.f32 %v2082, %v2108
    %v2115 = vsub.f32 1.0, %v2082
    %v2116 = vmul.f32 %v2115, %v101
    %v2117 = vadd.f32 %v2112, %v2116
    %v2118 = vadd.f32 %v2113, %v2116
    %v2119 = vadd.f32 %v2114, %v2116
    %v2120 = vsel %vm104, %v2117, 0.0
    %2121 = vadd.xlane.f32.xlu0 %v2120
    %v2122 = vpop.xlane.xlu0 %2121
    %v2123 = vsel %vm104, %v2118, 0.0
    %2124 = vadd.xlane.f32.xlu0 %v2123
    %v2125 = vpop.xlane.xlu0 %2124
    %v2126 = vsel %vm104, %v2119, 0.0
    %2127 = vadd.xlane.f32.xlu0 %v2126
    %v2128 = vpop.xlane.xlu0 %2127
    %v2129 = vrcp.pop %v2122
    %v2130 = vrcp.pop %v2125
    %v2131 = vrcp.pop %v2128
    %v2132 = vmul.f32 %v2117, %v2129
    %v2133 = vmul.f32 %v2118, %v2130
    %v2134 = vmul.f32 %v2119, %v2131
    %v2135 = vlaneseq
    %v2136 = vshrl.u32 %v2135, 7
    %v2137 = vsub.s32 1, %v2136
    %v2138 = vrot.slane %v2002, %v2137
    %2140 = vrot.lane.b32.xlu0 %v2138, 119
    %v2141 = vpop.permute.xlu0 %2140
    %v2143 = vmul.f32 %v101, %v2141
    %v2145 = vsel %vm104, %v2143, 0
    %2147 = vmatprep.subr.mxu0 0.0
    %2148 = vmatpush1.msra.mxu0 1.0
    %2149 = vmatprep.subr.mxu0 0.0
    %2150 = vmatpush1.msra.mxu0 0.0
    %2151 = vmatprep.subr.mxu0 0.0
    %2152 = vmatpush1.msra.mxu0 0.0
    %2153 = vmatprep.subr.mxu0 0.0
    %2154 = vmatpush1.msra.mxu0 0.0
    %2155 = vmatprep.subr.mxu0 0.0
    %2156 = vmatpush1.msra.mxu0 0.0
    %2157 = vmatprep.subr.mxu0 0.0
    %2158 = vmatpush1.msra.mxu0 0.0
    %2159 = vmatprep.subr.mxu0 0.0
    %2160 = vmatpush1.msra.mxu0 0.0
    %2161 = vmatprep.subr.mxu0 0.0
    %2162 = vmatpush1.msra.mxu0 0.0
    %2163 = vmatprep.subr.mxu0 0.0
    %2164 = vmatpush1.msra.mxu0 0.0
    %2165 = vmatprep.subr.mxu0 0.0
    %2166 = vmatpush1.msra.mxu0 0.0
    %2167 = vmatprep.subr.mxu0 0.0
    %2168 = vmatpush1.msra.mxu0 0.0
    %2169 = vmatprep.subr.mxu0 0.0
    %2170 = vmatpush1.msra.mxu0 0.0
    %2171 = vmatprep.subr.mxu0 0.0
    %2172 = vmatpush1.msra.mxu0 0.0
    %2173 = vmatprep.subr.mxu0 0.0
    %2174 = vmatpush1.msra.mxu0 0.0
    %2175 = vmatprep.subr.mxu0 0.0
    %2176 = vmatpush1.msra.mxu0 0.0
    %2177 = vmatprep.subr.mxu0 0.0
    %2178 = vmatpush1.msra.mxu0 0.0
    %2179 = vmatprep.subr.mxu0 0.0
    %2180 = vmatpush1.msra.mxu0 0.0
    %2181 = vmatprep.subr.mxu0 0.0
    %2182 = vmatpush1.msra.mxu0 0.0
    %2183 = vmatprep.subr.mxu0 0.0
    %2184 = vmatpush1.msra.mxu0 0.0
    %2185 = vmatprep.subr.mxu0 0.0
    %2186 = vmatpush1.msra.mxu0 0.0
    %2187 = vmatprep.subr.mxu0 0.0
    %2188 = vmatpush1.msra.mxu0 0.0
    %2189 = vmatprep.subr.mxu0 0.0
    %2190 = vmatpush1.msra.mxu0 0.0
    %2191 = vmatprep.subr.mxu0 0.0
    %2192 = vmatpush1.msra.mxu0 0.0
    %2193 = vmatprep.subr.mxu0 0.0
    %2194 = vmatpush1.msra.mxu0 0.0
    %2195 = vmatprep.subr.mxu0 0.0
    %2196 = vmatpush1.msra.mxu0 0.0
    %2197 = vmatprep.subr.mxu0 0.0
    %2198 = vmatpush1.msra.mxu0 0.0
    %2199 = vmatprep.subr.mxu0 0.0
    %2200 = vmatpush1.msra.mxu0 0.0
    %2201 = vmatprep.subr.mxu0 0.0
    %2202 = vmatpush1.msra.mxu0 0.0
    %2203 = vmatprep.subr.mxu0 0.0
    %2204 = vmatpush1.msra.mxu0 0.0
    %2205 = vmatprep.subr.mxu0 0.0
    %2206 = vmatpush1.msra.mxu0 0.0
    %2207 = vmatprep.subr.mxu0 0.0
    %2208 = vmatpush1.msra.mxu0 0.0
    %2209 = vmatprep.subr.mxu0 0.0
    %2210 = vmatpush1.msra.mxu0 0.0
    %2211 = vmatprep.mubr.f32.mxu0 0.0
    %2212 = vmatmul.mubr.f32.gmra.mrb[0].mxu0 %v2145
    %v2213 = vpop.f32.mrb[0].mxu0
    %v2214 = vadd.f32 0.0, %v2213
    %v2215 = vpop.f32.mrb[0].mxu0
    %2216 = vdwg.mxu0
    %v2217 = vmul.f32 %v2138, %v2089
    %v2218 = vmul.f32 %v2138, %v2091
    %v2219 = vmul.f32 %v2138, %v2093
    %2223 = vrot.lane.b32.xlu0 %v2217, 119
    %v2224 = vpop.permute.xlu0 %2223
    %2225 = vrot.lane.b32.xlu0 %v2218, 119
    %v2226 = vpop.permute.xlu0 %2225
    %2227 = vrot.lane.b32.xlu0 %v2219, 119
    %v2228 = vpop.permute.xlu0 %2227
    %v2232 = vmul.f32 %v2214, %v2224
    %v2233 = vmul.f32 %v2214, %v2226
    %v2234 = vmul.f32 %v2214, %v2228
    %v2235 = vsub.f32 1.0, %v2214
    %v2236 = vmul.f32 %v2235, %v101
    %v2237 = vadd.f32 %v2232, %v2236
    %v2238 = vadd.f32 %v2233, %v2236
    %v2239 = vadd.f32 %v2234, %v2236
    %v2240 = vsel %vm104, %v2237, 0.0
    %2241 = vadd.xlane.f32.xlu0 %v2240
    %v2242 = vpop.xlane.xlu0 %2241
    %v2243 = vsel %vm104, %v2238, 0.0
    %2244 = vadd.xlane.f32.xlu0 %v2243
    %v2245 = vpop.xlane.xlu0 %2244
    %v2246 = vsel %vm104, %v2239, 0.0
    %2247 = vadd.xlane.f32.xlu0 %v2246
    %v2248 = vpop.xlane.xlu0 %2247
    %v2249 = vrcp.pop %v2242
    %v2250 = vrcp.pop %v2245
    %v2251 = vrcp.pop %v2248
    %v2252 = vmul.f32 %v2237, %v2249
    %v2253 = vmul.f32 %v2238, %v2250
    %v2254 = vmul.f32 %v2239, %v2251
    %v2255 = vld [vmem:[#allocation2] sm:$0xff]
    %2256 = vmatprep.subr.mxu0 0.0
    %2257 = vmatpush1.msra.mxu0 %v2255
    %2258 = vmatprep.subr.mxu0 0.0
    %2259 = vmatpush1.msra.mxu0 0.0
    %2260 = vmatprep.subr.mxu0 0.0
    %2261 = vmatpush1.msra.mxu0 0.0
    %2262 = vmatprep.subr.mxu0 0.0
    %2263 = vmatpush1.msra.mxu0 0.0
    %2264 = vmatprep.subr.mxu0 0.0
    %2265 = vmatpush1.msra.mxu0 0.0
    %2266 = vmatprep.subr.mxu0 0.0
    %2267 = vmatpush1.msra.mxu0 0.0
    %2268 = vmatprep.subr.mxu0 0.0
    %2269 = vmatpush1.msra.mxu0 0.0
    %2270 = vmatprep.subr.mxu0 0.0
    %2271 = vmatpush1.msra.mxu0 0.0
    %2272 = vmatprep.subr.mxu0 0.0
    %2273 = vmatpush1.msra.mxu0 0.0
    %2274 = vmatprep.subr.mxu0 0.0
    %2275 = vmatpush1.msra.mxu0 0.0
    %2276 = vmatprep.subr.mxu0 0.0
    %2277 = vmatpush1.msra.mxu0 0.0
    %2278 = vmatprep.subr.mxu0 0.0
    %2279 = vmatpush1.msra.mxu0 0.0
    %2280 = vmatprep.subr.mxu0 0.0
    %2281 = vmatpush1.msra.mxu0 0.0
    %2282 = vmatprep.subr.mxu0 0.0
    %2283 = vmatpush1.msra.mxu0 0.0
    %2284 = vmatprep.subr.mxu0 0.0
    %2285 = vmatpush1.msra.mxu0 0.0
    %2286 = vmatprep.subr.mxu0 0.0
    %2287 = vmatpush1.msra.mxu0 0.0
    %2288 = vmatprep.subr.mxu0 0.0
    %2289 = vmatpush1.msra.mxu0 0.0
    %2290 = vmatprep.subr.mxu0 0.0
    %2291 = vmatpush1.msra.mxu0 0.0
    %2292 = vmatprep.subr.mxu0 0.0
    %2293 = vmatpush1.msra.mxu0 0.0
    %2294 = vmatprep.subr.mxu0 0.0
    %2295 = vmatpush1.msra.mxu0 0.0
    %2296 = vmatprep.subr.mxu0 0.0
    %2297 = vmatpush1.msra.mxu0 0.0
    %2298 = vmatprep.subr.mxu0 0.0
    %2299 = vmatpush1.msra.mxu0 0.0
    %2300 = vmatprep.subr.mxu0 0.0
    %2301 = vmatpush1.msra.mxu0 0.0
    %2302 = vmatprep.subr.mxu0 0.0
    %2303 = vmatpush1.msra.mxu0 0.0
    %2304 = vmatprep.subr.mxu0 0.0
    %2305 = vmatpush1.msra.mxu0 0.0
    %2306 = vmatprep.subr.mxu0 0.0
    %2307 = vmatpush1.msra.mxu0 0.0
    %2308 = vmatprep.subr.mxu0 0.0
    %2309 = vmatpush1.msra.mxu0 0.0
    %2310 = vmatprep.subr.mxu0 0.0
    %2311 = vmatpush1.msra.mxu0 0.0
    %2312 = vmatprep.subr.mxu0 0.0
    %2313 = vmatpush1.msra.mxu0 0.0
    %2314 = vmatprep.subr.mxu0 0.0
    %2315 = vmatpush1.msra.mxu0 0.0
    %2316 = vmatprep.subr.mxu0 0.0
    %2317 = vmatpush1.msra.mxu0 0.0
    %2318 = vmatprep.subr.mxu0 0.0
    %2319 = vmatpush1.msra.mxu0 0.0
    %2320 = vmatprep.mubr.f32.mxu0 0.0
    %2321 = vmatmul.mubr.f32.gmra.mrb[0].mxu0 %v328
    %v2322 = vpop.f32.mrb[0].mxu0
    %v2323 = vadd.f32 0.0, %v2322
    %v2324 = vpop.f32.mrb[0].mxu0
    %2325 = vmatprep.mubr.f32.mxu0 0.0
    %2326 = vmatmul.mubr.f32.gmra.mrb[0].mxu0 %v331
    %v2327 = vpop.f32.mrb[0].mxu0
    %v2328 = vadd.f32 0.0, %v2327
    %v2329 = vpop.f32.mrb[0].mxu0
    %2330 = vmatprep.mubr.f32.mxu0 0.0
    %2331 = vmatmul.mubr.f32.gmra.mrb[0].mxu0 %v334
    %v2332 = vpop.f32.mrb[0].mxu0
    %v2333 = vadd.f32 0.0, %v2332
    %v2334 = vpop.f32.mrb[0].mxu0
    %2335 = vmatprep.mubr.f32.mxu0 0.0
    %2336 = vmatmul.mubr.f32.gmra.mrb[0].mxu0 %v337
    %v2337 = vpop.f32.mrb[0].mxu0
    %v2338 = vadd.f32 0.0, %v2337
    %v2339 = vpop.f32.mrb[0].mxu0
    %2340 = vmatprep.mubr.f32.mxu0 0.0
    %2341 = vmatmul.mubr.f32.gmra.mrb[0].mxu0 %v340
    %v2342 = vpop.f32.mrb[0].mxu0
    %v2343 = vadd.f32 0.0, %v2342
    %v2344 = vpop.f32.mrb[0].mxu0
    %2345 = vmatprep.mubr.f32.mxu0 0.0
    %2346 = vmatmul.mubr.f32.gmra.mrb[0].mxu0 %v343
    %v2347 = vpop.f32.mrb[0].mxu0
    %v2348 = vadd.f32 0.0, %v2347
    %v2349 = vpop.f32.mrb[0].mxu0
    %2350 = vmatprep.mubr.f32.mxu0 0.0
    %2351 = vmatmul.mubr.f32.gmra.mrb[0].mxu0 %v346
    %v2352 = vpop.f32.mrb[0].mxu0
    %v2353 = vadd.f32 0.0, %v2352
    %v2354 = vpop.f32.mrb[0].mxu0
    %2355 = vmatprep.mubr.f32.mxu0 0.0
    %2356 = vmatmul.mubr.f32.gmra.mrb[0].mxu0 %v349
    %v2357 = vpop.f32.mrb[0].mxu0
    %v2358 = vadd.f32 0.0, %v2357
    %v2359 = vpop.f32.mrb[0].mxu0
    %2360 = vmatprep.mubr.f32.mxu0 0.0
    %2361 = vmatmul.mubr.f32.gmra.mrb[0].mxu0 %v352
    %v2362 = vpop.f32.mrb[0].mxu0
    %v2363 = vadd.f32 0.0, %v2362
    %v2364 = vpop.f32.mrb[0].mxu0
    %2365 = vmatprep.mubr.f32.mxu0 0.0
    %2366 = vmatmul.mubr.f32.gmra.mrb[0].mxu0 %v355
    %v2367 = vpop.f32.mrb[0].mxu0
    %v2368 = vadd.f32 0.0, %v2367
    %v2369 = vpop.f32.mrb[0].mxu0
    %2370 = vmatprep.mubr.f32.mxu0 0.0
    %2371 = vmatmul.mubr.f32.gmra.mrb[0].mxu0 %v358
    %v2372 = vpop.f32.mrb[0].mxu0
    %v2373 = vadd.f32 0.0, %v2372
    %v2374 = vpop.f32.mrb[0].mxu0
    %2375 = vmatprep.mubr.f32.mxu0 0.0
    %2376 = vmatmul.mubr.f32.gmra.mrb[0].mxu0 %v361
    %v2377 = vpop.f32.mrb[0].mxu0
    %v2378 = vadd.f32 0.0, %v2377
    %v2379 = vpop.f32.mrb[0].mxu0
    %2380 = vmatprep.mubr.f32.mxu0 0.0
    %2381 = vmatmul.mubr.f32.gmra.mrb[0].mxu0 %v364
    %v2382 = vpop.f32.mrb[0].mxu0
    %v2383 = vadd.f32 0.0, %v2382
    %v2384 = vpop.f32.mrb[0].mxu0
    %2385 = vmatprep.mubr.f32.mxu0 0.0
    %2386 = vmatmul.mubr.f32.gmra.mrb[0].mxu0 %v367
    %v2387 = vpop.f32.mrb[0].mxu0
    %v2388 = vadd.f32 0.0, %v2387
    %v2389 = vpop.f32.mrb[0].mxu0
    %2390 = vmatprep.mubr.f32.mxu0 0.0
    %2391 = vmatmul.mubr.f32.gmra.mrb[0].mxu0 %v370
    %v2392 = vpop.f32.mrb[0].mxu0
    %v2393 = vadd.f32 0.0, %v2392
    %v2394 = vpop.f32.mrb[0].mxu0
    %2395 = vmatprep.mubr.f32.mxu0 0.0
    %2396 = vmatmul.mubr.f32.gmra.mrb[0].mxu0 %v373
    %v2397 = vpop.f32.mrb[0].mxu0
    %v2398 = vadd.f32 0.0, %v2397
    %v2399 = vpop.f32.mrb[0].mxu0
    %2400 = vmatprep.mubr.f32.mxu0 0.0
    %2401 = vmatmul.mubr.f32.gmra.mrb[0].mxu0 %v376
    %v2402 = vpop.f32.mrb[0].mxu0
    %v2403 = vadd.f32 0.0, %v2402
    %v2404 = vpop.f32.mrb[0].mxu0
    %2405 = vmatprep.mubr.f32.mxu0 0.0
    %2406 = vmatmul.mubr.f32.gmra.mrb[0].mxu0 %v379
    %v2407 = vpop.f32.mrb[0].mxu0
    %v2408 = vadd.f32 0.0, %v2407
    %v2409 = vpop.f32.mrb[0].mxu0
    %2410 = vdwg.mxu0
    %v2412 = vsel %vm104, %v2323, 0
    %v2415 = vsel %vm104, %v2328, 0
    %v2418 = vsel %vm104, %v2333, 0
    %v2421 = vsel %vm104, %v2338, 0
    %v2424 = vsel %vm104, %v2343, 0
    %v2427 = vsel %vm104, %v2348, 0
    %v2430 = vsel %vm104, %v2132, 0
    %2432 = vmatprep.subr.mxu0 0.0
    %2433 = vmatpush1.xpose.msra.mxu0 %v2430
    %2434 = vmatprep.subr.mxu0 0.0
    %2435 = vmatpush1.xpose.msra.mxu0 0.0
    %2436 = vmatprep.subr.mxu0 0.0
    %2437 = vmatpush1.xpose.msra.mxu0 0.0
    %2438 = vmatprep.subr.mxu0 0.0
    %2439 = vmatpush1.xpose.msra.mxu0 0.0
    %2440 = vmatprep.subr.mxu0 0.0
    %2441 = vmatpush1.xpose.msra.mxu0 0.0
    %2442 = vmatprep.subr.mxu0 0.0
    %2443 = vmatpush1.xpose.msra.mxu0 0.0
    %2444 = vmatprep.subr.mxu0 0.0
    %2445 = vmatpush1.xpose.msra.mxu0 0.0
    %2446 = vmatprep.subr.mxu0 0.0
    %2447 = vmatpush1.xpose.msra.mxu0 0.0
    %2448 = vmatprep.subr.mxu0 0.0
    %2449 = vmatpush1.xpose.msra.mxu0 0.0
    %2450 = vmatprep.subr.mxu0 0.0
    %2451 = vmatpush1.xpose.msra.mxu0 0.0
    %2452 = vmatprep.subr.mxu0 0.0
    %2453 = vmatpush1.xpose.msra.mxu0 0.0
    %2454 = vmatprep.subr.mxu0 0.0
    %2455 = vmatpush1.xpose.msra.mxu0 0.0
    %2456 = vmatprep.subr.mxu0 0.0
    %2457 = vmatpush1.xpose.msra.mxu0 0.0
    %2458 = vmatprep.subr.mxu0 0.0
    %2459 = vmatpush1.xpose.msra.mxu0 0.0
    %2460 = vmatprep.subr.mxu0 0.0
    %2461 = vmatpush1.xpose.msra.mxu0 0.0
    %2462 = vmatprep.subr.mxu0 0.0
    %2463 = vmatpush1.xpose.msra.mxu0 0.0
    %2464 = vmatprep.subr.mxu0 0.0
    %2465 = vmatpush1.xpose.msra.mxu0 0.0
    %2466 = vmatprep.subr.mxu0 0.0
    %2467 = vmatpush1.xpose.msra.mxu0 0.0
    %2468 = vmatprep.subr.mxu0 0.0
    %2469 = vmatpush1.xpose.msra.mxu0 0.0
    %2470 = vmatprep.subr.mxu0 0.0
    %2471 = vmatpush1.xpose.msra.mxu0 0.0
    %2472 = vmatprep.subr.mxu0 0.0
    %2473 = vmatpush1.xpose.msra.mxu0 0.0
    %2474 = vmatprep.subr.mxu0 0.0
    %2475 = vmatpush1.xpose.msra.mxu0 0.0
    %2476 = vmatprep.subr.mxu0 0.0
    %2477 = vmatpush1.xpose.msra.mxu0 0.0
    %2478 = vmatprep.subr.mxu0 0.0
    %2479 = vmatpush1.xpose.msra.mxu0 0.0
    %2480 = vmatprep.subr.mxu0 0.0
    %2481 = vmatpush1.xpose.msra.mxu0 0.0
    %2482 = vmatprep.subr.mxu0 0.0
    %2483 = vmatpush1.xpose.msra.mxu0 0.0
    %2484 = vmatprep.subr.mxu0 0.0
    %2485 = vmatpush1.xpose.msra.mxu0 0.0
    %2486 = vmatprep.subr.mxu0 0.0
    %2487 = vmatpush1.xpose.msra.mxu0 0.0
    %2488 = vmatprep.subr.mxu0 0.0
    %2489 = vmatpush1.xpose.msra.mxu0 0.0
    %2490 = vmatprep.subr.mxu0 0.0
    %2491 = vmatpush1.xpose.msra.mxu0 0.0
    %2492 = vmatprep.subr.mxu0 0.0
    %2493 = vmatpush1.xpose.msra.mxu0 0.0
    %2494 = vmatprep.subr.mxu0 0.0
    %2495 = vmatpush1.xpose.msra.mxu0 0.0
    %2496 = vmatprep.mubr.f32.mxu0 0.0
    %2497 = vmatmul.mubr.f32.gmra.mrb[0].mxu0 %v2412
    %v2498 = vpop.f32.mrb[0].mxu0
    %v2499 = vadd.f32 0.0, %v2498
    %v2500 = vpop.f32.mrb[0].mxu0
    %2501 = vmatprep.mubr.f32.mxu0 0.0
    %2502 = vmatmul.mubr.f32.gmra.mrb[0].mxu0 %v2415
    %v2503 = vpop.f32.mrb[0].mxu0
    %v2504 = vadd.f32 0.0, %v2503
    %v2505 = vpop.f32.mrb[0].mxu0
    %2506 = vmatprep.mubr.f32.mxu0 0.0
    %2507 = vmatmul.mubr.f32.gmra.mrb[0].mxu0 %v2418
    %v2508 = vpop.f32.mrb[0].mxu0
    %v2509 = vadd.f32 0.0, %v2508
    %v2510 = vpop.f32.mrb[0].mxu0
    %2511 = vmatprep.mubr.f32.mxu0 0.0
    %2512 = vmatmul.mubr.f32.gmra.mrb[0].mxu0 %v2421
    %v2513 = vpop.f32.mrb[0].mxu0
    %v2514 = vadd.f32 0.0, %v2513
    %v2515 = vpop.f32.mrb[0].mxu0
    %2516 = vmatprep.mubr.f32.mxu0 0.0
    %2517 = vmatmul.mubr.f32.gmra.mrb[0].mxu0 %v2424
    %v2518 = vpop.f32.mrb[0].mxu0
    %v2519 = vadd.f32 0.0, %v2518
    %v2520 = vpop.f32.mrb[0].mxu0
    %2521 = vmatprep.mubr.f32.mxu0 0.0
    %2522 = vmatmul.mubr.f32.gmra.mrb[0].mxu0 %v2427
    %v2523 = vpop.f32.mrb[0].mxu0
    %v2524 = vadd.f32 0.0, %v2523
    %v2525 = vpop.f32.mrb[0].mxu0
    %2526 = vdwg.mxu0
    %v2527 = vadd.f32 %v87, %v2499
    %v2528 = vadd.f32 %v88, %v2504
    %v2529 = vadd.f32 %v89, %v2509
    %v2530 = vadd.f32 %v90, %v2514
    %v2531 = vadd.f32 %v91, %v2519
    %v2532 = vadd.f32 %v92, %v2524
    %v2534 = vsel %vm104, %v2353, 0
    %v2537 = vsel %vm104, %v2358, 0
    %v2540 = vsel %vm104, %v2363, 0
    %v2543 = vsel %vm104, %v2368, 0
    %v2546 = vsel %vm104, %v2373, 0
    %v2549 = vsel %vm104, %v2378, 0
    %v2552 = vsel %vm104, %v2133, 0
    %2554 = vmatprep.subr.mxu0 0.0
    %2555 = vmatpush1.xpose.msra.mxu0 %v2552
    %2556 = vmatprep.subr.mxu0 0.0
    %2557 = vmatpush1.xpose.msra.mxu0 0.0
    %2558 = vmatprep.subr.mxu0 0.0
    %2559 = vmatpush1.xpose.msra.mxu0 0.0
    %2560 = vmatprep.subr.mxu0 0.0
    %2561 = vmatpush1.xpose.msra.mxu0 0.0
    %2562 = vmatprep.subr.mxu0 0.0
    %2563 = vmatpush1.xpose.msra.mxu0 0.0
    %2564 = vmatprep.subr.mxu0 0.0
    %2565 = vmatpush1.xpose.msra.mxu0 0.0
    %2566 = vmatprep.subr.mxu0 0.0
    %2567 = vmatpush1.xpose.msra.mxu0 0.0
    %2568 = vmatprep.subr.mxu0 0.0
    %2569 = vmatpush1.xpose.msra.mxu0 0.0
    %2570 = vmatprep.subr.mxu0 0.0
    %2571 = vmatpush1.xpose.msra.mxu0 0.0
    %2572 = vmatprep.subr.mxu0 0.0
    %2573 = vmatpush1.xpose.msra.mxu0 0.0
    %2574 = vmatprep.subr.mxu0 0.0
    %2575 = vmatpush1.xpose.msra.mxu0 0.0
    %2576 = vmatprep.subr.mxu0 0.0
    %2577 = vmatpush1.xpose.msra.mxu0 0.0
    %2578 = vmatprep.subr.mxu0 0.0
    %2579 = vmatpush1.xpose.msra.mxu0 0.0
    %2580 = vmatprep.subr.mxu0 0.0
    %2581 = vmatpush1.xpose.msra.mxu0 0.0
    %2582 = vmatprep.subr.mxu0 0.0
    %2583 = vmatpush1.xpose.msra.mxu0 0.0
    %2584 = vmatprep.subr.mxu0 0.0
    %2585 = vmatpush1.xpose.msra.mxu0 0.0
    %2586 = vmatprep.subr.mxu0 0.0
    %2587 = vmatpush1.xpose.msra.mxu0 0.0
    %2588 = vmatprep.subr.mxu0 0.0
    %2589 = vmatpush1.xpose.msra.mxu0 0.0
    %2590 = vmatprep.subr.mxu0 0.0
    %2591 = vmatpush1.xpose.msra.mxu0 0.0
    %2592 = vmatprep.subr.mxu0 0.0
    %2593 = vmatpush1.xpose.msra.mxu0 0.0
    %2594 = vmatprep.subr.mxu0 0.0
    %2595 = vmatpush1.xpose.msra.mxu0 0.0
    %2596 = vmatprep.subr.mxu0 0.0
    %2597 = vmatpush1.xpose.msra.mxu0 0.0
    %2598 = vmatprep.subr.mxu0 0.0
    %2599 = vmatpush1.xpose.msra.mxu0 0.0
    %2600 = vmatprep.subr.mxu0 0.0
    %2601 = vmatpush1.xpose.msra.mxu0 0.0
    %2602 = vmatprep.subr.mxu0 0.0
    %2603 = vmatpush1.xpose.msra.mxu0 0.0
    %2604 = vmatprep.subr.mxu0 0.0
    %2605 = vmatpush1.xpose.msra.mxu0 0.0
    %2606 = vmatprep.subr.mxu0 0.0
    %2607 = vmatpush1.xpose.msra.mxu0 0.0
    %2608 = vmatprep.subr.mxu0 0.0
    %2609 = vmatpush1.xpose.msra.mxu0 0.0
    %2610 = vmatprep.subr.mxu0 0.0
    %2611 = vmatpush1.xpose.msra.mxu0 0.0
    %2612 = vmatprep.subr.mxu0 0.0
    %2613 = vmatpush1.xpose.msra.mxu0 0.0
    %2614 = vmatprep.subr.mxu0 0.0
    %2615 = vmatpush1.xpose.msra.mxu0 0.0
    %2616 = vmatprep.subr.mxu0 0.0
    %2617 = vmatpush1.xpose.msra.mxu0 0.0
    %2618 = vmatprep.mubr.f32.mxu0 0.0
    %2619 = vmatmul.mubr.f32.gmra.mrb[0].mxu0 %v2534
    %v2620 = vpop.f32.mrb[0].mxu0
    %v2621 = vadd.f32 0.0, %v2620
    %v2622 = vpop.f32.mrb[0].mxu0
    %2623 = vmatprep.mubr.f32.mxu0 0.0
    %2624 = vmatmul.mubr.f32.gmra.mrb[0].mxu0 %v2537
    %v2625 = vpop.f32.mrb[0].mxu0
    %v2626 = vadd.f32 0.0, %v2625
    %v2627 = vpop.f32.mrb[0].mxu0
    %2628 = vmatprep.mubr.f32.mxu0 0.0
    %2629 = vmatmul.mubr.f32.gmra.mrb[0].mxu0 %v2540
    %v2630 = vpop.f32.mrb[0].mxu0
    %v2631 = vadd.f32 0.0, %v2630
    %v2632 = vpop.f32.mrb[0].mxu0
    %2633 = vmatprep.mubr.f32.mxu0 0.0
    %2634 = vmatmul.mubr.f32.gmra.mrb[0].mxu0 %v2543
    %v2635 = vpop.f32.mrb[0].mxu0
    %v2636 = vadd.f32 0.0, %v2635
    %v2637 = vpop.f32.mrb[0].mxu0
    %2638 = vmatprep.mubr.f32.mxu0 0.0
    %2639 = vmatmul.mubr.f32.gmra.mrb[0].mxu0 %v2546
    %v2640 = vpop.f32.mrb[0].mxu0
    %v2641 = vadd.f32 0.0, %v2640
    %v2642 = vpop.f32.mrb[0].mxu0
    %2643 = vmatprep.mubr.f32.mxu0 0.0
    %2644 = vmatmul.mubr.f32.gmra.mrb[0].mxu0 %v2549
    %v2645 = vpop.f32.mrb[0].mxu0
    %v2646 = vadd.f32 0.0, %v2645
    %v2647 = vpop.f32.mrb[0].mxu0
    %2648 = vdwg.mxu0
    %v2649 = vadd.f32 %v2527, %v2621
    %v2650 = vadd.f32 %v2528, %v2626
    %v2651 = vadd.f32 %v2529, %v2631
    %v2652 = vadd.f32 %v2530, %v2636
    %v2653 = vadd.f32 %v2531, %v2641
    %v2654 = vadd.f32 %v2532, %v2646
    %v2656 = vsel %vm104, %v2383, 0
    %v2659 = vsel %vm104, %v2388, 0
    %v2662 = vsel %vm104, %v2393, 0
    %v2665 = vsel %vm104, %v2398, 0
    %v2668 = vsel %vm104, %v2403, 0
    %v2671 = vsel %vm104, %v2408, 0
    %v2674 = vsel %vm104, %v2134, 0
    %2676 = vmatprep.subr.mxu0 0.0
    %2677 = vmatpush1.xpose.msra.mxu0 %v2674
    %2678 = vmatprep.subr.mxu0 0.0
    %2679 = vmatpush1.xpose.msra.mxu0 0.0
    %2680 = vmatprep.subr.mxu0 0.0
    %2681 = vmatpush1.xpose.msra.mxu0 0.0
    %2682 = vmatprep.subr.mxu0 0.0
    %2683 = vmatpush1.xpose.msra.mxu0 0.0
    %2684 = vmatprep.subr.mxu0 0.0
    %2685 = vmatpush1.xpose.msra.mxu0 0.0
    %2686 = vmatprep.subr.mxu0 0.0
    %2687 = vmatpush1.xpose.msra.mxu0 0.0
    %2688 = vmatprep.subr.mxu0 0.0
    %2689 = vmatpush1.xpose.msra.mxu0 0.0
    %2690 = vmatprep.subr.mxu0 0.0
    %2691 = vmatpush1.xpose.msra.mxu0 0.0
    %2692 = vmatprep.subr.mxu0 0.0
    %2693 = vmatpush1.xpose.msra.mxu0 0.0
    %2694 = vmatprep.subr.mxu0 0.0
    %2695 = vmatpush1.xpose.msra.mxu0 0.0
    %2696 = vmatprep.subr.mxu0 0.0
    %2697 = vmatpush1.xpose.msra.mxu0 0.0
    %2698 = vmatprep.subr.mxu0 0.0
    %2699 = vmatpush1.xpose.msra.mxu0 0.0
    %2700 = vmatprep.subr.mxu0 0.0
    %2701 = vmatpush1.xpose.msra.mxu0 0.0
    %2702 = vmatprep.subr.mxu0 0.0
    %2703 = vmatpush1.xpose.msra.mxu0 0.0
    %2704 = vmatprep.subr.mxu0 0.0
    %2705 = vmatpush1.xpose.msra.mxu0 0.0
    %2706 = vmatprep.subr.mxu0 0.0
    %2707 = vmatpush1.xpose.msra.mxu0 0.0
    %2708 = vmatprep.subr.mxu0 0.0
    %2709 = vmatpush1.xpose.msra.mxu0 0.0
    %2710 = vmatprep.subr.mxu0 0.0
    %2711 = vmatpush1.xpose.msra.mxu0 0.0
    %2712 = vmatprep.subr.mxu0 0.0
    %2713 = vmatpush1.xpose.msra.mxu0 0.0
    %2714 = vmatprep.subr.mxu0 0.0
    %2715 = vmatpush1.xpose.msra.mxu0 0.0
    %2716 = vmatprep.subr.mxu0 0.0
    %2717 = vmatpush1.xpose.msra.mxu0 0.0
    %2718 = vmatprep.subr.mxu0 0.0
    %2719 = vmatpush1.xpose.msra.mxu0 0.0
    %2720 = vmatprep.subr.mxu0 0.0
    %2721 = vmatpush1.xpose.msra.mxu0 0.0
    %2722 = vmatprep.subr.mxu0 0.0
    %2723 = vmatpush1.xpose.msra.mxu0 0.0
    %2724 = vmatprep.subr.mxu0 0.0
    %2725 = vmatpush1.xpose.msra.mxu0 0.0
    %2726 = vmatprep.subr.mxu0 0.0
    %2727 = vmatpush1.xpose.msra.mxu0 0.0
    %2728 = vmatprep.subr.mxu0 0.0
    %2729 = vmatpush1.xpose.msra.mxu0 0.0
    %2730 = vmatprep.subr.mxu0 0.0
    %2731 = vmatpush1.xpose.msra.mxu0 0.0
    %2732 = vmatprep.subr.mxu0 0.0
    %2733 = vmatpush1.xpose.msra.mxu0 0.0
    %2734 = vmatprep.subr.mxu0 0.0
    %2735 = vmatpush1.xpose.msra.mxu0 0.0
    %2736 = vmatprep.subr.mxu0 0.0
    %2737 = vmatpush1.xpose.msra.mxu0 0.0
    %2738 = vmatprep.subr.mxu0 0.0
    %2739 = vmatpush1.xpose.msra.mxu0 0.0
    %2740 = vmatprep.mubr.f32.mxu0 0.0
    %2741 = vmatmul.mubr.f32.gmra.mrb[0].mxu0 %v2656
    %v2742 = vpop.f32.mrb[0].mxu0
    %v2743 = vadd.f32 0.0, %v2742
    %v2744 = vpop.f32.mrb[0].mxu0
    %2745 = vmatprep.mubr.f32.mxu0 0.0
    %2746 = vmatmul.mubr.f32.gmra.mrb[0].mxu0 %v2659
    %v2747 = vpop.f32.mrb[0].mxu0
    %v2748 = vadd.f32 0.0, %v2747
    %v2749 = vpop.f32.mrb[0].mxu0
    %2750 = vmatprep.mubr.f32.mxu0 0.0
    %2751 = vmatmul.mubr.f32.gmra.mrb[0].mxu0 %v2662
    %v2752 = vpop.f32.mrb[0].mxu0
    %v2753 = vadd.f32 0.0, %v2752
    %v2754 = vpop.f32.mrb[0].mxu0
    %2755 = vmatprep.mubr.f32.mxu0 0.0
    %2756 = vmatmul.mubr.f32.gmra.mrb[0].mxu0 %v2665
    %v2757 = vpop.f32.mrb[0].mxu0
    %v2758 = vadd.f32 0.0, %v2757
    %v2759 = vpop.f32.mrb[0].mxu0
    %2760 = vmatprep.mubr.f32.mxu0 0.0
    %2761 = vmatmul.mubr.f32.gmra.mrb[0].mxu0 %v2668
    %v2762 = vpop.f32.mrb[0].mxu0
    %v2763 = vadd.f32 0.0, %v2762
    %v2764 = vpop.f32.mrb[0].mxu0
    %2765 = vmatprep.mubr.f32.mxu0 0.0
    %2766 = vmatmul.mubr.f32.gmra.mrb[0].mxu0 %v2671
    %v2767 = vpop.f32.mrb[0].mxu0
    %v2768 = vadd.f32 0.0, %v2767
    %v2769 = vpop.f32.mrb[0].mxu0
    %2770 = vdwg.mxu0
    %v2771 = vadd.f32 %v2649, %v2743
    %v2772 = vadd.f32 %v2650, %v2748
    %v2773 = vadd.f32 %v2651, %v2753
    %v2774 = vadd.f32 %v2652, %v2758
    %v2775 = vadd.f32 %v2653, %v2763
    %v2776 = vadd.f32 %v2654, %v2768
    %v2777 = vxor.u32 %v2771, 2147483648
    %v2778 = vxor.u32 %v2772, 2147483648
    %v2779 = vmul.f32 %v2777, 1.442695
    %v2780 = vpow.pop %v2779
    %v2781 = vmul.f32 %v2778, 1.442695
    %v2782 = vpow.pop %v2781
    %v2783 = vadd.f32 %v2780, 1.0
    %v2784 = vadd.f32 %v2782, 1.0
    %v2785 = vrcp.pop %v2783
    %v2786 = vmul.f32 1.0, %v2785
    %v2787 = vrcp.pop %v2784
    %v2788 = vmul.f32 1.0, %v2787
    %v2789 = vtanh.pop %v2775
    %v2790 = vtanh.pop %v2776
    %v2791 = vmul.f32 %v2786, %v2789
    %v2792 = vmul.f32 %v2788, %v2790
    %2793 = vmatprep.subr.mxu0 0.0
    %2794 = vmatpush1.msra.mxu0 %v2791
    %2795 = vmatprep.subr.mxu0 0.0
    %2796 = vmatpush1.msra.mxu0 %v2792
    %2797 = vmatprep.subr.mxu0 0.0
    %2798 = vmatpush1.msra.mxu0 0.0
    %2799 = vmatprep.subr.mxu0 0.0
    %2800 = vmatpush1.msra.mxu0 0.0
    %2801 = vmatprep.subr.mxu0 0.0
    %2802 = vmatpush1.msra.mxu0 0.0
    %2803 = vmatprep.subr.mxu0 0.0
    %2804 = vmatpush1.msra.mxu0 0.0
    %2805 = vmatprep.subr.mxu0 0.0
    %2806 = vmatpush1.msra.mxu0 0.0
    %2807 = vmatprep.subr.mxu0 0.0
    %2808 = vmatpush1.msra.mxu0 0.0
    %2809 = vmatprep.subr.mxu0 0.0
    %2810 = vmatpush1.msra.mxu0 0.0
    %2811 = vmatprep.subr.mxu0 0.0
    %2812 = vmatpush1.msra.mxu0 0.0
    %2813 = vmatprep.subr.mxu0 0.0
    %2814 = vmatpush1.msra.mxu0 0.0
    %2815 = vmatprep.subr.mxu0 0.0
    %2816 = vmatpush1.msra.mxu0 0.0
    %2817 = vmatprep.subr.mxu0 0.0
    %2818 = vmatpush1.msra.mxu0 0.0
    %2819 = vmatprep.subr.mxu0 0.0
    %2820 = vmatpush1.msra.mxu0 0.0
    %2821 = vmatprep.subr.mxu0 0.0
    %2822 = vmatpush1.msra.mxu0 0.0
    %2823 = vmatprep.subr.mxu0 0.0
    %2824 = vmatpush1.msra.mxu0 0.0
    %2825 = vmatprep.subr.mxu0 0.0
    %2826 = vmatpush1.msra.mxu0 0.0
    %2827 = vmatprep.subr.mxu0 0.0
    %2828 = vmatpush1.msra.mxu0 0.0
    %2829 = vmatprep.subr.mxu0 0.0
    %2830 = vmatpush1.msra.mxu0 0.0
    %2831 = vmatprep.subr.mxu0 0.0
    %2832 = vmatpush1.msra.mxu0 0.0
    %2833 = vmatprep.subr.mxu0 0.0
    %2834 = vmatpush1.msra.mxu0 0.0
    %2835 = vmatprep.subr.mxu0 0.0
    %2836 = vmatpush1.msra.mxu0 0.0
    %2837 = vmatprep.subr.mxu0 0.0
    %2838 = vmatpush1.msra.mxu0 0.0
    %2839 = vmatprep.subr.mxu0 0.0
    %2840 = vmatpush1.msra.mxu0 0.0
    %2841 = vmatprep.subr.mxu0 0.0
    %2842 = vmatpush1.msra.mxu0 0.0
    %2843 = vmatprep.subr.mxu0 0.0
    %2844 = vmatpush1.msra.mxu0 0.0
    %2845 = vmatprep.subr.mxu0 0.0
    %2846 = vmatpush1.msra.mxu0 0.0
    %2847 = vmatprep.subr.mxu0 0.0
    %2848 = vmatpush1.msra.mxu0 0.0
    %2849 = vmatprep.subr.mxu0 0.0
    %2850 = vmatpush1.msra.mxu0 0.0
    %2851 = vmatprep.subr.mxu0 0.0
    %2852 = vmatpush1.msra.mxu0 0.0
    %2853 = vmatprep.subr.mxu0 0.0
    %2854 = vmatpush1.msra.mxu0 0.0
    %2855 = vmatprep.subr.mxu0 0.0
    %2856 = vmatpush1.msra.mxu0 0.0
    %2857 = vmatprep.mubr.f32.mxu0 0.0
    %2858 = vmatmul.mubr.f32.gmra.mrb[0].mxu0 %v920
    %v2859 = vpop.f32.mrb[0].mxu0
    %v2860 = vadd.f32 0.0, %v2859
    %v2861 = vpop.f32.mrb[0].mxu0
    %2862 = vmatprep.mubr.f32.mxu0 0.0
    %2863 = vmatmul.mubr.f32.gmra.mrb[0].mxu0 %v923
    %v2864 = vpop.f32.mrb[0].mxu0
    %v2865 = vadd.f32 0.0, %v2864
    %v2866 = vpop.f32.mrb[0].mxu0
    %2867 = vdwg.mxu0
    %v2868 = vadd.f32 %v2773, %v2860
    %v2869 = vadd.f32 %v2774, %v2865
    %v2870 = vxor.u32 %v2868, 2147483648
    %v2871 = vxor.u32 %v2869, 2147483648
    %v2872 = vmul.f32 %v2870, 1.442695
    %v2873 = vpow.pop %v2872
    %v2874 = vmul.f32 %v2871, 1.442695
    %v2875 = vpow.pop %v2874
    %v2876 = vadd.f32 %v2873, 1.0
    %v2877 = vadd.f32 %v2875, 1.0
    %v2878 = vrcp.pop %v2876
    %v2879 = vmul.f32 1.0, %v2878
    %v2880 = vrcp.pop %v2877
    %v2881 = vmul.f32 1.0, %v2880
    %v2882 = vtanh.pop %v2791
    %v2883 = vtanh.pop %v2792
    %v2884 = vmul.f32 %v2879, %v2882
    %v2885 = vmul.f32 %v2881, %v2883
    %v2886 = vld [vmem:[%s1018] sm:$0xff]
    %2887 = vmatprep.subr.mxu0 0.0
    %2888 = vmatpush1.msra.mxu0 %v2886
    %2889 = vmatprep.subr.mxu0 0.0
    %2890 = vmatpush1.msra.mxu0 0.0
    %2891 = vmatprep.subr.mxu0 0.0
    %2892 = vmatpush1.msra.mxu0 0.0
    %2893 = vmatprep.subr.mxu0 0.0
    %2894 = vmatpush1.msra.mxu0 0.0
    %2895 = vmatprep.subr.mxu0 0.0
    %2896 = vmatpush1.msra.mxu0 0.0
    %2897 = vmatprep.subr.mxu0 0.0
    %2898 = vmatpush1.msra.mxu0 0.0
    %2899 = vmatprep.subr.mxu0 0.0
    %2900 = vmatpush1.msra.mxu0 0.0
    %2901 = vmatprep.subr.mxu0 0.0
    %2902 = vmatpush1.msra.mxu0 0.0
    %2903 = vmatprep.subr.mxu0 0.0
    %2904 = vmatpush1.msra.mxu0 0.0
    %2905 = vmatprep.subr.mxu0 0.0
    %2906 = vmatpush1.msra.mxu0 0.0
    %2907 = vmatprep.subr.mxu0 0.0
    %2908 = vmatpush1.msra.mxu0 0.0
    %2909 = vmatprep.subr.mxu0 0.0
    %2910 = vmatpush1.msra.mxu0 0.0
    %2911 = vmatprep.subr.mxu0 0.0
    %2912 = vmatpush1.msra.mxu0 0.0
    %2913 = vmatprep.subr.mxu0 0.0
    %2914 = vmatpush1.msra.mxu0 0.0
    %2915 = vmatprep.subr.mxu0 0.0
    %2916 = vmatpush1.msra.mxu0 0.0
    %2917 = vmatprep.subr.mxu0 0.0
    %2918 = vmatpush1.msra.mxu0 0.0
    %2919 = vmatprep.subr.mxu0 0.0
    %2920 = vmatpush1.msra.mxu0 0.0
    %2921 = vmatprep.subr.mxu0 0.0
    %2922 = vmatpush1.msra.mxu0 0.0
    %2923 = vmatprep.subr.mxu0 0.0
    %2924 = vmatpush1.msra.mxu0 0.0
    %2925 = vmatprep.subr.mxu0 0.0
    %2926 = vmatpush1.msra.mxu0 0.0
    %2927 = vmatprep.subr.mxu0 0.0
    %2928 = vmatpush1.msra.mxu0 0.0
    %2929 = vmatprep.subr.mxu0 0.0
    %2930 = vmatpush1.msra.mxu0 0.0
    %2931 = vmatprep.subr.mxu0 0.0
    %2932 = vmatpush1.msra.mxu0 0.0
    %2933 = vmatprep.subr.mxu0 0.0
    %2934 = vmatpush1.msra.mxu0 0.0
    %2935 = vmatprep.subr.mxu0 0.0
    %2936 = vmatpush1.msra.mxu0 0.0
    %2937 = vmatprep.subr.mxu0 0.0
    %2938 = vmatpush1.msra.mxu0 0.0
    %2939 = vmatprep.subr.mxu0 0.0
    %2940 = vmatpush1.msra.mxu0 0.0
    %2941 = vmatprep.subr.mxu0 0.0
    %2942 = vmatpush1.msra.mxu0 0.0
    %2943 = vmatprep.subr.mxu0 0.0
    %2944 = vmatpush1.msra.mxu0 0.0
    %2945 = vmatprep.subr.mxu0 0.0
    %2946 = vmatpush1.msra.mxu0 0.0
    %2947 = vmatprep.subr.mxu0 0.0
    %2948 = vmatpush1.msra.mxu0 0.0
    %2949 = vmatprep.subr.mxu0 0.0
    %2950 = vmatpush1.msra.mxu0 0.0
    %2951 = vmatprep.mubr.f32.mxu0 0.0
    %2952 = vmatmul.mubr.f32.gmra.mrb[0].mxu0 %v328
    %v2953 = vpop.f32.mrb[0].mxu0
    %v2954 = vadd.f32 0.0, %v2953
    %v2955 = vpop.f32.mrb[0].mxu0
    %2956 = vmatprep.mubr.f32.mxu0 0.0
    %2957 = vmatmul.mubr.f32.gmra.mrb[0].mxu0 %v331
    %v2958 = vpop.f32.mrb[0].mxu0
    %v2959 = vadd.f32 0.0, %v2958
    %v2960 = vpop.f32.mrb[0].mxu0
    %2961 = vmatprep.mubr.f32.mxu0 0.0
    %2962 = vmatmul.mubr.f32.gmra.mrb[0].mxu0 %v334
    %v2963 = vpop.f32.mrb[0].mxu0
    %v2964 = vadd.f32 0.0, %v2963
    %v2965 = vpop.f32.mrb[0].mxu0
    %2966 = vmatprep.mubr.f32.mxu0 0.0
    %2967 = vmatmul.mubr.f32.gmra.mrb[0].mxu0 %v337
    %v2968 = vpop.f32.mrb[0].mxu0
    %v2969 = vadd.f32 0.0, %v2968
    %v2970 = vpop.f32.mrb[0].mxu0
    %2971 = vmatprep.mubr.f32.mxu0 0.0
    %2972 = vmatmul.mubr.f32.gmra.mrb[0].mxu0 %v340
    %v2973 = vpop.f32.mrb[0].mxu0
    %v2974 = vadd.f32 0.0, %v2973
    %v2975 = vpop.f32.mrb[0].mxu0
    %2976 = vmatprep.mubr.f32.mxu0 0.0
    %2977 = vmatmul.mubr.f32.gmra.mrb[0].mxu0 %v343
    %v2978 = vpop.f32.mrb[0].mxu0
    %v2979 = vadd.f32 0.0, %v2978
    %v2980 = vpop.f32.mrb[0].mxu0
    %2981 = vmatprep.mubr.f32.mxu0 0.0
    %2982 = vmatmul.mubr.f32.gmra.mrb[0].mxu0 %v346
    %v2983 = vpop.f32.mrb[0].mxu0
    %v2984 = vadd.f32 0.0, %v2983
    %v2985 = vpop.f32.mrb[0].mxu0
    %2986 = vmatprep.mubr.f32.mxu0 0.0
    %2987 = vmatmul.mubr.f32.gmra.mrb[0].mxu0 %v349
    %v2988 = vpop.f32.mrb[0].mxu0
    %v2989 = vadd.f32 0.0, %v2988
    %v2990 = vpop.f32.mrb[0].mxu0
    %2991 = vmatprep.mubr.f32.mxu0 0.0
    %2992 = vmatmul.mubr.f32.gmra.mrb[0].mxu0 %v352
    %v2993 = vpop.f32.mrb[0].mxu0
    %v2994 = vadd.f32 0.0, %v2993
    %v2995 = vpop.f32.mrb[0].mxu0
    %2996 = vmatprep.mubr.f32.mxu0 0.0
    %2997 = vmatmul.mubr.f32.gmra.mrb[0].mxu0 %v355
    %v2998 = vpop.f32.mrb[0].mxu0
    %v2999 = vadd.f32 0.0, %v2998
    %v3000 = vpop.f32.mrb[0].mxu0
    %3001 = vmatprep.mubr.f32.mxu0 0.0
    %3002 = vmatmul.mubr.f32.gmra.mrb[0].mxu0 %v358
    %v3003 = vpop.f32.mrb[0].mxu0
    %v3004 = vadd.f32 0.0, %v3003
    %v3005 = vpop.f32.mrb[0].mxu0
    %3006 = vmatprep.mubr.f32.mxu0 0.0
    %3007 = vmatmul.mubr.f32.gmra.mrb[0].mxu0 %v361
    %v3008 = vpop.f32.mrb[0].mxu0
    %v3009 = vadd.f32 0.0, %v3008
    %v3010 = vpop.f32.mrb[0].mxu0
    %3011 = vmatprep.mubr.f32.mxu0 0.0
    %3012 = vmatmul.mubr.f32.gmra.mrb[0].mxu0 %v364
    %v3013 = vpop.f32.mrb[0].mxu0
    %v3014 = vadd.f32 0.0, %v3013
    %v3015 = vpop.f32.mrb[0].mxu0
    %3016 = vmatprep.mubr.f32.mxu0 0.0
    %3017 = vmatmul.mubr.f32.gmra.mrb[0].mxu0 %v367
    %v3018 = vpop.f32.mrb[0].mxu0
    %v3019 = vadd.f32 0.0, %v3018
    %v3020 = vpop.f32.mrb[0].mxu0
    %3021 = vmatprep.mubr.f32.mxu0 0.0
    %3022 = vmatmul.mubr.f32.gmra.mrb[0].mxu0 %v370
    %v3023 = vpop.f32.mrb[0].mxu0
    %v3024 = vadd.f32 0.0, %v3023
    %v3025 = vpop.f32.mrb[0].mxu0
    %3026 = vmatprep.mubr.f32.mxu0 0.0
    %3027 = vmatmul.mubr.f32.gmra.mrb[0].mxu0 %v373
    %v3028 = vpop.f32.mrb[0].mxu0
    %v3029 = vadd.f32 0.0, %v3028
    %v3030 = vpop.f32.mrb[0].mxu0
    %3031 = vmatprep.mubr.f32.mxu0 0.0
    %3032 = vmatmul.mubr.f32.gmra.mrb[0].mxu0 %v376
    %v3033 = vpop.f32.mrb[0].mxu0
    %v3034 = vadd.f32 0.0, %v3033
    %v3035 = vpop.f32.mrb[0].mxu0
    %3036 = vmatprep.mubr.f32.mxu0 0.0
    %3037 = vmatmul.mubr.f32.gmra.mrb[0].mxu0 %v379
    %v3038 = vpop.f32.mrb[0].mxu0
    %v3039 = vadd.f32 0.0, %v3038
    %v3040 = vpop.f32.mrb[0].mxu0
    %3041 = vdwg.mxu0
    %v3043 = vsel %vm104, %v2954, 0
    %v3046 = vsel %vm104, %v2959, 0
    %v3049 = vsel %vm104, %v2964, 0
    %v3052 = vsel %vm104, %v2969, 0
    %v3055 = vsel %vm104, %v2974, 0
    %v3058 = vsel %vm104, %v2979, 0
    %v3061 = vsel %vm104, %v2252, 0
    %3063 = vmatprep.subr.mxu0 0.0
    %3064 = vmatpush1.xpose.msra.mxu0 %v3061
    %3065 = vmatprep.subr.mxu0 0.0
    %3066 = vmatpush1.xpose.msra.mxu0 0.0
    %3067 = vmatprep.subr.mxu0 0.0
    %3068 = vmatpush1.xpose.msra.mxu0 0.0
    %3069 = vmatprep.subr.mxu0 0.0
    %3070 = vmatpush1.xpose.msra.mxu0 0.0
    %3071 = vmatprep.subr.mxu0 0.0
    %3072 = vmatpush1.xpose.msra.mxu0 0.0
    %3073 = vmatprep.subr.mxu0 0.0
    %3074 = vmatpush1.xpose.msra.mxu0 0.0
    %3075 = vmatprep.subr.mxu0 0.0
    %3076 = vmatpush1.xpose.msra.mxu0 0.0
    %3077 = vmatprep.subr.mxu0 0.0
    %3078 = vmatpush1.xpose.msra.mxu0 0.0
    %3079 = vmatprep.subr.mxu0 0.0
    %3080 = vmatpush1.xpose.msra.mxu0 0.0
    %3081 = vmatprep.subr.mxu0 0.0
    %3082 = vmatpush1.xpose.msra.mxu0 0.0
    %3083 = vmatprep.subr.mxu0 0.0
    %3084 = vmatpush1.xpose.msra.mxu0 0.0
    %3085 = vmatprep.subr.mxu0 0.0
    %3086 = vmatpush1.xpose.msra.mxu0 0.0
    %3087 = vmatprep.subr.mxu0 0.0
    %3088 = vmatpush1.xpose.msra.mxu0 0.0
    %3089 = vmatprep.subr.mxu0 0.0
    %3090 = vmatpush1.xpose.msra.mxu0 0.0
    %3091 = vmatprep.subr.mxu0 0.0
    %3092 = vmatpush1.xpose.msra.mxu0 0.0
    %3093 = vmatprep.subr.mxu0 0.0
    %3094 = vmatpush1.xpose.msra.mxu0 0.0
    %3095 = vmatprep.subr.mxu0 0.0
    %3096 = vmatpush1.xpose.msra.mxu0 0.0
    %3097 = vmatprep.subr.mxu0 0.0
    %3098 = vmatpush1.xpose.msra.mxu0 0.0
    %3099 = vmatprep.subr.mxu0 0.0
    %3100 = vmatpush1.xpose.msra.mxu0 0.0
    %3101 = vmatprep.subr.mxu0 0.0
    %3102 = vmatpush1.xpose.msra.mxu0 0.0
    %3103 = vmatprep.subr.mxu0 0.0
    %3104 = vmatpush1.xpose.msra.mxu0 0.0
    %3105 = vmatprep.subr.mxu0 0.0
    %3106 = vmatpush1.xpose.msra.mxu0 0.0
    %3107 = vmatprep.subr.mxu0 0.0
    %3108 = vmatpush1.xpose.msra.mxu0 0.0
    %3109 = vmatprep.subr.mxu0 0.0
    %3110 = vmatpush1.xpose.msra.mxu0 0.0
    %3111 = vmatprep.subr.mxu0 0.0
    %3112 = vmatpush1.xpose.msra.mxu0 0.0
    %3113 = vmatprep.subr.mxu0 0.0
    %3114 = vmatpush1.xpose.msra.mxu0 0.0
    %3115 = vmatprep.subr.mxu0 0.0
    %3116 = vmatpush1.xpose.msra.mxu0 0.0
    %3117 = vmatprep.subr.mxu0 0.0
    %3118 = vmatpush1.xpose.msra.mxu0 0.0
    %3119 = vmatprep.subr.mxu0 0.0
    %3120 = vmatpush1.xpose.msra.mxu0 0.0
    %3121 = vmatprep.subr.mxu0 0.0
    %3122 = vmatpush1.xpose.msra.mxu0 0.0
    %3123 = vmatprep.subr.mxu0 0.0
    %3124 = vmatpush1.xpose.msra.mxu0 0.0
    %3125 = vmatprep.subr.mxu0 0.0
    %3126 = vmatpush1.xpose.msra.mxu0 0.0
    %3127 = vmatprep.mubr.f32.mxu0 0.0
    %3128 = vmatmul.mubr.f32.gmra.mrb[0].mxu0 %v3043
    %v3129 = vpop.f32.mrb[0].mxu0
    %v3130 = vadd.f32 0.0, %v3129
    %v3131 = vpop.f32.mrb[0].mxu0
    %3132 = vmatprep.mubr.f32.mxu0 0.0
    %3133 = vmatmul.mubr.f32.gmra.mrb[0].mxu0 %v3046
    %v3134 = vpop.f32.mrb[0].mxu0
    %v3135 = vadd.f32 0.0, %v3134
    %v3136 = vpop.f32.mrb[0].mxu0
    %3137 = vmatprep.mubr.f32.mxu0 0.0
    %3138 = vmatmul.mubr.f32.gmra.mrb[0].mxu0 %v3049
    %v3139 = vpop.f32.mrb[0].mxu0
    %v3140 = vadd.f32 0.0, %v3139
    %v3141 = vpop.f32.mrb[0].mxu0
    %3142 = vmatprep.mubr.f32.mxu0 0.0
    %3143 = vmatmul.mubr.f32.gmra.mrb[0].mxu0 %v3052
    %v3144 = vpop.f32.mrb[0].mxu0
    %v3145 = vadd.f32 0.0, %v3144
    %v3146 = vpop.f32.mrb[0].mxu0
    %3147 = vmatprep.mubr.f32.mxu0 0.0
    %3148 = vmatmul.mubr.f32.gmra.mrb[0].mxu0 %v3055
    %v3149 = vpop.f32.mrb[0].mxu0
    %v3150 = vadd.f32 0.0, %v3149
    %v3151 = vpop.f32.mrb[0].mxu0
    %3152 = vmatprep.mubr.f32.mxu0 0.0
    %3153 = vmatmul.mubr.f32.gmra.mrb[0].mxu0 %v3058
    %v3154 = vpop.f32.mrb[0].mxu0
    %v3155 = vadd.f32 0.0, %v3154
    %v3156 = vpop.f32.mrb[0].mxu0
    %3157 = vdwg.mxu0
    %v3158 = vadd.f32 %v87, %v3130
    %v3159 = vadd.f32 %v88, %v3135
    %v3160 = vadd.f32 %v89, %v3140
    %v3161 = vadd.f32 %v90, %v3145
    %v3162 = vadd.f32 %v91, %v3150
    %v3163 = vadd.f32 %v92, %v3155
    %v3165 = vsel %vm104, %v2984, 0
    %v3168 = vsel %vm104, %v2989, 0
    %v3171 = vsel %vm104, %v2994, 0
    %v3174 = vsel %vm104, %v2999, 0
    %v3177 = vsel %vm104, %v3004, 0
    %v3180 = vsel %vm104, %v3009, 0
    %v3183 = vsel %vm104, %v2253, 0
    %3185 = vmatprep.subr.mxu0 0.0
    %3186 = vmatpush1.xpose.msra.mxu0 %v3183
    %3187 = vmatprep.subr.mxu0 0.0
    %3188 = vmatpush1.xpose.msra.mxu0 0.0
    %3189 = vmatprep.subr.mxu0 0.0
    %3190 = vmatpush1.xpose.msra.mxu0 0.0
    %3191 = vmatprep.subr.mxu0 0.0
    %3192 = vmatpush1.xpose.msra.mxu0 0.0
    %3193 = vmatprep.subr.mxu0 0.0
    %3194 = vmatpush1.xpose.msra.mxu0 0.0
    %3195 = vmatprep.subr.mxu0 0.0
    %3196 = vmatpush1.xpose.msra.mxu0 0.0
    %3197 = vmatprep.subr.mxu0 0.0
    %3198 = vmatpush1.xpose.msra.mxu0 0.0
    %3199 = vmatprep.subr.mxu0 0.0
    %3200 = vmatpush1.xpose.msra.mxu0 0.0
    %3201 = vmatprep.subr.mxu0 0.0
    %3202 = vmatpush1.xpose.msra.mxu0 0.0
    %3203 = vmatprep.subr.mxu0 0.0
    %3204 = vmatpush1.xpose.msra.mxu0 0.0
    %3205 = vmatprep.subr.mxu0 0.0
    %3206 = vmatpush1.xpose.msra.mxu0 0.0
    %3207 = vmatprep.subr.mxu0 0.0
    %3208 = vmatpush1.xpose.msra.mxu0 0.0
    %3209 = vmatprep.subr.mxu0 0.0
    %3210 = vmatpush1.xpose.msra.mxu0 0.0
    %3211 = vmatprep.subr.mxu0 0.0
    %3212 = vmatpush1.xpose.msra.mxu0 0.0
    %3213 = vmatprep.subr.mxu0 0.0
    %3214 = vmatpush1.xpose.msra.mxu0 0.0
    %3215 = vmatprep.subr.mxu0 0.0
    %3216 = vmatpush1.xpose.msra.mxu0 0.0
    %3217 = vmatprep.subr.mxu0 0.0
    %3218 = vmatpush1.xpose.msra.mxu0 0.0
    %3219 = vmatprep.subr.mxu0 0.0
    %3220 = vmatpush1.xpose.msra.mxu0 0.0
    %3221 = vmatprep.subr.mxu0 0.0
    %3222 = vmatpush1.xpose.msra.mxu0 0.0
    %3223 = vmatprep.subr.mxu0 0.0
    %3224 = vmatpush1.xpose.msra.mxu0 0.0
    %3225 = vmatprep.subr.mxu0 0.0
    %3226 = vmatpush1.xpose.msra.mxu0 0.0
    %3227 = vmatprep.subr.mxu0 0.0
    %3228 = vmatpush1.xpose.msra.mxu0 0.0
    %3229 = vmatprep.subr.mxu0 0.0
    %3230 = vmatpush1.xpose.msra.mxu0 0.0
    %3231 = vmatprep.subr.mxu0 0.0
    %3232 = vmatpush1.xpose.msra.mxu0 0.0
    %3233 = vmatprep.subr.mxu0 0.0
    %3234 = vmatpush1.xpose.msra.mxu0 0.0
    %3235 = vmatprep.subr.mxu0 0.0
    %3236 = vmatpush1.xpose.msra.mxu0 0.0
    %3237 = vmatprep.subr.mxu0 0.0
    %3238 = vmatpush1.xpose.msra.mxu0 0.0
    %3239 = vmatprep.subr.mxu0 0.0
    %3240 = vmatpush1.xpose.msra.mxu0 0.0
    %3241 = vmatprep.subr.mxu0 0.0
    %3242 = vmatpush1.xpose.msra.mxu0 0.0
    %3243 = vmatprep.subr.mxu0 0.0
    %3244 = vmatpush1.xpose.msra.mxu0 0.0
    %3245 = vmatprep.subr.mxu0 0.0
    %3246 = vmatpush1.xpose.msra.mxu0 0.0
    %3247 = vmatprep.subr.mxu0 0.0
    %3248 = vmatpush1.xpose.msra.mxu0 0.0
    %3249 = vmatprep.mubr.f32.mxu0 0.0
    %3250 = vmatmul.mubr.f32.gmra.mrb[0].mxu0 %v3165
    %v3251 = vpop.f32.mrb[0].mxu0
    %v3252 = vadd.f32 0.0, %v3251
    %v3253 = vpop.f32.mrb[0].mxu0
    %3254 = vmatprep.mubr.f32.mxu0 0.0
    %3255 = vmatmul.mubr.f32.gmra.mrb[0].mxu0 %v3168
    %v3256 = vpop.f32.mrb[0].mxu0
    %v3257 = vadd.f32 0.0, %v3256
    %v3258 = vpop.f32.mrb[0].mxu0
    %3259 = vmatprep.mubr.f32.mxu0 0.0
    %3260 = vmatmul.mubr.f32.gmra.mrb[0].mxu0 %v3171
    %v3261 = vpop.f32.mrb[0].mxu0
    %v3262 = vadd.f32 0.0, %v3261
    %v3263 = vpop.f32.mrb[0].mxu0
    %3264 = vmatprep.mubr.f32.mxu0 0.0
    %3265 = vmatmul.mubr.f32.gmra.mrb[0].mxu0 %v3174
    %v3266 = vpop.f32.mrb[0].mxu0
    %v3267 = vadd.f32 0.0, %v3266
    %v3268 = vpop.f32.mrb[0].mxu0
    %3269 = vmatprep.mubr.f32.mxu0 0.0
    %3270 = vmatmul.mubr.f32.gmra.mrb[0].mxu0 %v3177
    %v3271 = vpop.f32.mrb[0].mxu0
    %v3272 = vadd.f32 0.0, %v3271
    %v3273 = vpop.f32.mrb[0].mxu0
    %3274 = vmatprep.mubr.f32.mxu0 0.0
    %3275 = vmatmul.mubr.f32.gmra.mrb[0].mxu0 %v3180
    %v3276 = vpop.f32.mrb[0].mxu0
    %v3277 = vadd.f32 0.0, %v3276
    %v3278 = vpop.f32.mrb[0].mxu0
    %3279 = vdwg.mxu0
    %v3280 = vadd.f32 %v3158, %v3252
    %v3281 = vadd.f32 %v3159, %v3257
    %v3282 = vadd.f32 %v3160, %v3262
    %v3283 = vadd.f32 %v3161, %v3267
    %v3284 = vadd.f32 %v3162, %v3272
    %v3285 = vadd.f32 %v3163, %v3277
    %v3287 = vsel %vm104, %v3014, 0
    %v3290 = vsel %vm104, %v3019, 0
    %v3293 = vsel %vm104, %v3024, 0
    %v3296 = vsel %vm104, %v3029, 0
    %v3299 = vsel %vm104, %v3034, 0
    %v3302 = vsel %vm104, %v3039, 0
    %v3305 = vsel %vm104, %v2254, 0
    %3307 = vmatprep.subr.mxu0 0.0
    %3308 = vmatpush1.xpose.msra.mxu0 %v3305
    %3309 = vmatprep.subr.mxu0 0.0
    %3310 = vmatpush1.xpose.msra.mxu0 0.0
    %3311 = vmatprep.subr.mxu0 0.0
    %3312 = vmatpush1.xpose.msra.mxu0 0.0
    %3313 = vmatprep.subr.mxu0 0.0
    %3314 = vmatpush1.xpose.msra.mxu0 0.0
    %3315 = vmatprep.subr.mxu0 0.0
    %3316 = vmatpush1.xpose.msra.mxu0 0.0
    %3317 = vmatprep.subr.mxu0 0.0
    %3318 = vmatpush1.xpose.msra.mxu0 0.0
    %3319 = vmatprep.subr.mxu0 0.0
    %3320 = vmatpush1.xpose.msra.mxu0 0.0
    %3321 = vmatprep.subr.mxu0 0.0
    %3322 = vmatpush1.xpose.msra.mxu0 0.0
    %3323 = vmatprep.subr.mxu0 0.0
    %3324 = vmatpush1.xpose.msra.mxu0 0.0
    %3325 = vmatprep.subr.mxu0 0.0
    %3326 = vmatpush1.xpose.msra.mxu0 0.0
    %3327 = vmatprep.subr.mxu0 0.0
    %3328 = vmatpush1.xpose.msra.mxu0 0.0
    %3329 = vmatprep.subr.mxu0 0.0
    %3330 = vmatpush1.xpose.msra.mxu0 0.0
    %3331 = vmatprep.subr.mxu0 0.0
    %3332 = vmatpush1.xpose.msra.mxu0 0.0
    %3333 = vmatprep.subr.mxu0 0.0
    %3334 = vmatpush1.xpose.msra.mxu0 0.0
    %3335 = vmatprep.subr.mxu0 0.0
    %3336 = vmatpush1.xpose.msra.mxu0 0.0
    %3337 = vmatprep.subr.mxu0 0.0
    %3338 = vmatpush1.xpose.msra.mxu0 0.0
    %3339 = vmatprep.subr.mxu0 0.0
    %3340 = vmatpush1.xpose.msra.mxu0 0.0
    %3341 = vmatprep.subr.mxu0 0.0
    %3342 = vmatpush1.xpose.msra.mxu0 0.0
    %3343 = vmatprep.subr.mxu0 0.0
    %3344 = vmatpush1.xpose.msra.mxu0 0.0
    %3345 = vmatprep.subr.mxu0 0.0
    %3346 = vmatpush1.xpose.msra.mxu0 0.0
    %3347 = vmatprep.subr.mxu0 0.0
    %3348 = vmatpush1.xpose.msra.mxu0 0.0
    %3349 = vmatprep.subr.mxu0 0.0
    %3350 = vmatpush1.xpose.msra.mxu0 0.0
    %3351 = vmatprep.subr.mxu0 0.0
    %3352 = vmatpush1.xpose.msra.mxu0 0.0
    %3353 = vmatprep.subr.mxu0 0.0
    %3354 = vmatpush1.xpose.msra.mxu0 0.0
    %3355 = vmatprep.subr.mxu0 0.0
    %3356 = vmatpush1.xpose.msra.mxu0 0.0
    %3357 = vmatprep.subr.mxu0 0.0
    %3358 = vmatpush1.xpose.msra.mxu0 0.0
    %3359 = vmatprep.subr.mxu0 0.0
    %3360 = vmatpush1.xpose.msra.mxu0 0.0
    %3361 = vmatprep.subr.mxu0 0.0
    %3362 = vmatpush1.xpose.msra.mxu0 0.0
    %3363 = vmatprep.subr.mxu0 0.0
    %3364 = vmatpush1.xpose.msra.mxu0 0.0
    %3365 = vmatprep.subr.mxu0 0.0
    %3366 = vmatpush1.xpose.msra.mxu0 0.0
    %3367 = vmatprep.subr.mxu0 0.0
    %3368 = vmatpush1.xpose.msra.mxu0 0.0
    %3369 = vmatprep.subr.mxu0 0.0
    %3370 = vmatpush1.xpose.msra.mxu0 0.0
    %3371 = vmatprep.mubr.f32.mxu0 0.0
    %3372 = vmatmul.mubr.f32.gmra.mrb[0].mxu0 %v3287
    %v3373 = vpop.f32.mrb[0].mxu0
    %v3374 = vadd.f32 0.0, %v3373
    %v3375 = vpop.f32.mrb[0].mxu0
    %3376 = vmatprep.mubr.f32.mxu0 0.0
    %3377 = vmatmul.mubr.f32.gmra.mrb[0].mxu0 %v3290
    %v3378 = vpop.f32.mrb[0].mxu0
    %v3379 = vadd.f32 0.0, %v3378
    %v3380 = vpop.f32.mrb[0].mxu0
    %3381 = vmatprep.mubr.f32.mxu0 0.0
    %3382 = vmatmul.mubr.f32.gmra.mrb[0].mxu0 %v3293
    %v3383 = vpop.f32.mrb[0].mxu0
    %v3384 = vadd.f32 0.0, %v3383
    %v3385 = vpop.f32.mrb[0].mxu0
    %3386 = vmatprep.mubr.f32.mxu0 0.0
    %3387 = vmatmul.mubr.f32.gmra.mrb[0].mxu0 %v3296
    %v3388 = vpop.f32.mrb[0].mxu0
    %v3389 = vadd.f32 0.0, %v3388
    %v3390 = vpop.f32.mrb[0].mxu0
    %3391 = vmatprep.mubr.f32.mxu0 0.0
    %3392 = vmatmul.mubr.f32.gmra.mrb[0].mxu0 %v3299
    %v3393 = vpop.f32.mrb[0].mxu0
    %v3394 = vadd.f32 0.0, %v3393
    %v3395 = vpop.f32.mrb[0].mxu0
    %3396 = vmatprep.mubr.f32.mxu0 0.0
    %3397 = vmatmul.mubr.f32.gmra.mrb[0].mxu0 %v3302
    %v3398 = vpop.f32.mrb[0].mxu0
    %v3399 = vadd.f32 0.0, %v3398
    %v3400 = vpop.f32.mrb[0].mxu0
    %3401 = vdwg.mxu0
    %v3402 = vadd.f32 %v3280, %v3374
    %v3403 = vadd.f32 %v3281, %v3379
    %v3404 = vadd.f32 %v3282, %v3384
    %v3405 = vadd.f32 %v3283, %v3389
    %v3406 = vadd.f32 %v3284, %v3394
    %v3407 = vadd.f32 %v3285, %v3399
    %v3408 = vxor.u32 %v3402, 2147483648
    %v3409 = vxor.u32 %v3403, 2147483648
    %v3410 = vmul.f32 %v3408, 1.442695
    %v3411 = vpow.pop %v3410
    %v3412 = vmul.f32 %v3409, 1.442695
    %v3413 = vpow.pop %v3412
    %v3414 = vadd.f32 %v3411, 1.0
    %v3415 = vadd.f32 %v3413, 1.0
    %v3416 = vrcp.pop %v3414
    %v3417 = vmul.f32 1.0, %v3416
    %v3418 = vrcp.pop %v3415
    %v3419 = vmul.f32 1.0, %v3418
    %v3420 = vtanh.pop %v3406
    %v3421 = vtanh.pop %v3407
    %v3422 = vmul.f32 %v3417, %v3420
    %v3423 = vmul.f32 %v3419, %v3421
    %3424 = vmatprep.subr.mxu0 0.0
    %3425 = vmatpush1.msra.mxu0 %v3422
    %3426 = vmatprep.subr.mxu0 0.0
    %3427 = vmatpush1.msra.mxu0 %v3423
    %3428 = vmatprep.subr.mxu0 0.0
    %3429 = vmatpush1.msra.mxu0 0.0
    %3430 = vmatprep.subr.mxu0 0.0
    %3431 = vmatpush1.msra.mxu0 0.0
    %3432 = vmatprep.subr.mxu0 0.0
    %3433 = vmatpush1.msra.mxu0 0.0
    %3434 = vmatprep.subr.mxu0 0.0
    %3435 = vmatpush1.msra.mxu0 0.0
    %3436 = vmatprep.subr.mxu0 0.0
    %3437 = vmatpush1.msra.mxu0 0.0
    %3438 = vmatprep.subr.mxu0 0.0
    %3439 = vmatpush1.msra.mxu0 0.0
    %3440 = vmatprep.subr.mxu0 0.0
    %3441 = vmatpush1.msra.mxu0 0.0
    %3442 = vmatprep.subr.mxu0 0.0
    %3443 = vmatpush1.msra.mxu0 0.0
    %3444 = vmatprep.subr.mxu0 0.0
    %3445 = vmatpush1.msra.mxu0 0.0
    %3446 = vmatprep.subr.mxu0 0.0
    %3447 = vmatpush1.msra.mxu0 0.0
    %3448 = vmatprep.subr.mxu0 0.0
    %3449 = vmatpush1.msra.mxu0 0.0
    %3450 = vmatprep.subr.mxu0 0.0
    %3451 = vmatpush1.msra.mxu0 0.0
    %3452 = vmatprep.subr.mxu0 0.0
    %3453 = vmatpush1.msra.mxu0 0.0
    %3454 = vmatprep.subr.mxu0 0.0
    %3455 = vmatpush1.msra.mxu0 0.0
    %3456 = vmatprep.subr.mxu0 0.0
    %3457 = vmatpush1.msra.mxu0 0.0
    %3458 = vmatprep.subr.mxu0 0.0
    %3459 = vmatpush1.msra.mxu0 0.0
    %3460 = vmatprep.subr.mxu0 0.0
    %3461 = vmatpush1.msra.mxu0 0.0
    %3462 = vmatprep.subr.mxu0 0.0
    %3463 = vmatpush1.msra.mxu0 0.0
    %3464 = vmatprep.subr.mxu0 0.0
    %3465 = vmatpush1.msra.mxu0 0.0
    %3466 = vmatprep.subr.mxu0 0.0
    %3467 = vmatpush1.msra.mxu0 0.0
    %3468 = vmatprep.subr.mxu0 0.0
    %3469 = vmatpush1.msra.mxu0 0.0
    %3470 = vmatprep.subr.mxu0 0.0
    %3471 = vmatpush1.msra.mxu0 0.0
    %3472 = vmatprep.subr.mxu0 0.0
    %3473 = vmatpush1.msra.mxu0 0.0
    %3474 = vmatprep.subr.mxu0 0.0
    %3475 = vmatpush1.msra.mxu0 0.0
    %3476 = vmatprep.subr.mxu0 0.0
    %3477 = vmatpush1.msra.mxu0 0.0
    %3478 = vmatprep.subr.mxu0 0.0
    %3479 = vmatpush1.msra.mxu0 0.0
    %3480 = vmatprep.subr.mxu0 0.0
    %3481 = vmatpush1.msra.mxu0 0.0
    %3482 = vmatprep.subr.mxu0 0.0
    %3483 = vmatpush1.msra.mxu0 0.0
    %3484 = vmatprep.subr.mxu0 0.0
    %3485 = vmatpush1.msra.mxu0 0.0
    %3486 = vmatprep.subr.mxu0 0.0
    %3487 = vmatpush1.msra.mxu0 0.0
    %3488 = vmatprep.mubr.f32.mxu0 0.0
    %3489 = vmatmul.mubr.f32.gmra.mrb[0].mxu0 %v920
    %v3490 = vpop.f32.mrb[0].mxu0
    %v3491 = vadd.f32 0.0, %v3490
    %v3492 = vpop.f32.mrb[0].mxu0
    %3493 = vmatprep.mubr.f32.mxu0 0.0
    %3494 = vmatmul.mubr.f32.gmra.mrb[0].mxu0 %v923
    %v3495 = vpop.f32.mrb[0].mxu0
    %v3496 = vadd.f32 0.0, %v3495
    %v3497 = vpop.f32.mrb[0].mxu0
    %3498 = vdwg.mxu0
    %v3499 = vadd.f32 %v3404, %v3491
    %v3500 = vadd.f32 %v3405, %v3496
    %v3501 = vxor.u32 %v3499, 2147483648
    %v3502 = vxor.u32 %v3500, 2147483648
    %v3503 = vmul.f32 %v3501, 1.442695
    %v3504 = vpow.pop %v3503
    %v3505 = vmul.f32 %v3502, 1.442695
    %v3506 = vpow.pop %v3505
    %v3507 = vadd.f32 %v3504, 1.0
    %v3508 = vadd.f32 %v3506, 1.0
    %v3509 = vrcp.pop %v3507
    %v3510 = vmul.f32 1.0, %v3509
    %v3511 = vrcp.pop %v3508
    %v3512 = vmul.f32 1.0, %v3511
    %v3513 = vtanh.pop %v3422
    %v3514 = vtanh.pop %v3423
    %v3515 = vmul.f32 %v3510, %v3513
    %v3516 = vmul.f32 %v3512, %v3514
    %v3518 = vsel %vm104, %v2884, 0
    %v3521 = vsel %vm104, %v2885, 0
    %3523 = vmatprep.subr.mxu0 0.0
    %3524 = vmatpush1.msra.mxu0 %v48
    %3525 = vmatprep.subr.mxu0 0.0
    %3526 = vmatpush1.msra.mxu0 0.0
    %3527 = vmatprep.subr.mxu0 0.0
    %3528 = vmatpush1.msra.mxu0 0.0
    %3529 = vmatprep.subr.mxu0 0.0
    %3530 = vmatpush1.msra.mxu0 0.0
    %3531 = vmatprep.subr.mxu0 0.0
    %3532 = vmatpush1.msra.mxu0 0.0
    %3533 = vmatprep.subr.mxu0 0.0
    %3534 = vmatpush1.msra.mxu0 0.0
    %3535 = vmatprep.subr.mxu0 0.0
    %3536 = vmatpush1.msra.mxu0 0.0
    %3537 = vmatprep.subr.mxu0 0.0
    %3538 = vmatpush1.msra.mxu0 0.0
    %3539 = vmatprep.subr.mxu0 0.0
    %3540 = vmatpush1.msra.mxu0 0.0
    %3541 = vmatprep.subr.mxu0 0.0
    %3542 = vmatpush1.msra.mxu0 0.0
    %3543 = vmatprep.subr.mxu0 0.0
    %3544 = vmatpush1.msra.mxu0 0.0
    %3545 = vmatprep.subr.mxu0 0.0
    %3546 = vmatpush1.msra.mxu0 0.0
    %3547 = vmatprep.subr.mxu0 0.0
    %3548 = vmatpush1.msra.mxu0 0.0
    %3549 = vmatprep.subr.mxu0 0.0
    %3550 = vmatpush1.msra.mxu0 0.0
    %3551 = vmatprep.subr.mxu0 0.0
    %3552 = vmatpush1.msra.mxu0 0.0
    %3553 = vmatprep.subr.mxu0 0.0
    %3554 = vmatpush1.msra.mxu0 0.0
    %3555 = vmatprep.subr.mxu0 0.0
    %3556 = vmatpush1.msra.mxu0 0.0
    %3557 = vmatprep.subr.mxu0 0.0
    %3558 = vmatpush1.msra.mxu0 0.0
    %3559 = vmatprep.subr.mxu0 0.0
    %3560 = vmatpush1.msra.mxu0 0.0
    %3561 = vmatprep.subr.mxu0 0.0
    %3562 = vmatpush1.msra.mxu0 0.0
    %3563 = vmatprep.subr.mxu0 0.0
    %3564 = vmatpush1.msra.mxu0 0.0
    %3565 = vmatprep.subr.mxu0 0.0
    %3566 = vmatpush1.msra.mxu0 0.0
    %3567 = vmatprep.subr.mxu0 0.0
    %3568 = vmatpush1.msra.mxu0 0.0
    %3569 = vmatprep.subr.mxu0 0.0
    %3570 = vmatpush1.msra.mxu0 0.0
    %3571 = vmatprep.subr.mxu0 0.0
    %3572 = vmatpush1.msra.mxu0 0.0
    %3573 = vmatprep.subr.mxu0 0.0
    %3574 = vmatpush1.msra.mxu0 0.0
    %3575 = vmatprep.subr.mxu0 0.0
    %3576 = vmatpush1.msra.mxu0 0.0
    %3577 = vmatprep.subr.mxu0 0.0
    %3578 = vmatpush1.msra.mxu0 0.0
    %3579 = vmatprep.subr.mxu0 0.0
    %3580 = vmatpush1.msra.mxu0 0.0
    %3581 = vmatprep.subr.mxu0 0.0
    %3582 = vmatpush1.msra.mxu0 0.0
    %3583 = vmatprep.subr.mxu0 0.0
    %3584 = vmatpush1.msra.mxu0 0.0
    %3585 = vmatprep.subr.mxu0 0.0
    %3586 = vmatpush1.msra.mxu0 0.0
    %3587 = vmatprep.mubr.f32.mxu0 0.0
    %3588 = vmatmul.mubr.f32.gmra.mrb[0].mxu0 %v3518
    %v3589 = vpop.f32.mrb[0].mxu0
    %v3590 = vadd.f32 0.0, %v3589
    %v3591 = vpop.f32.mrb[0].mxu0
    %3592 = vmatprep.mubr.f32.mxu0 0.0
    %3593 = vmatmul.mubr.f32.gmra.mrb[0].mxu0 %v3521
    %v3594 = vpop.f32.mrb[0].mxu0
    %v3595 = vadd.f32 0.0, %v3594
    %v3596 = vpop.f32.mrb[0].mxu0
    %3597 = vdwg.mxu0
    %v3598 = vmul.f32 %v3590, %v49
    %v3599 = vmul.f32 %v3595, %v50
    %v3600 = vadd.f32 %v3598, %v3599
    %v3601 = vrot.slane %v3600, 4
    %v3602 = vadd.f32 %v3600, %v3601
    %v3603 = vrot.slane %v3602, 2
    %v3604 = vadd.f32 %v3602, %v3603
    %v3605 = vrot.slane %v3604, 1
    %v3606 = vadd.f32 %v3604, %v3605
    %v3608 = vsel %vm104, %v3515, 0
    %v3611 = vsel %vm104, %v3516, 0
    %3613 = vmatprep.subr.mxu0 0.0
    %3614 = vmatpush1.msra.mxu0 %v48
    %3615 = vmatprep.subr.mxu0 0.0
    %3616 = vmatpush1.msra.mxu0 0.0
    %3617 = vmatprep.subr.mxu0 0.0
    %3618 = vmatpush1.msra.mxu0 0.0
    %3619 = vmatprep.subr.mxu0 0.0
    %3620 = vmatpush1.msra.mxu0 0.0
    %3621 = vmatprep.subr.mxu0 0.0
    %3622 = vmatpush1.msra.mxu0 0.0
    %3623 = vmatprep.subr.mxu0 0.0
    %3624 = vmatpush1.msra.mxu0 0.0
    %3625 = vmatprep.subr.mxu0 0.0
    %3626 = vmatpush1.msra.mxu0 0.0
    %3627 = vmatprep.subr.mxu0 0.0
    %3628 = vmatpush1.msra.mxu0 0.0
    %3629 = vmatprep.subr.mxu0 0.0
    %3630 = vmatpush1.msra.mxu0 0.0
    %3631 = vmatprep.subr.mxu0 0.0
    %3632 = vmatpush1.msra.mxu0 0.0
    %3633 = vmatprep.subr.mxu0 0.0
    %3634 = vmatpush1.msra.mxu0 0.0
    %3635 = vmatprep.subr.mxu0 0.0
    %3636 = vmatpush1.msra.mxu0 0.0
    %3637 = vmatprep.subr.mxu0 0.0
    %3638 = vmatpush1.msra.mxu0 0.0
    %3639 = vmatprep.subr.mxu0 0.0
    %3640 = vmatpush1.msra.mxu0 0.0
    %3641 = vmatprep.subr.mxu0 0.0
    %3642 = vmatpush1.msra.mxu0 0.0
    %3643 = vmatprep.subr.mxu0 0.0
    %3644 = vmatpush1.msra.mxu0 0.0
    %3645 = vmatprep.subr.mxu0 0.0
    %3646 = vmatpush1.msra.mxu0 0.0
    %3647 = vmatprep.subr.mxu0 0.0
    %3648 = vmatpush1.msra.mxu0 0.0
    %3649 = vmatprep.subr.mxu0 0.0
    %3650 = vmatpush1.msra.mxu0 0.0
    %3651 = vmatprep.subr.mxu0 0.0
    %3652 = vmatpush1.msra.mxu0 0.0
    %3653 = vmatprep.subr.mxu0 0.0
    %3654 = vmatpush1.msra.mxu0 0.0
    %3655 = vmatprep.subr.mxu0 0.0
    %3656 = vmatpush1.msra.mxu0 0.0
    %3657 = vmatprep.subr.mxu0 0.0
    %3658 = vmatpush1.msra.mxu0 0.0
    %3659 = vmatprep.subr.mxu0 0.0
    %3660 = vmatpush1.msra.mxu0 0.0
    %3661 = vmatprep.subr.mxu0 0.0
    %3662 = vmatpush1.msra.mxu0 0.0
    %3663 = vmatprep.subr.mxu0 0.0
    %3664 = vmatpush1.msra.mxu0 0.0
    %3665 = vmatprep.subr.mxu0 0.0
    %3666 = vmatpush1.msra.mxu0 0.0
    %3667 = vmatprep.subr.mxu0 0.0
    %3668 = vmatpush1.msra.mxu0 0.0
    %3669 = vmatprep.subr.mxu0 0.0
    %3670 = vmatpush1.msra.mxu0 0.0
    %3671 = vmatprep.subr.mxu0 0.0
    %3672 = vmatpush1.msra.mxu0 0.0
    %3673 = vmatprep.subr.mxu0 0.0
    %3674 = vmatpush1.msra.mxu0 0.0
    %3675 = vmatprep.subr.mxu0 0.0
    %3676 = vmatpush1.msra.mxu0 0.0
    %3677 = vmatprep.mubr.f32.mxu0 0.0
    %3678 = vmatmul.mubr.f32.gmra.mrb[0].mxu0 %v3608
    %v3679 = vpop.f32.mrb[0].mxu0
    %v3680 = vadd.f32 0.0, %v3679
    %v3681 = vpop.f32.mrb[0].mxu0
    %3682 = vmatprep.mubr.f32.mxu0 0.0
    %3683 = vmatmul.mubr.f32.gmra.mrb[0].mxu0 %v3611
    %v3684 = vpop.f32.mrb[0].mxu0
    %v3685 = vadd.f32 0.0, %v3684
    %v3686 = vpop.f32.mrb[0].mxu0
    %3687 = vdwg.mxu0
    %v3688 = vmul.f32 %v3680, %v49
    %v3689 = vmul.f32 %v3685, %v50
    %v3690 = vadd.f32 %v3688, %v3689
    %v3691 = vrot.slane %v3690, 4
    %v3692 = vadd.f32 %v3690, %v3691
    %v3693 = vrot.slane %v3692, 2
    %v3694 = vadd.f32 %v3692, %v3693
    %v3695 = vrot.slane %v3694, 1
    %v3696 = vadd.f32 %v3694, %v3695
    %v3697 = vsel %vm113, %v3606, %v3696
    %3698 = vmatprep.subr.mxu0 0.0
    %3699 = vmatpush1.msra.mxu0 %v51
    %3700 = vmatprep.subr.mxu0 0.0
    %3701 = vmatpush1.msra.mxu0 %v52
    %3702 = vmatprep.subr.mxu0 0.0
    %3703 = vmatpush1.msra.mxu0 %v53
    %3704 = vmatprep.subr.mxu0 0.0
    %3705 = vmatpush1.msra.mxu0 %v54
    %3706 = vmatprep.subr.mxu0 0.0
    %3707 = vmatpush1.msra.mxu0 %v55
    %3708 = vmatprep.subr.mxu0 0.0
    %3709 = vmatpush1.msra.mxu0 %v56
    %3710 = vmatprep.subr.mxu0 0.0
    %3711 = vmatpush1.msra.mxu0 %v57
    %3712 = vmatprep.subr.mxu0 0.0
    %3713 = vmatpush1.msra.mxu0 %v58
    %3714 = vmatprep.subr.mxu0 0.0
    %3715 = vmatpush1.msra.mxu0 %v59
    %3716 = vmatprep.subr.mxu0 0.0
    %3717 = vmatpush1.msra.mxu0 %v60
    %3718 = vmatprep.subr.mxu0 0.0
    %3719 = vmatpush1.msra.mxu0 %v61
    %3720 = vmatprep.subr.mxu0 0.0
    %3721 = vmatpush1.msra.mxu0 %v62
    %3722 = vmatprep.subr.mxu0 0.0
    %3723 = vmatpush1.msra.mxu0 %v63
    %3724 = vmatprep.subr.mxu0 0.0
    %3725 = vmatpush1.msra.mxu0 %v64
    %3726 = vmatprep.subr.mxu0 0.0
    %3727 = vmatpush1.msra.mxu0 %v65
    %3728 = vmatprep.subr.mxu0 0.0
    %3729 = vmatpush1.msra.mxu0 %v66
    %3730 = vmatprep.subr.mxu0 0.0
    %3731 = vmatpush1.msra.mxu0 0.0
    %3732 = vmatprep.subr.mxu0 0.0
    %3733 = vmatpush1.msra.mxu0 0.0
    %3734 = vmatprep.subr.mxu0 0.0
    %3735 = vmatpush1.msra.mxu0 0.0
    %3736 = vmatprep.subr.mxu0 0.0
    %3737 = vmatpush1.msra.mxu0 0.0
    %3738 = vmatprep.subr.mxu0 0.0
    %3739 = vmatpush1.msra.mxu0 0.0
    %3740 = vmatprep.subr.mxu0 0.0
    %3741 = vmatpush1.msra.mxu0 0.0
    %3742 = vmatprep.subr.mxu0 0.0
    %3743 = vmatpush1.msra.mxu0 0.0
    %3744 = vmatprep.subr.mxu0 0.0
    %3745 = vmatpush1.msra.mxu0 0.0
    %3746 = vmatprep.subr.mxu0 0.0
    %3747 = vmatpush1.msra.mxu0 0.0
    %3748 = vmatprep.subr.mxu0 0.0
    %3749 = vmatpush1.msra.mxu0 0.0
    %3750 = vmatprep.subr.mxu0 0.0
    %3751 = vmatpush1.msra.mxu0 0.0
    %3752 = vmatprep.subr.mxu0 0.0
    %3753 = vmatpush1.msra.mxu0 0.0
    %3754 = vmatprep.subr.mxu0 0.0
    %3755 = vmatpush1.msra.mxu0 0.0
    %3756 = vmatprep.subr.mxu0 0.0
    %3757 = vmatpush1.msra.mxu0 0.0
    %3758 = vmatprep.subr.mxu0 0.0
    %3759 = vmatpush1.msra.mxu0 0.0
    %3760 = vmatprep.subr.mxu0 0.0
    %3761 = vmatpush1.msra.mxu0 0.0
    %3762 = vmatprep.mubr.f32.mxu0 0.0
    %3763 = vmatmul.mubr.f32.gmra.mrb[0].mxu0 %v3697
    %v3764 = vpop.f32.mrb[0].mxu0
    %v3765 = vadd.f32 %v1835, %v3764
    %v3766 = vpop.f32.mrb[0].mxu0
    %3767 = vdwg.mxu0
    %v3768 = vmax.f32 %v3765, 0.0
    %v3769 = vsel %vm1908, %v3768, 0.0
    %v3770 = vrot.slane %v3769, 4
    %v3771 = vadd.f32 %v3769, %v3770
    %v3772 = vrot.slane %v3771, 2
    %v3773 = vadd.f32 %v3771, %v3772
    %v3774 = vrot.slane %v3773, 1
    %v3775 = vadd.f32 %v3773, %v3774
    %v3776 = vmul.f32 %v3775, 0.5
    %v3777 = vadd.f32 %v1917, %v3776
    %v3778 = vmul.f32 %v3777, 0.019634955
    %v3779 = vsub.f32 1.0, %v3778
    %v3780 = vmul.f32 %v3765, %v1922
    %v3782 = vlaneseq
    %v3783 = vshrl.u32 %v3782, 7
    %v3784 = vsub.s32 0, %v3783
    %v3785 = vrot.slane %v3779, %v3784
    %3786 = vset.pattern.permute.xlu0 0
    %3787 = vperm.xlu0 %3786, %v3785
    %v3788 = vpop.permute.xlu0 %3787
    %v3790 = vrcp.pop %v3788
    %v3791 = vmul.f32 %v3780, %v3790
    %v3792 = vadd.f32 %v3791, %v1952
    %v3793 = vmax.f32 %v3792, 0.0
    %3795 = vrot.lane.b32.xlu0 %v3793, 119
    %v3796 = vpop.permute.xlu0 %3795
    %v3798 = vsel %vm1946, %v3796, 0.0
    %3799 = vadd.xlane.f32.xlu0 %v3798
    %v3800 = vpop.xlane.xlu0 %3799
    %v3801 = vmax.f32 %v3800, 1e-12
    %v3802 = vrcp.pop %v3801
    %v3803 = vmul.f32 %v3793, %v3802
    %v3804 = vsub.f32 %v3803, %v1952
    %v3805 = vmul.f32 %v3804, 16.666666
    %3807 = vrot.lane.b32.xlu0 %v3805, 119
    %v3808 = vpop.permute.xlu0 %3807
    %s3810 = scalar_lea.vmem %s11, 2
    %3811 = vst.msk [vmem:[%s3810] sm:$0x3] %vm1946, %v3808
    %3813 = vrot.lane.b32.xlu0 %v3768, 7
    %v3814 = vpop.permute.xlu0 %3813
    %3816 = vst.msk [vmem:[%s3810] sm:$0x3] %vm1964, %v3814
    %3817 = vrot.lane.b32.xlu0 %v3768, 16
    %v3818 = vpop.permute.xlu0 %3817
    %3820 = vst.msk [vmem:[%s3810] sm:$0x3] %vm1969, %v3818
    %3822 = vrot.lane.b32.xlu0 %v3803, 119
    %v3823 = vpop.permute.xlu0 %3822
    %s3825 = scalar_lea.vmem %s12, 2
    %3826 = vst.msk [vmem:[%s3825] sm:$0x3] %vm1946, %v3823
    %3827 = vst.msk [vmem:[#allocation2] sm:$0x1] %vm1976, %v3823
    %3828 = vst.msk [vmem:[#allocation2 + $0x1] sm:$0x1] %vm1976, %v3808
    %3830 = vrot.lane.b32.xlu0 %v3765, 127
    %v3831 = vpop.permute.xlu0 %3830
    %3833 = vst.msk [vmem:[#allocation2 + $0x2] sm:$0x1] %vm1976, %v3831
    %3834 = vset.pattern.permute.xlu0 0
    %3835 = vperm.xlu0 %3834, %v3768
    %v3836 = vpop.permute.xlu0 %3835
    %3838 = vst.msk [vmem:[#allocation2 + $0x3] sm:$0x1] %vm1976, %v3836
    %v3839 = vld [vmem:[#allocation2 + $0x7] sm:$0x1]
    %v3840 = vadd.f32 %v3839, 0.01
    %3841 = vst.msk [vmem:[#allocation2 + $0x7] sm:$0x1] %vm1976, %v3840
    %3842 = vst.msk [vmem:[%s1018 - $0x1] sm:$0x2] %vm1992, %v3823
    %3843 = vst.msk [vmem:[%s1018] sm:$0x2] %vm1992, %v3808
    %3844 = vst.msk [vmem:[%s1018 + $0x1] sm:$0x2] %vm1992, %v3831
    %3845 = vst.msk [vmem:[%s1018 + $0x2] sm:$0x2] %vm1992, %v3836
    %v3846 = vld [vmem:[%s1018 + $0x7] sm:$0x1]
    %v3847 = vadd.f32 %v3846, 0.01
    %3848 = vst.msk [vmem:[%s1018 + $0x7] sm:$0x1] %vm1976, %v3847
    %vm3849 = vcmp.gt.f32.partialorder %v3803, 1e-06
    %v3850 = vsel %vm3849, 1, 0
    %v3851 = vcvt.s32.f32 %v3850
    %v3852 = vlaneseq
    %v3853 = vshrl.u32 %v3852, 7
    %v3854 = vsub.s32 0, %v3853
    %v3855 = vrot.slane %v3851, %v3854
    %3857 = vrot.lane.b32.xlu0 %v3855, 119
    %v3858 = vpop.permute.xlu0 %3857
    %v3860 = vmul.f32 %v101, %v3858
    %v3862 = vsel %vm104, %v3860, 0
    %3864 = vmatprep.subr.mxu0 0.0
    %3865 = vmatpush1.msra.mxu0 1.0
    %3866 = vmatprep.subr.mxu0 0.0
    %3867 = vmatpush1.msra.mxu0 0.0
    %3868 = vmatprep.subr.mxu0 0.0
    %3869 = vmatpush1.msra.mxu0 0.0
    %3870 = vmatprep.subr.mxu0 0.0
    %3871 = vmatpush1.msra.mxu0 0.0
    %3872 = vmatprep.subr.mxu0 0.0
    %3873 = vmatpush1.msra.mxu0 0.0
    %3874 = vmatprep.subr.mxu0 0.0
    %3875 = vmatpush1.msra.mxu0 0.0
    %3876 = vmatprep.subr.mxu0 0.0
    %3877 = vmatpush1.msra.mxu0 0.0
    %3878 = vmatprep.subr.mxu0 0.0
    %3879 = vmatpush1.msra.mxu0 0.0
    %3880 = vmatprep.subr.mxu0 0.0
    %3881 = vmatpush1.msra.mxu0 0.0
    %3882 = vmatprep.subr.mxu0 0.0
    %3883 = vmatpush1.msra.mxu0 0.0
    %3884 = vmatprep.subr.mxu0 0.0
    %3885 = vmatpush1.msra.mxu0 0.0
    %3886 = vmatprep.subr.mxu0 0.0
    %3887 = vmatpush1.msra.mxu0 0.0
    %3888 = vmatprep.subr.mxu0 0.0
    %3889 = vmatpush1.msra.mxu0 0.0
    %3890 = vmatprep.subr.mxu0 0.0
    %3891 = vmatpush1.msra.mxu0 0.0
    %3892 = vmatprep.subr.mxu0 0.0
    %3893 = vmatpush1.msra.mxu0 0.0
    %3894 = vmatprep.subr.mxu0 0.0
    %3895 = vmatpush1.msra.mxu0 0.0
    %3896 = vmatprep.subr.mxu0 0.0
    %3897 = vmatpush1.msra.mxu0 0.0
    %3898 = vmatprep.subr.mxu0 0.0
    %3899 = vmatpush1.msra.mxu0 0.0
    %3900 = vmatprep.subr.mxu0 0.0
    %3901 = vmatpush1.msra.mxu0 0.0
    %3902 = vmatprep.subr.mxu0 0.0
    %3903 = vmatpush1.msra.mxu0 0.0
    %3904 = vmatprep.subr.mxu0 0.0
    %3905 = vmatpush1.msra.mxu0 0.0
    %3906 = vmatprep.subr.mxu0 0.0
    %3907 = vmatpush1.msra.mxu0 0.0
    %3908 = vmatprep.subr.mxu0 0.0
    %3909 = vmatpush1.msra.mxu0 0.0
    %3910 = vmatprep.subr.mxu0 0.0
    %3911 = vmatpush1.msra.mxu0 0.0
    %3912 = vmatprep.subr.mxu0 0.0
    %3913 = vmatpush1.msra.mxu0 0.0
    %3914 = vmatprep.subr.mxu0 0.0
    %3915 = vmatpush1.msra.mxu0 0.0
    %3916 = vmatprep.subr.mxu0 0.0
    %3917 = vmatpush1.msra.mxu0 0.0
    %3918 = vmatprep.subr.mxu0 0.0
    %3919 = vmatpush1.msra.mxu0 0.0
    %3920 = vmatprep.subr.mxu0 0.0
    %3921 = vmatpush1.msra.mxu0 0.0
    %3922 = vmatprep.subr.mxu0 0.0
    %3923 = vmatpush1.msra.mxu0 0.0
    %3924 = vmatprep.subr.mxu0 0.0
    %3925 = vmatpush1.msra.mxu0 0.0
    %3926 = vmatprep.subr.mxu0 0.0
    %3927 = vmatpush1.msra.mxu0 0.0
    %3928 = vmatprep.mubr.f32.mxu0 0.0
    %3929 = vmatmul.mubr.f32.gmra.mrb[0].mxu0 %v3862
    %v3930 = vpop.f32.mrb[0].mxu0
    %v3931 = vadd.f32 0.0, %v3930
    %v3932 = vpop.f32.mrb[0].mxu0
    %3933 = vdwg.mxu0
    %v3934 = vmul.f32 %v3855, %v2089
    %v3935 = vmul.f32 %v3855, %v2091
    %v3936 = vmul.f32 %v3855, %v2093
    %3940 = vrot.lane.b32.xlu0 %v3934, 119
    %v3941 = vpop.permute.xlu0 %3940
    %3942 = vrot.lane.b32.xlu0 %v3935, 119
    %v3943 = vpop.permute.xlu0 %3942
    %3944 = vrot.lane.b32.xlu0 %v3936, 119
    %v3945 = vpop.permute.xlu0 %3944
    %v3949 = vmul.f32 %v3931, %v3941
    %v3950 = vmul.f32 %v3931, %v3943
    %v3951 = vmul.f32 %v3931, %v3945
    %v3952 = vsub.f32 1.0, %v3931
    %v3953 = vmul.f32 %v3952, %v101
    %v3954 = vadd.f32 %v3949, %v3953
    %v3955 = vadd.f32 %v3950, %v3953
    %v3956 = vadd.f32 %v3951, %v3953
    %v3957 = vsel %vm104, %v3954, 0.0
    %3958 = vadd.xlane.f32.xlu0 %v3957
    %v3959 = vpop.xlane.xlu0 %3958
    %v3960 = vsel %vm104, %v3955, 0.0
    %3961 = vadd.xlane.f32.xlu0 %v3960
    %v3962 = vpop.xlane.xlu0 %3961
    %v3963 = vsel %vm104, %v3956, 0.0
    %3964 = vadd.xlane.f32.xlu0 %v3963
    %v3965 = vpop.xlane.xlu0 %3964
    %v3966 = vrcp.pop %v3959
    %v3967 = vrcp.pop %v3962
    %v3968 = vrcp.pop %v3965
    %v3969 = vmul.f32 %v3954, %v3966
    %v3970 = vmul.f32 %v3955, %v3967
    %v3971 = vmul.f32 %v3956, %v3968
    %v3972 = vlaneseq
    %v3973 = vshrl.u32 %v3972, 7
    %v3974 = vsub.s32 1, %v3973
    %v3975 = vrot.slane %v3851, %v3974
    %3977 = vrot.lane.b32.xlu0 %v3975, 119
    %v3978 = vpop.permute.xlu0 %3977
    %v3980 = vmul.f32 %v101, %v3978
    %v3982 = vsel %vm104, %v3980, 0
    %3984 = vmatprep.subr.mxu0 0.0
    %3985 = vmatpush1.msra.mxu0 1.0
    %3986 = vmatprep.subr.mxu0 0.0
    %3987 = vmatpush1.msra.mxu0 0.0
    %3988 = vmatprep.subr.mxu0 0.0
    %3989 = vmatpush1.msra.mxu0 0.0
    %3990 = vmatprep.subr.mxu0 0.0
    %3991 = vmatpush1.msra.mxu0 0.0
    %3992 = vmatprep.subr.mxu0 0.0
    %3993 = vmatpush1.msra.mxu0 0.0
    %3994 = vmatprep.subr.mxu0 0.0
    %3995 = vmatpush1.msra.mxu0 0.0
    %3996 = vmatprep.subr.mxu0 0.0
    %3997 = vmatpush1.msra.mxu0 0.0
    %3998 = vmatprep.subr.mxu0 0.0
    %3999 = vmatpush1.msra.mxu0 0.0
    %4000 = vmatprep.subr.mxu0 0.0
    %4001 = vmatpush1.msra.mxu0 0.0
    %4002 = vmatprep.subr.mxu0 0.0
    %4003 = vmatpush1.msra.mxu0 0.0
    %4004 = vmatprep.subr.mxu0 0.0
    %4005 = vmatpush1.msra.mxu0 0.0
    %4006 = vmatprep.subr.mxu0 0.0
    %4007 = vmatpush1.msra.mxu0 0.0
    %4008 = vmatprep.subr.mxu0 0.0
    %4009 = vmatpush1.msra.mxu0 0.0
    %4010 = vmatprep.subr.mxu0 0.0
    %4011 = vmatpush1.msra.mxu0 0.0
    %4012 = vmatprep.subr.mxu0 0.0
    %4013 = vmatpush1.msra.mxu0 0.0
    %4014 = vmatprep.subr.mxu0 0.0
    %4015 = vmatpush1.msra.mxu0 0.0
    %4016 = vmatprep.subr.mxu0 0.0
    %4017 = vmatpush1.msra.mxu0 0.0
    %4018 = vmatprep.subr.mxu0 0.0
    %4019 = vmatpush1.msra.mxu0 0.0
    %4020 = vmatprep.subr.mxu0 0.0
    %4021 = vmatpush1.msra.mxu0 0.0
    %4022 = vmatprep.subr.mxu0 0.0
    %4023 = vmatpush1.msra.mxu0 0.0
    %4024 = vmatprep.subr.mxu0 0.0
    %4025 = vmatpush1.msra.mxu0 0.0
    %4026 = vmatprep.subr.mxu0 0.0
    %4027 = vmatpush1.msra.mxu0 0.0
    %4028 = vmatprep.subr.mxu0 0.0
    %4029 = vmatpush1.msra.mxu0 0.0
    %4030 = vmatprep.subr.mxu0 0.0
    %4031 = vmatpush1.msra.mxu0 0.0
    %4032 = vmatprep.subr.mxu0 0.0
    %4033 = vmatpush1.msra.mxu0 0.0
    %4034 = vmatprep.subr.mxu0 0.0
    %4035 = vmatpush1.msra.mxu0 0.0
    %4036 = vmatprep.subr.mxu0 0.0
    %4037 = vmatpush1.msra.mxu0 0.0
    %4038 = vmatprep.subr.mxu0 0.0
    %4039 = vmatpush1.msra.mxu0 0.0
    %4040 = vmatprep.subr.mxu0 0.0
    %4041 = vmatpush1.msra.mxu0 0.0
    %4042 = vmatprep.subr.mxu0 0.0
    %4043 = vmatpush1.msra.mxu0 0.0
    %4044 = vmatprep.subr.mxu0 0.0
    %4045 = vmatpush1.msra.mxu0 0.0
    %4046 = vmatprep.subr.mxu0 0.0
    %4047 = vmatpush1.msra.mxu0 0.0
    %4048 = vmatprep.mubr.f32.mxu0 0.0
    %4049 = vmatmul.mubr.f32.gmra.mrb[0].mxu0 %v3982
    %v4050 = vpop.f32.mrb[0].mxu0
    %v4051 = vadd.f32 0.0, %v4050
    %v4052 = vpop.f32.mrb[0].mxu0
    %4053 = vdwg.mxu0
    %v4054 = vmul.f32 %v3975, %v2089
    %v4055 = vmul.f32 %v3975, %v2091
    %v4056 = vmul.f32 %v3975, %v2093
    %4060 = vrot.lane.b32.xlu0 %v4054, 119
    %v4061 = vpop.permute.xlu0 %4060
    %4062 = vrot.lane.b32.xlu0 %v4055, 119
    %v4063 = vpop.permute.xlu0 %4062
    %4064 = vrot.lane.b32.xlu0 %v4056, 119
    %v4065 = vpop.permute.xlu0 %4064
    %v4069 = vmul.f32 %v4051, %v4061
    %v4070 = vmul.f32 %v4051, %v4063
    %v4071 = vmul.f32 %v4051, %v4065
    %v4072 = vsub.f32 1.0, %v4051
    %v4073 = vmul.f32 %v4072, %v101
    %v4074 = vadd.f32 %v4069, %v4073
    %v4075 = vadd.f32 %v4070, %v4073
    %v4076 = vadd.f32 %v4071, %v4073
    %v4077 = vsel %vm104, %v4074, 0.0
    %4078 = vadd.xlane.f32.xlu0 %v4077
    %v4079 = vpop.xlane.xlu0 %4078
    %v4080 = vsel %vm104, %v4075, 0.0
    %4081 = vadd.xlane.f32.xlu0 %v4080
    %v4082 = vpop.xlane.xlu0 %4081
    %v4083 = vsel %vm104, %v4076, 0.0
    %4084 = vadd.xlane.f32.xlu0 %v4083
    %v4085 = vpop.xlane.xlu0 %4084
    %v4086 = vrcp.pop %v4079
    %v4087 = vrcp.pop %v4082
    %v4088 = vrcp.pop %v4085
    %v4089 = vmul.f32 %v4074, %v4086
    %v4090 = vmul.f32 %v4075, %v4087
    %v4091 = vmul.f32 %v4076, %v4088
    %v4092 = vld [vmem:[#allocation2] sm:$0xff]
    %4093 = vmatprep.subr.mxu0 0.0
    %4094 = vmatpush1.msra.mxu0 %v4092
    %4095 = vmatprep.subr.mxu0 0.0
    %4096 = vmatpush1.msra.mxu0 0.0
    %4097 = vmatprep.subr.mxu0 0.0
    %4098 = vmatpush1.msra.mxu0 0.0
    %4099 = vmatprep.subr.mxu0 0.0
    %4100 = vmatpush1.msra.mxu0 0.0
    %4101 = vmatprep.subr.mxu0 0.0
    %4102 = vmatpush1.msra.mxu0 0.0
    %4103 = vmatprep.subr.mxu0 0.0
    %4104 = vmatpush1.msra.mxu0 0.0
    %4105 = vmatprep.subr.mxu0 0.0
    %4106 = vmatpush1.msra.mxu0 0.0
    %4107 = vmatprep.subr.mxu0 0.0
    %4108 = vmatpush1.msra.mxu0 0.0
    %4109 = vmatprep.subr.mxu0 0.0
    %4110 = vmatpush1.msra.mxu0 0.0
    %4111 = vmatprep.subr.mxu0 0.0
    %4112 = vmatpush1.msra.mxu0 0.0
    %4113 = vmatprep.subr.mxu0 0.0
    %4114 = vmatpush1.msra.mxu0 0.0
    %4115 = vmatprep.subr.mxu0 0.0
    %4116 = vmatpush1.msra.mxu0 0.0
    %4117 = vmatprep.subr.mxu0 0.0
    %4118 = vmatpush1.msra.mxu0 0.0
    %4119 = vmatprep.subr.mxu0 0.0
    %4120 = vmatpush1.msra.mxu0 0.0
    %4121 = vmatprep.subr.mxu0 0.0
    %4122 = vmatpush1.msra.mxu0 0.0
    %4123 = vmatprep.subr.mxu0 0.0
    %4124 = vmatpush1.msra.mxu0 0.0
    %4125 = vmatprep.subr.mxu0 0.0
    %4126 = vmatpush1.msra.mxu0 0.0
    %4127 = vmatprep.subr.mxu0 0.0
    %4128 = vmatpush1.msra.mxu0 0.0
    %4129 = vmatprep.subr.mxu0 0.0
    %4130 = vmatpush1.msra.mxu0 0.0
    %4131 = vmatprep.subr.mxu0 0.0
    %4132 = vmatpush1.msra.mxu0 0.0
    %4133 = vmatprep.subr.mxu0 0.0
    %4134 = vmatpush1.msra.mxu0 0.0
    %4135 = vmatprep.subr.mxu0 0.0
    %4136 = vmatpush1.msra.mxu0 0.0
    %4137 = vmatprep.subr.mxu0 0.0
    %4138 = vmatpush1.msra.mxu0 0.0
    %4139 = vmatprep.subr.mxu0 0.0
    %4140 = vmatpush1.msra.mxu0 0.0
    %4141 = vmatprep.subr.mxu0 0.0
    %4142 = vmatpush1.msra.mxu0 0.0
    %4143 = vmatprep.subr.mxu0 0.0
    %4144 = vmatpush1.msra.mxu0 0.0
    %4145 = vmatprep.subr.mxu0 0.0
    %4146 = vmatpush1.msra.mxu0 0.0
    %4147 = vmatprep.subr.mxu0 0.0
    %4148 = vmatpush1.msra.mxu0 0.0
    %4149 = vmatprep.subr.mxu0 0.0
    %4150 = vmatpush1.msra.mxu0 0.0
    %4151 = vmatprep.subr.mxu0 0.0
    %4152 = vmatpush1.msra.mxu0 0.0
    %4153 = vmatprep.subr.mxu0 0.0
    %4154 = vmatpush1.msra.mxu0 0.0
    %4155 = vmatprep.subr.mxu0 0.0
    %4156 = vmatpush1.msra.mxu0 0.0
    %4157 = vmatprep.mubr.f32.mxu0 0.0
    %4158 = vmatmul.mubr.f32.gmra.mrb[0].mxu0 %v328
    %v4159 = vpop.f32.mrb[0].mxu0
    %v4160 = vadd.f32 0.0, %v4159
    %v4161 = vpop.f32.mrb[0].mxu0
    %4162 = vmatprep.mubr.f32.mxu0 0.0
    %4163 = vmatmul.mubr.f32.gmra.mrb[0].mxu0 %v331
    %v4164 = vpop.f32.mrb[0].mxu0
    %v4165 = vadd.f32 0.0, %v4164
    %v4166 = vpop.f32.mrb[0].mxu0
    %4167 = vmatprep.mubr.f32.mxu0 0.0
    %4168 = vmatmul.mubr.f32.gmra.mrb[0].mxu0 %v334
    %v4169 = vpop.f32.mrb[0].mxu0
    %v4170 = vadd.f32 0.0, %v4169
    %v4171 = vpop.f32.mrb[0].mxu0
    %4172 = vmatprep.mubr.f32.mxu0 0.0
    %4173 = vmatmul.mubr.f32.gmra.mrb[0].mxu0 %v337
    %v4174 = vpop.f32.mrb[0].mxu0
    %v4175 = vadd.f32 0.0, %v4174
    %v4176 = vpop.f32.mrb[0].mxu0
    %4177 = vmatprep.mubr.f32.mxu0 0.0
    %4178 = vmatmul.mubr.f32.gmra.mrb[0].mxu0 %v340
    %v4179 = vpop.f32.mrb[0].mxu0
    %v4180 = vadd.f32 0.0, %v4179
    %v4181 = vpop.f32.mrb[0].mxu0
    %4182 = vmatprep.mubr.f32.mxu0 0.0
    %4183 = vmatmul.mubr.f32.gmra.mrb[0].mxu0 %v343
    %v4184 = vpop.f32.mrb[0].mxu0
    %v4185 = vadd.f32 0.0, %v4184
    %v4186 = vpop.f32.mrb[0].mxu0
    %4187 = vmatprep.mubr.f32.mxu0 0.0
    %4188 = vmatmul.mubr.f32.gmra.mrb[0].mxu0 %v346
    %v4189 = vpop.f32.mrb[0].mxu0
    %v4190 = vadd.f32 0.0, %v4189
    %v4191 = vpop.f32.mrb[0].mxu0
    %4192 = vmatprep.mubr.f32.mxu0 0.0
    %4193 = vmatmul.mubr.f32.gmra.mrb[0].mxu0 %v349
    %v4194 = vpop.f32.mrb[0].mxu0
    %v4195 = vadd.f32 0.0, %v4194
    %v4196 = vpop.f32.mrb[0].mxu0
    %4197 = vmatprep.mubr.f32.mxu0 0.0
    %4198 = vmatmul.mubr.f32.gmra.mrb[0].mxu0 %v352
    %v4199 = vpop.f32.mrb[0].mxu0
    %v4200 = vadd.f32 0.0, %v4199
    %v4201 = vpop.f32.mrb[0].mxu0
    %4202 = vmatprep.mubr.f32.mxu0 0.0
    %4203 = vmatmul.mubr.f32.gmra.mrb[0].mxu0 %v355
    %v4204 = vpop.f32.mrb[0].mxu0
    %v4205 = vadd.f32 0.0, %v4204
    %v4206 = vpop.f32.mrb[0].mxu0
    %4207 = vmatprep.mubr.f32.mxu0 0.0
    %4208 = vmatmul.mubr.f32.gmra.mrb[0].mxu0 %v358
    %v4209 = vpop.f32.mrb[0].mxu0
    %v4210 = vadd.f32 0.0, %v4209
    %v4211 = vpop.f32.mrb[0].mxu0
    %4212 = vmatprep.mubr.f32.mxu0 0.0
    %4213 = vmatmul.mubr.f32.gmra.mrb[0].mxu0 %v361
    %v4214 = vpop.f32.mrb[0].mxu0
    %v4215 = vadd.f32 0.0, %v4214
    %v4216 = vpop.f32.mrb[0].mxu0
    %4217 = vmatprep.mubr.f32.mxu0 0.0
    %4218 = vmatmul.mubr.f32.gmra.mrb[0].mxu0 %v364
    %v4219 = vpop.f32.mrb[0].mxu0
    %v4220 = vadd.f32 0.0, %v4219
    %v4221 = vpop.f32.mrb[0].mxu0
    %4222 = vmatprep.mubr.f32.mxu0 0.0
    %4223 = vmatmul.mubr.f32.gmra.mrb[0].mxu0 %v367
    %v4224 = vpop.f32.mrb[0].mxu0
    %v4225 = vadd.f32 0.0, %v4224
    %v4226 = vpop.f32.mrb[0].mxu0
    %4227 = vmatprep.mubr.f32.mxu0 0.0
    %4228 = vmatmul.mubr.f32.gmra.mrb[0].mxu0 %v370
    %v4229 = vpop.f32.mrb[0].mxu0
    %v4230 = vadd.f32 0.0, %v4229
    %v4231 = vpop.f32.mrb[0].mxu0
    %4232 = vmatprep.mubr.f32.mxu0 0.0
    %4233 = vmatmul.mubr.f32.gmra.mrb[0].mxu0 %v373
    %v4234 = vpop.f32.mrb[0].mxu0
    %v4235 = vadd.f32 0.0, %v4234
    %v4236 = vpop.f32.mrb[0].mxu0
    %4237 = vmatprep.mubr.f32.mxu0 0.0
    %4238 = vmatmul.mubr.f32.gmra.mrb[0].mxu0 %v376
    %v4239 = vpop.f32.mrb[0].mxu0
    %v4240 = vadd.f32 0.0, %v4239
    %v4241 = vpop.f32.mrb[0].mxu0
    %4242 = vmatprep.mubr.f32.mxu0 0.0
    %4243 = vmatmul.mubr.f32.gmra.mrb[0].mxu0 %v379
    %v4244 = vpop.f32.mrb[0].mxu0
    %v4245 = vadd.f32 0.0, %v4244
    %v4246 = vpop.f32.mrb[0].mxu0
    %4247 = vdwg.mxu0
    %v4249 = vsel %vm104, %v4160, 0
    %v4252 = vsel %vm104, %v4165, 0
    %v4255 = vsel %vm104, %v4170, 0
    %v4258 = vsel %vm104, %v4175, 0
    %v4261 = vsel %vm104, %v4180, 0
    %v4264 = vsel %vm104, %v4185, 0
    %v4267 = vsel %vm104, %v3969, 0
    %4269 = vmatprep.subr.mxu0 0.0
    %4270 = vmatpush1.xpose.msra.mxu0 %v4267
    %4271 = vmatprep.subr.mxu0 0.0
    %4272 = vmatpush1.xpose.msra.mxu0 0.0
    %4273 = vmatprep.subr.mxu0 0.0
    %4274 = vmatpush1.xpose.msra.mxu0 0.0
    %4275 = vmatprep.subr.mxu0 0.0
    %4276 = vmatpush1.xpose.msra.mxu0 0.0
    %4277 = vmatprep.subr.mxu0 0.0
    %4278 = vmatpush1.xpose.msra.mxu0 0.0
    %4279 = vmatprep.subr.mxu0 0.0
    %4280 = vmatpush1.xpose.msra.mxu0 0.0
    %4281 = vmatprep.subr.mxu0 0.0
    %4282 = vmatpush1.xpose.msra.mxu0 0.0
    %4283 = vmatprep.subr.mxu0 0.0
    %4284 = vmatpush1.xpose.msra.mxu0 0.0
    %4285 = vmatprep.subr.mxu0 0.0
    %4286 = vmatpush1.xpose.msra.mxu0 0.0
    %4287 = vmatprep.subr.mxu0 0.0
    %4288 = vmatpush1.xpose.msra.mxu0 0.0
    %4289 = vmatprep.subr.mxu0 0.0
    %4290 = vmatpush1.xpose.msra.mxu0 0.0
    %4291 = vmatprep.subr.mxu0 0.0
    %4292 = vmatpush1.xpose.msra.mxu0 0.0
    %4293 = vmatprep.subr.mxu0 0.0
    %4294 = vmatpush1.xpose.msra.mxu0 0.0
    %4295 = vmatprep.subr.mxu0 0.0
    %4296 = vmatpush1.xpose.msra.mxu0 0.0
    %4297 = vmatprep.subr.mxu0 0.0
    %4298 = vmatpush1.xpose.msra.mxu0 0.0
    %4299 = vmatprep.subr.mxu0 0.0
    %4300 = vmatpush1.xpose.msra.mxu0 0.0
    %4301 = vmatprep.subr.mxu0 0.0
    %4302 = vmatpush1.xpose.msra.mxu0 0.0
    %4303 = vmatprep.subr.mxu0 0.0
    %4304 = vmatpush1.xpose.msra.mxu0 0.0
    %4305 = vmatprep.subr.mxu0 0.0
    %4306 = vmatpush1.xpose.msra.mxu0 0.0
    %4307 = vmatprep.subr.mxu0 0.0
    %4308 = vmatpush1.xpose.msra.mxu0 0.0
    %4309 = vmatprep.subr.mxu0 0.0
    %4310 = vmatpush1.xpose.msra.mxu0 0.0
    %4311 = vmatprep.subr.mxu0 0.0
    %4312 = vmatpush1.xpose.msra.mxu0 0.0
    %4313 = vmatprep.subr.mxu0 0.0
    %4314 = vmatpush1.xpose.msra.mxu0 0.0
    %4315 = vmatprep.subr.mxu0 0.0
    %4316 = vmatpush1.xpose.msra.mxu0 0.0
    %4317 = vmatprep.subr.mxu0 0.0
    %4318 = vmatpush1.xpose.msra.mxu0 0.0
    %4319 = vmatprep.subr.mxu0 0.0
    %4320 = vmatpush1.xpose.msra.mxu0 0.0
    %4321 = vmatprep.subr.mxu0 0.0
    %4322 = vmatpush1.xpose.msra.mxu0 0.0
    %4323 = vmatprep.subr.mxu0 0.0
    %4324 = vmatpush1.xpose.msra.mxu0 0.0
    %4325 = vmatprep.subr.mxu0 0.0
    %4326 = vmatpush1.xpose.msra.mxu0 0.0
    %4327 = vmatprep.subr.mxu0 0.0
    %4328 = vmatpush1.xpose.msra.mxu0 0.0
    %4329 = vmatprep.subr.mxu0 0.0
    %4330 = vmatpush1.xpose.msra.mxu0 0.0
    %4331 = vmatprep.subr.mxu0 0.0
    %4332 = vmatpush1.xpose.msra.mxu0 0.0
    %4333 = vmatprep.mubr.f32.mxu0 0.0
    %4334 = vmatmul.mubr.f32.gmra.mrb[0].mxu0 %v4249
    %v4335 = vpop.f32.mrb[0].mxu0
    %v4336 = vadd.f32 0.0, %v4335
    %v4337 = vpop.f32.mrb[0].mxu0
    %4338 = vmatprep.mubr.f32.mxu0 0.0
    %4339 = vmatmul.mubr.f32.gmra.mrb[0].mxu0 %v4252
    %v4340 = vpop.f32.mrb[0].mxu0
    %v4341 = vadd.f32 0.0, %v4340
    %v4342 = vpop.f32.mrb[0].mxu0
    %4343 = vmatprep.mubr.f32.mxu0 0.0
    %4344 = vmatmul.mubr.f32.gmra.mrb[0].mxu0 %v4255
    %v4345 = vpop.f32.mrb[0].mxu0
    %v4346 = vadd.f32 0.0, %v4345
    %v4347 = vpop.f32.mrb[0].mxu0
    %4348 = vmatprep.mubr.f32.mxu0 0.0
    %4349 = vmatmul.mubr.f32.gmra.mrb[0].mxu0 %v4258
    %v4350 = vpop.f32.mrb[0].mxu0
    %v4351 = vadd.f32 0.0, %v4350
    %v4352 = vpop.f32.mrb[0].mxu0
    %4353 = vmatprep.mubr.f32.mxu0 0.0
    %4354 = vmatmul.mubr.f32.gmra.mrb[0].mxu0 %v4261
    %v4355 = vpop.f32.mrb[0].mxu0
    %v4356 = vadd.f32 0.0, %v4355
    %v4357 = vpop.f32.mrb[0].mxu0
    %4358 = vmatprep.mubr.f32.mxu0 0.0
    %4359 = vmatmul.mubr.f32.gmra.mrb[0].mxu0 %v4264
    %v4360 = vpop.f32.mrb[0].mxu0
    %v4361 = vadd.f32 0.0, %v4360
    %v4362 = vpop.f32.mrb[0].mxu0
    %4363 = vdwg.mxu0
    %v4364 = vadd.f32 %v87, %v4336
    %v4365 = vadd.f32 %v88, %v4341
    %v4366 = vadd.f32 %v89, %v4346
    %v4367 = vadd.f32 %v90, %v4351
    %v4368 = vadd.f32 %v91, %v4356
    %v4369 = vadd.f32 %v92, %v4361
    %v4371 = vsel %vm104, %v4190, 0
    %v4374 = vsel %vm104, %v4195, 0
    %v4377 = vsel %vm104, %v4200, 0
    %v4380 = vsel %vm104, %v4205, 0
    %v4383 = vsel %vm104, %v4210, 0
    %v4386 = vsel %vm104, %v4215, 0
    %v4389 = vsel %vm104, %v3970, 0
    %4391 = vmatprep.subr.mxu0 0.0
    %4392 = vmatpush1.xpose.msra.mxu0 %v4389
    %4393 = vmatprep.subr.mxu0 0.0
    %4394 = vmatpush1.xpose.msra.mxu0 0.0
    %4395 = vmatprep.subr.mxu0 0.0
    %4396 = vmatpush1.xpose.msra.mxu0 0.0
    %4397 = vmatprep.subr.mxu0 0.0
    %4398 = vmatpush1.xpose.msra.mxu0 0.0
    %4399 = vmatprep.subr.mxu0 0.0
    %4400 = vmatpush1.xpose.msra.mxu0 0.0
    %4401 = vmatprep.subr.mxu0 0.0
    %4402 = vmatpush1.xpose.msra.mxu0 0.0
    %4403 = vmatprep.subr.mxu0 0.0
    %4404 = vmatpush1.xpose.msra.mxu0 0.0
    %4405 = vmatprep.subr.mxu0 0.0
    %4406 = vmatpush1.xpose.msra.mxu0 0.0
    %4407 = vmatprep.subr.mxu0 0.0
    %4408 = vmatpush1.xpose.msra.mxu0 0.0
    %4409 = vmatprep.subr.mxu0 0.0
    %4410 = vmatpush1.xpose.msra.mxu0 0.0
    %4411 = vmatprep.subr.mxu0 0.0
    %4412 = vmatpush1.xpose.msra.mxu0 0.0
    %4413 = vmatprep.subr.mxu0 0.0
    %4414 = vmatpush1.xpose.msra.mxu0 0.0
    %4415 = vmatprep.subr.mxu0 0.0
    %4416 = vmatpush1.xpose.msra.mxu0 0.0
    %4417 = vmatprep.subr.mxu0 0.0
    %4418 = vmatpush1.xpose.msra.mxu0 0.0
    %4419 = vmatprep.subr.mxu0 0.0
    %4420 = vmatpush1.xpose.msra.mxu0 0.0
    %4421 = vmatprep.subr.mxu0 0.0
    %4422 = vmatpush1.xpose.msra.mxu0 0.0
    %4423 = vmatprep.subr.mxu0 0.0
    %4424 = vmatpush1.xpose.msra.mxu0 0.0
    %4425 = vmatprep.subr.mxu0 0.0
    %4426 = vmatpush1.xpose.msra.mxu0 0.0
    %4427 = vmatprep.subr.mxu0 0.0
    %4428 = vmatpush1.xpose.msra.mxu0 0.0
    %4429 = vmatprep.subr.mxu0 0.0
    %4430 = vmatpush1.xpose.msra.mxu0 0.0
    %4431 = vmatprep.subr.mxu0 0.0
    %4432 = vmatpush1.xpose.msra.mxu0 0.0
    %4433 = vmatprep.subr.mxu0 0.0
    %4434 = vmatpush1.xpose.msra.mxu0 0.0
    %4435 = vmatprep.subr.mxu0 0.0
    %4436 = vmatpush1.xpose.msra.mxu0 0.0
    %4437 = vmatprep.subr.mxu0 0.0
    %4438 = vmatpush1.xpose.msra.mxu0 0.0
    %4439 = vmatprep.subr.mxu0 0.0
    %4440 = vmatpush1.xpose.msra.mxu0 0.0
    %4441 = vmatprep.subr.mxu0 0.0
    %4442 = vmatpush1.xpose.msra.mxu0 0.0
    %4443 = vmatprep.subr.mxu0 0.0
    %4444 = vmatpush1.xpose.msra.mxu0 0.0
    %4445 = vmatprep.subr.mxu0 0.0
    %4446 = vmatpush1.xpose.msra.mxu0 0.0
    %4447 = vmatprep.subr.mxu0 0.0
    %4448 = vmatpush1.xpose.msra.mxu0 0.0
    %4449 = vmatprep.subr.mxu0 0.0
    %4450 = vmatpush1.xpose.msra.mxu0 0.0
    %4451 = vmatprep.subr.mxu0 0.0
    %4452 = vmatpush1.xpose.msra.mxu0 0.0
    %4453 = vmatprep.subr.mxu0 0.0
    %4454 = vmatpush1.xpose.msra.mxu0 0.0
    %4455 = vmatprep.mubr.f32.mxu0 0.0
    %4456 = vmatmul.mubr.f32.gmra.mrb[0].mxu0 %v4371
    %v4457 = vpop.f32.mrb[0].mxu0
    %v4458 = vadd.f32 0.0, %v4457
    %v4459 = vpop.f32.mrb[0].mxu0
    %4460 = vmatprep.mubr.f32.mxu0 0.0
    %4461 = vmatmul.mubr.f32.gmra.mrb[0].mxu0 %v4374
    %v4462 = vpop.f32.mrb[0].mxu0
    %v4463 = vadd.f32 0.0, %v4462
    %v4464 = vpop.f32.mrb[0].mxu0
    %4465 = vmatprep.mubr.f32.mxu0 0.0
    %4466 = vmatmul.mubr.f32.gmra.mrb[0].mxu0 %v4377
    %v4467 = vpop.f32.mrb[0].mxu0
    %v4468 = vadd.f32 0.0, %v4467
    %v4469 = vpop.f32.mrb[0].mxu0
    %4470 = vmatprep.mubr.f32.mxu0 0.0
    %4471 = vmatmul.mubr.f32.gmra.mrb[0].mxu0 %v4380
    %v4472 = vpop.f32.mrb[0].mxu0
    %v4473 = vadd.f32 0.0, %v4472
    %v4474 = vpop.f32.mrb[0].mxu0
    %4475 = vmatprep.mubr.f32.mxu0 0.0
    %4476 = vmatmul.mubr.f32.gmra.mrb[0].mxu0 %v4383
    %v4477 = vpop.f32.mrb[0].mxu0
    %v4478 = vadd.f32 0.0, %v4477
    %v4479 = vpop.f32.mrb[0].mxu0
    %4480 = vmatprep.mubr.f32.mxu0 0.0
    %4481 = vmatmul.mubr.f32.gmra.mrb[0].mxu0 %v4386
    %v4482 = vpop.f32.mrb[0].mxu0
    %v4483 = vadd.f32 0.0, %v4482
    %v4484 = vpop.f32.mrb[0].mxu0
    %4485 = vdwg.mxu0
    %v4486 = vadd.f32 %v4364, %v4458
    %v4487 = vadd.f32 %v4365, %v4463
    %v4488 = vadd.f32 %v4366, %v4468
    %v4489 = vadd.f32 %v4367, %v4473
    %v4490 = vadd.f32 %v4368, %v4478
    %v4491 = vadd.f32 %v4369, %v4483
    %v4493 = vsel %vm104, %v4220, 0
    %v4496 = vsel %vm104, %v4225, 0
    %v4499 = vsel %vm104, %v4230, 0
    %v4502 = vsel %vm104, %v4235, 0
    %v4505 = vsel %vm104, %v4240, 0
    %v4508 = vsel %vm104, %v4245, 0
    %v4511 = vsel %vm104, %v3971, 0
    %4513 = vmatprep.subr.mxu0 0.0
    %4514 = vmatpush1.xpose.msra.mxu0 %v4511
    %4515 = vmatprep.subr.mxu0 0.0
    %4516 = vmatpush1.xpose.msra.mxu0 0.0
    %4517 = vmatprep.subr.mxu0 0.0
    %4518 = vmatpush1.xpose.msra.mxu0 0.0
    %4519 = vmatprep.subr.mxu0 0.0
    %4520 = vmatpush1.xpose.msra.mxu0 0.0
    %4521 = vmatprep.subr.mxu0 0.0
    %4522 = vmatpush1.xpose.msra.mxu0 0.0
    %4523 = vmatprep.subr.mxu0 0.0
    %4524 = vmatpush1.xpose.msra.mxu0 0.0
    %4525 = vmatprep.subr.mxu0 0.0
    %4526 = vmatpush1.xpose.msra.mxu0 0.0
    %4527 = vmatprep.subr.mxu0 0.0
    %4528 = vmatpush1.xpose.msra.mxu0 0.0
    %4529 = vmatprep.subr.mxu0 0.0
    %4530 = vmatpush1.xpose.msra.mxu0 0.0
    %4531 = vmatprep.subr.mxu0 0.0
    %4532 = vmatpush1.xpose.msra.mxu0 0.0
    %4533 = vmatprep.subr.mxu0 0.0
    %4534 = vmatpush1.xpose.msra.mxu0 0.0
    %4535 = vmatprep.subr.mxu0 0.0
    %4536 = vmatpush1.xpose.msra.mxu0 0.0
    %4537 = vmatprep.subr.mxu0 0.0
    %4538 = vmatpush1.xpose.msra.mxu0 0.0
    %4539 = vmatprep.subr.mxu0 0.0
    %4540 = vmatpush1.xpose.msra.mxu0 0.0
    %4541 = vmatprep.subr.mxu0 0.0
    %4542 = vmatpush1.xpose.msra.mxu0 0.0
    %4543 = vmatprep.subr.mxu0 0.0
    %4544 = vmatpush1.xpose.msra.mxu0 0.0
    %4545 = vmatprep.subr.mxu0 0.0
    %4546 = vmatpush1.xpose.msra.mxu0 0.0
    %4547 = vmatprep.subr.mxu0 0.0
    %4548 = vmatpush1.xpose.msra.mxu0 0.0
    %4549 = vmatprep.subr.mxu0 0.0
    %4550 = vmatpush1.xpose.msra.mxu0 0.0
    %4551 = vmatprep.subr.mxu0 0.0
    %4552 = vmatpush1.xpose.msra.mxu0 0.0
    %4553 = vmatprep.subr.mxu0 0.0
    %4554 = vmatpush1.xpose.msra.mxu0 0.0
    %4555 = vmatprep.subr.mxu0 0.0
    %4556 = vmatpush1.xpose.msra.mxu0 0.0
    %4557 = vmatprep.subr.mxu0 0.0
    %4558 = vmatpush1.xpose.msra.mxu0 0.0
    %4559 = vmatprep.subr.mxu0 0.0
    %4560 = vmatpush1.xpose.msra.mxu0 0.0
    %4561 = vmatprep.subr.mxu0 0.0
    %4562 = vmatpush1.xpose.msra.mxu0 0.0
    %4563 = vmatprep.subr.mxu0 0.0
    %4564 = vmatpush1.xpose.msra.mxu0 0.0
    %4565 = vmatprep.subr.mxu0 0.0
    %4566 = vmatpush1.xpose.msra.mxu0 0.0
    %4567 = vmatprep.subr.mxu0 0.0
    %4568 = vmatpush1.xpose.msra.mxu0 0.0
    %4569 = vmatprep.subr.mxu0 0.0
    %4570 = vmatpush1.xpose.msra.mxu0 0.0
    %4571 = vmatprep.subr.mxu0 0.0
    %4572 = vmatpush1.xpose.msra.mxu0 0.0
    %4573 = vmatprep.subr.mxu0 0.0
    %4574 = vmatpush1.xpose.msra.mxu0 0.0
    %4575 = vmatprep.subr.mxu0 0.0
    %4576 = vmatpush1.xpose.msra.mxu0 0.0
    %4577 = vmatprep.mubr.f32.mxu0 0.0
    %4578 = vmatmul.mubr.f32.gmra.mrb[0].mxu0 %v4493
    %v4579 = vpop.f32.mrb[0].mxu0
    %v4580 = vadd.f32 0.0, %v4579
    %v4581 = vpop.f32.mrb[0].mxu0
    %4582 = vmatprep.mubr.f32.mxu0 0.0
    %4583 = vmatmul.mubr.f32.gmra.mrb[0].mxu0 %v4496
    %v4584 = vpop.f32.mrb[0].mxu0
    %v4585 = vadd.f32 0.0, %v4584
    %v4586 = vpop.f32.mrb[0].mxu0
    %4587 = vmatprep.mubr.f32.mxu0 0.0
    %4588 = vmatmul.mubr.f32.gmra.mrb[0].mxu0 %v4499
    %v4589 = vpop.f32.mrb[0].mxu0
    %v4590 = vadd.f32 0.0, %v4589
    %v4591 = vpop.f32.mrb[0].mxu0
    %4592 = vmatprep.mubr.f32.mxu0 0.0
    %4593 = vmatmul.mubr.f32.gmra.mrb[0].mxu0 %v4502
    %v4594 = vpop.f32.mrb[0].mxu0
    %v4595 = vadd.f32 0.0, %v4594
    %v4596 = vpop.f32.mrb[0].mxu0
    %4597 = vmatprep.mubr.f32.mxu0 0.0
    %4598 = vmatmul.mubr.f32.gmra.mrb[0].mxu0 %v4505
    %v4599 = vpop.f32.mrb[0].mxu0
    %v4600 = vadd.f32 0.0, %v4599
    %v4601 = vpop.f32.mrb[0].mxu0
    %4602 = vmatprep.mubr.f32.mxu0 0.0
    %4603 = vmatmul.mubr.f32.gmra.mrb[0].mxu0 %v4508
    %v4604 = vpop.f32.mrb[0].mxu0
    %v4605 = vadd.f32 0.0, %v4604
    %v4606 = vpop.f32.mrb[0].mxu0
    %4607 = vdwg.mxu0
    %v4608 = vadd.f32 %v4486, %v4580
    %v4609 = vadd.f32 %v4487, %v4585
    %v4610 = vadd.f32 %v4488, %v4590
    %v4611 = vadd.f32 %v4489, %v4595
    %v4612 = vadd.f32 %v4490, %v4600
    %v4613 = vadd.f32 %v4491, %v4605
    %v4614 = vxor.u32 %v4608, 2147483648
    %v4615 = vxor.u32 %v4609, 2147483648
    %v4616 = vmul.f32 %v4614, 1.442695
    %v4617 = vpow.pop %v4616
    %v4618 = vmul.f32 %v4615, 1.442695
    %v4619 = vpow.pop %v4618
    %v4620 = vadd.f32 %v4617, 1.0
    %v4621 = vadd.f32 %v4619, 1.0
    %v4622 = vrcp.pop %v4620
    %v4623 = vmul.f32 1.0, %v4622
    %v4624 = vrcp.pop %v4621
    %v4625 = vmul.f32 1.0, %v4624
    %v4626 = vtanh.pop %v4612
    %v4627 = vtanh.pop %v4613
    %v4628 = vmul.f32 %v4623, %v4626
    %v4629 = vmul.f32 %v4625, %v4627
    %4630 = vmatprep.subr.mxu0 0.0
    %4631 = vmatpush1.msra.mxu0 %v4628
    %4632 = vmatprep.subr.mxu0 0.0
    %4633 = vmatpush1.msra.mxu0 %v4629
    %4634 = vmatprep.subr.mxu0 0.0
    %4635 = vmatpush1.msra.mxu0 0.0
    %4636 = vmatprep.subr.mxu0 0.0
    %4637 = vmatpush1.msra.mxu0 0.0
    %4638 = vmatprep.subr.mxu0 0.0
    %4639 = vmatpush1.msra.mxu0 0.0
    %4640 = vmatprep.subr.mxu0 0.0
    %4641 = vmatpush1.msra.mxu0 0.0
    %4642 = vmatprep.subr.mxu0 0.0
    %4643 = vmatpush1.msra.mxu0 0.0
    %4644 = vmatprep.subr.mxu0 0.0
    %4645 = vmatpush1.msra.mxu0 0.0
    %4646 = vmatprep.subr.mxu0 0.0
    %4647 = vmatpush1.msra.mxu0 0.0
    %4648 = vmatprep.subr.mxu0 0.0
    %4649 = vmatpush1.msra.mxu0 0.0
    %4650 = vmatprep.subr.mxu0 0.0
    %4651 = vmatpush1.msra.mxu0 0.0
    %4652 = vmatprep.subr.mxu0 0.0
    %4653 = vmatpush1.msra.mxu0 0.0
    %4654 = vmatprep.subr.mxu0 0.0
    %4655 = vmatpush1.msra.mxu0 0.0
    %4656 = vmatprep.subr.mxu0 0.0
    %4657 = vmatpush1.msra.mxu0 0.0
    %4658 = vmatprep.subr.mxu0 0.0
    %4659 = vmatpush1.msra.mxu0 0.0
    %4660 = vmatprep.subr.mxu0 0.0
    %4661 = vmatpush1.msra.mxu0 0.0
    %4662 = vmatprep.subr.mxu0 0.0
    %4663 = vmatpush1.msra.mxu0 0.0
    %4664 = vmatprep.subr.mxu0 0.0
    %4665 = vmatpush1.msra.mxu0 0.0
    %4666 = vmatprep.subr.mxu0 0.0
    %4667 = vmatpush1.msra.mxu0 0.0
    %4668 = vmatprep.subr.mxu0 0.0
    %4669 = vmatpush1.msra.mxu0 0.0
    %4670 = vmatprep.subr.mxu0 0.0
    %4671 = vmatpush1.msra.mxu0 0.0
    %4672 = vmatprep.subr.mxu0 0.0
    %4673 = vmatpush1.msra.mxu0 0.0
    %4674 = vmatprep.subr.mxu0 0.0
    %4675 = vmatpush1.msra.mxu0 0.0
    %4676 = vmatprep.subr.mxu0 0.0
    %4677 = vmatpush1.msra.mxu0 0.0
    %4678 = vmatprep.subr.mxu0 0.0
    %4679 = vmatpush1.msra.mxu0 0.0
    %4680 = vmatprep.subr.mxu0 0.0
    %4681 = vmatpush1.msra.mxu0 0.0
    %4682 = vmatprep.subr.mxu0 0.0
    %4683 = vmatpush1.msra.mxu0 0.0
    %4684 = vmatprep.subr.mxu0 0.0
    %4685 = vmatpush1.msra.mxu0 0.0
    %4686 = vmatprep.subr.mxu0 0.0
    %4687 = vmatpush1.msra.mxu0 0.0
    %4688 = vmatprep.subr.mxu0 0.0
    %4689 = vmatpush1.msra.mxu0 0.0
    %4690 = vmatprep.subr.mxu0 0.0
    %4691 = vmatpush1.msra.mxu0 0.0
    %4692 = vmatprep.subr.mxu0 0.0
    %4693 = vmatpush1.msra.mxu0 0.0
    %4694 = vmatprep.mubr.f32.mxu0 0.0
    %4695 = vmatmul.mubr.f32.gmra.mrb[0].mxu0 %v920
    %v4696 = vpop.f32.mrb[0].mxu0
    %v4697 = vadd.f32 0.0, %v4696
    %v4698 = vpop.f32.mrb[0].mxu0
    %4699 = vmatprep.mubr.f32.mxu0 0.0
    %4700 = vmatmul.mubr.f32.gmra.mrb[0].mxu0 %v923
    %v4701 = vpop.f32.mrb[0].mxu0
    %v4702 = vadd.f32 0.0, %v4701
    %v4703 = vpop.f32.mrb[0].mxu0
    %4704 = vdwg.mxu0
    %v4705 = vadd.f32 %v4610, %v4697
    %v4706 = vadd.f32 %v4611, %v4702
    %v4707 = vxor.u32 %v4705, 2147483648
    %v4708 = vxor.u32 %v4706, 2147483648
    %v4709 = vmul.f32 %v4707, 1.442695
    %v4710 = vpow.pop %v4709
    %v4711 = vmul.f32 %v4708, 1.442695
    %v4712 = vpow.pop %v4711
    %v4713 = vadd.f32 %v4710, 1.0
    %v4714 = vadd.f32 %v4712, 1.0
    %v4715 = vrcp.pop %v4713
    %v4716 = vmul.f32 1.0, %v4715
    %v4717 = vrcp.pop %v4714
    %v4718 = vmul.f32 1.0, %v4717
    %v4719 = vtanh.pop %v4628
    %v4720 = vtanh.pop %v4629
    %v4721 = vmul.f32 %v4716, %v4719
    %v4722 = vmul.f32 %v4718, %v4720
    %v4723 = vld [vmem:[%s1018] sm:$0xff]
    %4724 = vmatprep.subr.mxu0 0.0
    %4725 = vmatpush1.msra.mxu0 %v4723
    %4726 = vmatprep.subr.mxu0 0.0
    %4727 = vmatpush1.msra.mxu0 0.0
    %4728 = vmatprep.subr.mxu0 0.0
    %4729 = vmatpush1.msra.mxu0 0.0
    %4730 = vmatprep.subr.mxu0 0.0
    %4731 = vmatpush1.msra.mxu0 0.0
    %4732 = vmatprep.subr.mxu0 0.0
    %4733 = vmatpush1.msra.mxu0 0.0
    %4734 = vmatprep.subr.mxu0 0.0
    %4735 = vmatpush1.msra.mxu0 0.0
    %4736 = vmatprep.subr.mxu0 0.0
    %4737 = vmatpush1.msra.mxu0 0.0
    %4738 = vmatprep.subr.mxu0 0.0
    %4739 = vmatpush1.msra.mxu0 0.0
    %4740 = vmatprep.subr.mxu0 0.0
    %4741 = vmatpush1.msra.mxu0 0.0
    %4742 = vmatprep.subr.mxu0 0.0
    %4743 = vmatpush1.msra.mxu0 0.0
    %4744 = vmatprep.subr.mxu0 0.0
    %4745 = vmatpush1.msra.mxu0 0.0
    %4746 = vmatprep.subr.mxu0 0.0
    %4747 = vmatpush1.msra.mxu0 0.0
    %4748 = vmatprep.subr.mxu0 0.0
    %4749 = vmatpush1.msra.mxu0 0.0
    %4750 = vmatprep.subr.mxu0 0.0
    %4751 = vmatpush1.msra.mxu0 0.0
    %4752 = vmatprep.subr.mxu0 0.0
    %4753 = vmatpush1.msra.mxu0 0.0
    %4754 = vmatprep.subr.mxu0 0.0
    %4755 = vmatpush1.msra.mxu0 0.0
    %4756 = vmatprep.subr.mxu0 0.0
    %4757 = vmatpush1.msra.mxu0 0.0
    %4758 = vmatprep.subr.mxu0 0.0
    %4759 = vmatpush1.msra.mxu0 0.0
    %4760 = vmatprep.subr.mxu0 0.0
    %4761 = vmatpush1.msra.mxu0 0.0
    %4762 = vmatprep.subr.mxu0 0.0
    %4763 = vmatpush1.msra.mxu0 0.0
    %4764 = vmatprep.subr.mxu0 0.0
    %4765 = vmatpush1.msra.mxu0 0.0
    %4766 = vmatprep.subr.mxu0 0.0
    %4767 = vmatpush1.msra.mxu0 0.0
    %4768 = vmatprep.subr.mxu0 0.0
    %4769 = vmatpush1.msra.mxu0 0.0
    %4770 = vmatprep.subr.mxu0 0.0
    %4771 = vmatpush1.msra.mxu0 0.0
    %4772 = vmatprep.subr.mxu0 0.0
    %4773 = vmatpush1.msra.mxu0 0.0
    %4774 = vmatprep.subr.mxu0 0.0
    %4775 = vmatpush1.msra.mxu0 0.0
    %4776 = vmatprep.subr.mxu0 0.0
    %4777 = vmatpush1.msra.mxu0 0.0
    %4778 = vmatprep.subr.mxu0 0.0
    %4779 = vmatpush1.msra.mxu0 0.0
    %4780 = vmatprep.subr.mxu0 0.0
    %4781 = vmatpush1.msra.mxu0 0.0
    %4782 = vmatprep.subr.mxu0 0.0
    %4783 = vmatpush1.msra.mxu0 0.0
    %4784 = vmatprep.subr.mxu0 0.0
    %4785 = vmatpush1.msra.mxu0 0.0
    %4786 = vmatprep.subr.mxu0 0.0
    %4787 = vmatpush1.msra.mxu0 0.0
    %4788 = vmatprep.mubr.f32.mxu0 0.0
    %4789 = vmatmul.mubr.f32.gmra.mrb[0].mxu0 %v328
    %v4790 = vpop.f32.mrb[0].mxu0
    %v4791 = vadd.f32 0.0, %v4790
    %v4792 = vpop.f32.mrb[0].mxu0
    %4793 = vmatprep.mubr.f32.mxu0 0.0
    %4794 = vmatmul.mubr.f32.gmra.mrb[0].mxu0 %v331
    %v4795 = vpop.f32.mrb[0].mxu0
    %v4796 = vadd.f32 0.0, %v4795
    %v4797 = vpop.f32.mrb[0].mxu0
    %4798 = vmatprep.mubr.f32.mxu0 0.0
    %4799 = vmatmul.mubr.f32.gmra.mrb[0].mxu0 %v334
    %v4800 = vpop.f32.mrb[0].mxu0
    %v4801 = vadd.f32 0.0, %v4800
    %v4802 = vpop.f32.mrb[0].mxu0
    %4803 = vmatprep.mubr.f32.mxu0 0.0
    %4804 = vmatmul.mubr.f32.gmra.mrb[0].mxu0 %v337
    %v4805 = vpop.f32.mrb[0].mxu0
    %v4806 = vadd.f32 0.0, %v4805
    %v4807 = vpop.f32.mrb[0].mxu0
    %4808 = vmatprep.mubr.f32.mxu0 0.0
    %4809 = vmatmul.mubr.f32.gmra.mrb[0].mxu0 %v340
    %v4810 = vpop.f32.mrb[0].mxu0
    %v4811 = vadd.f32 0.0, %v4810
    %v4812 = vpop.f32.mrb[0].mxu0
    %4813 = vmatprep.mubr.f32.mxu0 0.0
    %4814 = vmatmul.mubr.f32.gmra.mrb[0].mxu0 %v343
    %v4815 = vpop.f32.mrb[0].mxu0
    %v4816 = vadd.f32 0.0, %v4815
    %v4817 = vpop.f32.mrb[0].mxu0
    %4818 = vmatprep.mubr.f32.mxu0 0.0
    %4819 = vmatmul.mubr.f32.gmra.mrb[0].mxu0 %v346
    %v4820 = vpop.f32.mrb[0].mxu0
    %v4821 = vadd.f32 0.0, %v4820
    %v4822 = vpop.f32.mrb[0].mxu0
    %4823 = vmatprep.mubr.f32.mxu0 0.0
    %4824 = vmatmul.mubr.f32.gmra.mrb[0].mxu0 %v349
    %v4825 = vpop.f32.mrb[0].mxu0
    %v4826 = vadd.f32 0.0, %v4825
    %v4827 = vpop.f32.mrb[0].mxu0
    %4828 = vmatprep.mubr.f32.mxu0 0.0
    %4829 = vmatmul.mubr.f32.gmra.mrb[0].mxu0 %v352
    %v4830 = vpop.f32.mrb[0].mxu0
    %v4831 = vadd.f32 0.0, %v4830
    %v4832 = vpop.f32.mrb[0].mxu0
    %4833 = vmatprep.mubr.f32.mxu0 0.0
    %4834 = vmatmul.mubr.f32.gmra.mrb[0].mxu0 %v355
    %v4835 = vpop.f32.mrb[0].mxu0
    %v4836 = vadd.f32 0.0, %v4835
    %v4837 = vpop.f32.mrb[0].mxu0
    %4838 = vmatprep.mubr.f32.mxu0 0.0
    %4839 = vmatmul.mubr.f32.gmra.mrb[0].mxu0 %v358
    %v4840 = vpop.f32.mrb[0].mxu0
    %v4841 = vadd.f32 0.0, %v4840
    %v4842 = vpop.f32.mrb[0].mxu0
    %4843 = vmatprep.mubr.f32.mxu0 0.0
    %4844 = vmatmul.mubr.f32.gmra.mrb[0].mxu0 %v361
    %v4845 = vpop.f32.mrb[0].mxu0
    %v4846 = vadd.f32 0.0, %v4845
    %v4847 = vpop.f32.mrb[0].mxu0
    %4848 = vmatprep.mubr.f32.mxu0 0.0
    %4849 = vmatmul.mubr.f32.gmra.mrb[0].mxu0 %v364
    %v4850 = vpop.f32.mrb[0].mxu0
    %v4851 = vadd.f32 0.0, %v4850
    %v4852 = vpop.f32.mrb[0].mxu0
    %4853 = vmatprep.mubr.f32.mxu0 0.0
    %4854 = vmatmul.mubr.f32.gmra.mrb[0].mxu0 %v367
    %v4855 = vpop.f32.mrb[0].mxu0
    %v4856 = vadd.f32 0.0, %v4855
    %v4857 = vpop.f32.mrb[0].mxu0
    %4858 = vmatprep.mubr.f32.mxu0 0.0
    %4859 = vmatmul.mubr.f32.gmra.mrb[0].mxu0 %v370
    %v4860 = vpop.f32.mrb[0].mxu0
    %v4861 = vadd.f32 0.0, %v4860
    %v4862 = vpop.f32.mrb[0].mxu0
    %4863 = vmatprep.mubr.f32.mxu0 0.0
    %4864 = vmatmul.mubr.f32.gmra.mrb[0].mxu0 %v373
    %v4865 = vpop.f32.mrb[0].mxu0
    %v4866 = vadd.f32 0.0, %v4865
    %v4867 = vpop.f32.mrb[0].mxu0
    %4868 = vmatprep.mubr.f32.mxu0 0.0
    %4869 = vmatmul.mubr.f32.gmra.mrb[0].mxu0 %v376
    %v4870 = vpop.f32.mrb[0].mxu0
    %v4871 = vadd.f32 0.0, %v4870
    %v4872 = vpop.f32.mrb[0].mxu0
    %4873 = vmatprep.mubr.f32.mxu0 0.0
    %4874 = vmatmul.mubr.f32.gmra.mrb[0].mxu0 %v379
    %v4875 = vpop.f32.mrb[0].mxu0
    %v4876 = vadd.f32 0.0, %v4875
    %v4877 = vpop.f32.mrb[0].mxu0
    %4878 = vdwg.mxu0
    %v4880 = vsel %vm104, %v4791, 0
    %v4883 = vsel %vm104, %v4796, 0
    %v4886 = vsel %vm104, %v4801, 0
    %v4889 = vsel %vm104, %v4806, 0
    %v4892 = vsel %vm104, %v4811, 0
    %v4895 = vsel %vm104, %v4816, 0
    %v4898 = vsel %vm104, %v4089, 0
    %4900 = vmatprep.subr.mxu0 0.0
    %4901 = vmatpush1.xpose.msra.mxu0 %v4898
    %4902 = vmatprep.subr.mxu0 0.0
    %4903 = vmatpush1.xpose.msra.mxu0 0.0
    %4904 = vmatprep.subr.mxu0 0.0
    %4905 = vmatpush1.xpose.msra.mxu0 0.0
    %4906 = vmatprep.subr.mxu0 0.0
    %4907 = vmatpush1.xpose.msra.mxu0 0.0
    %4908 = vmatprep.subr.mxu0 0.0
    %4909 = vmatpush1.xpose.msra.mxu0 0.0
    %4910 = vmatprep.subr.mxu0 0.0
    %4911 = vmatpush1.xpose.msra.mxu0 0.0
    %4912 = vmatprep.subr.mxu0 0.0
    %4913 = vmatpush1.xpose.msra.mxu0 0.0
    %4914 = vmatprep.subr.mxu0 0.0
    %4915 = vmatpush1.xpose.msra.mxu0 0.0
    %4916 = vmatprep.subr.mxu0 0.0
    %4917 = vmatpush1.xpose.msra.mxu0 0.0
    %4918 = vmatprep.subr.mxu0 0.0
    %4919 = vmatpush1.xpose.msra.mxu0 0.0
    %4920 = vmatprep.subr.mxu0 0.0
    %4921 = vmatpush1.xpose.msra.mxu0 0.0
    %4922 = vmatprep.subr.mxu0 0.0
    %4923 = vmatpush1.xpose.msra.mxu0 0.0
    %4924 = vmatprep.subr.mxu0 0.0
    %4925 = vmatpush1.xpose.msra.mxu0 0.0
    %4926 = vmatprep.subr.mxu0 0.0
    %4927 = vmatpush1.xpose.msra.mxu0 0.0
    %4928 = vmatprep.subr.mxu0 0.0
    %4929 = vmatpush1.xpose.msra.mxu0 0.0
    %4930 = vmatprep.subr.mxu0 0.0
    %4931 = vmatpush1.xpose.msra.mxu0 0.0
    %4932 = vmatprep.subr.mxu0 0.0
    %4933 = vmatpush1.xpose.msra.mxu0 0.0
    %4934 = vmatprep.subr.mxu0 0.0
    %4935 = vmatpush1.xpose.msra.mxu0 0.0
    %4936 = vmatprep.subr.mxu0 0.0
    %4937 = vmatpush1.xpose.msra.mxu0 0.0
    %4938 = vmatprep.subr.mxu0 0.0
    %4939 = vmatpush1.xpose.msra.mxu0 0.0
    %4940 = vmatprep.subr.mxu0 0.0
    %4941 = vmatpush1.xpose.msra.mxu0 0.0
    %4942 = vmatprep.subr.mxu0 0.0
    %4943 = vmatpush1.xpose.msra.mxu0 0.0
    %4944 = vmatprep.subr.mxu0 0.0
    %4945 = vmatpush1.xpose.msra.mxu0 0.0
    %4946 = vmatprep.subr.mxu0 0.0
    %4947 = vmatpush1.xpose.msra.mxu0 0.0
    %4948 = vmatprep.subr.mxu0 0.0
    %4949 = vmatpush1.xpose.msra.mxu0 0.0
    %4950 = vmatprep.subr.mxu0 0.0
    %4951 = vmatpush1.xpose.msra.mxu0 0.0
    %4952 = vmatprep.subr.mxu0 0.0
    %4953 = vmatpush1.xpose.msra.mxu0 0.0
    %4954 = vmatprep.subr.mxu0 0.0
    %4955 = vmatpush1.xpose.msra.mxu0 0.0
    %4956 = vmatprep.subr.mxu0 0.0
    %4957 = vmatpush1.xpose.msra.mxu0 0.0
    %4958 = vmatprep.subr.mxu0 0.0
    %4959 = vmatpush1.xpose.msra.mxu0 0.0
    %4960 = vmatprep.subr.mxu0 0.0
    %4961 = vmatpush1.xpose.msra.mxu0 0.0
    %4962 = vmatprep.subr.mxu0 0.0
    %4963 = vmatpush1.xpose.msra.mxu0 0.0
    %4964 = vmatprep.mubr.f32.mxu0 0.0
    %4965 = vmatmul.mubr.f32.gmra.mrb[0].mxu0 %v4880
    %v4966 = vpop.f32.mrb[0].mxu0
    %v4967 = vadd.f32 0.0, %v4966
    %v4968 = vpop.f32.mrb[0].mxu0
    %4969 = vmatprep.mubr.f32.mxu0 0.0
    %4970 = vmatmul.mubr.f32.gmra.mrb[0].mxu0 %v4883
    %v4971 = vpop.f32.mrb[0].mxu0
    %v4972 = vadd.f32 0.0, %v4971
    %v4973 = vpop.f32.mrb[0].mxu0
    %4974 = vmatprep.mubr.f32.mxu0 0.0
    %4975 = vmatmul.mubr.f32.gmra.mrb[0].mxu0 %v4886
    %v4976 = vpop.f32.mrb[0].mxu0
    %v4977 = vadd.f32 0.0, %v4976
    %v4978 = vpop.f32.mrb[0].mxu0
    %4979 = vmatprep.mubr.f32.mxu0 0.0
    %4980 = vmatmul.mubr.f32.gmra.mrb[0].mxu0 %v4889
    %v4981 = vpop.f32.mrb[0].mxu0
    %v4982 = vadd.f32 0.0, %v4981
    %v4983 = vpop.f32.mrb[0].mxu0
    %4984 = vmatprep.mubr.f32.mxu0 0.0
    %4985 = vmatmul.mubr.f32.gmra.mrb[0].mxu0 %v4892
    %v4986 = vpop.f32.mrb[0].mxu0
    %v4987 = vadd.f32 0.0, %v4986
    %v4988 = vpop.f32.mrb[0].mxu0
    %4989 = vmatprep.mubr.f32.mxu0 0.0
    %4990 = vmatmul.mubr.f32.gmra.mrb[0].mxu0 %v4895
    %v4991 = vpop.f32.mrb[0].mxu0
    %v4992 = vadd.f32 0.0, %v4991
    %v4993 = vpop.f32.mrb[0].mxu0
    %4994 = vdwg.mxu0
    %v4995 = vadd.f32 %v87, %v4967
    %v4996 = vadd.f32 %v88, %v4972
    %v4997 = vadd.f32 %v89, %v4977
    %v4998 = vadd.f32 %v90, %v4982
    %v4999 = vadd.f32 %v91, %v4987
    %v5000 = vadd.f32 %v92, %v4992
    %v5002 = vsel %vm104, %v4821, 0
    %v5005 = vsel %vm104, %v4826, 0
    %v5008 = vsel %vm104, %v4831, 0
    %v5011 = vsel %vm104, %v4836, 0
    %v5014 = vsel %vm104, %v4841, 0
    %v5017 = vsel %vm104, %v4846, 0
    %v5020 = vsel %vm104, %v4090, 0
    %5022 = vmatprep.subr.mxu0 0.0
    %5023 = vmatpush1.xpose.msra.mxu0 %v5020
    %5024 = vmatprep.subr.mxu0 0.0
    %5025 = vmatpush1.xpose.msra.mxu0 0.0
    %5026 = vmatprep.subr.mxu0 0.0
    %5027 = vmatpush1.xpose.msra.mxu0 0.0
    %5028 = vmatprep.subr.mxu0 0.0
    %5029 = vmatpush1.xpose.msra.mxu0 0.0
    %5030 = vmatprep.subr.mxu0 0.0
    %5031 = vmatpush1.xpose.msra.mxu0 0.0
    %5032 = vmatprep.subr.mxu0 0.0
    %5033 = vmatpush1.xpose.msra.mxu0 0.0
    %5034 = vmatprep.subr.mxu0 0.0
    %5035 = vmatpush1.xpose.msra.mxu0 0.0
    %5036 = vmatprep.subr.mxu0 0.0
    %5037 = vmatpush1.xpose.msra.mxu0 0.0
    %5038 = vmatprep.subr.mxu0 0.0
    %5039 = vmatpush1.xpose.msra.mxu0 0.0
    %5040 = vmatprep.subr.mxu0 0.0
    %5041 = vmatpush1.xpose.msra.mxu0 0.0
    %5042 = vmatprep.subr.mxu0 0.0
    %5043 = vmatpush1.xpose.msra.mxu0 0.0
    %5044 = vmatprep.subr.mxu0 0.0
    %5045 = vmatpush1.xpose.msra.mxu0 0.0
    %5046 = vmatprep.subr.mxu0 0.0
    %5047 = vmatpush1.xpose.msra.mxu0 0.0
    %5048 = vmatprep.subr.mxu0 0.0
    %5049 = vmatpush1.xpose.msra.mxu0 0.0
    %5050 = vmatprep.subr.mxu0 0.0
    %5051 = vmatpush1.xpose.msra.mxu0 0.0
    %5052 = vmatprep.subr.mxu0 0.0
    %5053 = vmatpush1.xpose.msra.mxu0 0.0
    %5054 = vmatprep.subr.mxu0 0.0
    %5055 = vmatpush1.xpose.msra.mxu0 0.0
    %5056 = vmatprep.subr.mxu0 0.0
    %5057 = vmatpush1.xpose.msra.mxu0 0.0
    %5058 = vmatprep.subr.mxu0 0.0
    %5059 = vmatpush1.xpose.msra.mxu0 0.0
    %5060 = vmatprep.subr.mxu0 0.0
    %5061 = vmatpush1.xpose.msra.mxu0 0.0
    %5062 = vmatprep.subr.mxu0 0.0
    %5063 = vmatpush1.xpose.msra.mxu0 0.0
    %5064 = vmatprep.subr.mxu0 0.0
    %5065 = vmatpush1.xpose.msra.mxu0 0.0
    %5066 = vmatprep.subr.mxu0 0.0
    %5067 = vmatpush1.xpose.msra.mxu0 0.0
    %5068 = vmatprep.subr.mxu0 0.0
    %5069 = vmatpush1.xpose.msra.mxu0 0.0
    %5070 = vmatprep.subr.mxu0 0.0
    %5071 = vmatpush1.xpose.msra.mxu0 0.0
    %5072 = vmatprep.subr.mxu0 0.0
    %5073 = vmatpush1.xpose.msra.mxu0 0.0
    %5074 = vmatprep.subr.mxu0 0.0
    %5075 = vmatpush1.xpose.msra.mxu0 0.0
    %5076 = vmatprep.subr.mxu0 0.0
    %5077 = vmatpush1.xpose.msra.mxu0 0.0
    %5078 = vmatprep.subr.mxu0 0.0
    %5079 = vmatpush1.xpose.msra.mxu0 0.0
    %5080 = vmatprep.subr.mxu0 0.0
    %5081 = vmatpush1.xpose.msra.mxu0 0.0
    %5082 = vmatprep.subr.mxu0 0.0
    %5083 = vmatpush1.xpose.msra.mxu0 0.0
    %5084 = vmatprep.subr.mxu0 0.0
    %5085 = vmatpush1.xpose.msra.mxu0 0.0
    %5086 = vmatprep.mubr.f32.mxu0 0.0
    %5087 = vmatmul.mubr.f32.gmra.mrb[0].mxu0 %v5002
    %v5088 = vpop.f32.mrb[0].mxu0
    %v5089 = vadd.f32 0.0, %v5088
    %v5090 = vpop.f32.mrb[0].mxu0
    %5091 = vmatprep.mubr.f32.mxu0 0.0
    %5092 = vmatmul.mubr.f32.gmra.mrb[0].mxu0 %v5005
    %v5093 = vpop.f32.mrb[0].mxu0
    %v5094 = vadd.f32 0.0, %v5093
    %v5095 = vpop.f32.mrb[0].mxu0
    %5096 = vmatprep.mubr.f32.mxu0 0.0
    %5097 = vmatmul.mubr.f32.gmra.mrb[0].mxu0 %v5008
    %v5098 = vpop.f32.mrb[0].mxu0
    %v5099 = vadd.f32 0.0, %v5098
    %v5100 = vpop.f32.mrb[0].mxu0
    %5101 = vmatprep.mubr.f32.mxu0 0.0
    %5102 = vmatmul.mubr.f32.gmra.mrb[0].mxu0 %v5011
    %v5103 = vpop.f32.mrb[0].mxu0
    %v5104 = vadd.f32 0.0, %v5103
    %v5105 = vpop.f32.mrb[0].mxu0
    %5106 = vmatprep.mubr.f32.mxu0 0.0
    %5107 = vmatmul.mubr.f32.gmra.mrb[0].mxu0 %v5014
    %v5108 = vpop.f32.mrb[0].mxu0
    %v5109 = vadd.f32 0.0, %v5108
    %v5110 = vpop.f32.mrb[0].mxu0
    %5111 = vmatprep.mubr.f32.mxu0 0.0
    %5112 = vmatmul.mubr.f32.gmra.mrb[0].mxu0 %v5017
    %v5113 = vpop.f32.mrb[0].mxu0
    %v5114 = vadd.f32 0.0, %v5113
    %v5115 = vpop.f32.mrb[0].mxu0
    %5116 = vdwg.mxu0
    %v5117 = vadd.f32 %v4995, %v5089
    %v5118 = vadd.f32 %v4996, %v5094
    %v5119 = vadd.f32 %v4997, %v5099
    %v5120 = vadd.f32 %v4998, %v5104
    %v5121 = vadd.f32 %v4999, %v5109
    %v5122 = vadd.f32 %v5000, %v5114
    %v5124 = vsel %vm104, %v4851, 0
    %v5127 = vsel %vm104, %v4856, 0
    %v5130 = vsel %vm104, %v4861, 0
    %v5133 = vsel %vm104, %v4866, 0
    %v5136 = vsel %vm104, %v4871, 0
    %v5139 = vsel %vm104, %v4876, 0
    %v5142 = vsel %vm104, %v4091, 0
    %5144 = vmatprep.subr.mxu0 0.0
    %5145 = vmatpush1.xpose.msra.mxu0 %v5142
    %5146 = vmatprep.subr.mxu0 0.0
    %5147 = vmatpush1.xpose.msra.mxu0 0.0
    %5148 = vmatprep.subr.mxu0 0.0
    %5149 = vmatpush1.xpose.msra.mxu0 0.0
    %5150 = vmatprep.subr.mxu0 0.0
    %5151 = vmatpush1.xpose.msra.mxu0 0.0
    %5152 = vmatprep.subr.mxu0 0.0
    %5153 = vmatpush1.xpose.msra.mxu0 0.0
    %5154 = vmatprep.subr.mxu0 0.0
    %5155 = vmatpush1.xpose.msra.mxu0 0.0
    %5156 = vmatprep.subr.mxu0 0.0
    %5157 = vmatpush1.xpose.msra.mxu0 0.0
    %5158 = vmatprep.subr.mxu0 0.0
    %5159 = vmatpush1.xpose.msra.mxu0 0.0
    %5160 = vmatprep.subr.mxu0 0.0
    %5161 = vmatpush1.xpose.msra.mxu0 0.0
    %5162 = vmatprep.subr.mxu0 0.0
    %5163 = vmatpush1.xpose.msra.mxu0 0.0
    %5164 = vmatprep.subr.mxu0 0.0
    %5165 = vmatpush1.xpose.msra.mxu0 0.0
    %5166 = vmatprep.subr.mxu0 0.0
    %5167 = vmatpush1.xpose.msra.mxu0 0.0
    %5168 = vmatprep.subr.mxu0 0.0
    %5169 = vmatpush1.xpose.msra.mxu0 0.0
    %5170 = vmatprep.subr.mxu0 0.0
    %5171 = vmatpush1.xpose.msra.mxu0 0.0
    %5172 = vmatprep.subr.mxu0 0.0
    %5173 = vmatpush1.xpose.msra.mxu0 0.0
    %5174 = vmatprep.subr.mxu0 0.0
    %5175 = vmatpush1.xpose.msra.mxu0 0.0
    %5176 = vmatprep.subr.mxu0 0.0
    %5177 = vmatpush1.xpose.msra.mxu0 0.0
    %5178 = vmatprep.subr.mxu0 0.0
    %5179 = vmatpush1.xpose.msra.mxu0 0.0
    %5180 = vmatprep.subr.mxu0 0.0
    %5181 = vmatpush1.xpose.msra.mxu0 0.0
    %5182 = vmatprep.subr.mxu0 0.0
    %5183 = vmatpush1.xpose.msra.mxu0 0.0
    %5184 = vmatprep.subr.mxu0 0.0
    %5185 = vmatpush1.xpose.msra.mxu0 0.0
    %5186 = vmatprep.subr.mxu0 0.0
    %5187 = vmatpush1.xpose.msra.mxu0 0.0
    %5188 = vmatprep.subr.mxu0 0.0
    %5189 = vmatpush1.xpose.msra.mxu0 0.0
    %5190 = vmatprep.subr.mxu0 0.0
    %5191 = vmatpush1.xpose.msra.mxu0 0.0
    %5192 = vmatprep.subr.mxu0 0.0
    %5193 = vmatpush1.xpose.msra.mxu0 0.0
    %5194 = vmatprep.subr.mxu0 0.0
    %5195 = vmatpush1.xpose.msra.mxu0 0.0
    %5196 = vmatprep.subr.mxu0 0.0
    %5197 = vmatpush1.xpose.msra.mxu0 0.0
    %5198 = vmatprep.subr.mxu0 0.0
    %5199 = vmatpush1.xpose.msra.mxu0 0.0
    %5200 = vmatprep.subr.mxu0 0.0
    %5201 = vmatpush1.xpose.msra.mxu0 0.0
    %5202 = vmatprep.subr.mxu0 0.0
    %5203 = vmatpush1.xpose.msra.mxu0 0.0
    %5204 = vmatprep.subr.mxu0 0.0
    %5205 = vmatpush1.xpose.msra.mxu0 0.0
    %5206 = vmatprep.subr.mxu0 0.0
    %5207 = vmatpush1.xpose.msra.mxu0 0.0
    %5208 = vmatprep.mubr.f32.mxu0 0.0
    %5209 = vmatmul.mubr.f32.gmra.mrb[0].mxu0 %v5124
    %v5210 = vpop.f32.mrb[0].mxu0
    %v5211 = vadd.f32 0.0, %v5210
    %v5212 = vpop.f32.mrb[0].mxu0
    %5213 = vmatprep.mubr.f32.mxu0 0.0
    %5214 = vmatmul.mubr.f32.gmra.mrb[0].mxu0 %v5127
    %v5215 = vpop.f32.mrb[0].mxu0
    %v5216 = vadd.f32 0.0, %v5215
    %v5217 = vpop.f32.mrb[0].mxu0
    %5218 = vmatprep.mubr.f32.mxu0 0.0
    %5219 = vmatmul.mubr.f32.gmra.mrb[0].mxu0 %v5130
    %v5220 = vpop.f32.mrb[0].mxu0
    %v5221 = vadd.f32 0.0, %v5220
    %v5222 = vpop.f32.mrb[0].mxu0
    %5223 = vmatprep.mubr.f32.mxu0 0.0
    %5224 = vmatmul.mubr.f32.gmra.mrb[0].mxu0 %v5133
    %v5225 = vpop.f32.mrb[0].mxu0
    %v5226 = vadd.f32 0.0, %v5225
    %v5227 = vpop.f32.mrb[0].mxu0
    %5228 = vmatprep.mubr.f32.mxu0 0.0
    %5229 = vmatmul.mubr.f32.gmra.mrb[0].mxu0 %v5136
    %v5230 = vpop.f32.mrb[0].mxu0
    %v5231 = vadd.f32 0.0, %v5230
    %v5232 = vpop.f32.mrb[0].mxu0
    %5233 = vmatprep.mubr.f32.mxu0 0.0
    %5234 = vmatmul.mubr.f32.gmra.mrb[0].mxu0 %v5139
    %v5235 = vpop.f32.mrb[0].mxu0
    %v5236 = vadd.f32 0.0, %v5235
    %v5237 = vpop.f32.mrb[0].mxu0
    %5238 = vdwg.mxu0
    %v5239 = vadd.f32 %v5117, %v5211
    %v5240 = vadd.f32 %v5118, %v5216
    %v5241 = vadd.f32 %v5119, %v5221
    %v5242 = vadd.f32 %v5120, %v5226
    %v5243 = vadd.f32 %v5121, %v5231
    %v5244 = vadd.f32 %v5122, %v5236
    %v5245 = vxor.u32 %v5239, 2147483648
    %v5246 = vxor.u32 %v5240, 2147483648
    %v5247 = vmul.f32 %v5245, 1.442695
    %v5248 = vpow.pop %v5247
    %v5249 = vmul.f32 %v5246, 1.442695
    %v5250 = vpow.pop %v5249
    %v5251 = vadd.f32 %v5248, 1.0
    %v5252 = vadd.f32 %v5250, 1.0
    %v5253 = vrcp.pop %v5251
    %v5254 = vmul.f32 1.0, %v5253
    %v5255 = vrcp.pop %v5252
    %v5256 = vmul.f32 1.0, %v5255
    %v5257 = vtanh.pop %v5243
    %v5258 = vtanh.pop %v5244
    %v5259 = vmul.f32 %v5254, %v5257
    %v5260 = vmul.f32 %v5256, %v5258
    %5261 = vmatprep.subr.mxu0 0.0
    %5262 = vmatpush1.msra.mxu0 %v5259
    %5263 = vmatprep.subr.mxu0 0.0
    %5264 = vmatpush1.msra.mxu0 %v5260
    %5265 = vmatprep.subr.mxu0 0.0
    %5266 = vmatpush1.msra.mxu0 0.0
    %5267 = vmatprep.subr.mxu0 0.0
    %5268 = vmatpush1.msra.mxu0 0.0
    %5269 = vmatprep.subr.mxu0 0.0
    %5270 = vmatpush1.msra.mxu0 0.0
    %5271 = vmatprep.subr.mxu0 0.0
    %5272 = vmatpush1.msra.mxu0 0.0
    %5273 = vmatprep.subr.mxu0 0.0
    %5274 = vmatpush1.msra.mxu0 0.0
    %5275 = vmatprep.subr.mxu0 0.0
    %5276 = vmatpush1.msra.mxu0 0.0
    %5277 = vmatprep.subr.mxu0 0.0
    %5278 = vmatpush1.msra.mxu0 0.0
    %5279 = vmatprep.subr.mxu0 0.0
    %5280 = vmatpush1.msra.mxu0 0.0
    %5281 = vmatprep.subr.mxu0 0.0
    %5282 = vmatpush1.msra.mxu0 0.0
    %5283 = vmatprep.subr.mxu0 0.0
    %5284 = vmatpush1.msra.mxu0 0.0
    %5285 = vmatprep.subr.mxu0 0.0
    %5286 = vmatpush1.msra.mxu0 0.0
    %5287 = vmatprep.subr.mxu0 0.0
    %5288 = vmatpush1.msra.mxu0 0.0
    %5289 = vmatprep.subr.mxu0 0.0
    %5290 = vmatpush1.msra.mxu0 0.0
    %5291 = vmatprep.subr.mxu0 0.0
    %5292 = vmatpush1.msra.mxu0 0.0
    %5293 = vmatprep.subr.mxu0 0.0
    %5294 = vmatpush1.msra.mxu0 0.0
    %5295 = vmatprep.subr.mxu0 0.0
    %5296 = vmatpush1.msra.mxu0 0.0
    %5297 = vmatprep.subr.mxu0 0.0
    %5298 = vmatpush1.msra.mxu0 0.0
    %5299 = vmatprep.subr.mxu0 0.0
    %5300 = vmatpush1.msra.mxu0 0.0
    %5301 = vmatprep.subr.mxu0 0.0
    %5302 = vmatpush1.msra.mxu0 0.0
    %5303 = vmatprep.subr.mxu0 0.0
    %5304 = vmatpush1.msra.mxu0 0.0
    %5305 = vmatprep.subr.mxu0 0.0
    %5306 = vmatpush1.msra.mxu0 0.0
    %5307 = vmatprep.subr.mxu0 0.0
    %5308 = vmatpush1.msra.mxu0 0.0
    %5309 = vmatprep.subr.mxu0 0.0
    %5310 = vmatpush1.msra.mxu0 0.0
    %5311 = vmatprep.subr.mxu0 0.0
    %5312 = vmatpush1.msra.mxu0 0.0
    %5313 = vmatprep.subr.mxu0 0.0
    %5314 = vmatpush1.msra.mxu0 0.0
    %5315 = vmatprep.subr.mxu0 0.0
    %5316 = vmatpush1.msra.mxu0 0.0
    %5317 = vmatprep.subr.mxu0 0.0
    %5318 = vmatpush1.msra.mxu0 0.0
    %5319 = vmatprep.subr.mxu0 0.0
    %5320 = vmatpush1.msra.mxu0 0.0
    %5321 = vmatprep.subr.mxu0 0.0
    %5322 = vmatpush1.msra.mxu0 0.0
    %5323 = vmatprep.subr.mxu0 0.0
    %5324 = vmatpush1.msra.mxu0 0.0
    %5325 = vmatprep.mubr.f32.mxu0 0.0
    %5326 = vmatmul.mubr.f32.gmra.mrb[0].mxu0 %v920
    %v5327 = vpop.f32.mrb[0].mxu0
    %v5328 = vadd.f32 0.0, %v5327
    %v5329 = vpop.f32.mrb[0].mxu0
    %5330 = vmatprep.mubr.f32.mxu0 0.0
    %5331 = vmatmul.mubr.f32.gmra.mrb[0].mxu0 %v923
    %v5332 = vpop.f32.mrb[0].mxu0
    %v5333 = vadd.f32 0.0, %v5332
    %v5334 = vpop.f32.mrb[0].mxu0
    %5335 = vdwg.mxu0
    %v5336 = vadd.f32 %v5241, %v5328
    %v5337 = vadd.f32 %v5242, %v5333
    %v5338 = vxor.u32 %v5336, 2147483648
    %v5339 = vxor.u32 %v5337, 2147483648
    %v5340 = vmul.f32 %v5338, 1.442695
    %v5341 = vpow.pop %v5340
    %v5342 = vmul.f32 %v5339, 1.442695
    %v5343 = vpow.pop %v5342
    %v5344 = vadd.f32 %v5341, 1.0
    %v5345 = vadd.f32 %v5343, 1.0
    %v5346 = vrcp.pop %v5344
    %v5347 = vmul.f32 1.0, %v5346
    %v5348 = vrcp.pop %v5345
    %v5349 = vmul.f32 1.0, %v5348
    %v5350 = vtanh.pop %v5259
    %v5351 = vtanh.pop %v5260
    %v5352 = vmul.f32 %v5347, %v5350
    %v5353 = vmul.f32 %v5349, %v5351
    %v5355 = vsel %vm104, %v4721, 0
    %v5358 = vsel %vm104, %v4722, 0
    %5360 = vmatprep.subr.mxu0 0.0
    %5361 = vmatpush1.msra.mxu0 %v48
    %5362 = vmatprep.subr.mxu0 0.0
    %5363 = vmatpush1.msra.mxu0 0.0
    %5364 = vmatprep.subr.mxu0 0.0
    %5365 = vmatpush1.msra.mxu0 0.0
    %5366 = vmatprep.subr.mxu0 0.0
    %5367 = vmatpush1.msra.mxu0 0.0
    %5368 = vmatprep.subr.mxu0 0.0
    %5369 = vmatpush1.msra.mxu0 0.0
    %5370 = vmatprep.subr.mxu0 0.0
    %5371 = vmatpush1.msra.mxu0 0.0
    %5372 = vmatprep.subr.mxu0 0.0
    %5373 = vmatpush1.msra.mxu0 0.0
    %5374 = vmatprep.subr.mxu0 0.0
    %5375 = vmatpush1.msra.mxu0 0.0
    %5376 = vmatprep.subr.mxu0 0.0
    %5377 = vmatpush1.msra.mxu0 0.0
    %5378 = vmatprep.subr.mxu0 0.0
    %5379 = vmatpush1.msra.mxu0 0.0
    %5380 = vmatprep.subr.mxu0 0.0
    %5381 = vmatpush1.msra.mxu0 0.0
    %5382 = vmatprep.subr.mxu0 0.0
    %5383 = vmatpush1.msra.mxu0 0.0
    %5384 = vmatprep.subr.mxu0 0.0
    %5385 = vmatpush1.msra.mxu0 0.0
    %5386 = vmatprep.subr.mxu0 0.0
    %5387 = vmatpush1.msra.mxu0 0.0
    %5388 = vmatprep.subr.mxu0 0.0
    %5389 = vmatpush1.msra.mxu0 0.0
    %5390 = vmatprep.subr.mxu0 0.0
    %5391 = vmatpush1.msra.mxu0 0.0
    %5392 = vmatprep.subr.mxu0 0.0
    %5393 = vmatpush1.msra.mxu0 0.0
    %5394 = vmatprep.subr.mxu0 0.0
    %5395 = vmatpush1.msra.mxu0 0.0
    %5396 = vmatprep.subr.mxu0 0.0
    %5397 = vmatpush1.msra.mxu0 0.0
    %5398 = vmatprep.subr.mxu0 0.0
    %5399 = vmatpush1.msra.mxu0 0.0
    %5400 = vmatprep.subr.mxu0 0.0
    %5401 = vmatpush1.msra.mxu0 0.0
    %5402 = vmatprep.subr.mxu0 0.0
    %5403 = vmatpush1.msra.mxu0 0.0
    %5404 = vmatprep.subr.mxu0 0.0
    %5405 = vmatpush1.msra.mxu0 0.0
    %5406 = vmatprep.subr.mxu0 0.0
    %5407 = vmatpush1.msra.mxu0 0.0
    %5408 = vmatprep.subr.mxu0 0.0
    %5409 = vmatpush1.msra.mxu0 0.0
    %5410 = vmatprep.subr.mxu0 0.0
    %5411 = vmatpush1.msra.mxu0 0.0
    %5412 = vmatprep.subr.mxu0 0.0
    %5413 = vmatpush1.msra.mxu0 0.0
    %5414 = vmatprep.subr.mxu0 0.0
    %5415 = vmatpush1.msra.mxu0 0.0
    %5416 = vmatprep.subr.mxu0 0.0
    %5417 = vmatpush1.msra.mxu0 0.0
    %5418 = vmatprep.subr.mxu0 0.0
    %5419 = vmatpush1.msra.mxu0 0.0
    %5420 = vmatprep.subr.mxu0 0.0
    %5421 = vmatpush1.msra.mxu0 0.0
    %5422 = vmatprep.subr.mxu0 0.0
    %5423 = vmatpush1.msra.mxu0 0.0
    %5424 = vmatprep.mubr.f32.mxu0 0.0
    %5425 = vmatmul.mubr.f32.gmra.mrb[0].mxu0 %v5355
    %v5426 = vpop.f32.mrb[0].mxu0
    %v5427 = vadd.f32 0.0, %v5426
    %v5428 = vpop.f32.mrb[0].mxu0
    %5429 = vmatprep.mubr.f32.mxu0 0.0
    %5430 = vmatmul.mubr.f32.gmra.mrb[0].mxu0 %v5358
    %v5431 = vpop.f32.mrb[0].mxu0
    %v5432 = vadd.f32 0.0, %v5431
    %v5433 = vpop.f32.mrb[0].mxu0
    %5434 = vdwg.mxu0
    %v5435 = vmul.f32 %v5427, %v49
    %v5436 = vmul.f32 %v5432, %v50
    %v5437 = vadd.f32 %v5435, %v5436
    %v5438 = vrot.slane %v5437, 4
    %v5439 = vadd.f32 %v5437, %v5438
    %v5440 = vrot.slane %v5439, 2
    %v5441 = vadd.f32 %v5439, %v5440
    %v5442 = vrot.slane %v5441, 1
    %v5443 = vadd.f32 %v5441, %v5442
    %v5445 = vsel %vm104, %v5352, 0
    %v5448 = vsel %vm104, %v5353, 0
    %5450 = vmatprep.subr.mxu0 0.0
    %5451 = vmatpush1.msra.mxu0 %v48
    %5452 = vmatprep.subr.mxu0 0.0
    %5453 = vmatpush1.msra.mxu0 0.0
    %5454 = vmatprep.subr.mxu0 0.0
    %5455 = vmatpush1.msra.mxu0 0.0
    %5456 = vmatprep.subr.mxu0 0.0
    %5457 = vmatpush1.msra.mxu0 0.0
    %5458 = vmatprep.subr.mxu0 0.0
    %5459 = vmatpush1.msra.mxu0 0.0
    %5460 = vmatprep.subr.mxu0 0.0
    %5461 = vmatpush1.msra.mxu0 0.0
    %5462 = vmatprep.subr.mxu0 0.0
    %5463 = vmatpush1.msra.mxu0 0.0
    %5464 = vmatprep.subr.mxu0 0.0
    %5465 = vmatpush1.msra.mxu0 0.0
    %5466 = vmatprep.subr.mxu0 0.0
    %5467 = vmatpush1.msra.mxu0 0.0
    %5468 = vmatprep.subr.mxu0 0.0
    %5469 = vmatpush1.msra.mxu0 0.0
    %5470 = vmatprep.subr.mxu0 0.0
    %5471 = vmatpush1.msra.mxu0 0.0
    %5472 = vmatprep.subr.mxu0 0.0
    %5473 = vmatpush1.msra.mxu0 0.0
    %5474 = vmatprep.subr.mxu0 0.0
    %5475 = vmatpush1.msra.mxu0 0.0
    %5476 = vmatprep.subr.mxu0 0.0
    %5477 = vmatpush1.msra.mxu0 0.0
    %5478 = vmatprep.subr.mxu0 0.0
    %5479 = vmatpush1.msra.mxu0 0.0
    %5480 = vmatprep.subr.mxu0 0.0
    %5481 = vmatpush1.msra.mxu0 0.0
    %5482 = vmatprep.subr.mxu0 0.0
    %5483 = vmatpush1.msra.mxu0 0.0
    %5484 = vmatprep.subr.mxu0 0.0
    %5485 = vmatpush1.msra.mxu0 0.0
    %5486 = vmatprep.subr.mxu0 0.0
    %5487 = vmatpush1.msra.mxu0 0.0
    %5488 = vmatprep.subr.mxu0 0.0
    %5489 = vmatpush1.msra.mxu0 0.0
    %5490 = vmatprep.subr.mxu0 0.0
    %5491 = vmatpush1.msra.mxu0 0.0
    %5492 = vmatprep.subr.mxu0 0.0
    %5493 = vmatpush1.msra.mxu0 0.0
    %5494 = vmatprep.subr.mxu0 0.0
    %5495 = vmatpush1.msra.mxu0 0.0
    %5496 = vmatprep.subr.mxu0 0.0
    %5497 = vmatpush1.msra.mxu0 0.0
    %5498 = vmatprep.subr.mxu0 0.0
    %5499 = vmatpush1.msra.mxu0 0.0
    %5500 = vmatprep.subr.mxu0 0.0
    %5501 = vmatpush1.msra.mxu0 0.0
    %5502 = vmatprep.subr.mxu0 0.0
    %5503 = vmatpush1.msra.mxu0 0.0
    %5504 = vmatprep.subr.mxu0 0.0
    %5505 = vmatpush1.msra.mxu0 0.0
    %5506 = vmatprep.subr.mxu0 0.0
    %5507 = vmatpush1.msra.mxu0 0.0
    %5508 = vmatprep.subr.mxu0 0.0
    %5509 = vmatpush1.msra.mxu0 0.0
    %5510 = vmatprep.subr.mxu0 0.0
    %5511 = vmatpush1.msra.mxu0 0.0
    %5512 = vmatprep.subr.mxu0 0.0
    %5513 = vmatpush1.msra.mxu0 0.0
    %5514 = vmatprep.mubr.f32.mxu0 0.0
    %5515 = vmatmul.mubr.f32.gmra.mrb[0].mxu0 %v5445
    %v5516 = vpop.f32.mrb[0].mxu0
    %v5517 = vadd.f32 0.0, %v5516
    %v5518 = vpop.f32.mrb[0].mxu0
    %5519 = vmatprep.mubr.f32.mxu0 0.0
    %5520 = vmatmul.mubr.f32.gmra.mrb[0].mxu0 %v5448
    %v5521 = vpop.f32.mrb[0].mxu0
    %v5522 = vadd.f32 0.0, %v5521
    %v5523 = vpop.f32.mrb[0].mxu0
    %5524 = vdwg.mxu0
    %v5525 = vmul.f32 %v5517, %v49
    %v5526 = vmul.f32 %v5522, %v50
    %v5527 = vadd.f32 %v5525, %v5526
    %v5528 = vrot.slane %v5527, 4
    %v5529 = vadd.f32 %v5527, %v5528
    %v5530 = vrot.slane %v5529, 2
    %v5531 = vadd.f32 %v5529, %v5530
    %v5532 = vrot.slane %v5531, 1
    %v5533 = vadd.f32 %v5531, %v5532
    %v5534 = vsel %vm113, %v5443, %v5533
    %5535 = vmatprep.subr.mxu0 0.0
    %5536 = vmatpush1.msra.mxu0 %v51
    %5537 = vmatprep.subr.mxu0 0.0
    %5538 = vmatpush1.msra.mxu0 %v52
    %5539 = vmatprep.subr.mxu0 0.0
    %5540 = vmatpush1.msra.mxu0 %v53
    %5541 = vmatprep.subr.mxu0 0.0
    %5542 = vmatpush1.msra.mxu0 %v54
    %5543 = vmatprep.subr.mxu0 0.0
    %5544 = vmatpush1.msra.mxu0 %v55
    %5545 = vmatprep.subr.mxu0 0.0
    %5546 = vmatpush1.msra.mxu0 %v56
    %5547 = vmatprep.subr.mxu0 0.0
    %5548 = vmatpush1.msra.mxu0 %v57
    %5549 = vmatprep.subr.mxu0 0.0
    %5550 = vmatpush1.msra.mxu0 %v58
    %5551 = vmatprep.subr.mxu0 0.0
    %5552 = vmatpush1.msra.mxu0 %v59
    %5553 = vmatprep.subr.mxu0 0.0
    %5554 = vmatpush1.msra.mxu0 %v60
    %5555 = vmatprep.subr.mxu0 0.0
    %5556 = vmatpush1.msra.mxu0 %v61
    %5557 = vmatprep.subr.mxu0 0.0
    %5558 = vmatpush1.msra.mxu0 %v62
    %5559 = vmatprep.subr.mxu0 0.0
    %5560 = vmatpush1.msra.mxu0 %v63
    %5561 = vmatprep.subr.mxu0 0.0
    %5562 = vmatpush1.msra.mxu0 %v64
    %5563 = vmatprep.subr.mxu0 0.0
    %5564 = vmatpush1.msra.mxu0 %v65
    %5565 = vmatprep.subr.mxu0 0.0
    %5566 = vmatpush1.msra.mxu0 %v66
    %5567 = vmatprep.subr.mxu0 0.0
    %5568 = vmatpush1.msra.mxu0 0.0
    %5569 = vmatprep.subr.mxu0 0.0
    %5570 = vmatpush1.msra.mxu0 0.0
    %5571 = vmatprep.subr.mxu0 0.0
    %5572 = vmatpush1.msra.mxu0 0.0
    %5573 = vmatprep.subr.mxu0 0.0
    %5574 = vmatpush1.msra.mxu0 0.0
    %5575 = vmatprep.subr.mxu0 0.0
    %5576 = vmatpush1.msra.mxu0 0.0
    %5577 = vmatprep.subr.mxu0 0.0
    %5578 = vmatpush1.msra.mxu0 0.0
    %5579 = vmatprep.subr.mxu0 0.0
    %5580 = vmatpush1.msra.mxu0 0.0
    %5581 = vmatprep.subr.mxu0 0.0
    %5582 = vmatpush1.msra.mxu0 0.0
    %5583 = vmatprep.subr.mxu0 0.0
    %5584 = vmatpush1.msra.mxu0 0.0
    %5585 = vmatprep.subr.mxu0 0.0
    %5586 = vmatpush1.msra.mxu0 0.0
    %5587 = vmatprep.subr.mxu0 0.0
    %5588 = vmatpush1.msra.mxu0 0.0
    %5589 = vmatprep.subr.mxu0 0.0
    %5590 = vmatpush1.msra.mxu0 0.0
    %5591 = vmatprep.subr.mxu0 0.0
    %5592 = vmatpush1.msra.mxu0 0.0
    %5593 = vmatprep.subr.mxu0 0.0
    %5594 = vmatpush1.msra.mxu0 0.0
    %5595 = vmatprep.subr.mxu0 0.0
    %5596 = vmatpush1.msra.mxu0 0.0
    %5597 = vmatprep.subr.mxu0 0.0
    %5598 = vmatpush1.msra.mxu0 0.0
    %5599 = vmatprep.mubr.f32.mxu0 0.0
    %5600 = vmatmul.mubr.f32.gmra.mrb[0].mxu0 %v5534
    %v5601 = vpop.f32.mrb[0].mxu0
    %v5602 = vadd.f32 %v1835, %v5601
    %v5603 = vpop.f32.mrb[0].mxu0
    %5604 = vdwg.mxu0
    %v5605 = vmax.f32 %v5602, 0.0
    %v5606 = vsel %vm1908, %v5605, 0.0
    %v5607 = vrot.slane %v5606, 4
    %v5608 = vadd.f32 %v5606, %v5607
    %v5609 = vrot.slane %v5608, 2
    %v5610 = vadd.f32 %v5608, %v5609
    %v5611 = vrot.slane %v5610, 1
    %v5612 = vadd.f32 %v5610, %v5611
    %v5613 = vmul.f32 %v5612, 0.5
    %v5614 = vadd.f32 %v3777, %v5613
    %v5615 = vmul.f32 %v5614, 0.019634955
    %v5616 = vsub.f32 1.0, %v5615
    %v5617 = vmul.f32 %v5602, %v1922
    %v5619 = vlaneseq
    %v5620 = vshrl.u32 %v5619, 7
    %v5621 = vsub.s32 0, %v5620
    %v5622 = vrot.slane %v5616, %v5621
    %5623 = vset.pattern.permute.xlu0 0
    %5624 = vperm.xlu0 %5623, %v5622
    %v5625 = vpop.permute.xlu0 %5624
    %v5627 = vrcp.pop %v5625
    %v5628 = vmul.f32 %v5617, %v5627
    %v5629 = vadd.f32 %v5628, %v3803
    %v5630 = vmax.f32 %v5629, 0.0
    %5632 = vrot.lane.b32.xlu0 %v5630, 119
    %v5633 = vpop.permute.xlu0 %5632
    %v5635 = vsel %vm1946, %v5633, 0.0
    %5636 = vadd.xlane.f32.xlu0 %v5635
    %v5637 = vpop.xlane.xlu0 %5636
    %v5638 = vmax.f32 %v5637, 1e-12
    %v5639 = vrcp.pop %v5638
    %v5640 = vmul.f32 %v5630, %v5639
    %v5641 = vsub.f32 %v5640, %v3803
    %v5642 = vmul.f32 %v5641, 16.666666
    %5644 = vrot.lane.b32.xlu0 %v5642, 119
    %v5645 = vpop.permute.xlu0 %5644
    %s5647 = scalar_lea.vmem %s11, 4
    %5648 = vst.msk [vmem:[%s5647] sm:$0x3] %vm1946, %v5645
    %5650 = vrot.lane.b32.xlu0 %v5605, 7
    %v5651 = vpop.permute.xlu0 %5650
    %5653 = vst.msk [vmem:[%s5647] sm:$0x3] %vm1964, %v5651
    %5654 = vrot.lane.b32.xlu0 %v5605, 16
    %v5655 = vpop.permute.xlu0 %5654
    %5657 = vst.msk [vmem:[%s5647] sm:$0x3] %vm1969, %v5655
    %5659 = vrot.lane.b32.xlu0 %v5640, 119
    %v5660 = vpop.permute.xlu0 %5659
    %s5662 = scalar_lea.vmem %s12, 4
    %5663 = vst.msk [vmem:[%s5662] sm:$0x3] %vm1946, %v5660
    %5664 = vst.msk [vmem:[#allocation2] sm:$0x1] %vm1976, %v5660
    %5665 = vst.msk [vmem:[#allocation2 + $0x1] sm:$0x1] %vm1976, %v5645
    %5667 = vrot.lane.b32.xlu0 %v5602, 127
    %v5668 = vpop.permute.xlu0 %5667
    %5670 = vst.msk [vmem:[#allocation2 + $0x2] sm:$0x1] %vm1976, %v5668
    %5671 = vset.pattern.permute.xlu0 0
    %5672 = vperm.xlu0 %5671, %v5605
    %v5673 = vpop.permute.xlu0 %5672
    %5675 = vst.msk [vmem:[#allocation2 + $0x3] sm:$0x1] %vm1976, %v5673
    %v5676 = vld [vmem:[#allocation2 + $0x7] sm:$0x1]
    %v5677 = vadd.f32 %v5676, 0.01
    %5678 = vst.msk [vmem:[#allocation2 + $0x7] sm:$0x1] %vm1976, %v5677
    %5679 = vst.msk [vmem:[%s1018 - $0x1] sm:$0x2] %vm1992, %v5660
    %5680 = vst.msk [vmem:[%s1018] sm:$0x2] %vm1992, %v5645
    %5681 = vst.msk [vmem:[%s1018 + $0x1] sm:$0x2] %vm1992, %v5668
    %5682 = vst.msk [vmem:[%s1018 + $0x2] sm:$0x2] %vm1992, %v5673
    %v5683 = vld [vmem:[%s1018 + $0x7] sm:$0x1]
    %v5684 = vadd.f32 %v5683, 0.01
    %5685 = vst.msk [vmem:[%s1018 + $0x7] sm:$0x1] %vm1976, %v5684
    %vm5686 = vcmp.gt.f32.partialorder %v5640, 1e-06
    %v5687 = vsel %vm5686, 1, 0
    %v5688 = vcvt.s32.f32 %v5687
    %v5689 = vlaneseq
    %v5690 = vshrl.u32 %v5689, 7
    %v5691 = vsub.s32 0, %v5690
    %v5692 = vrot.slane %v5688, %v5691
    %5694 = vrot.lane.b32.xlu0 %v5692, 119
    %v5695 = vpop.permute.xlu0 %5694
    %v5697 = vmul.f32 %v101, %v5695
    %v5699 = vsel %vm104, %v5697, 0
    %5701 = vmatprep.subr.mxu0 0.0
    %5702 = vmatpush1.msra.mxu0 1.0
    %5703 = vmatprep.subr.mxu0 0.0
    %5704 = vmatpush1.msra.mxu0 0.0
    %5705 = vmatprep.subr.mxu0 0.0
    %5706 = vmatpush1.msra.mxu0 0.0
    %5707 = vmatprep.subr.mxu0 0.0
    %5708 = vmatpush1.msra.mxu0 0.0
    %5709 = vmatprep.subr.mxu0 0.0
    %5710 = vmatpush1.msra.mxu0 0.0
    %5711 = vmatprep.subr.mxu0 0.0
    %5712 = vmatpush1.msra.mxu0 0.0
    %5713 = vmatprep.subr.mxu0 0.0
    %5714 = vmatpush1.msra.mxu0 0.0
    %5715 = vmatprep.subr.mxu0 0.0
    %5716 = vmatpush1.msra.mxu0 0.0
    %5717 = vmatprep.subr.mxu0 0.0
    %5718 = vmatpush1.msra.mxu0 0.0
    %5719 = vmatprep.subr.mxu0 0.0
    %5720 = vmatpush1.msra.mxu0 0.0
    %5721 = vmatprep.subr.mxu0 0.0
    %5722 = vmatpush1.msra.mxu0 0.0
    %5723 = vmatprep.subr.mxu0 0.0
    %5724 = vmatpush1.msra.mxu0 0.0
    %5725 = vmatprep.subr.mxu0 0.0
    %5726 = vmatpush1.msra.mxu0 0.0
    %5727 = vmatprep.subr.mxu0 0.0
    %5728 = vmatpush1.msra.mxu0 0.0
    %5729 = vmatprep.subr.mxu0 0.0
    %5730 = vmatpush1.msra.mxu0 0.0
    %5731 = vmatprep.subr.mxu0 0.0
    %5732 = vmatpush1.msra.mxu0 0.0
    %5733 = vmatprep.subr.mxu0 0.0
    %5734 = vmatpush1.msra.mxu0 0.0
    %5735 = vmatprep.subr.mxu0 0.0
    %5736 = vmatpush1.msra.mxu0 0.0
    %5737 = vmatprep.subr.mxu0 0.0
    %5738 = vmatpush1.msra.mxu0 0.0
    %5739 = vmatprep.subr.mxu0 0.0
    %5740 = vmatpush1.msra.mxu0 0.0
    %5741 = vmatprep.subr.mxu0 0.0
    %5742 = vmatpush1.msra.mxu0 0.0
    %5743 = vmatprep.subr.mxu0 0.0
    %5744 = vmatpush1.msra.mxu0 0.0
    %5745 = vmatprep.subr.mxu0 0.0
    %5746 = vmatpush1.msra.mxu0 0.0
    %5747 = vmatprep.subr.mxu0 0.0
    %5748 = vmatpush1.msra.mxu0 0.0
    %5749 = vmatprep.subr.mxu0 0.0
    %5750 = vmatpush1.msra.mxu0 0.0
    %5751 = vmatprep.subr.mxu0 0.0
    %5752 = vmatpush1.msra.mxu0 0.0
    %5753 = vmatprep.subr.mxu0 0.0
    %5754 = vmatpush1.msra.mxu0 0.0
    %5755 = vmatprep.subr.mxu0 0.0
    %5756 = vmatpush1.msra.mxu0 0.0
    %5757 = vmatprep.subr.mxu0 0.0
    %5758 = vmatpush1.msra.mxu0 0.0
    %5759 = vmatprep.subr.mxu0 0.0
    %5760 = vmatpush1.msra.mxu0 0.0
    %5761 = vmatprep.subr.mxu0 0.0
    %5762 = vmatpush1.msra.mxu0 0.0
    %5763 = vmatprep.subr.mxu0 0.0
    %5764 = vmatpush1.msra.mxu0 0.0
    %5765 = vmatprep.mubr.f32.mxu0 0.0
    %5766 = vmatmul.mubr.f32.gmra.mrb[0].mxu0 %v5699
    %v5767 = vpop.f32.mrb[0].mxu0
    %v5768 = vadd.f32 0.0, %v5767
    %v5769 = vpop.f32.mrb[0].mxu0
    %5770 = vdwg.mxu0
    %v5771 = vmul.f32 %v5692, %v2089
    %v5772 = vmul.f32 %v5692, %v2091
    %v5773 = vmul.f32 %v5692, %v2093
    %5777 = vrot.lane.b32.xlu0 %v5771, 119
    %v5778 = vpop.permute.xlu0 %5777
    %5779 = vrot.lane.b32.xlu0 %v5772, 119
    %v5780 = vpop.permute.xlu0 %5779
    %5781 = vrot.lane.b32.xlu0 %v5773, 119
    %v5782 = vpop.permute.xlu0 %5781
    %v5786 = vmul.f32 %v5768, %v5778
    %v5787 = vmul.f32 %v5768, %v5780
    %v5788 = vmul.f32 %v5768, %v5782
    %v5789 = vsub.f32 1.0, %v5768
    %v5790 = vmul.f32 %v5789, %v101
    %v5791 = vadd.f32 %v5786, %v5790
    %v5792 = vadd.f32 %v5787, %v5790
    %v5793 = vadd.f32 %v5788, %v5790
    %v5794 = vsel %vm104, %v5791, 0.0
    %5795 = vadd.xlane.f32.xlu0 %v5794
    %v5796 = vpop.xlane.xlu0 %5795
    %v5797 = vsel %vm104, %v5792, 0.0
    %5798 = vadd.xlane.f32.xlu0 %v5797
    %v5799 = vpop.xlane.xlu0 %5798
    %v5800 = vsel %vm104, %v5793, 0.0
    %5801 = vadd.xlane.f32.xlu0 %v5800
    %v5802 = vpop.xlane.xlu0 %5801
    %v5803 = vrcp.pop %v5796
    %v5804 = vrcp.pop %v5799
    %v5805 = vrcp.pop %v5802
    %v5806 = vmul.f32 %v5791, %v5803
    %v5807 = vmul.f32 %v5792, %v5804
    %v5808 = vmul.f32 %v5793, %v5805
    %v5809 = vlaneseq
    %v5810 = vshrl.u32 %v5809, 7
    %v5811 = vsub.s32 1, %v5810
    %v5812 = vrot.slane %v5688, %v5811
    %5814 = vrot.lane.b32.xlu0 %v5812, 119
    %v5815 = vpop.permute.xlu0 %5814
    %v5817 = vmul.f32 %v101, %v5815
    %v5819 = vsel %vm104, %v5817, 0
    %5821 = vmatprep.subr.mxu0 0.0
    %5822 = vmatpush1.msra.mxu0 1.0
    %5823 = vmatprep.subr.mxu0 0.0
    %5824 = vmatpush1.msra.mxu0 0.0
    %5825 = vmatprep.subr.mxu0 0.0
    %5826 = vmatpush1.msra.mxu0 0.0
    %5827 = vmatprep.subr.mxu0 0.0
    %5828 = vmatpush1.msra.mxu0 0.0
    %5829 = vmatprep.subr.mxu0 0.0
    %5830 = vmatpush1.msra.mxu0 0.0
    %5831 = vmatprep.subr.mxu0 0.0
    %5832 = vmatpush1.msra.mxu0 0.0
    %5833 = vmatprep.subr.mxu0 0.0
    %5834 = vmatpush1.msra.mxu0 0.0
    %5835 = vmatprep.subr.mxu0 0.0
    %5836 = vmatpush1.msra.mxu0 0.0
    %5837 = vmatprep.subr.mxu0 0.0
    %5838 = vmatpush1.msra.mxu0 0.0
    %5839 = vmatprep.subr.mxu0 0.0
    %5840 = vmatpush1.msra.mxu0 0.0
    %5841 = vmatprep.subr.mxu0 0.0
    %5842 = vmatpush1.msra.mxu0 0.0
    %5843 = vmatprep.subr.mxu0 0.0
    %5844 = vmatpush1.msra.mxu0 0.0
    %5845 = vmatprep.subr.mxu0 0.0
    %5846 = vmatpush1.msra.mxu0 0.0
    %5847 = vmatprep.subr.mxu0 0.0
    %5848 = vmatpush1.msra.mxu0 0.0
    %5849 = vmatprep.subr.mxu0 0.0
    %5850 = vmatpush1.msra.mxu0 0.0
    %5851 = vmatprep.subr.mxu0 0.0
    %5852 = vmatpush1.msra.mxu0 0.0
    %5853 = vmatprep.subr.mxu0 0.0
    %5854 = vmatpush1.msra.mxu0 0.0
    %5855 = vmatprep.subr.mxu0 0.0
    %5856 = vmatpush1.msra.mxu0 0.0
    %5857 = vmatprep.subr.mxu0 0.0
    %5858 = vmatpush1.msra.mxu0 0.0
    %5859 = vmatprep.subr.mxu0 0.0
    %5860 = vmatpush1.msra.mxu0 0.0
    %5861 = vmatprep.subr.mxu0 0.0
    %5862 = vmatpush1.msra.mxu0 0.0
    %5863 = vmatprep.subr.mxu0 0.0
    %5864 = vmatpush1.msra.mxu0 0.0
    %5865 = vmatprep.subr.mxu0 0.0
    %5866 = vmatpush1.msra.mxu0 0.0
    %5867 = vmatprep.subr.mxu0 0.0
    %5868 = vmatpush1.msra.mxu0 0.0
    %5869 = vmatprep.subr.mxu0 0.0
    %5870 = vmatpush1.msra.mxu0 0.0
    %5871 = vmatprep.subr.mxu0 0.0
    %5872 = vmatpush1.msra.mxu0 0.0
    %5873 = vmatprep.subr.mxu0 0.0
    %5874 = vmatpush1.msra.mxu0 0.0
    %5875 = vmatprep.subr.mxu0 0.0
    %5876 = vmatpush1.msra.mxu0 0.0
    %5877 = vmatprep.subr.mxu0 0.0
    %5878 = vmatpush1.msra.mxu0 0.0
    %5879 = vmatprep.subr.mxu0 0.0
    %5880 = vmatpush1.msra.mxu0 0.0
    %5881 = vmatprep.subr.mxu0 0.0
    %5882 = vmatpush1.msra.mxu0 0.0
    %5883 = vmatprep.subr.mxu0 0.0
    %5884 = vmatpush1.msra.mxu0 0.0
    %5885 = vmatprep.mubr.f32.mxu0 0.0
    %5886 = vmatmul.mubr.f32.gmra.mrb[0].mxu0 %v5819
    %v5887 = vpop.f32.mrb[0].mxu0
    %v5888 = vadd.f32 0.0, %v5887
    %v5889 = vpop.f32.mrb[0].mxu0
    %5890 = vdwg.mxu0
    %v5891 = vmul.f32 %v5812, %v2089
    %v5892 = vmul.f32 %v5812, %v2091
    %v5893 = vmul.f32 %v5812, %v2093
    %5897 = vrot.lane.b32.xlu0 %v5891, 119
    %v5898 = vpop.permute.xlu0 %5897
    %5899 = vrot.lane.b32.xlu0 %v5892, 119
    %v5900 = vpop.permute.xlu0 %5899
    %5901 = vrot.lane.b32.xlu0 %v5893, 119
    %v5902 = vpop.permute.xlu0 %5901
    %v5906 = vmul.f32 %v5888, %v5898
    %v5907 = vmul.f32 %v5888, %v5900
    %v5908 = vmul.f32 %v5888, %v5902
    %v5909 = vsub.f32 1.0, %v5888
    %v5910 = vmul.f32 %v5909, %v101
    %v5911 = vadd.f32 %v5906, %v5910
    %v5912 = vadd.f32 %v5907, %v5910
    %v5913 = vadd.f32 %v5908, %v5910
    %v5914 = vsel %vm104, %v5911, 0.0
    %5915 = vadd.xlane.f32.xlu0 %v5914
    %v5916 = vpop.xlane.xlu0 %5915
    %v5917 = vsel %vm104, %v5912, 0.0
    %5918 = vadd.xlane.f32.xlu0 %v5917
    %v5919 = vpop.xlane.xlu0 %5918
    %v5920 = vsel %vm104, %v5913, 0.0
    %5921 = vadd.xlane.f32.xlu0 %v5920
    %v5922 = vpop.xlane.xlu0 %5921
    %v5923 = vrcp.pop %v5916
    %v5924 = vrcp.pop %v5919
    %v5925 = vrcp.pop %v5922
    %v5926 = vmul.f32 %v5911, %v5923
    %v5927 = vmul.f32 %v5912, %v5924
    %v5928 = vmul.f32 %v5913, %v5925
    %v5929 = vld [vmem:[#allocation2] sm:$0xff]
    %5930 = vmatprep.subr.mxu0 0.0
    %5931 = vmatpush1.msra.mxu0 %v5929
    %5932 = vmatprep.subr.mxu0 0.0
    %5933 = vmatpush1.msra.mxu0 0.0
    %5934 = vmatprep.subr.mxu0 0.0
    %5935 = vmatpush1.msra.mxu0 0.0
    %5936 = vmatprep.subr.mxu0 0.0
    %5937 = vmatpush1.msra.mxu0 0.0
    %5938 = vmatprep.subr.mxu0 0.0
    %5939 = vmatpush1.msra.mxu0 0.0
    %5940 = vmatprep.subr.mxu0 0.0
    %5941 = vmatpush1.msra.mxu0 0.0
    %5942 = vmatprep.subr.mxu0 0.0
    %5943 = vmatpush1.msra.mxu0 0.0
    %5944 = vmatprep.subr.mxu0 0.0
    %5945 = vmatpush1.msra.mxu0 0.0
    %5946 = vmatprep.subr.mxu0 0.0
    %5947 = vmatpush1.msra.mxu0 0.0
    %5948 = vmatprep.subr.mxu0 0.0
    %5949 = vmatpush1.msra.mxu0 0.0
    %5950 = vmatprep.subr.mxu0 0.0
    %5951 = vmatpush1.msra.mxu0 0.0
    %5952 = vmatprep.subr.mxu0 0.0
    %5953 = vmatpush1.msra.mxu0 0.0
    %5954 = vmatprep.subr.mxu0 0.0
    %5955 = vmatpush1.msra.mxu0 0.0
    %5956 = vmatprep.subr.mxu0 0.0
    %5957 = vmatpush1.msra.mxu0 0.0
    %5958 = vmatprep.subr.mxu0 0.0
    %5959 = vmatpush1.msra.mxu0 0.0
    %5960 = vmatprep.subr.mxu0 0.0
    %5961 = vmatpush1.msra.mxu0 0.0
    %5962 = vmatprep.subr.mxu0 0.0
    %5963 = vmatpush1.msra.mxu0 0.0
    %5964 = vmatprep.subr.mxu0 0.0
    %5965 = vmatpush1.msra.mxu0 0.0
    %5966 = vmatprep.subr.mxu0 0.0
    %5967 = vmatpush1.msra.mxu0 0.0
    %5968 = vmatprep.subr.mxu0 0.0
    %5969 = vmatpush1.msra.mxu0 0.0
    %5970 = vmatprep.subr.mxu0 0.0
    %5971 = vmatpush1.msra.mxu0 0.0
    %5972 = vmatprep.subr.mxu0 0.0
    %5973 = vmatpush1.msra.mxu0 0.0
    %5974 = vmatprep.subr.mxu0 0.0
    %5975 = vmatpush1.msra.mxu0 0.0
    %5976 = vmatprep.subr.mxu0 0.0
    %5977 = vmatpush1.msra.mxu0 0.0
    %5978 = vmatprep.subr.mxu0 0.0
    %5979 = vmatpush1.msra.mxu0 0.0
    %5980 = vmatprep.subr.mxu0 0.0
    %5981 = vmatpush1.msra.mxu0 0.0
    %5982 = vmatprep.subr.mxu0 0.0
    %5983 = vmatpush1.msra.mxu0 0.0
    %5984 = vmatprep.subr.mxu0 0.0
    %5985 = vmatpush1.msra.mxu0 0.0
    %5986 = vmatprep.subr.mxu0 0.0
    %5987 = vmatpush1.msra.mxu0 0.0
    %5988 = vmatprep.subr.mxu0 0.0
    %5989 = vmatpush1.msra.mxu0 0.0
    %5990 = vmatprep.subr.mxu0 0.0
    %5991 = vmatpush1.msra.mxu0 0.0
    %5992 = vmatprep.subr.mxu0 0.0
    %5993 = vmatpush1.msra.mxu0 0.0
    %5994 = vmatprep.mubr.f32.mxu0 0.0
    %5995 = vmatmul.mubr.f32.gmra.mrb[0].mxu0 %v328
    %v5996 = vpop.f32.mrb[0].mxu0
    %v5997 = vadd.f32 0.0, %v5996
    %v5998 = vpop.f32.mrb[0].mxu0
    %5999 = vmatprep.mubr.f32.mxu0 0.0
    %6000 = vmatmul.mubr.f32.gmra.mrb[0].mxu0 %v331
    %v6001 = vpop.f32.mrb[0].mxu0
    %v6002 = vadd.f32 0.0, %v6001
    %v6003 = vpop.f32.mrb[0].mxu0
    %6004 = vmatprep.mubr.f32.mxu0 0.0
    %6005 = vmatmul.mubr.f32.gmra.mrb[0].mxu0 %v334
    %v6006 = vpop.f32.mrb[0].mxu0
    %v6007 = vadd.f32 0.0, %v6006
    %v6008 = vpop.f32.mrb[0].mxu0
    %6009 = vmatprep.mubr.f32.mxu0 0.0
    %6010 = vmatmul.mubr.f32.gmra.mrb[0].mxu0 %v337
    %v6011 = vpop.f32.mrb[0].mxu0
    %v6012 = vadd.f32 0.0, %v6011
    %v6013 = vpop.f32.mrb[0].mxu0
    %6014 = vmatprep.mubr.f32.mxu0 0.0
    %6015 = vmatmul.mubr.f32.gmra.mrb[0].mxu0 %v340
    %v6016 = vpop.f32.mrb[0].mxu0
    %v6017 = vadd.f32 0.0, %v6016
    %v6018 = vpop.f32.mrb[0].mxu0
    %6019 = vmatprep.mubr.f32.mxu0 0.0
    %6020 = vmatmul.mubr.f32.gmra.mrb[0].mxu0 %v343
    %v6021 = vpop.f32.mrb[0].mxu0
    %v6022 = vadd.f32 0.0, %v6021
    %v6023 = vpop.f32.mrb[0].mxu0
    %6024 = vmatprep.mubr.f32.mxu0 0.0
    %6025 = vmatmul.mubr.f32.gmra.mrb[0].mxu0 %v346
    %v6026 = vpop.f32.mrb[0].mxu0
    %v6027 = vadd.f32 0.0, %v6026
    %v6028 = vpop.f32.mrb[0].mxu0
    %6029 = vmatprep.mubr.f32.mxu0 0.0
    %6030 = vmatmul.mubr.f32.gmra.mrb[0].mxu0 %v349
    %v6031 = vpop.f32.mrb[0].mxu0
    %v6032 = vadd.f32 0.0, %v6031
    %v6033 = vpop.f32.mrb[0].mxu0
    %6034 = vmatprep.mubr.f32.mxu0 0.0
    %6035 = vmatmul.mubr.f32.gmra.mrb[0].mxu0 %v352
    %v6036 = vpop.f32.mrb[0].mxu0
    %v6037 = vadd.f32 0.0, %v6036
    %v6038 = vpop.f32.mrb[0].mxu0
    %6039 = vmatprep.mubr.f32.mxu0 0.0
    %6040 = vmatmul.mubr.f32.gmra.mrb[0].mxu0 %v355
    %v6041 = vpop.f32.mrb[0].mxu0
    %v6042 = vadd.f32 0.0, %v6041
    %v6043 = vpop.f32.mrb[0].mxu0
    %6044 = vmatprep.mubr.f32.mxu0 0.0
    %6045 = vmatmul.mubr.f32.gmra.mrb[0].mxu0 %v358
    %v6046 = vpop.f32.mrb[0].mxu0
    %v6047 = vadd.f32 0.0, %v6046
    %v6048 = vpop.f32.mrb[0].mxu0
    %6049 = vmatprep.mubr.f32.mxu0 0.0
    %6050 = vmatmul.mubr.f32.gmra.mrb[0].mxu0 %v361
    %v6051 = vpop.f32.mrb[0].mxu0
    %v6052 = vadd.f32 0.0, %v6051
    %v6053 = vpop.f32.mrb[0].mxu0
    %6054 = vmatprep.mubr.f32.mxu0 0.0
    %6055 = vmatmul.mubr.f32.gmra.mrb[0].mxu0 %v364
    %v6056 = vpop.f32.mrb[0].mxu0
    %v6057 = vadd.f32 0.0, %v6056
    %v6058 = vpop.f32.mrb[0].mxu0
    %6059 = vmatprep.mubr.f32.mxu0 0.0
    %6060 = vmatmul.mubr.f32.gmra.mrb[0].mxu0 %v367
    %v6061 = vpop.f32.mrb[0].mxu0
    %v6062 = vadd.f32 0.0, %v6061
    %v6063 = vpop.f32.mrb[0].mxu0
    %6064 = vmatprep.mubr.f32.mxu0 0.0
    %6065 = vmatmul.mubr.f32.gmra.mrb[0].mxu0 %v370
    %v6066 = vpop.f32.mrb[0].mxu0
    %v6067 = vadd.f32 0.0, %v6066
    %v6068 = vpop.f32.mrb[0].mxu0
    %6069 = vmatprep.mubr.f32.mxu0 0.0
    %6070 = vmatmul.mubr.f32.gmra.mrb[0].mxu0 %v373
    %v6071 = vpop.f32.mrb[0].mxu0
    %v6072 = vadd.f32 0.0, %v6071
    %v6073 = vpop.f32.mrb[0].mxu0
    %6074 = vmatprep.mubr.f32.mxu0 0.0
    %6075 = vmatmul.mubr.f32.gmra.mrb[0].mxu0 %v376
    %v6076 = vpop.f32.mrb[0].mxu0
    %v6077 = vadd.f32 0.0, %v6076
    %v6078 = vpop.f32.mrb[0].mxu0
    %6079 = vmatprep.mubr.f32.mxu0 0.0
    %6080 = vmatmul.mubr.f32.gmra.mrb[0].mxu0 %v379
    %v6081 = vpop.f32.mrb[0].mxu0
    %v6082 = vadd.f32 0.0, %v6081
    %v6083 = vpop.f32.mrb[0].mxu0
    %6084 = vdwg.mxu0
    %v6086 = vsel %vm104, %v5997, 0
    %v6089 = vsel %vm104, %v6002, 0
    %v6092 = vsel %vm104, %v6007, 0
    %v6095 = vsel %vm104, %v6012, 0
    %v6098 = vsel %vm104, %v6017, 0
    %v6101 = vsel %vm104, %v6022, 0
    %v6104 = vsel %vm104, %v5806, 0
    %6106 = vmatprep.subr.mxu0 0.0
    %6107 = vmatpush1.xpose.msra.mxu0 %v6104
    %6108 = vmatprep.subr.mxu0 0.0
    %6109 = vmatpush1.xpose.msra.mxu0 0.0
    %6110 = vmatprep.subr.mxu0 0.0
    %6111 = vmatpush1.xpose.msra.mxu0 0.0
    %6112 = vmatprep.subr.mxu0 0.0
    %6113 = vmatpush1.xpose.msra.mxu0 0.0
    %6114 = vmatprep.subr.mxu0 0.0
    %6115 = vmatpush1.xpose.msra.mxu0 0.0
    %6116 = vmatprep.subr.mxu0 0.0
    %6117 = vmatpush1.xpose.msra.mxu0 0.0
    %6118 = vmatprep.subr.mxu0 0.0
    %6119 = vmatpush1.xpose.msra.mxu0 0.0
    %6120 = vmatprep.subr.mxu0 0.0
    %6121 = vmatpush1.xpose.msra.mxu0 0.0
    %6122 = vmatprep.subr.mxu0 0.0
    %6123 = vmatpush1.xpose.msra.mxu0 0.0
    %6124 = vmatprep.subr.mxu0 0.0
    %6125 = vmatpush1.xpose.msra.mxu0 0.0
    %6126 = vmatprep.subr.mxu0 0.0
    %6127 = vmatpush1.xpose.msra.mxu0 0.0
    %6128 = vmatprep.subr.mxu0 0.0
    %6129 = vmatpush1.xpose.msra.mxu0 0.0
    %6130 = vmatprep.subr.mxu0 0.0
    %6131 = vmatpush1.xpose.msra.mxu0 0.0
    %6132 = vmatprep.subr.mxu0 0.0
    %6133 = vmatpush1.xpose.msra.mxu0 0.0
    %6134 = vmatprep.subr.mxu0 0.0
    %6135 = vmatpush1.xpose.msra.mxu0 0.0
    %6136 = vmatprep.subr.mxu0 0.0
    %6137 = vmatpush1.xpose.msra.mxu0 0.0
    %6138 = vmatprep.subr.mxu0 0.0
    %6139 = vmatpush1.xpose.msra.mxu0 0.0
    %6140 = vmatprep.subr.mxu0 0.0
    %6141 = vmatpush1.xpose.msra.mxu0 0.0
    %6142 = vmatprep.subr.mxu0 0.0
    %6143 = vmatpush1.xpose.msra.mxu0 0.0
    %6144 = vmatprep.subr.mxu0 0.0
    %6145 = vmatpush1.xpose.msra.mxu0 0.0
    %6146 = vmatprep.subr.mxu0 0.0
    %6147 = vmatpush1.xpose.msra.mxu0 0.0
    %6148 = vmatprep.subr.mxu0 0.0
    %6149 = vmatpush1.xpose.msra.mxu0 0.0
    %6150 = vmatprep.subr.mxu0 0.0
    %6151 = vmatpush1.xpose.msra.mxu0 0.0
    %6152 = vmatprep.subr.mxu0 0.0
    %6153 = vmatpush1.xpose.msra.mxu0 0.0
    %6154 = vmatprep.subr.mxu0 0.0
    %6155 = vmatpush1.xpose.msra.mxu0 0.0
    %6156 = vmatprep.subr.mxu0 0.0
    %6157 = vmatpush1.xpose.msra.mxu0 0.0
    %6158 = vmatprep.subr.mxu0 0.0
    %6159 = vmatpush1.xpose.msra.mxu0 0.0
    %6160 = vmatprep.subr.mxu0 0.0
    %6161 = vmatpush1.xpose.msra.mxu0 0.0
    %6162 = vmatprep.subr.mxu0 0.0
    %6163 = vmatpush1.xpose.msra.mxu0 0.0
    %6164 = vmatprep.subr.mxu0 0.0
    %6165 = vmatpush1.xpose.msra.mxu0 0.0
    %6166 = vmatprep.subr.mxu0 0.0
    %6167 = vmatpush1.xpose.msra.mxu0 0.0
    %6168 = vmatprep.subr.mxu0 0.0
    %6169 = vmatpush1.xpose.msra.mxu0 0.0
    %6170 = vmatprep.mubr.f32.mxu0 0.0
    %6171 = vmatmul.mubr.f32.gmra.mrb[0].mxu0 %v6086
    %v6172 = vpop.f32.mrb[0].mxu0
    %v6173 = vadd.f32 0.0, %v6172
    %v6174 = vpop.f32.mrb[0].mxu0
    %6175 = vmatprep.mubr.f32.mxu0 0.0
    %6176 = vmatmul.mubr.f32.gmra.mrb[0].mxu0 %v6089
    %v6177 = vpop.f32.mrb[0].mxu0
    %v6178 = vadd.f32 0.0, %v6177
    %v6179 = vpop.f32.mrb[0].mxu0
    %6180 = vmatprep.mubr.f32.mxu0 0.0
    %6181 = vmatmul.mubr.f32.gmra.mrb[0].mxu0 %v6092
    %v6182 = vpop.f32.mrb[0].mxu0
    %v6183 = vadd.f32 0.0, %v6182
    %v6184 = vpop.f32.mrb[0].mxu0
    %6185 = vmatprep.mubr.f32.mxu0 0.0
    %6186 = vmatmul.mubr.f32.gmra.mrb[0].mxu0 %v6095
    %v6187 = vpop.f32.mrb[0].mxu0
    %v6188 = vadd.f32 0.0, %v6187
    %v6189 = vpop.f32.mrb[0].mxu0
    %6190 = vmatprep.mubr.f32.mxu0 0.0
    %6191 = vmatmul.mubr.f32.gmra.mrb[0].mxu0 %v6098
    %v6192 = vpop.f32.mrb[0].mxu0
    %v6193 = vadd.f32 0.0, %v6192
    %v6194 = vpop.f32.mrb[0].mxu0
    %6195 = vmatprep.mubr.f32.mxu0 0.0
    %6196 = vmatmul.mubr.f32.gmra.mrb[0].mxu0 %v6101
    %v6197 = vpop.f32.mrb[0].mxu0
    %v6198 = vadd.f32 0.0, %v6197
    %v6199 = vpop.f32.mrb[0].mxu0
    %6200 = vdwg.mxu0
    %v6201 = vadd.f32 %v87, %v6173
    %v6202 = vadd.f32 %v88, %v6178
    %v6203 = vadd.f32 %v89, %v6183
    %v6204 = vadd.f32 %v90, %v6188
    %v6205 = vadd.f32 %v91, %v6193
    %v6206 = vadd.f32 %v92, %v6198
    %v6208 = vsel %vm104, %v6027, 0
    %v6211 = vsel %vm104, %v6032, 0
    %v6214 = vsel %vm104, %v6037, 0
    %v6217 = vsel %vm104, %v6042, 0
    %v6220 = vsel %vm104, %v6047, 0
    %v6223 = vsel %vm104, %v6052, 0
    %v6226 = vsel %vm104, %v5807, 0
    %6228 = vmatprep.subr.mxu0 0.0
    %6229 = vmatpush1.xpose.msra.mxu0 %v6226
    %6230 = vmatprep.subr.mxu0 0.0
    %6231 = vmatpush1.xpose.msra.mxu0 0.0
    %6232 = vmatprep.subr.mxu0 0.0
    %6233 = vmatpush1.xpose.msra.mxu0 0.0
    %6234 = vmatprep.subr.mxu0 0.0
    %6235 = vmatpush1.xpose.msra.mxu0 0.0
    %6236 = vmatprep.subr.mxu0 0.0
    %6237 = vmatpush1.xpose.msra.mxu0 0.0
    %6238 = vmatprep.subr.mxu0 0.0
    %6239 = vmatpush1.xpose.msra.mxu0 0.0
    %6240 = vmatprep.subr.mxu0 0.0
    %6241 = vmatpush1.xpose.msra.mxu0 0.0
    %6242 = vmatprep.subr.mxu0 0.0
    %6243 = vmatpush1.xpose.msra.mxu0 0.0
    %6244 = vmatprep.subr.mxu0 0.0
    %6245 = vmatpush1.xpose.msra.mxu0 0.0
    %6246 = vmatprep.subr.mxu0 0.0
    %6247 = vmatpush1.xpose.msra.mxu0 0.0
    %6248 = vmatprep.subr.mxu0 0.0
    %6249 = vmatpush1.xpose.msra.mxu0 0.0
    %6250 = vmatprep.subr.mxu0 0.0
    %6251 = vmatpush1.xpose.msra.mxu0 0.0
    %6252 = vmatprep.subr.mxu0 0.0
    %6253 = vmatpush1.xpose.msra.mxu0 0.0
    %6254 = vmatprep.subr.mxu0 0.0
    %6255 = vmatpush1.xpose.msra.mxu0 0.0
    %6256 = vmatprep.subr.mxu0 0.0
    %6257 = vmatpush1.xpose.msra.mxu0 0.0
    %6258 = vmatprep.subr.mxu0 0.0
    %6259 = vmatpush1.xpose.msra.mxu0 0.0
    %6260 = vmatprep.subr.mxu0 0.0
    %6261 = vmatpush1.xpose.msra.mxu0 0.0
    %6262 = vmatprep.subr.mxu0 0.0
    %6263 = vmatpush1.xpose.msra.mxu0 0.0
    %6264 = vmatprep.subr.mxu0 0.0
    %6265 = vmatpush1.xpose.msra.mxu0 0.0
    %6266 = vmatprep.subr.mxu0 0.0
    %6267 = vmatpush1.xpose.msra.mxu0 0.0
    %6268 = vmatprep.subr.mxu0 0.0
    %6269 = vmatpush1.xpose.msra.mxu0 0.0
    %6270 = vmatprep.subr.mxu0 0.0
    %6271 = vmatpush1.xpose.msra.mxu0 0.0
    %6272 = vmatprep.subr.mxu0 0.0
    %6273 = vmatpush1.xpose.msra.mxu0 0.0
    %6274 = vmatprep.subr.mxu0 0.0
    %6275 = vmatpush1.xpose.msra.mxu0 0.0
    %6276 = vmatprep.subr.mxu0 0.0
    %6277 = vmatpush1.xpose.msra.mxu0 0.0
    %6278 = vmatprep.subr.mxu0 0.0
    %6279 = vmatpush1.xpose.msra.mxu0 0.0
    %6280 = vmatprep.subr.mxu0 0.0
    %6281 = vmatpush1.xpose.msra.mxu0 0.0
    %6282 = vmatprep.subr.mxu0 0.0
    %6283 = vmatpush1.xpose.msra.mxu0 0.0
    %6284 = vmatprep.subr.mxu0 0.0
    %6285 = vmatpush1.xpose.msra.mxu0 0.0
    %6286 = vmatprep.subr.mxu0 0.0
    %6287 = vmatpush1.xpose.msra.mxu0 0.0
    %6288 = vmatprep.subr.mxu0 0.0
    %6289 = vmatpush1.xpose.msra.mxu0 0.0
    %6290 = vmatprep.subr.mxu0 0.0
    %6291 = vmatpush1.xpose.msra.mxu0 0.0
    %6292 = vmatprep.mubr.f32.mxu0 0.0
    %6293 = vmatmul.mubr.f32.gmra.mrb[0].mxu0 %v6208
    %v6294 = vpop.f32.mrb[0].mxu0
    %v6295 = vadd.f32 0.0, %v6294
    %v6296 = vpop.f32.mrb[0].mxu0
    %6297 = vmatprep.mubr.f32.mxu0 0.0
    %6298 = vmatmul.mubr.f32.gmra.mrb[0].mxu0 %v6211
    %v6299 = vpop.f32.mrb[0].mxu0
    %v6300 = vadd.f32 0.0, %v6299
    %v6301 = vpop.f32.mrb[0].mxu0
    %6302 = vmatprep.mubr.f32.mxu0 0.0
    %6303 = vmatmul.mubr.f32.gmra.mrb[0].mxu0 %v6214
    %v6304 = vpop.f32.mrb[0].mxu0
    %v6305 = vadd.f32 0.0, %v6304
    %v6306 = vpop.f32.mrb[0].mxu0
    %6307 = vmatprep.mubr.f32.mxu0 0.0
    %6308 = vmatmul.mubr.f32.gmra.mrb[0].mxu0 %v6217
    %v6309 = vpop.f32.mrb[0].mxu0
    %v6310 = vadd.f32 0.0, %v6309
    %v6311 = vpop.f32.mrb[0].mxu0
    %6312 = vmatprep.mubr.f32.mxu0 0.0
    %6313 = vmatmul.mubr.f32.gmra.mrb[0].mxu0 %v6220
    %v6314 = vpop.f32.mrb[0].mxu0
    %v6315 = vadd.f32 0.0, %v6314
    %v6316 = vpop.f32.mrb[0].mxu0
    %6317 = vmatprep.mubr.f32.mxu0 0.0
    %6318 = vmatmul.mubr.f32.gmra.mrb[0].mxu0 %v6223
    %v6319 = vpop.f32.mrb[0].mxu0
    %v6320 = vadd.f32 0.0, %v6319
    %v6321 = vpop.f32.mrb[0].mxu0
    %6322 = vdwg.mxu0
    %v6323 = vadd.f32 %v6201, %v6295
    %v6324 = vadd.f32 %v6202, %v6300
    %v6325 = vadd.f32 %v6203, %v6305
    %v6326 = vadd.f32 %v6204, %v6310
    %v6327 = vadd.f32 %v6205, %v6315
    %v6328 = vadd.f32 %v6206, %v6320
    %v6330 = vsel %vm104, %v6057, 0
    %v6333 = vsel %vm104, %v6062, 0
    %v6336 = vsel %vm104, %v6067, 0
    %v6339 = vsel %vm104, %v6072, 0
    %v6342 = vsel %vm104, %v6077, 0
    %v6345 = vsel %vm104, %v6082, 0
    %v6348 = vsel %vm104, %v5808, 0
    %6350 = vmatprep.subr.mxu0 0.0
    %6351 = vmatpush1.xpose.msra.mxu0 %v6348
    %6352 = vmatprep.subr.mxu0 0.0
    %6353 = vmatpush1.xpose.msra.mxu0 0.0
    %6354 = vmatprep.subr.mxu0 0.0
    %6355 = vmatpush1.xpose.msra.mxu0 0.0
    %6356 = vmatprep.subr.mxu0 0.0
    %6357 = vmatpush1.xpose.msra.mxu0 0.0
    %6358 = vmatprep.subr.mxu0 0.0
    %6359 = vmatpush1.xpose.msra.mxu0 0.0
    %6360 = vmatprep.subr.mxu0 0.0
    %6361 = vmatpush1.xpose.msra.mxu0 0.0
    %6362 = vmatprep.subr.mxu0 0.0
    %6363 = vmatpush1.xpose.msra.mxu0 0.0
    %6364 = vmatprep.subr.mxu0 0.0
    %6365 = vmatpush1.xpose.msra.mxu0 0.0
    %6366 = vmatprep.subr.mxu0 0.0
    %6367 = vmatpush1.xpose.msra.mxu0 0.0
    %6368 = vmatprep.subr.mxu0 0.0
    %6369 = vmatpush1.xpose.msra.mxu0 0.0
    %6370 = vmatprep.subr.mxu0 0.0
    %6371 = vmatpush1.xpose.msra.mxu0 0.0
    %6372 = vmatprep.subr.mxu0 0.0
    %6373 = vmatpush1.xpose.msra.mxu0 0.0
    %6374 = vmatprep.subr.mxu0 0.0
    %6375 = vmatpush1.xpose.msra.mxu0 0.0
    %6376 = vmatprep.subr.mxu0 0.0
    %6377 = vmatpush1.xpose.msra.mxu0 0.0
    %6378 = vmatprep.subr.mxu0 0.0
    %6379 = vmatpush1.xpose.msra.mxu0 0.0
    %6380 = vmatprep.subr.mxu0 0.0
    %6381 = vmatpush1.xpose.msra.mxu0 0.0
    %6382 = vmatprep.subr.mxu0 0.0
    %6383 = vmatpush1.xpose.msra.mxu0 0.0
    %6384 = vmatprep.subr.mxu0 0.0
    %6385 = vmatpush1.xpose.msra.mxu0 0.0
    %6386 = vmatprep.subr.mxu0 0.0
    %6387 = vmatpush1.xpose.msra.mxu0 0.0
    %6388 = vmatprep.subr.mxu0 0.0
    %6389 = vmatpush1.xpose.msra.mxu0 0.0
    %6390 = vmatprep.subr.mxu0 0.0
    %6391 = vmatpush1.xpose.msra.mxu0 0.0
    %6392 = vmatprep.subr.mxu0 0.0
    %6393 = vmatpush1.xpose.msra.mxu0 0.0
    %6394 = vmatprep.subr.mxu0 0.0
    %6395 = vmatpush1.xpose.msra.mxu0 0.0
    %6396 = vmatprep.subr.mxu0 0.0
    %6397 = vmatpush1.xpose.msra.mxu0 0.0
    %6398 = vmatprep.subr.mxu0 0.0
    %6399 = vmatpush1.xpose.msra.mxu0 0.0
    %6400 = vmatprep.subr.mxu0 0.0
    %6401 = vmatpush1.xpose.msra.mxu0 0.0
    %6402 = vmatprep.subr.mxu0 0.0
    %6403 = vmatpush1.xpose.msra.mxu0 0.0
    %6404 = vmatprep.subr.mxu0 0.0
    %6405 = vmatpush1.xpose.msra.mxu0 0.0
    %6406 = vmatprep.subr.mxu0 0.0
    %6407 = vmatpush1.xpose.msra.mxu0 0.0
    %6408 = vmatprep.subr.mxu0 0.0
    %6409 = vmatpush1.xpose.msra.mxu0 0.0
    %6410 = vmatprep.subr.mxu0 0.0
    %6411 = vmatpush1.xpose.msra.mxu0 0.0
    %6412 = vmatprep.subr.mxu0 0.0
    %6413 = vmatpush1.xpose.msra.mxu0 0.0
    %6414 = vmatprep.mubr.f32.mxu0 0.0
    %6415 = vmatmul.mubr.f32.gmra.mrb[0].mxu0 %v6330
    %v6416 = vpop.f32.mrb[0].mxu0
    %v6417 = vadd.f32 0.0, %v6416
    %v6418 = vpop.f32.mrb[0].mxu0
    %6419 = vmatprep.mubr.f32.mxu0 0.0
    %6420 = vmatmul.mubr.f32.gmra.mrb[0].mxu0 %v6333
    %v6421 = vpop.f32.mrb[0].mxu0
    %v6422 = vadd.f32 0.0, %v6421
    %v6423 = vpop.f32.mrb[0].mxu0
    %6424 = vmatprep.mubr.f32.mxu0 0.0
    %6425 = vmatmul.mubr.f32.gmra.mrb[0].mxu0 %v6336
    %v6426 = vpop.f32.mrb[0].mxu0
    %v6427 = vadd.f32 0.0, %v6426
    %v6428 = vpop.f32.mrb[0].mxu0
    %6429 = vmatprep.mubr.f32.mxu0 0.0
    %6430 = vmatmul.mubr.f32.gmra.mrb[0].mxu0 %v6339
    %v6431 = vpop.f32.mrb[0].mxu0
    %v6432 = vadd.f32 0.0, %v6431
    %v6433 = vpop.f32.mrb[0].mxu0
    %6434 = vmatprep.mubr.f32.mxu0 0.0
    %6435 = vmatmul.mubr.f32.gmra.mrb[0].mxu0 %v6342
    %v6436 = vpop.f32.mrb[0].mxu0
    %v6437 = vadd.f32 0.0, %v6436
    %v6438 = vpop.f32.mrb[0].mxu0
    %6439 = vmatprep.mubr.f32.mxu0 0.0
    %6440 = vmatmul.mubr.f32.gmra.mrb[0].mxu0 %v6345
    %v6441 = vpop.f32.mrb[0].mxu0
    %v6442 = vadd.f32 0.0, %v6441
    %v6443 = vpop.f32.mrb[0].mxu0
    %6444 = vdwg.mxu0
    %v6445 = vadd.f32 %v6323, %v6417
    %v6446 = vadd.f32 %v6324, %v6422
    %v6447 = vadd.f32 %v6325, %v6427
    %v6448 = vadd.f32 %v6326, %v6432
    %v6449 = vadd.f32 %v6327, %v6437
    %v6450 = vadd.f32 %v6328, %v6442
    %v6451 = vxor.u32 %v6445, 2147483648
    %v6452 = vxor.u32 %v6446, 2147483648
    %v6453 = vmul.f32 %v6451, 1.442695
    %v6454 = vpow.pop %v6453
    %v6455 = vmul.f32 %v6452, 1.442695
    %v6456 = vpow.pop %v6455
    %v6457 = vadd.f32 %v6454, 1.0
    %v6458 = vadd.f32 %v6456, 1.0
    %v6459 = vrcp.pop %v6457
    %v6460 = vmul.f32 1.0, %v6459
    %v6461 = vrcp.pop %v6458
    %v6462 = vmul.f32 1.0, %v6461
    %v6463 = vtanh.pop %v6449
    %v6464 = vtanh.pop %v6450
    %v6465 = vmul.f32 %v6460, %v6463
    %v6466 = vmul.f32 %v6462, %v6464
    %6467 = vmatprep.subr.mxu0 0.0
    %6468 = vmatpush1.msra.mxu0 %v6465
    %6469 = vmatprep.subr.mxu0 0.0
    %6470 = vmatpush1.msra.mxu0 %v6466
    %6471 = vmatprep.subr.mxu0 0.0
    %6472 = vmatpush1.msra.mxu0 0.0
    %6473 = vmatprep.subr.mxu0 0.0
    %6474 = vmatpush1.msra.mxu0 0.0
    %6475 = vmatprep.subr.mxu0 0.0
    %6476 = vmatpush1.msra.mxu0 0.0
    %6477 = vmatprep.subr.mxu0 0.0
    %6478 = vmatpush1.msra.mxu0 0.0
    %6479 = vmatprep.subr.mxu0 0.0
    %6480 = vmatpush1.msra.mxu0 0.0
    %6481 = vmatprep.subr.mxu0 0.0
    %6482 = vmatpush1.msra.mxu0 0.0
    %6483 = vmatprep.subr.mxu0 0.0
    %6484 = vmatpush1.msra.mxu0 0.0
    %6485 = vmatprep.subr.mxu0 0.0
    %6486 = vmatpush1.msra.mxu0 0.0
    %6487 = vmatprep.subr.mxu0 0.0
    %6488 = vmatpush1.msra.mxu0 0.0
    %6489 = vmatprep.subr.mxu0 0.0
    %6490 = vmatpush1.msra.mxu0 0.0
    %6491 = vmatprep.subr.mxu0 0.0
    %6492 = vmatpush1.msra.mxu0 0.0
    %6493 = vmatprep.subr.mxu0 0.0
    %6494 = vmatpush1.msra.mxu0 0.0
    %6495 = vmatprep.subr.mxu0 0.0
    %6496 = vmatpush1.msra.mxu0 0.0
    %6497 = vmatprep.subr.mxu0 0.0
    %6498 = vmatpush1.msra.mxu0 0.0
    %6499 = vmatprep.subr.mxu0 0.0
    %6500 = vmatpush1.msra.mxu0 0.0
    %6501 = vmatprep.subr.mxu0 0.0
    %6502 = vmatpush1.msra.mxu0 0.0
    %6503 = vmatprep.subr.mxu0 0.0
    %6504 = vmatpush1.msra.mxu0 0.0
    %6505 = vmatprep.subr.mxu0 0.0
    %6506 = vmatpush1.msra.mxu0 0.0
    %6507 = vmatprep.subr.mxu0 0.0
    %6508 = vmatpush1.msra.mxu0 0.0
    %6509 = vmatprep.subr.mxu0 0.0
    %6510 = vmatpush1.msra.mxu0 0.0
    %6511 = vmatprep.subr.mxu0 0.0
    %6512 = vmatpush1.msra.mxu0 0.0
    %6513 = vmatprep.subr.mxu0 0.0
    %6514 = vmatpush1.msra.mxu0 0.0
    %6515 = vmatprep.subr.mxu0 0.0
    %6516 = vmatpush1.msra.mxu0 0.0
    %6517 = vmatprep.subr.mxu0 0.0
    %6518 = vmatpush1.msra.mxu0 0.0
    %6519 = vmatprep.subr.mxu0 0.0
    %6520 = vmatpush1.msra.mxu0 0.0
    %6521 = vmatprep.subr.mxu0 0.0
    %6522 = vmatpush1.msra.mxu0 0.0
    %6523 = vmatprep.subr.mxu0 0.0
    %6524 = vmatpush1.msra.mxu0 0.0
    %6525 = vmatprep.subr.mxu0 0.0
    %6526 = vmatpush1.msra.mxu0 0.0
    %6527 = vmatprep.subr.mxu0 0.0
    %6528 = vmatpush1.msra.mxu0 0.0
    %6529 = vmatprep.subr.mxu0 0.0
    %6530 = vmatpush1.msra.mxu0 0.0
    %6531 = vmatprep.mubr.f32.mxu0 0.0
    %6532 = vmatmul.mubr.f32.gmra.mrb[0].mxu0 %v920
    %v6533 = vpop.f32.mrb[0].mxu0
    %v6534 = vadd.f32 0.0, %v6533
    %v6535 = vpop.f32.mrb[0].mxu0
    %6536 = vmatprep.mubr.f32.mxu0 0.0
    %6537 = vmatmul.mubr.f32.gmra.mrb[0].mxu0 %v923
    %v6538 = vpop.f32.mrb[0].mxu0
    %v6539 = vadd.f32 0.0, %v6538
    %v6540 = vpop.f32.mrb[0].mxu0
    %6541 = vdwg.mxu0
    %v6542 = vadd.f32 %v6447, %v6534
    %v6543 = vadd.f32 %v6448, %v6539
    %v6544 = vxor.u32 %v6542, 2147483648
    %v6545 = vxor.u32 %v6543, 2147483648
    %v6546 = vmul.f32 %v6544, 1.442695
    %v6547 = vpow.pop %v6546
    %v6548 = vmul.f32 %v6545, 1.442695
    %v6549 = vpow.pop %v6548
    %v6550 = vadd.f32 %v6547, 1.0
    %v6551 = vadd.f32 %v6549, 1.0
    %v6552 = vrcp.pop %v6550
    %v6553 = vmul.f32 1.0, %v6552
    %v6554 = vrcp.pop %v6551
    %v6555 = vmul.f32 1.0, %v6554
    %v6556 = vtanh.pop %v6465
    %v6557 = vtanh.pop %v6466
    %v6558 = vmul.f32 %v6553, %v6556
    %v6559 = vmul.f32 %v6555, %v6557
    %v6560 = vld [vmem:[%s1018] sm:$0xff]
    %6561 = vmatprep.subr.mxu0 0.0
    %6562 = vmatpush1.msra.mxu0 %v6560
    %6563 = vmatprep.subr.mxu0 0.0
    %6564 = vmatpush1.msra.mxu0 0.0
    %6565 = vmatprep.subr.mxu0 0.0
    %6566 = vmatpush1.msra.mxu0 0.0
    %6567 = vmatprep.subr.mxu0 0.0
    %6568 = vmatpush1.msra.mxu0 0.0
    %6569 = vmatprep.subr.mxu0 0.0
    %6570 = vmatpush1.msra.mxu0 0.0
    %6571 = vmatprep.subr.mxu0 0.0
    %6572 = vmatpush1.msra.mxu0 0.0
    %6573 = vmatprep.subr.mxu0 0.0
    %6574 = vmatpush1.msra.mxu0 0.0
    %6575 = vmatprep.subr.mxu0 0.0
    %6576 = vmatpush1.msra.mxu0 0.0
    %6577 = vmatprep.subr.mxu0 0.0
    %6578 = vmatpush1.msra.mxu0 0.0
    %6579 = vmatprep.subr.mxu0 0.0
    %6580 = vmatpush1.msra.mxu0 0.0
    %6581 = vmatprep.subr.mxu0 0.0
    %6582 = vmatpush1.msra.mxu0 0.0
    %6583 = vmatprep.subr.mxu0 0.0
    %6584 = vmatpush1.msra.mxu0 0.0
    %6585 = vmatprep.subr.mxu0 0.0
    %6586 = vmatpush1.msra.mxu0 0.0
    %6587 = vmatprep.subr.mxu0 0.0
    %6588 = vmatpush1.msra.mxu0 0.0
    %6589 = vmatprep.subr.mxu0 0.0
    %6590 = vmatpush1.msra.mxu0 0.0
    %6591 = vmatprep.subr.mxu0 0.0
    %6592 = vmatpush1.msra.mxu0 0.0
    %6593 = vmatprep.subr.mxu0 0.0
    %6594 = vmatpush1.msra.mxu0 0.0
    %6595 = vmatprep.subr.mxu0 0.0
    %6596 = vmatpush1.msra.mxu0 0.0
    %6597 = vmatprep.subr.mxu0 0.0
    %6598 = vmatpush1.msra.mxu0 0.0
    %6599 = vmatprep.subr.mxu0 0.0
    %6600 = vmatpush1.msra.mxu0 0.0
    %6601 = vmatprep.subr.mxu0 0.0
    %6602 = vmatpush1.msra.mxu0 0.0
    %6603 = vmatprep.subr.mxu0 0.0
    %6604 = vmatpush1.msra.mxu0 0.0
    %6605 = vmatprep.subr.mxu0 0.0
    %6606 = vmatpush1.msra.mxu0 0.0
    %6607 = vmatprep.subr.mxu0 0.0
    %6608 = vmatpush1.msra.mxu0 0.0
    %6609 = vmatprep.subr.mxu0 0.0
    %6610 = vmatpush1.msra.mxu0 0.0
    %6611 = vmatprep.subr.mxu0 0.0
    %6612 = vmatpush1.msra.mxu0 0.0
    %6613 = vmatprep.subr.mxu0 0.0
    %6614 = vmatpush1.msra.mxu0 0.0
    %6615 = vmatprep.subr.mxu0 0.0
    %6616 = vmatpush1.msra.mxu0 0.0
    %6617 = vmatprep.subr.mxu0 0.0
    %6618 = vmatpush1.msra.mxu0 0.0
    %6619 = vmatprep.subr.mxu0 0.0
    %6620 = vmatpush1.msra.mxu0 0.0
    %6621 = vmatprep.subr.mxu0 0.0
    %6622 = vmatpush1.msra.mxu0 0.0
    %6623 = vmatprep.subr.mxu0 0.0
    %6624 = vmatpush1.msra.mxu0 0.0
    %6625 = vmatprep.mubr.f32.mxu0 0.0
    %6626 = vmatmul.mubr.f32.gmra.mrb[0].mxu0 %v328
    %v6627 = vpop.f32.mrb[0].mxu0
    %v6628 = vadd.f32 0.0, %v6627
    %v6629 = vpop.f32.mrb[0].mxu0
    %6630 = vmatprep.mubr.f32.mxu0 0.0
    %6631 = vmatmul.mubr.f32.gmra.mrb[0].mxu0 %v331
    %v6632 = vpop.f32.mrb[0].mxu0
    %v6633 = vadd.f32 0.0, %v6632
    %v6634 = vpop.f32.mrb[0].mxu0
    %6635 = vmatprep.mubr.f32.mxu0 0.0
    %6636 = vmatmul.mubr.f32.gmra.mrb[0].mxu0 %v334
    %v6637 = vpop.f32.mrb[0].mxu0
    %v6638 = vadd.f32 0.0, %v6637
    %v6639 = vpop.f32.mrb[0].mxu0
    %6640 = vmatprep.mubr.f32.mxu0 0.0
    %6641 = vmatmul.mubr.f32.gmra.mrb[0].mxu0 %v337
    %v6642 = vpop.f32.mrb[0].mxu0
    %v6643 = vadd.f32 0.0, %v6642
    %v6644 = vpop.f32.mrb[0].mxu0
    %6645 = vmatprep.mubr.f32.mxu0 0.0
    %6646 = vmatmul.mubr.f32.gmra.mrb[0].mxu0 %v340
    %v6647 = vpop.f32.mrb[0].mxu0
    %v6648 = vadd.f32 0.0, %v6647
    %v6649 = vpop.f32.mrb[0].mxu0
    %6650 = vmatprep.mubr.f32.mxu0 0.0
    %6651 = vmatmul.mubr.f32.gmra.mrb[0].mxu0 %v343
    %v6652 = vpop.f32.mrb[0].mxu0
    %v6653 = vadd.f32 0.0, %v6652
    %v6654 = vpop.f32.mrb[0].mxu0
    %6655 = vmatprep.mubr.f32.mxu0 0.0
    %6656 = vmatmul.mubr.f32.gmra.mrb[0].mxu0 %v346
    %v6657 = vpop.f32.mrb[0].mxu0
    %v6658 = vadd.f32 0.0, %v6657
    %v6659 = vpop.f32.mrb[0].mxu0
    %6660 = vmatprep.mubr.f32.mxu0 0.0
    %6661 = vmatmul.mubr.f32.gmra.mrb[0].mxu0 %v349
    %v6662 = vpop.f32.mrb[0].mxu0
    %v6663 = vadd.f32 0.0, %v6662
    %v6664 = vpop.f32.mrb[0].mxu0
    %6665 = vmatprep.mubr.f32.mxu0 0.0
    %6666 = vmatmul.mubr.f32.gmra.mrb[0].mxu0 %v352
    %v6667 = vpop.f32.mrb[0].mxu0
    %v6668 = vadd.f32 0.0, %v6667
    %v6669 = vpop.f32.mrb[0].mxu0
    %6670 = vmatprep.mubr.f32.mxu0 0.0
    %6671 = vmatmul.mubr.f32.gmra.mrb[0].mxu0 %v355
    %v6672 = vpop.f32.mrb[0].mxu0
    %v6673 = vadd.f32 0.0, %v6672
    %v6674 = vpop.f32.mrb[0].mxu0
    %6675 = vmatprep.mubr.f32.mxu0 0.0
    %6676 = vmatmul.mubr.f32.gmra.mrb[0].mxu0 %v358
    %v6677 = vpop.f32.mrb[0].mxu0
    %v6678 = vadd.f32 0.0, %v6677
    %v6679 = vpop.f32.mrb[0].mxu0
    %6680 = vmatprep.mubr.f32.mxu0 0.0
    %6681 = vmatmul.mubr.f32.gmra.mrb[0].mxu0 %v361
    %v6682 = vpop.f32.mrb[0].mxu0
    %v6683 = vadd.f32 0.0, %v6682
    %v6684 = vpop.f32.mrb[0].mxu0
    %6685 = vmatprep.mubr.f32.mxu0 0.0
    %6686 = vmatmul.mubr.f32.gmra.mrb[0].mxu0 %v364
    %v6687 = vpop.f32.mrb[0].mxu0
    %v6688 = vadd.f32 0.0, %v6687
    %v6689 = vpop.f32.mrb[0].mxu0
    %6690 = vmatprep.mubr.f32.mxu0 0.0
    %6691 = vmatmul.mubr.f32.gmra.mrb[0].mxu0 %v367
    %v6692 = vpop.f32.mrb[0].mxu0
    %v6693 = vadd.f32 0.0, %v6692
    %v6694 = vpop.f32.mrb[0].mxu0
    %6695 = vmatprep.mubr.f32.mxu0 0.0
    %6696 = vmatmul.mubr.f32.gmra.mrb[0].mxu0 %v370
    %v6697 = vpop.f32.mrb[0].mxu0
    %v6698 = vadd.f32 0.0, %v6697
    %v6699 = vpop.f32.mrb[0].mxu0
    %6700 = vmatprep.mubr.f32.mxu0 0.0
    %6701 = vmatmul.mubr.f32.gmra.mrb[0].mxu0 %v373
    %v6702 = vpop.f32.mrb[0].mxu0
    %v6703 = vadd.f32 0.0, %v6702
    %v6704 = vpop.f32.mrb[0].mxu0
    %6705 = vmatprep.mubr.f32.mxu0 0.0
    %6706 = vmatmul.mubr.f32.gmra.mrb[0].mxu0 %v376
    %v6707 = vpop.f32.mrb[0].mxu0
    %v6708 = vadd.f32 0.0, %v6707
    %v6709 = vpop.f32.mrb[0].mxu0
    %6710 = vmatprep.mubr.f32.mxu0 0.0
    %6711 = vmatmul.mubr.f32.gmra.mrb[0].mxu0 %v379
    %v6712 = vpop.f32.mrb[0].mxu0
    %v6713 = vadd.f32 0.0, %v6712
    %v6714 = vpop.f32.mrb[0].mxu0
    %6715 = vdwg.mxu0
    %v6717 = vsel %vm104, %v6628, 0
    %v6720 = vsel %vm104, %v6633, 0
    %v6723 = vsel %vm104, %v6638, 0
    %v6726 = vsel %vm104, %v6643, 0
    %v6729 = vsel %vm104, %v6648, 0
    %v6732 = vsel %vm104, %v6653, 0
    %v6735 = vsel %vm104, %v5926, 0
    %6737 = vmatprep.subr.mxu0 0.0
    %6738 = vmatpush1.xpose.msra.mxu0 %v6735
    %6739 = vmatprep.subr.mxu0 0.0
    %6740 = vmatpush1.xpose.msra.mxu0 0.0
    %6741 = vmatprep.subr.mxu0 0.0
    %6742 = vmatpush1.xpose.msra.mxu0 0.0
    %6743 = vmatprep.subr.mxu0 0.0
    %6744 = vmatpush1.xpose.msra.mxu0 0.0
    %6745 = vmatprep.subr.mxu0 0.0
    %6746 = vmatpush1.xpose.msra.mxu0 0.0
    %6747 = vmatprep.subr.mxu0 0.0
    %6748 = vmatpush1.xpose.msra.mxu0 0.0
    %6749 = vmatprep.subr.mxu0 0.0
    %6750 = vmatpush1.xpose.msra.mxu0 0.0
    %6751 = vmatprep.subr.mxu0 0.0
    %6752 = vmatpush1.xpose.msra.mxu0 0.0
    %6753 = vmatprep.subr.mxu0 0.0
    %6754 = vmatpush1.xpose.msra.mxu0 0.0
    %6755 = vmatprep.subr.mxu0 0.0
    %6756 = vmatpush1.xpose.msra.mxu0 0.0
    %6757 = vmatprep.subr.mxu0 0.0
    %6758 = vmatpush1.xpose.msra.mxu0 0.0
    %6759 = vmatprep.subr.mxu0 0.0
    %6760 = vmatpush1.xpose.msra.mxu0 0.0
    %6761 = vmatprep.subr.mxu0 0.0
    %6762 = vmatpush1.xpose.msra.mxu0 0.0
    %6763 = vmatprep.subr.mxu0 0.0
    %6764 = vmatpush1.xpose.msra.mxu0 0.0
    %6765 = vmatprep.subr.mxu0 0.0
    %6766 = vmatpush1.xpose.msra.mxu0 0.0
    %6767 = vmatprep.subr.mxu0 0.0
    %6768 = vmatpush1.xpose.msra.mxu0 0.0
    %6769 = vmatprep.subr.mxu0 0.0
    %6770 = vmatpush1.xpose.msra.mxu0 0.0
    %6771 = vmatprep.subr.mxu0 0.0
    %6772 = vmatpush1.xpose.msra.mxu0 0.0
    %6773 = vmatprep.subr.mxu0 0.0
    %6774 = vmatpush1.xpose.msra.mxu0 0.0
    %6775 = vmatprep.subr.mxu0 0.0
    %6776 = vmatpush1.xpose.msra.mxu0 0.0
    %6777 = vmatprep.subr.mxu0 0.0
    %6778 = vmatpush1.xpose.msra.mxu0 0.0
    %6779 = vmatprep.subr.mxu0 0.0
    %6780 = vmatpush1.xpose.msra.mxu0 0.0
    %6781 = vmatprep.subr.mxu0 0.0
    %6782 = vmatpush1.xpose.msra.mxu0 0.0
    %6783 = vmatprep.subr.mxu0 0.0
    %6784 = vmatpush1.xpose.msra.mxu0 0.0
    %6785 = vmatprep.subr.mxu0 0.0
    %6786 = vmatpush1.xpose.msra.mxu0 0.0
    %6787 = vmatprep.subr.mxu0 0.0
    %6788 = vmatpush1.xpose.msra.mxu0 0.0
    %6789 = vmatprep.subr.mxu0 0.0
    %6790 = vmatpush1.xpose.msra.mxu0 0.0
    %6791 = vmatprep.subr.mxu0 0.0
    %6792 = vmatpush1.xpose.msra.mxu0 0.0
    %6793 = vmatprep.subr.mxu0 0.0
    %6794 = vmatpush1.xpose.msra.mxu0 0.0
    %6795 = vmatprep.subr.mxu0 0.0
    %6796 = vmatpush1.xpose.msra.mxu0 0.0
    %6797 = vmatprep.subr.mxu0 0.0
    %6798 = vmatpush1.xpose.msra.mxu0 0.0
    %6799 = vmatprep.subr.mxu0 0.0
    %6800 = vmatpush1.xpose.msra.mxu0 0.0
    %6801 = vmatprep.mubr.f32.mxu0 0.0
    %6802 = vmatmul.mubr.f32.gmra.mrb[0].mxu0 %v6717
    %v6803 = vpop.f32.mrb[0].mxu0
    %v6804 = vadd.f32 0.0, %v6803
    %v6805 = vpop.f32.mrb[0].mxu0
    %6806 = vmatprep.mubr.f32.mxu0 0.0
    %6807 = vmatmul.mubr.f32.gmra.mrb[0].mxu0 %v6720
    %v6808 = vpop.f32.mrb[0].mxu0
    %v6809 = vadd.f32 0.0, %v6808
    %v6810 = vpop.f32.mrb[0].mxu0
    %6811 = vmatprep.mubr.f32.mxu0 0.0
    %6812 = vmatmul.mubr.f32.gmra.mrb[0].mxu0 %v6723
    %v6813 = vpop.f32.mrb[0].mxu0
    %v6814 = vadd.f32 0.0, %v6813
    %v6815 = vpop.f32.mrb[0].mxu0
    %6816 = vmatprep.mubr.f32.mxu0 0.0
    %6817 = vmatmul.mubr.f32.gmra.mrb[0].mxu0 %v6726
    %v6818 = vpop.f32.mrb[0].mxu0
    %v6819 = vadd.f32 0.0, %v6818
    %v6820 = vpop.f32.mrb[0].mxu0
    %6821 = vmatprep.mubr.f32.mxu0 0.0
    %6822 = vmatmul.mubr.f32.gmra.mrb[0].mxu0 %v6729
    %v6823 = vpop.f32.mrb[0].mxu0
    %v6824 = vadd.f32 0.0, %v6823
    %v6825 = vpop.f32.mrb[0].mxu0
    %6826 = vmatprep.mubr.f32.mxu0 0.0
    %6827 = vmatmul.mubr.f32.gmra.mrb[0].mxu0 %v6732
    %v6828 = vpop.f32.mrb[0].mxu0
    %v6829 = vadd.f32 0.0, %v6828
    %v6830 = vpop.f32.mrb[0].mxu0
    %6831 = vdwg.mxu0
    %v6832 = vadd.f32 %v87, %v6804
    %v6833 = vadd.f32 %v88, %v6809
    %v6834 = vadd.f32 %v89, %v6814
    %v6835 = vadd.f32 %v90, %v6819
    %v6836 = vadd.f32 %v91, %v6824
    %v6837 = vadd.f32 %v92, %v6829
    %v6839 = vsel %vm104, %v6658, 0
    %v6842 = vsel %vm104, %v6663, 0
    %v6845 = vsel %vm104, %v6668, 0
    %v6848 = vsel %vm104, %v6673, 0
    %v6851 = vsel %vm104, %v6678, 0
    %v6854 = vsel %vm104, %v6683, 0
    %v6857 = vsel %vm104, %v5927, 0
    %6859 = vmatprep.subr.mxu0 0.0
    %6860 = vmatpush1.xpose.msra.mxu0 %v6857
    %6861 = vmatprep.subr.mxu0 0.0
    %6862 = vmatpush1.xpose.msra.mxu0 0.0
    %6863 = vmatprep.subr.mxu0 0.0
    %6864 = vmatpush1.xpose.msra.mxu0 0.0
    %6865 = vmatprep.subr.mxu0 0.0
    %6866 = vmatpush1.xpose.msra.mxu0 0.0
    %6867 = vmatprep.subr.mxu0 0.0
    %6868 = vmatpush1.xpose.msra.mxu0 0.0
    %6869 = vmatprep.subr.mxu0 0.0
    %6870 = vmatpush1.xpose.msra.mxu0 0.0
    %6871 = vmatprep.subr.mxu0 0.0
    %6872 = vmatpush1.xpose.msra.mxu0 0.0
    %6873 = vmatprep.subr.mxu0 0.0
    %6874 = vmatpush1.xpose.msra.mxu0 0.0
    %6875 = vmatprep.subr.mxu0 0.0
    %6876 = vmatpush1.xpose.msra.mxu0 0.0
    %6877 = vmatprep.subr.mxu0 0.0
    %6878 = vmatpush1.xpose.msra.mxu0 0.0
    %6879 = vmatprep.subr.mxu0 0.0
    %6880 = vmatpush1.xpose.msra.mxu0 0.0
    %6881 = vmatprep.subr.mxu0 0.0
    %6882 = vmatpush1.xpose.msra.mxu0 0.0
    %6883 = vmatprep.subr.mxu0 0.0
    %6884 = vmatpush1.xpose.msra.mxu0 0.0
    %6885 = vmatprep.subr.mxu0 0.0
    %6886 = vmatpush1.xpose.msra.mxu0 0.0
    %6887 = vmatprep.subr.mxu0 0.0
    %6888 = vmatpush1.xpose.msra.mxu0 0.0
    %6889 = vmatprep.subr.mxu0 0.0
    %6890 = vmatpush1.xpose.msra.mxu0 0.0
    %6891 = vmatprep.subr.mxu0 0.0
    %6892 = vmatpush1.xpose.msra.mxu0 0.0
    %6893 = vmatprep.subr.mxu0 0.0
    %6894 = vmatpush1.xpose.msra.mxu0 0.0
    %6895 = vmatprep.subr.mxu0 0.0
    %6896 = vmatpush1.xpose.msra.mxu0 0.0
    %6897 = vmatprep.subr.mxu0 0.0
    %6898 = vmatpush1.xpose.msra.mxu0 0.0
    %6899 = vmatprep.subr.mxu0 0.0
    %6900 = vmatpush1.xpose.msra.mxu0 0.0
    %6901 = vmatprep.subr.mxu0 0.0
    %6902 = vmatpush1.xpose.msra.mxu0 0.0
    %6903 = vmatprep.subr.mxu0 0.0
    %6904 = vmatpush1.xpose.msra.mxu0 0.0
    %6905 = vmatprep.subr.mxu0 0.0
    %6906 = vmatpush1.xpose.msra.mxu0 0.0
    %6907 = vmatprep.subr.mxu0 0.0
    %6908 = vmatpush1.xpose.msra.mxu0 0.0
    %6909 = vmatprep.subr.mxu0 0.0
    %6910 = vmatpush1.xpose.msra.mxu0 0.0
    %6911 = vmatprep.subr.mxu0 0.0
    %6912 = vmatpush1.xpose.msra.mxu0 0.0
    %6913 = vmatprep.subr.mxu0 0.0
    %6914 = vmatpush1.xpose.msra.mxu0 0.0
    %6915 = vmatprep.subr.mxu0 0.0
    %6916 = vmatpush1.xpose.msra.mxu0 0.0
    %6917 = vmatprep.subr.mxu0 0.0
    %6918 = vmatpush1.xpose.msra.mxu0 0.0
    %6919 = vmatprep.subr.mxu0 0.0
    %6920 = vmatpush1.xpose.msra.mxu0 0.0
    %6921 = vmatprep.subr.mxu0 0.0
    %6922 = vmatpush1.xpose.msra.mxu0 0.0
    %6923 = vmatprep.mubr.f32.mxu0 0.0
    %6924 = vmatmul.mubr.f32.gmra.mrb[0].mxu0 %v6839
    %v6925 = vpop.f32.mrb[0].mxu0
    %v6926 = vadd.f32 0.0, %v6925
    %v6927 = vpop.f32.mrb[0].mxu0
    %6928 = vmatprep.mubr.f32.mxu0 0.0
    %6929 = vmatmul.mubr.f32.gmra.mrb[0].mxu0 %v6842
    %v6930 = vpop.f32.mrb[0].mxu0
    %v6931 = vadd.f32 0.0, %v6930
    %v6932 = vpop.f32.mrb[0].mxu0
    %6933 = vmatprep.mubr.f32.mxu0 0.0
    %6934 = vmatmul.mubr.f32.gmra.mrb[0].mxu0 %v6845
    %v6935 = vpop.f32.mrb[0].mxu0
    %v6936 = vadd.f32 0.0, %v6935
    %v6937 = vpop.f32.mrb[0].mxu0
    %6938 = vmatprep.mubr.f32.mxu0 0.0
    %6939 = vmatmul.mubr.f32.gmra.mrb[0].mxu0 %v6848
    %v6940 = vpop.f32.mrb[0].mxu0
    %v6941 = vadd.f32 0.0, %v6940
    %v6942 = vpop.f32.mrb[0].mxu0
    %6943 = vmatprep.mubr.f32.mxu0 0.0
    %6944 = vmatmul.mubr.f32.gmra.mrb[0].mxu0 %v6851
    %v6945 = vpop.f32.mrb[0].mxu0
    %v6946 = vadd.f32 0.0, %v6945
    %v6947 = vpop.f32.mrb[0].mxu0
    %6948 = vmatprep.mubr.f32.mxu0 0.0
    %6949 = vmatmul.mubr.f32.gmra.mrb[0].mxu0 %v6854
    %v6950 = vpop.f32.mrb[0].mxu0
    %v6951 = vadd.f32 0.0, %v6950
    %v6952 = vpop.f32.mrb[0].mxu0
    %6953 = vdwg.mxu0
    %v6954 = vadd.f32 %v6832, %v6926
    %v6955 = vadd.f32 %v6833, %v6931
    %v6956 = vadd.f32 %v6834, %v6936
    %v6957 = vadd.f32 %v6835, %v6941
    %v6958 = vadd.f32 %v6836, %v6946
    %v6959 = vadd.f32 %v6837, %v6951
    %v6961 = vsel %vm104, %v6688, 0
    %v6964 = vsel %vm104, %v6693, 0
    %v6967 = vsel %vm104, %v6698, 0
    %v6970 = vsel %vm104, %v6703, 0
    %v6973 = vsel %vm104, %v6708, 0
    %v6976 = vsel %vm104, %v6713, 0
    %v6979 = vsel %vm104, %v5928, 0
    %6981 = vmatprep.subr.mxu0 0.0
    %6982 = vmatpush1.xpose.msra.mxu0 %v6979
    %6983 = vmatprep.subr.mxu0 0.0
    %6984 = vmatpush1.xpose.msra.mxu0 0.0
    %6985 = vmatprep.subr.mxu0 0.0
    %6986 = vmatpush1.xpose.msra.mxu0 0.0
    %6987 = vmatprep.subr.mxu0 0.0
    %6988 = vmatpush1.xpose.msra.mxu0 0.0
    %6989 = vmatprep.subr.mxu0 0.0
    %6990 = vmatpush1.xpose.msra.mxu0 0.0
    %6991 = vmatprep.subr.mxu0 0.0
    %6992 = vmatpush1.xpose.msra.mxu0 0.0
    %6993 = vmatprep.subr.mxu0 0.0
    %6994 = vmatpush1.xpose.msra.mxu0 0.0
    %6995 = vmatprep.subr.mxu0 0.0
    %6996 = vmatpush1.xpose.msra.mxu0 0.0
    %6997 = vmatprep.subr.mxu0 0.0
    %6998 = vmatpush1.xpose.msra.mxu0 0.0
    %6999 = vmatprep.subr.mxu0 0.0
    %7000 = vmatpush1.xpose.msra.mxu0 0.0
    %7001 = vmatprep.subr.mxu0 0.0
    %7002 = vmatpush1.xpose.msra.mxu0 0.0
    %7003 = vmatprep.subr.mxu0 0.0
    %7004 = vmatpush1.xpose.msra.mxu0 0.0
    %7005 = vmatprep.subr.mxu0 0.0
    %7006 = vmatpush1.xpose.msra.mxu0 0.0
    %7007 = vmatprep.subr.mxu0 0.0
    %7008 = vmatpush1.xpose.msra.mxu0 0.0
    %7009 = vmatprep.subr.mxu0 0.0
    %7010 = vmatpush1.xpose.msra.mxu0 0.0
    %7011 = vmatprep.subr.mxu0 0.0
    %7012 = vmatpush1.xpose.msra.mxu0 0.0
    %7013 = vmatprep.subr.mxu0 0.0
    %7014 = vmatpush1.xpose.msra.mxu0 0.0
    %7015 = vmatprep.subr.mxu0 0.0
    %7016 = vmatpush1.xpose.msra.mxu0 0.0
    %7017 = vmatprep.subr.mxu0 0.0
    %7018 = vmatpush1.xpose.msra.mxu0 0.0
    %7019 = vmatprep.subr.mxu0 0.0
    %7020 = vmatpush1.xpose.msra.mxu0 0.0
    %7021 = vmatprep.subr.mxu0 0.0
    %7022 = vmatpush1.xpose.msra.mxu0 0.0
    %7023 = vmatprep.subr.mxu0 0.0
    %7024 = vmatpush1.xpose.msra.mxu0 0.0
    %7025 = vmatprep.subr.mxu0 0.0
    %7026 = vmatpush1.xpose.msra.mxu0 0.0
    %7027 = vmatprep.subr.mxu0 0.0
    %7028 = vmatpush1.xpose.msra.mxu0 0.0
    %7029 = vmatprep.subr.mxu0 0.0
    %7030 = vmatpush1.xpose.msra.mxu0 0.0
    %7031 = vmatprep.subr.mxu0 0.0
    %7032 = vmatpush1.xpose.msra.mxu0 0.0
    %7033 = vmatprep.subr.mxu0 0.0
    %7034 = vmatpush1.xpose.msra.mxu0 0.0
    %7035 = vmatprep.subr.mxu0 0.0
    %7036 = vmatpush1.xpose.msra.mxu0 0.0
    %7037 = vmatprep.subr.mxu0 0.0
    %7038 = vmatpush1.xpose.msra.mxu0 0.0
    %7039 = vmatprep.subr.mxu0 0.0
    %7040 = vmatpush1.xpose.msra.mxu0 0.0
    %7041 = vmatprep.subr.mxu0 0.0
    %7042 = vmatpush1.xpose.msra.mxu0 0.0
    %7043 = vmatprep.subr.mxu0 0.0
    %7044 = vmatpush1.xpose.msra.mxu0 0.0
    %7045 = vmatprep.mubr.f32.mxu0 0.0
    %7046 = vmatmul.mubr.f32.gmra.mrb[0].mxu0 %v6961
    %v7047 = vpop.f32.mrb[0].mxu0
    %v7048 = vadd.f32 0.0, %v7047
    %v7049 = vpop.f32.mrb[0].mxu0
    %7050 = vmatprep.mubr.f32.mxu0 0.0
    %7051 = vmatmul.mubr.f32.gmra.mrb[0].mxu0 %v6964
    %v7052 = vpop.f32.mrb[0].mxu0
    %v7053 = vadd.f32 0.0, %v7052
    %v7054 = vpop.f32.mrb[0].mxu0
    %7055 = vmatprep.mubr.f32.mxu0 0.0
    %7056 = vmatmul.mubr.f32.gmra.mrb[0].mxu0 %v6967
    %v7057 = vpop.f32.mrb[0].mxu0
    %v7058 = vadd.f32 0.0, %v7057
    %v7059 = vpop.f32.mrb[0].mxu0
    %7060 = vmatprep.mubr.f32.mxu0 0.0
    %7061 = vmatmul.mubr.f32.gmra.mrb[0].mxu0 %v6970
    %v7062 = vpop.f32.mrb[0].mxu0
    %v7063 = vadd.f32 0.0, %v7062
    %v7064 = vpop.f32.mrb[0].mxu0
    %7065 = vmatprep.mubr.f32.mxu0 0.0
    %7066 = vmatmul.mubr.f32.gmra.mrb[0].mxu0 %v6973
    %v7067 = vpop.f32.mrb[0].mxu0
    %v7068 = vadd.f32 0.0, %v7067
    %v7069 = vpop.f32.mrb[0].mxu0
    %7070 = vmatprep.mubr.f32.mxu0 0.0
    %7071 = vmatmul.mubr.f32.gmra.mrb[0].mxu0 %v6976
    %v7072 = vpop.f32.mrb[0].mxu0
    %v7073 = vadd.f32 0.0, %v7072
    %v7074 = vpop.f32.mrb[0].mxu0
    %7075 = vdwg.mxu0
    %v7076 = vadd.f32 %v6954, %v7048
    %v7077 = vadd.f32 %v6955, %v7053
    %v7078 = vadd.f32 %v6956, %v7058
    %v7079 = vadd.f32 %v6957, %v7063
    %v7080 = vadd.f32 %v6958, %v7068
    %v7081 = vadd.f32 %v6959, %v7073
    %v7082 = vxor.u32 %v7076, 2147483648
    %v7083 = vxor.u32 %v7077, 2147483648
    %v7084 = vmul.f32 %v7082, 1.442695
    %v7085 = vpow.pop %v7084
    %v7086 = vmul.f32 %v7083, 1.442695
    %v7087 = vpow.pop %v7086
    %v7088 = vadd.f32 %v7085, 1.0
    %v7089 = vadd.f32 %v7087, 1.0
    %v7090 = vrcp.pop %v7088
    %v7091 = vmul.f32 1.0, %v7090
    %v7092 = vrcp.pop %v7089
    %v7093 = vmul.f32 1.0, %v7092
    %v7094 = vtanh.pop %v7080
    %v7095 = vtanh.pop %v7081
    %v7096 = vmul.f32 %v7091, %v7094
    %v7097 = vmul.f32 %v7093, %v7095
    %7098 = vmatprep.subr.mxu0 0.0
    %7099 = vmatpush1.msra.mxu0 %v7096
    %7100 = vmatprep.subr.mxu0 0.0
    %7101 = vmatpush1.msra.mxu0 %v7097
    %7102 = vmatprep.subr.mxu0 0.0
    %7103 = vmatpush1.msra.mxu0 0.0
    %7104 = vmatprep.subr.mxu0 0.0
    %7105 = vmatpush1.msra.mxu0 0.0
    %7106 = vmatprep.subr.mxu0 0.0
    %7107 = vmatpush1.msra.mxu0 0.0
    %7108 = vmatprep.subr.mxu0 0.0
    %7109 = vmatpush1.msra.mxu0 0.0
    %7110 = vmatprep.subr.mxu0 0.0
    %7111 = vmatpush1.msra.mxu0 0.0
    %7112 = vmatprep.subr.mxu0 0.0
    %7113 = vmatpush1.msra.mxu0 0.0
    %7114 = vmatprep.subr.mxu0 0.0
    %7115 = vmatpush1.msra.mxu0 0.0
    %7116 = vmatprep.subr.mxu0 0.0
    %7117 = vmatpush1.msra.mxu0 0.0
    %7118 = vmatprep.subr.mxu0 0.0
    %7119 = vmatpush1.msra.mxu0 0.0
    %7120 = vmatprep.subr.mxu0 0.0
    %7121 = vmatpush1.msra.mxu0 0.0
    %7122 = vmatprep.subr.mxu0 0.0
    %7123 = vmatpush1.msra.mxu0 0.0
    %7124 = vmatprep.subr.mxu0 0.0
    %7125 = vmatpush1.msra.mxu0 0.0
    %7126 = vmatprep.subr.mxu0 0.0
    %7127 = vmatpush1.msra.mxu0 0.0
    %7128 = vmatprep.subr.mxu0 0.0
    %7129 = vmatpush1.msra.mxu0 0.0
    %7130 = vmatprep.subr.mxu0 0.0
    %7131 = vmatpush1.msra.mxu0 0.0
    %7132 = vmatprep.subr.mxu0 0.0
    %7133 = vmatpush1.msra.mxu0 0.0
    %7134 = vmatprep.subr.mxu0 0.0
    %7135 = vmatpush1.msra.mxu0 0.0
    %7136 = vmatprep.subr.mxu0 0.0
    %7137 = vmatpush1.msra.mxu0 0.0
    %7138 = vmatprep.subr.mxu0 0.0
    %7139 = vmatpush1.msra.mxu0 0.0
    %7140 = vmatprep.subr.mxu0 0.0
    %7141 = vmatpush1.msra.mxu0 0.0
    %7142 = vmatprep.subr.mxu0 0.0
    %7143 = vmatpush1.msra.mxu0 0.0
    %7144 = vmatprep.subr.mxu0 0.0
    %7145 = vmatpush1.msra.mxu0 0.0
    %7146 = vmatprep.subr.mxu0 0.0
    %7147 = vmatpush1.msra.mxu0 0.0
    %7148 = vmatprep.subr.mxu0 0.0
    %7149 = vmatpush1.msra.mxu0 0.0
    %7150 = vmatprep.subr.mxu0 0.0
    %7151 = vmatpush1.msra.mxu0 0.0
    %7152 = vmatprep.subr.mxu0 0.0
    %7153 = vmatpush1.msra.mxu0 0.0
    %7154 = vmatprep.subr.mxu0 0.0
    %7155 = vmatpush1.msra.mxu0 0.0
    %7156 = vmatprep.subr.mxu0 0.0
    %7157 = vmatpush1.msra.mxu0 0.0
    %7158 = vmatprep.subr.mxu0 0.0
    %7159 = vmatpush1.msra.mxu0 0.0
    %7160 = vmatprep.subr.mxu0 0.0
    %7161 = vmatpush1.msra.mxu0 0.0
    %7162 = vmatprep.mubr.f32.mxu0 0.0
    %7163 = vmatmul.mubr.f32.gmra.mrb[0].mxu0 %v920
    %v7164 = vpop.f32.mrb[0].mxu0
    %v7165 = vadd.f32 0.0, %v7164
    %v7166 = vpop.f32.mrb[0].mxu0
    %7167 = vmatprep.mubr.f32.mxu0 0.0
    %7168 = vmatmul.mubr.f32.gmra.mrb[0].mxu0 %v923
    %v7169 = vpop.f32.mrb[0].mxu0
    %v7170 = vadd.f32 0.0, %v7169
    %v7171 = vpop.f32.mrb[0].mxu0
    %7172 = vdwg.mxu0
    %v7173 = vadd.f32 %v7078, %v7165
    %v7174 = vadd.f32 %v7079, %v7170
    %v7175 = vxor.u32 %v7173, 2147483648
    %v7176 = vxor.u32 %v7174, 2147483648
    %v7177 = vmul.f32 %v7175, 1.442695
    %v7178 = vpow.pop %v7177
    %v7179 = vmul.f32 %v7176, 1.442695
    %v7180 = vpow.pop %v7179
    %v7181 = vadd.f32 %v7178, 1.0
    %v7182 = vadd.f32 %v7180, 1.0
    %v7183 = vrcp.pop %v7181
    %v7184 = vmul.f32 1.0, %v7183
    %v7185 = vrcp.pop %v7182
    %v7186 = vmul.f32 1.0, %v7185
    %v7187 = vtanh.pop %v7096
    %v7188 = vtanh.pop %v7097
    %v7189 = vmul.f32 %v7184, %v7187
    %v7190 = vmul.f32 %v7186, %v7188
    %v7192 = vsel %vm104, %v6558, 0
    %v7195 = vsel %vm104, %v6559, 0
    %7197 = vmatprep.subr.mxu0 0.0
    %7198 = vmatpush1.msra.mxu0 %v48
    %7199 = vmatprep.subr.mxu0 0.0
    %7200 = vmatpush1.msra.mxu0 0.0
    %7201 = vmatprep.subr.mxu0 0.0
    %7202 = vmatpush1.msra.mxu0 0.0
    %7203 = vmatprep.subr.mxu0 0.0
    %7204 = vmatpush1.msra.mxu0 0.0
    %7205 = vmatprep.subr.mxu0 0.0
    %7206 = vmatpush1.msra.mxu0 0.0
    %7207 = vmatprep.subr.mxu0 0.0
    %7208 = vmatpush1.msra.mxu0 0.0
    %7209 = vmatprep.subr.mxu0 0.0
    %7210 = vmatpush1.msra.mxu0 0.0
    %7211 = vmatprep.subr.mxu0 0.0
    %7212 = vmatpush1.msra.mxu0 0.0
    %7213 = vmatprep.subr.mxu0 0.0
    %7214 = vmatpush1.msra.mxu0 0.0
    %7215 = vmatprep.subr.mxu0 0.0
    %7216 = vmatpush1.msra.mxu0 0.0
    %7217 = vmatprep.subr.mxu0 0.0
    %7218 = vmatpush1.msra.mxu0 0.0
    %7219 = vmatprep.subr.mxu0 0.0
    %7220 = vmatpush1.msra.mxu0 0.0
    %7221 = vmatprep.subr.mxu0 0.0
    %7222 = vmatpush1.msra.mxu0 0.0
    %7223 = vmatprep.subr.mxu0 0.0
    %7224 = vmatpush1.msra.mxu0 0.0
    %7225 = vmatprep.subr.mxu0 0.0
    %7226 = vmatpush1.msra.mxu0 0.0
    %7227 = vmatprep.subr.mxu0 0.0
    %7228 = vmatpush1.msra.mxu0 0.0
    %7229 = vmatprep.subr.mxu0 0.0
    %7230 = vmatpush1.msra.mxu0 0.0
    %7231 = vmatprep.subr.mxu0 0.0
    %7232 = vmatpush1.msra.mxu0 0.0
    %7233 = vmatprep.subr.mxu0 0.0
    %7234 = vmatpush1.msra.mxu0 0.0
    %7235 = vmatprep.subr.mxu0 0.0
    %7236 = vmatpush1.msra.mxu0 0.0
    %7237 = vmatprep.subr.mxu0 0.0
    %7238 = vmatpush1.msra.mxu0 0.0
    %7239 = vmatprep.subr.mxu0 0.0
    %7240 = vmatpush1.msra.mxu0 0.0
    %7241 = vmatprep.subr.mxu0 0.0
    %7242 = vmatpush1.msra.mxu0 0.0
    %7243 = vmatprep.subr.mxu0 0.0
    %7244 = vmatpush1.msra.mxu0 0.0
    %7245 = vmatprep.subr.mxu0 0.0
    %7246 = vmatpush1.msra.mxu0 0.0
    %7247 = vmatprep.subr.mxu0 0.0
    %7248 = vmatpush1.msra.mxu0 0.0
    %7249 = vmatprep.subr.mxu0 0.0
    %7250 = vmatpush1.msra.mxu0 0.0
    %7251 = vmatprep.subr.mxu0 0.0
    %7252 = vmatpush1.msra.mxu0 0.0
    %7253 = vmatprep.subr.mxu0 0.0
    %7254 = vmatpush1.msra.mxu0 0.0
    %7255 = vmatprep.subr.mxu0 0.0
    %7256 = vmatpush1.msra.mxu0 0.0
    %7257 = vmatprep.subr.mxu0 0.0
    %7258 = vmatpush1.msra.mxu0 0.0
    %7259 = vmatprep.subr.mxu0 0.0
    %7260 = vmatpush1.msra.mxu0 0.0
    %7261 = vmatprep.mubr.f32.mxu0 0.0
    %7262 = vmatmul.mubr.f32.gmra.mrb[0].mxu0 %v7192
    %v7263 = vpop.f32.mrb[0].mxu0
    %v7264 = vadd.f32 0.0, %v7263
    %v7265 = vpop.f32.mrb[0].mxu0
    %7266 = vmatprep.mubr.f32.mxu0 0.0
    %7267 = vmatmul.mubr.f32.gmra.mrb[0].mxu0 %v7195
    %v7268 = vpop.f32.mrb[0].mxu0
    %v7269 = vadd.f32 0.0, %v7268
    %v7270 = vpop.f32.mrb[0].mxu0
    %7271 = vdwg.mxu0
    %v7272 = vmul.f32 %v7264, %v49
    %v7273 = vmul.f32 %v7269, %v50
    %v7274 = vadd.f32 %v7272, %v7273
    %v7275 = vrot.slane %v7274, 4
    %v7276 = vadd.f32 %v7274, %v7275
    %v7277 = vrot.slane %v7276, 2
    %v7278 = vadd.f32 %v7276, %v7277
    %v7279 = vrot.slane %v7278, 1
    %v7280 = vadd.f32 %v7278, %v7279
    %v7282 = vsel %vm104, %v7189, 0
    %v7285 = vsel %vm104, %v7190, 0
    %7287 = vmatprep.subr.mxu0 0.0
    %7288 = vmatpush1.msra.mxu0 %v48
    %7289 = vmatprep.subr.mxu0 0.0
    %7290 = vmatpush1.msra.mxu0 0.0
    %7291 = vmatprep.subr.mxu0 0.0
    %7292 = vmatpush1.msra.mxu0 0.0
    %7293 = vmatprep.subr.mxu0 0.0
    %7294 = vmatpush1.msra.mxu0 0.0
    %7295 = vmatprep.subr.mxu0 0.0
    %7296 = vmatpush1.msra.mxu0 0.0
    %7297 = vmatprep.subr.mxu0 0.0
    %7298 = vmatpush1.msra.mxu0 0.0
    %7299 = vmatprep.subr.mxu0 0.0
    %7300 = vmatpush1.msra.mxu0 0.0
    %7301 = vmatprep.subr.mxu0 0.0
    %7302 = vmatpush1.msra.mxu0 0.0
    %7303 = vmatprep.subr.mxu0 0.0
    %7304 = vmatpush1.msra.mxu0 0.0
    %7305 = vmatprep.subr.mxu0 0.0
    %7306 = vmatpush1.msra.mxu0 0.0
    %7307 = vmatprep.subr.mxu0 0.0
    %7308 = vmatpush1.msra.mxu0 0.0
    %7309 = vmatprep.subr.mxu0 0.0
    %7310 = vmatpush1.msra.mxu0 0.0
    %7311 = vmatprep.subr.mxu0 0.0
    %7312 = vmatpush1.msra.mxu0 0.0
    %7313 = vmatprep.subr.mxu0 0.0
    %7314 = vmatpush1.msra.mxu0 0.0
    %7315 = vmatprep.subr.mxu0 0.0
    %7316 = vmatpush1.msra.mxu0 0.0
    %7317 = vmatprep.subr.mxu0 0.0
    %7318 = vmatpush1.msra.mxu0 0.0
    %7319 = vmatprep.subr.mxu0 0.0
    %7320 = vmatpush1.msra.mxu0 0.0
    %7321 = vmatprep.subr.mxu0 0.0
    %7322 = vmatpush1.msra.mxu0 0.0
    %7323 = vmatprep.subr.mxu0 0.0
    %7324 = vmatpush1.msra.mxu0 0.0
    %7325 = vmatprep.subr.mxu0 0.0
    %7326 = vmatpush1.msra.mxu0 0.0
    %7327 = vmatprep.subr.mxu0 0.0
    %7328 = vmatpush1.msra.mxu0 0.0
    %7329 = vmatprep.subr.mxu0 0.0
    %7330 = vmatpush1.msra.mxu0 0.0
    %7331 = vmatprep.subr.mxu0 0.0
    %7332 = vmatpush1.msra.mxu0 0.0
    %7333 = vmatprep.subr.mxu0 0.0
    %7334 = vmatpush1.msra.mxu0 0.0
    %7335 = vmatprep.subr.mxu0 0.0
    %7336 = vmatpush1.msra.mxu0 0.0
    %7337 = vmatprep.subr.mxu0 0.0
    %7338 = vmatpush1.msra.mxu0 0.0
    %7339 = vmatprep.subr.mxu0 0.0
    %7340 = vmatpush1.msra.mxu0 0.0
    %7341 = vmatprep.subr.mxu0 0.0
    %7342 = vmatpush1.msra.mxu0 0.0
    %7343 = vmatprep.subr.mxu0 0.0
    %7344 = vmatpush1.msra.mxu0 0.0
    %7345 = vmatprep.subr.mxu0 0.0
    %7346 = vmatpush1.msra.mxu0 0.0
    %7347 = vmatprep.subr.mxu0 0.0
    %7348 = vmatpush1.msra.mxu0 0.0
    %7349 = vmatprep.subr.mxu0 0.0
    %7350 = vmatpush1.msra.mxu0 0.0
    %7351 = vmatprep.mubr.f32.mxu0 0.0
    %7352 = vmatmul.mubr.f32.gmra.mrb[0].mxu0 %v7282
    %v7353 = vpop.f32.mrb[0].mxu0
    %v7354 = vadd.f32 0.0, %v7353
    %v7355 = vpop.f32.mrb[0].mxu0
    %7356 = vmatprep.mubr.f32.mxu0 0.0
    %7357 = vmatmul.mubr.f32.gmra.mrb[0].mxu0 %v7285
    %v7358 = vpop.f32.mrb[0].mxu0
    %v7359 = vadd.f32 0.0, %v7358
    %v7360 = vpop.f32.mrb[0].mxu0
    %7361 = vdwg.mxu0
    %v7362 = vmul.f32 %v7354, %v49
    %v7363 = vmul.f32 %v7359, %v50
    %v7364 = vadd.f32 %v7362, %v7363
    %v7365 = vrot.slane %v7364, 4
    %v7366 = vadd.f32 %v7364, %v7365
    %v7367 = vrot.slane %v7366, 2
    %v7368 = vadd.f32 %v7366, %v7367
    %v7369 = vrot.slane %v7368, 1
    %v7370 = vadd.f32 %v7368, %v7369
    %v7371 = vsel %vm113, %v7280, %v7370
    %7372 = vmatprep.subr.mxu0 0.0
    %7373 = vmatpush1.msra.mxu0 %v51
    %7374 = vmatprep.subr.mxu0 0.0
    %7375 = vmatpush1.msra.mxu0 %v52
    %7376 = vmatprep.subr.mxu0 0.0
    %7377 = vmatpush1.msra.mxu0 %v53
    %7378 = vmatprep.subr.mxu0 0.0
    %7379 = vmatpush1.msra.mxu0 %v54
    %7380 = vmatprep.subr.mxu0 0.0
    %7381 = vmatpush1.msra.mxu0 %v55
    %7382 = vmatprep.subr.mxu0 0.0
    %7383 = vmatpush1.msra.mxu0 %v56
    %7384 = vmatprep.subr.mxu0 0.0
    %7385 = vmatpush1.msra.mxu0 %v57
    %7386 = vmatprep.subr.mxu0 0.0
    %7387 = vmatpush1.msra.mxu0 %v58
    %7388 = vmatprep.subr.mxu0 0.0
    %7389 = vmatpush1.msra.mxu0 %v59
    %7390 = vmatprep.subr.mxu0 0.0
    %7391 = vmatpush1.msra.mxu0 %v60
    %7392 = vmatprep.subr.mxu0 0.0
    %7393 = vmatpush1.msra.mxu0 %v61
    %7394 = vmatprep.subr.mxu0 0.0
    %7395 = vmatpush1.msra.mxu0 %v62
    %7396 = vmatprep.subr.mxu0 0.0
    %7397 = vmatpush1.msra.mxu0 %v63
    %7398 = vmatprep.subr.mxu0 0.0
    %7399 = vmatpush1.msra.mxu0 %v64
    %7400 = vmatprep.subr.mxu0 0.0
    %7401 = vmatpush1.msra.mxu0 %v65
    %7402 = vmatprep.subr.mxu0 0.0
    %7403 = vmatpush1.msra.mxu0 %v66
    %7404 = vmatprep.subr.mxu0 0.0
    %7405 = vmatpush1.msra.mxu0 0.0
    %7406 = vmatprep.subr.mxu0 0.0
    %7407 = vmatpush1.msra.mxu0 0.0
    %7408 = vmatprep.subr.mxu0 0.0
    %7409 = vmatpush1.msra.mxu0 0.0
    %7410 = vmatprep.subr.mxu0 0.0
    %7411 = vmatpush1.msra.mxu0 0.0
    %7412 = vmatprep.subr.mxu0 0.0
    %7413 = vmatpush1.msra.mxu0 0.0
    %7414 = vmatprep.subr.mxu0 0.0
    %7415 = vmatpush1.msra.mxu0 0.0
    %7416 = vmatprep.subr.mxu0 0.0
    %7417 = vmatpush1.msra.mxu0 0.0
    %7418 = vmatprep.subr.mxu0 0.0
    %7419 = vmatpush1.msra.mxu0 0.0
    %7420 = vmatprep.subr.mxu0 0.0
    %7421 = vmatpush1.msra.mxu0 0.0
    %7422 = vmatprep.subr.mxu0 0.0
    %7423 = vmatpush1.msra.mxu0 0.0
    %7424 = vmatprep.subr.mxu0 0.0
    %7425 = vmatpush1.msra.mxu0 0.0
    %7426 = vmatprep.subr.mxu0 0.0
    %7427 = vmatpush1.msra.mxu0 0.0
    %7428 = vmatprep.subr.mxu0 0.0
    %7429 = vmatpush1.msra.mxu0 0.0
    %7430 = vmatprep.subr.mxu0 0.0
    %7431 = vmatpush1.msra.mxu0 0.0
    %7432 = vmatprep.subr.mxu0 0.0
    %7433 = vmatpush1.msra.mxu0 0.0
    %7434 = vmatprep.subr.mxu0 0.0
    %7435 = vmatpush1.msra.mxu0 0.0
    %7436 = vmatprep.mubr.f32.mxu0 0.0
    %7437 = vmatmul.mubr.f32.gmra.mrb[0].mxu0 %v7371
    %v7438 = vpop.f32.mrb[0].mxu0
    %v7439 = vadd.f32 %v1835, %v7438
    %v7440 = vpop.f32.mrb[0].mxu0
    %7441 = vdwg.mxu0
    %v7442 = vmax.f32 %v7439, 0.0
    %v7443 = vsel %vm1908, %v7442, 0.0
    %v7444 = vrot.slane %v7443, 4
    %v7445 = vadd.f32 %v7443, %v7444
    %v7446 = vrot.slane %v7445, 2
    %v7447 = vadd.f32 %v7445, %v7446
    %v7448 = vrot.slane %v7447, 1
    %v7449 = vadd.f32 %v7447, %v7448
    %v7450 = vmul.f32 %v7449, 0.5
    %v7451 = vadd.f32 %v5614, %v7450
    %v7452 = vmul.f32 %v7451, 0.019634955
    %v7453 = vsub.f32 1.0, %v7452
    %v7454 = vmul.f32 %v7439, %v1922
    %v7456 = vlaneseq
    %v7457 = vshrl.u32 %v7456, 7
    %v7458 = vsub.s32 0, %v7457
    %v7459 = vrot.slane %v7453, %v7458
    %7460 = vset.pattern.permute.xlu0 0
    %7461 = vperm.xlu0 %7460, %v7459
    %v7462 = vpop.permute.xlu0 %7461
    %v7464 = vrcp.pop %v7462
    %v7465 = vmul.f32 %v7454, %v7464
    %v7466 = vadd.f32 %v7465, %v5640
    %v7467 = vmax.f32 %v7466, 0.0
    %7469 = vrot.lane.b32.xlu0 %v7467, 119
    %v7470 = vpop.permute.xlu0 %7469
    %v7472 = vsel %vm1946, %v7470, 0.0
    %7473 = vadd.xlane.f32.xlu0 %v7472
    %v7474 = vpop.xlane.xlu0 %7473
    %v7475 = vmax.f32 %v7474, 1e-12
    %v7476 = vrcp.pop %v7475
    %v7477 = vmul.f32 %v7467, %v7476
    %v7478 = vsub.f32 %v7477, %v5640
    %v7479 = vmul.f32 %v7478, 16.666666
    %7481 = vrot.lane.b32.xlu0 %v7479, 119
    %v7482 = vpop.permute.xlu0 %7481
    %s7484 = scalar_lea.vmem %s11, 6
    %7485 = vst.msk [vmem:[%s7484] sm:$0x3] %vm1946, %v7482
    %7487 = vrot.lane.b32.xlu0 %v7442, 7
    %v7488 = vpop.permute.xlu0 %7487
    %7490 = vst.msk [vmem:[%s7484] sm:$0x3] %vm1964, %v7488
    %7491 = vrot.lane.b32.xlu0 %v7442, 16
    %v7492 = vpop.permute.xlu0 %7491
    %7494 = vst.msk [vmem:[%s7484] sm:$0x3] %vm1969, %v7492
    %7496 = vrot.lane.b32.xlu0 %v7477, 119
    %v7497 = vpop.permute.xlu0 %7496
    %s7499 = scalar_lea.vmem %s12, 6
    %7500 = vst.msk [vmem:[%s7499] sm:$0x3] %vm1946, %v7497
    %vm7501 = vcmask 0
    %7502 = vst.msk [vmem:[#allocation4] sm:$0x1] %vm7501, %v7451
    // Predicated region
    $region46: #{convlstm_start_forward.1} parent=1 // pred_check
      _
    $region47: #{convlstm_start_forward.1} parent=1 // pred_check_branch
      %7504 = sbr.rel (0) target = $region49
    $region48: #{convlstm_start_forward.1} parent=1 // pred_region
      _
    $region49: #{convlstm_start_forward.1} parent=1 // pred_fallthru
      _
    // Predicated region
    $region50: #{convlstm_start_forward.1} parent=1 // pred_check
      _
    $region51: #{convlstm_start_forward.1} parent=1 // pred_check_branch
      %7506 = sbr.rel (0) target = $region53
    $region52: #{convlstm_start_forward.1} parent=1 // pred_region
      _
    $region53: #{convlstm_start_forward.1} parent=1 // pred_fallthru
      _
    // Predicated region
    $region54: #{convlstm_start_forward.1} parent=1 // pred_check
      _
    $region55: #{convlstm_start_forward.1} parent=1 // pred_check_branch
      %7508 = sbr.rel (0) target = $region57
    $region56: #{convlstm_start_forward.1} parent=1 // pred_region
      %s7510 = ssub.s32 16, 16
      %7511 = vsyncadd [#allocation5], %s7510
      %s7513 = sshll.u32 [#allocation4], 4
      %s7514 = int_to_ptr.vmem [resolvable:$true] %s7513
      %7516 = dma.vmem_to_hbm [thread:$0]  %s7514, 16, %s13, [#allocation5]
    $region57: #{convlstm_start_forward.1} parent=1 // pred_fallthru
      _
    // Predicated region
    $region58: #{convlstm_start_forward.1} parent=1 // pred_check
      _
    $region59: #{convlstm_start_forward.1} parent=1 // pred_check_branch
      %7518 = sbr.rel (0) target = $region61
    $region60: #{convlstm_start_forward.1} parent=1 // pred_region
      _
    $region61: #{convlstm_start_forward.1} parent=1 // pred_fallthru
      _
    // Predicated region
    $region62: #{convlstm_start_forward.1} parent=1 // pred_check
      _
    $region63: #{convlstm_start_forward.1} parent=1 // pred_check_branch
      %7520 = sbr.rel (0) target = $region65
    $region64: #{convlstm_start_forward.1} parent=1 // pred_region
      _
    $region65: #{convlstm_start_forward.1} parent=1 // pred_fallthru
      _
    // Predicated region
    $region66: #{convlstm_start_forward.1} parent=1 // pred_check
      _
    $region67: #{convlstm_start_forward.1} parent=1 // pred_check_branch
      %7522 = sbr.rel (0) target = $region69
    $region68: #{convlstm_start_forward.1} parent=1 // pred_region
      %7523 = dma.done [#allocation5], 16
    $region69: #{convlstm_start_forward.1} parent=1 // pred_fallthru
      _
    %7524 = vsyncpa [#allocation5], 1

</llo_original>
